<compile_context>
chip_gen: v5e
topology: v5e:2x2
jax: 0.10.0
libtpu: 0.0.40
codegen_flags: <defaults>
</compile_context>

<pallas_src>
import jax
import jax.numpy as jnp
from jax.experimental import pallas as pl
from jax.experimental.pallas import tpu as pltpu


# --------------------------------------------------------------------------------------
# Kernel
# --------------------------------------------------------------------------------------
def _mlp_kernel(x_ref, w1_ref, b1_ref, w2_ref, b2_ref, wf_ref, bf_ref, o_ref):
    # x tile: (blk, pack*E) -> bf16 operands for the MXU, f32 accumulation / bias / relu.
    x = x_ref[...].astype(jnp.bfloat16)
    h = jnp.dot(x, w1_ref[...], preferred_element_type=jnp.float32)
    h = jnp.maximum(h + b1_ref[...], 0.0)
    h = jnp.dot(h.astype(jnp.bfloat16), w2_ref[...], preferred_element_type=jnp.float32)
    h = jnp.maximum(h + b2_ref[...], 0.0)
    o = jnp.dot(h.astype(jnp.bfloat16), wf_ref[...], preferred_element_type=jnp.float32)
    o_ref[...] = (o + bf_ref[...]).astype(o_ref.dtype)   # lane-dense (blk, pack*T)


# --------------------------------------------------------------------------------------
# Hardware-aware sizing helpers
# --------------------------------------------------------------------------------------
def _tpu_generation():
    try:
        kind = jax.devices()[0].device_kind.lower()
    except Exception:
        return None
    for tag, gen in (("v7", 7), ("v6", 6), ("v5", 5), ("v4", 4)):
        if tag in kind:
            return gen
    return None


def _num_tensorcores(gen):
    return 2 if gen == 7 else 1


def _vmem_budget_bytes(gen):
    if gen == 7:
        return 48 * 1024 * 1024          # 64 MiB physical on v7x -> leave headroom
    if gen in (4, 5, 6):
        return 96 * 1024 * 1024          # 128 MiB physical
    return 64 * 1024 * 1024              # unknown backend: conservative


_PACKED_WEIGHT_BYTES_CAP = 4 * 1024 * 1024   # keep kron(I_pack, W) weights modest


def choose_pack(n_rows, embed_size, h1, h2, num_ent_types, gen=None):
    """Row-packing factor.  Output row width = pack*T lanes (==128 when possible).
    Capped so (a) the block-diagonal weights stay under a few MiB, (b) v5e's slow MXU
    isn't swamped by the pack-fold FLOP inflation, (c) pack divides n (no padding)."""
    T = num_ent_types
    if not (0 < T < 128 and 128 % T == 0):
        return 1
    pack = 128 // T
    if gen is not None and gen <= 5:
        pack = min(pack, 8)              # v5e: kron waste flips the kernel MXU-bound
    pack = max(pack, 1)
    while pack > 1:
        wbytes = 2 * pack * pack * (embed_size * h1 + h1 * h2 + h2 * T)
        if n_rows % pack == 0 and wbytes <= _PACKED_WEIGHT_BYTES_CAP:
            return pack
        pack //= 2
    return 1


def pack_decoder_params(params, pack):
    """Build block-diagonal bf16 weights + tiled f32 biases ONCE (hoist out of forward)."""
    w1, b1, w2, b2, wf, bfin = params
    H1, H2, T = w1.shape[1], w2.shape[1], wf.shape[1]
    eye = jnp.eye(pack, dtype=jnp.bfloat16)
    w1p = jnp.kron(eye, w1.astype(jnp.bfloat16))           # (pack*E,  pack*H1)
    w2p = jnp.kron(eye, w2.astype(jnp.bfloat16))           # (pack*H1, pack*H2)
    wfp = jnp.kron(eye, wf.astype(jnp.bfloat16))           # (pack*H2, pack*T)
    b1p = jnp.tile(b1.astype(jnp.float32).reshape(1, H1), (1, pack))
    b2p = jnp.tile(b2.astype(jnp.float32).reshape(1, H2), (1, pack))
    bfp = jnp.tile(bfin.astype(jnp.float32).reshape(1, T), (1, pack))
    return (w1p, b1p, w2p, b2p, wfp, bfp)


def _choose_block(n_pack, pack, E, T, out_itemsize, resident_bytes, gen, tile_rows):
    """Block size in packed rows: as large as the per-generation VMEM budget allows
    (per-step overhead ~0.35us must be amortized), multiple of 8 or full extent."""
    budget = _vmem_budget_bytes(gen)
    # per packed row of pipeline buffers: double-buffered f32 x tile + double-buffered out.
    row_bytes = 2 * pack * E * 4 + 2 * pack * T * out_itemsize
    avail = budget - resident_bytes - (2 << 20)            # 2 MiB slack
    vmem_rows = max(int(avail // max(row_bytes, 1)), 8)
    cap = max(tile_rows // pack, 8)
    max_blk = max(min(cap, vmem_rows), 8)

    cores = _num_tensorcores(gen)
    if n_pack <= max_blk:
        if cores > 1 and n_pack >= 32:
            # v7x megacore: >= 2 blocks per core so each core keeps double-buffering.
            blk = ((pl.cdiv(n_pack, 2 * cores) + 7) // 8) * 8
            if blk < n_pack:
                return blk
        return n_pack                    # single full-extent block (always layout-legal)
    return (max_blk // 8) * 8            # ragged boundary handled by cdiv grid (masked)


# --------------------------------------------------------------------------------------
# Forward
# --------------------------------------------------------------------------------------
_SINGLE_BUFFER_WEIGHTS_OK = None   # feature-detect pl.Buffered(1) once per process


def network_decoder_forward(embeds, mask, params, *, packed_params=None, tile_rows=16384):
    """embeds: [B, S, C, E]; mask: [B, S, 1] (unused, matching the torch forward).
    Returns [B, S, C, T] in embeds.dtype."""
    del mask  # not consumed by the PyTorch forward
    w1, b1, w2, b2, wf, bfin = params
    B, S, C, E = embeds.shape
    H1, H2, T = w1.shape[1], w2.shape[1], wf.shape[1]
    n = B * S * C
    gen = _tpu_generation()

    # Row-packing factor; prefer precomputed (hoisted) packed weights when compatible.
    if packed_params is not None:
        pack = packed_params[0].shape[0] // E
        if pack < 1 or n % pack != 0:
            packed_params = None
    if packed_params is None:
        pack = choose_pack(n, E, H1, H2, T, gen)
        packed_params = pack_decoder_params(params, pack)
    w1p, b1p, w2p, b2p, wfp, bfp = packed_params

    n_pack = n // pack
    out_dtype = embeds.dtype
    out_itemsize = jnp.dtype(out_dtype).itemsize

    # Conservative resident-bytes estimate (assume double-buffered weights for sizing).
    wbytes = 2 * (w1p.size + w2p.size + wfp.size) * 2 + 2 * (b1p.size + b2p.size + bfp.size) * 4
    blk = _choose_block(n_pack, pack, E, T, out_itemsize, wbytes, gen, tile_rows)
    grid = (pl.cdiv(n_pack, blk),)       # no padding: boundary block is masked by Pallas

    xp = embeds.reshape(n_pack, pack * E)   # contiguous, zero-copy reshape

    def run(single_buffer_weights):
        def wspec(shape):
            # Resident weights/biases: constant block index -> single-buffer to save VMEM.
            if single_buffer_weights:
                return pl.BlockSpec(shape, lambda i: (0, 0), pipeline_mode=pl.Buffered(1))
            return pl.BlockSpec(shape, lambda i: (0, 0))

        return pl.pallas_call(
            _mlp_kernel,
            out_shape=jax.ShapeDtypeStruct((n_pack, pack * T), out_dtype),
            grid_spec=pltpu.PrefetchScalarGridSpec(
                num_scalar_prefetch=0,
                grid=grid,
                in_specs=[
                    pl.BlockSpec((blk, pack * E), lambda i: (i, 0)),   # x tile (lane-dense)
                    wspec(w1p.shape), wspec(b1p.shape),                # W1 / b1 (resident)
                    wspec(w2p.shape), wspec(b2p.shape),                # W2 / b2
                    wspec(wfp.shape), wspec(bfp.shape),                # Wf / bf
                ],
                out_specs=pl.BlockSpec((blk, pack * T), lambda i: (i, 0)),
            ),
            compiler_params=pltpu.CompilerParams(
                dimension_semantics=("parallel",),
                vmem_limit_bytes=_vmem_budget_bytes(gen),
            ),
        )(xp, w1p, b1p, w2p, b2p, wfp, bfp)

    global _SINGLE_BUFFER_WEIGHTS_OK
    if _SINGLE_BUFFER_WEIGHTS_OK is None:
        try:
            out = run(True)
            _SINGLE_BUFFER_WEIGHTS_OK = True
        except Exception:
            _SINGLE_BUFFER_WEIGHTS_OK = False
            out = run(False)
    else:
        out = run(_SINGLE_BUFFER_WEIGHTS_OK)

    # Contiguous reshape back to logical rows; dtype already matches embeds.
    return out.reshape(B, S, C, T)


# --------------------------------------------------------------------------------------
# Params + references
# --------------------------------------------------------------------------------------
def init_params(key, embed_size, hidden_nodes, num_ent_types, init_std=0.02):
    """Synthetic init mirroring NN's __init__: w ~ normal(std=init_std),
    hidden b = init_std, final b = 0."""
    h1, h2 = hidden_nodes
    k1, k2, k3 = jax.random.split(key, 3)
    w1 = jax.random.normal(k1, (embed_size, h1), jnp.float32) * init_std
    b1 = jnp.full((1, h1), init_std, jnp.float32)
    w2 = jax.random.normal(k2, (h1, h2), jnp.float32) * init_std
    b2 = jnp.full((1, h2), init_std, jnp.float32)
    wf = jax.random.normal(k3, (h2, num_ent_types), jnp.float32) * init_std
    bf = jnp.zeros((1, num_ent_types), jnp.float32)
    return (w1, b1, w2, b2, wf, bf)


def _reference_bf16(embeds, params):
    """Same precision policy as the kernel: bf16 matmul operands, f32 accumulation."""
    w1, b1, w2, b2, wf, bfin = params
    bf16, f32 = jnp.bfloat16, jnp.float32
    h = jnp.dot(embeds.astype(bf16), w1.astype(bf16), preferred_element_type=f32) + b1[0]
    h = jnp.maximum(h, 0.0)
    h = jnp.dot(h.astype(bf16), w2.astype(bf16), preferred_element_type=f32) + b2[0]
    h = jnp.maximum(h, 0.0)
    return jnp.dot(h.astype(bf16), wf.astype(bf16), preferred_element_type=f32) + bfin[0]


def _reference_f32(embeds, params):
    w1, b1, w2, b2, wf, bfin = params
    h = jnp.maximum(embeds @ w1 + b1[0], 0.0)
    h = jnp.maximum(h @ w2 + b2[0], 0.0)
    return h @ wf + bfin[0]


if __name__ == "__main__":
    # Small shapes consistent with the module's forward contract.
    batch, seq_len, num_cluster_levels, embed_size = 2, 8, 2, 32
    hidden_nodes = [64, 32]          # decoder_hidden_nodes
    num_ent_types = 8
    init_std = 0.02                  # dropout is identity (eval); activation = relu

    key = jax.random.PRNGKey(0)
    k_e, k_p = jax.random.split(key)

    embeds = jax.random.normal(
        k_e, (batch, seq_len, num_cluster_levels, embed_size), jnp.float32)
    mask = jnp.ones((batch, seq_len, 1), jnp.float32)

    params = init_params(k_p, embed_size, hidden_nodes, num_ent_types, init_std)

    # Hoist packed-weight construction out of the forward (done once, reused every call).
    n_rows = batch * seq_len * num_cluster_levels
    gen = _tpu_generation()
    pack = choose_pack(n_rows, embed_size, hidden_nodes[0], hidden_nodes[1],
                       num_ent_types, gen)
    packed = pack_decoder_params(params, pack)

    ents = network_decoder_forward(embeds, mask, params, packed_params=packed)
    ents = jax.block_until_ready(ents)

    assert ents.shape == (batch, seq_len, num_cluster_levels, num_ent_types)
    assert ents.dtype == embeds.dtype

    # Precision-matched reference (bf16 operands, f32 accumulation).
    ref_bf16 = _reference_bf16(embeds, params)
    assert jnp.allclose(ents, ref_bf16, atol=1e-5, rtol=1e-3), "mismatch vs bf16/f32-acc reference"

    # Loose check vs full-f32 reference (bounds the bf16 cast error).
    ref_f32 = _reference_f32(embeds, params)
    assert jnp.allclose(ents, ref_f32, atol=1e-3, rtol=2e-2), "mismatch vs f32 reference"

    print("KERNEL_OK")
</pallas_src>

<mosaic_0001>
module attributes {stable_mosaic.version = 11 : i64} {
  func.func @_mlp_kernel(%arg0: i32, %arg1: memref<2x512xf32, #tpu.memory_space<vmem>>, %arg2: memref<512x1024xbf16, #tpu.memory_space<vmem>>, %arg3: memref<1x1024xf32, #tpu.memory_space<vmem>>, %arg4: memref<1024x512xbf16, #tpu.memory_space<vmem>>, %arg5: memref<1x512xf32, #tpu.memory_space<vmem>>, %arg6: memref<512x128xbf16, #tpu.memory_space<vmem>>, %arg7: memref<1x128xf32, #tpu.memory_space<vmem>>, %arg8: memref<2x128xf32, #tpu.memory_space<vmem>>) attributes {dimension_semantics = [#tpu.dimension_semantics<parallel>], iteration_bounds = array<i64: 1>, scalar_prefetch = 0 : i64, scratch_operands = 0 : i64, tpu.core_type = #tpu.core_type<tc>, window_params = [{transform_indices = @transform_0, window_bounds = array<i64: 2, 512>}, {pipeline_mode = #tpu.pipeline_mode<synchronous>, transform_indices = @transform_1, window_bounds = array<i64: 512, 1024>}, {pipeline_mode = #tpu.pipeline_mode<synchronous>, transform_indices = @transform_2, window_bounds = array<i64: 1, 1024>}, {pipeline_mode = #tpu.pipeline_mode<synchronous>, transform_indices = @transform_3, window_bounds = array<i64: 1024, 512>}, {pipeline_mode = #tpu.pipeline_mode<synchronous>, transform_indices = @transform_4, window_bounds = array<i64: 1, 512>}, {pipeline_mode = #tpu.pipeline_mode<synchronous>, transform_indices = @transform_5, window_bounds = array<i64: 512, 128>}, {pipeline_mode = #tpu.pipeline_mode<synchronous>, transform_indices = @transform_6, window_bounds = array<i64: 1, 128>}, {transform_indices = @transform_7, window_bounds = array<i64: 2, 128>}]} {
    %c0 = arith.constant 0 : index
    %c0_0 = arith.constant 0 : index
    %0 = vector.load %arg1[%c0, %c0_0] : memref<2x512xf32, #tpu.memory_space<vmem>>, vector<2x512xf32>
    %1 = arith.truncf %0 : vector<2x512xf32> to vector<2x512xbf16>
    %c0_1 = arith.constant 0 : index
    %c0_2 = arith.constant 0 : index
    %2 = vector.load %arg2[%c0_1, %c0_2] : memref<512x1024xbf16, #tpu.memory_space<vmem>>, vector<512x1024xbf16>
    %cst = arith.constant dense<0.000000e+00> : vector<2x1024xf32>
    %3 = tpu.matmul %1, %2, %cst {dimension_numbers = #tpu.dot_dimension_numbers<[1], [0], [0], [1], [0, 0, 1, 1], [], []>} : vector<2x512xbf16>, vector<512x1024xbf16>, vector<2x1024xf32> -> vector<2x1024xf32>
    %c0_3 = arith.constant 0 : index
    %c0_4 = arith.constant 0 : index
    %4 = vector.load %arg3[%c0_3, %c0_4] : memref<1x1024xf32, #tpu.memory_space<vmem>>, vector<1x1024xf32>
    %5 = vector.broadcast %4 : vector<1x1024xf32> to vector<2x1024xf32>
    %6 = arith.addf %3, %5 : vector<2x1024xf32>
    %cst_5 = arith.constant 0.000000e+00 : f32
    %7 = vector.broadcast %cst_5 : f32 to vector<2x1024xf32>
    %8 = arith.maximumf %6, %7 : vector<2x1024xf32>
    %9 = arith.truncf %8 : vector<2x1024xf32> to vector<2x1024xbf16>
    %c0_6 = arith.constant 0 : index
    %c0_7 = arith.constant 0 : index
    %10 = vector.load %arg4[%c0_6, %c0_7] : memref<1024x512xbf16, #tpu.memory_space<vmem>>, vector<1024x512xbf16>
    %cst_8 = arith.constant dense<0.000000e+00> : vector<2x512xf32>
    %11 = tpu.matmul %9, %10, %cst_8 {dimension_numbers = #tpu.dot_dimension_numbers<[1], [0], [0], [1], [0, 0, 1, 1], [], []>} : vector<2x1024xbf16>, vector<1024x512xbf16>, vector<2x512xf32> -> vector<2x512xf32>
    %c0_9 = arith.constant 0 : index
    %c0_10 = arith.constant 0 : index
    %12 = vector.load %arg5[%c0_9, %c0_10] : memref<1x512xf32, #tpu.memory_space<vmem>>, vector<1x512xf32>
    %13 = vector.broadcast %12 : vector<1x512xf32> to vector<2x512xf32>
    %14 = arith.addf %11, %13 : vector<2x512xf32>
    %cst_11 = arith.constant 0.000000e+00 : f32
    %15 = vector.broadcast %cst_11 : f32 to vector<2x512xf32>
    %16 = arith.maximumf %14, %15 : vector<2x512xf32>
    %17 = arith.truncf %16 : vector<2x512xf32> to vector<2x512xbf16>
    %c0_12 = arith.constant 0 : index
    %c0_13 = arith.constant 0 : index
    %18 = vector.load %arg6[%c0_12, %c0_13] : memref<512x128xbf16, #tpu.memory_space<vmem>>, vector<512x128xbf16>
    %cst_14 = arith.constant dense<0.000000e+00> : vector<2x128xf32>
    %19 = tpu.matmul %17, %18, %cst_14 {dimension_numbers = #tpu.dot_dimension_numbers<[1], [0], [0], [1], [0, 0, 1, 1], [], []>} : vector<2x512xbf16>, vector<512x128xbf16>, vector<2x128xf32> -> vector<2x128xf32>
    %c0_15 = arith.constant 0 : index
    %c0_16 = arith.constant 0 : index
    %20 = vector.load %arg7[%c0_15, %c0_16] : memref<1x128xf32, #tpu.memory_space<vmem>>, vector<1x128xf32>
    %21 = vector.broadcast %20 : vector<1x128xf32> to vector<2x128xf32>
    %22 = arith.addf %19, %21 : vector<2x128xf32>
    %c0_17 = arith.constant 0 : index
    %c0_18 = arith.constant 0 : index
    %23 = vector.load %arg8[%c0_17, %c0_18] : memref<2x128xf32, #tpu.memory_space<vmem>>, vector<2x128xf32>
    tpu.vector_store %arg8[%c0_17, %c0_18], %22 {strides = array<i32>} : memref<2x128xf32, #tpu.memory_space<vmem>>, vector<2x128xf32>,
    return
  }
  func.func @transform_0(%arg0: i32) -> (i32, i32) {
    %c0_i32 = arith.constant 0 : i32
    %c0_i32_0 = arith.constant 0 : i32
    return %arg0, %c0_i32 : i32, i32
  }
  func.func @transform_1(%arg0: i32) -> (i32, i32) {
    %c0_i32 = arith.constant 0 : i32
    %c0_i32_0 = arith.constant 0 : i32
    %c0_i32_1 = arith.constant 0 : i32
    return %c0_i32, %c0_i32_0 : i32, i32
  }
  func.func @transform_2(%arg0: i32) -> (i32, i32) {
    %c0_i32 = arith.constant 0 : i32
    %c0_i32_0 = arith.constant 0 : i32
    %c0_i32_1 = arith.constant 0 : i32
    return %c0_i32, %c0_i32_0 : i32, i32
  }
  func.func @transform_3(%arg0: i32) -> (i32, i32) {
    %c0_i32 = arith.constant 0 : i32
    %c0_i32_0 = arith.constant 0 : i32
    %c0_i32_1 = arith.constant 0 : i32
    return %c0_i32, %c0_i32_0 : i32, i32
  }
  func.func @transform_4(%arg0: i32) -> (i32, i32) {
    %c0_i32 = arith.constant 0 : i32
    %c0_i32_0 = arith.constant 0 : i32
    %c0_i32_1 = arith.constant 0 : i32
    return %c0_i32, %c0_i32_0 : i32, i32
  }
  func.func @transform_5(%arg0: i32) -> (i32, i32) {
    %c0_i32 = arith.constant 0 : i32
    %c0_i32_0 = arith.constant 0 : i32
    %c0_i32_1 = arith.constant 0 : i32
    return %c0_i32, %c0_i32_0 : i32, i32
  }
  func.func @transform_6(%arg0: i32) -> (i32, i32) {
    %c0_i32 = arith.constant 0 : i32
    %c0_i32_0 = arith.constant 0 : i32
    %c0_i32_1 = arith.constant 0 : i32
    return %c0_i32, %c0_i32_0 : i32, i32
  }
  func.func @transform_7(%arg0: i32) -> (i32, i32) {
    %c0_i32 = arith.constant 0 : i32
    %c0_i32_0 = arith.constant 0 : i32
    return %arg0, %c0_i32 : i32, i32
  }
}

module attributes {stable_mosaic.version = 11 : i64} {
  func.func @_mlp_kernel(%arg0: i32, %arg1: memref<2x512xf32, #tpu.memory_space<vmem>>, %arg2: memref<512x1024xbf16, #tpu.memory_space<vmem>>, %arg3: memref<1x1024xf32, #tpu.memory_space<vmem>>, %arg4: memref<1024x512xbf16, #tpu.memory_space<vmem>>, %arg5: memref<1x512xf32, #tpu.memory_space<vmem>>, %arg6: memref<512x128xbf16, #tpu.memory_space<vmem>>, %arg7: memref<1x128xf32, #tpu.memory_space<vmem>>, %arg8: memref<2x128xf32, #tpu.memory_space<vmem>>) attributes {dimension_semantics = [#tpu.dimension_semantics<parallel>], iteration_bounds = array<i64: 1>, scalar_prefetch = 0 : i64, scratch_operands = 0 : i64, tpu.core_type = #tpu.core_type<tc>, window_params = [{transform_indices = @transform_0, window_bounds = array<i64: 2, 512>}, {pipeline_mode = #tpu.pipeline_mode<synchronous>, transform_indices = @transform_1, window_bounds = array<i64: 512, 1024>}, {pipeline_mode = #tpu.pipeline_mode<synchronous>, transform_indices = @transform_2, window_bounds = array<i64: 1, 1024>}, {pipeline_mode = #tpu.pipeline_mode<synchronous>, transform_indices = @transform_3, window_bounds = array<i64: 1024, 512>}, {pipeline_mode = #tpu.pipeline_mode<synchronous>, transform_indices = @transform_4, window_bounds = array<i64: 1, 512>}, {pipeline_mode = #tpu.pipeline_mode<synchronous>, transform_indices = @transform_5, window_bounds = array<i64: 512, 128>}, {pipeline_mode = #tpu.pipeline_mode<synchronous>, transform_indices = @transform_6, window_bounds = array<i64: 1, 128>}, {transform_indices = @transform_7, window_bounds = array<i64: 2, 128>}]} {
    %c0 = arith.constant 0 : index
    %c0_0 = arith.constant 0 : index
    %0 = vector.load %arg1[%c0, %c0_0] : memref<2x512xf32, #tpu.memory_space<vmem>>, vector<2x512xf32>
    %1 = arith.truncf %0 : vector<2x512xf32> to vector<2x512xbf16>
    %c0_1 = arith.constant 0 : index
    %c0_2 = arith.constant 0 : index
    %2 = vector.load %arg2[%c0_1, %c0_2] : memref<512x1024xbf16, #tpu.memory_space<vmem>>, vector<512x1024xbf16>
    %cst = arith.constant dense<0.000000e+00> : vector<2x1024xf32>
    %3 = tpu.matmul %1, %2, %cst {dimension_numbers = #tpu.dot_dimension_numbers<[1], [0], [0], [1], [0, 0, 1, 1], [], []>} : vector<2x512xbf16>, vector<512x1024xbf16>, vector<2x1024xf32> -> vector<2x1024xf32>
    %c0_3 = arith.constant 0 : index
    %c0_4 = arith.constant 0 : index
    %4 = vector.load %arg3[%c0_3, %c0_4] : memref<1x1024xf32, #tpu.memory_space<vmem>>, vector<1x1024xf32>
    %5 = vector.broadcast %4 : vector<1x1024xf32> to vector<2x1024xf32>
    %6 = arith.addf %3, %5 : vector<2x1024xf32>
    %cst_5 = arith.constant 0.000000e+00 : f32
    %7 = vector.broadcast %cst_5 : f32 to vector<2x1024xf32>
    %8 = arith.maximumf %6, %7 : vector<2x1024xf32>
    %9 = arith.truncf %8 : vector<2x1024xf32> to vector<2x1024xbf16>
    %c0_6 = arith.constant 0 : index
    %c0_7 = arith.constant 0 : index
    %10 = vector.load %arg4[%c0_6, %c0_7] : memref<1024x512xbf16, #tpu.memory_space<vmem>>, vector<1024x512xbf16>
    %cst_8 = arith.constant dense<0.000000e+00> : vector<2x512xf32>
    %11 = tpu.matmul %9, %10, %cst_8 {dimension_numbers = #tpu.dot_dimension_numbers<[1], [0], [0], [1], [0, 0, 1, 1], [], []>} : vector<2x1024xbf16>, vector<1024x512xbf16>, vector<2x512xf32> -> vector<2x512xf32>
    %c0_9 = arith.constant 0 : index
    %c0_10 = arith.constant 0 : index
    %12 = vector.load %arg5[%c0_9, %c0_10] : memref<1x512xf32, #tpu.memory_space<vmem>>, vector<1x512xf32>
    %13 = vector.broadcast %12 : vector<1x512xf32> to vector<2x512xf32>
    %14 = arith.addf %11, %13 : vector<2x512xf32>
    %cst_11 = arith.constant 0.000000e+00 : f32
    %15 = vector.broadcast %cst_11 : f32 to vector<2x512xf32>
    %16 = arith.maximumf %14, %15 : vector<2x512xf32>
    %17 = arith.truncf %16 : vector<2x512xf32> to vector<2x512xbf16>
    %c0_12 = arith.constant 0 : index
    %c0_13 = arith.constant 0 : index
    %18 = vector.load %arg6[%c0_12, %c0_13] : memref<512x128xbf16, #tpu.memory_space<vmem>>, vector<512x128xbf16>
    %cst_14 = arith.constant dense<0.000000e+00> : vector<2x128xf32>
    %19 = tpu.matmul %17, %18, %cst_14 {dimension_numbers = #tpu.dot_dimension_numbers<[1], [0], [0], [1], [0, 0, 1, 1], [], []>} : vector<2x512xbf16>, vector<512x128xbf16>, vector<2x128xf32> -> vector<2x128xf32>
    %c0_15 = arith.constant 0 : index
    %c0_16 = arith.constant 0 : index
    %20 = vector.load %arg7[%c0_15, %c0_16] : memref<1x128xf32, #tpu.memory_space<vmem>>, vector<1x128xf32>
    %21 = vector.broadcast %20 : vector<1x128xf32> to vector<2x128xf32>
    %22 = arith.addf %19, %21 : vector<2x128xf32>
    %c0_17 = arith.constant 0 : index
    %c0_18 = arith.constant 0 : index
    %23 = vector.load %arg8[%c0_17, %c0_18] : memref<2x128xf32, #tpu.memory_space<vmem>>, vector<2x128xf32>
    tpu.vector_store %arg8[%c0_17, %c0_18], %22 {strides = array<i32>} : memref<2x128xf32, #tpu.memory_space<vmem>>, vector<2x128xf32>,
    return
  }
  func.func @transform_0(%arg0: i32) -> (i32, i32) {
    %c0_i32 = arith.constant 0 : i32
    %c0_i32_0 = arith.constant 0 : i32
    return %arg0, %c0_i32 : i32, i32
  }
  func.func @transform_1(%arg0: i32) -> (i32, i32) {
    %c0_i32 = arith.constant 0 : i32
    %c0_i32_0 = arith.constant 0 : i32
    %c0_i32_1 = arith.constant 0 : i32
    return %c0_i32, %c0_i32_0 : i32, i32
  }
  func.func @transform_2(%arg0: i32) -> (i32, i32) {
    %c0_i32 = arith.constant 0 : i32
    %c0_i32_0 = arith.constant 0 : i32
    %c0_i32_1 = arith.constant 0 : i32
    return %c0_i32, %c0_i32_0 : i32, i32
  }
  func.func @transform_3(%arg0: i32) -> (i32, i32) {
    %c0_i32 = arith.constant 0 : i32
    %c0_i32_0 = arith.constant 0 : i32
    %c0_i32_1 = arith.constant 0 : i32
    return %c0_i32, %c0_i32_0 : i32, i32
  }
  func.func @transform_4(%arg0: i32) -> (i32, i32) {
    %c0_i32 = arith.constant 0 : i32
    %c0_i32_0 = arith.constant 0 : i32
    %c0_i32_1 = arith.constant 0 : i32
    return %c0_i32, %c0_i32_0 : i32, i32
  }
  func.func @transform_5(%arg0: i32) -> (i32, i32) {
    %c0_i32 = arith.constant 0 : i32
    %c0_i32_0 = arith.constant 0 : i32
    %c0_i32_1 = arith.constant 0 : i32
    return %c0_i32, %c0_i32_0 : i32, i32
  }
  func.func @transform_6(%arg0: i32) -> (i32, i32) {
    %c0_i32 = arith.constant 0 : i32
    %c0_i32_0 = arith.constant 0 : i32
    %c0_i32_1 = arith.constant 0 : i32
    return %c0_i32, %c0_i32_0 : i32, i32
  }
  func.func @transform_7(%arg0: i32) -> (i32, i32) {
    %c0_i32 = arith.constant 0 : i32
    %c0_i32_0 = arith.constant 0 : i32
    return %arg0, %c0_i32 : i32, i32
  }
}

</mosaic_0001>

<llo_original>
// kernel: tpu_custom_call.1
$region0: #{tpu_custom_call.1}
  #allocation0 [shape = 'u32[]', space=smem, size = 0x4, offset = 0x4, fixed_abs, tag = 'smem constant byte address 0x4 - core index']
  #allocation1 [shape = 'u32[72,128]{1,0:T(1,128)}', space=vmem, size = 0x9000, scoped, tag = 'internal scratch']
  %s0 = inlined_call_operand.hbm [shape: f32[2,512], index: 0, kind: input, shape index: {}]
  %s1 = inlined_call_operand.hbm [shape: bf16[512,1024], index: 1, kind: input, shape index: {}]
  %s2 = inlined_call_operand.hbm [shape: f32[1,1024], index: 2, kind: input, shape index: {}]
  %s3 = inlined_call_operand.hbm [shape: bf16[1024,512], index: 3, kind: input, shape index: {}]
  %s4 = inlined_call_operand.hbm [shape: f32[1,512], index: 4, kind: input, shape index: {}]
  %s5 = inlined_call_operand.hbm [shape: bf16[512,128], index: 5, kind: input, shape index: {}]
  %s6 = inlined_call_operand.vmem [shape: f32[1,128], index: 6, kind: input, shape index: {}]
  %s7 = inlined_call_operand.hbm [shape: f32[2,128], index: 7, kind: output, shape index: {}]
  %s8 = sld [smem:[#allocation0]]
  $region62: #{tpu_custom_call.1} parent=0
    _
  %s10 = ssub.s32 1, %s8
  %s11 = scalar_select 0, %s10, %s8
  $region1: #{tpu_custom_call.1} parent=0
    #allocation2 [shape = 'u8[4096]{0}', space=vmem, size = 0x1000, scoped, tag = 'input window, operand 0, single buffered']
    #allocation3 [shape = 's32[1]{0}', space=sflag, size = 0x4, scoped, tag = 'scoped memory for tpu_custom_call.1']
    #allocation4 [shape = 's32[1]{0}', space=sflag, size = 0x4, scoped, tag = 'scoped memory for tpu_custom_call.1']
    #allocation5 [shape = 'u8[1048576]{0}', space=vmem, size = 0x100000, scoped, tag = 'input window, operand 1, single buffered']
    #allocation6 [shape = 's32[1]{0}', space=sflag, size = 0x4, scoped, tag = 'scoped memory for tpu_custom_call.1']
    #allocation7 [shape = 'u8[4096]{0}', space=vmem, size = 0x1000, scoped, tag = 'input window, operand 2, single buffered']
    #allocation8 [shape = 'u8[1048576]{0}', space=vmem, size = 0x100000, scoped, tag = 'input window, operand 3, single buffered']
    #allocation9 [shape = 's32[1]{0}', space=sflag, size = 0x4, scoped, tag = 'scoped memory for tpu_custom_call.1']
    #allocation10 [shape = 'u8[2048]{0}', space=vmem, size = 0x800, scoped, tag = 'input window, operand 4, single buffered']
    #allocation11 [shape = 'u8[131072]{0}', space=vmem, size = 0x20000, scoped, tag = 'input window, operand 5, single buffered']
    #allocation12 [shape = 's32[1]{0}', space=sflag, size = 0x4, scoped, tag = 'scoped memory for tpu_custom_call.1']
    #allocation13 [shape = 'u8[1024]{0}', space=vmem, size = 0x400, scoped, tag = 'output window, operand 0, single buffered']
    %12 = vsyncpa [#allocation3], 0
    %13 = vsyncpa [#allocation6], 0
    %14 = vsyncpa [#allocation9], 0
    %15 = vsyncpa [#allocation12], 0
    %16 = vsyncpa [#allocation4], 0
    // Predicated region
    $region2: #{tpu_custom_call.1} parent=1 // pred_check
      _
    $region3: #{tpu_custom_call.1} parent=1 // pred_check_branch
      %18 = sbr.rel (0) target = $region5
    $region4: #{tpu_custom_call.1} parent=1 // pred_region
      %20 = vsyncadd [#allocation3], 0
      %s22 = sshll.u32 %s0, 4
      %s23 = int_to_ptr.hbm [resolvable:$true] %s22
      %s24 = sshll.u32 [#allocation2], 4
      %s25 = int_to_ptr.vmem [resolvable:$true] %s24
      %27 = dma.hbm_to_vmem [thread:$0]  %s23, 128, %s25, [#allocation3]
    $region5: #{tpu_custom_call.1} parent=1 // pred_fallthru
      _
    // Predicated region
    $region6: #{tpu_custom_call.1} parent=1 // pred_check
      _
    $region7: #{tpu_custom_call.1} parent=1 // pred_check_branch
      %29 = sbr.rel (0) target = $region9
    $region8: #{tpu_custom_call.1} parent=1 // pred_region
      %31 = vsyncadd [#allocation6], 0
      %s32 = sshll.u32 %s1, 4
      %s33 = int_to_ptr.hbm [resolvable:$true] %s32
      %s34 = sshll.u32 [#allocation5], 4
      %s35 = int_to_ptr.vmem [resolvable:$true] %s34
      %40 = dma.hbm_to_vmem [thread:$0]  %s33, 32768, %s35, [#allocation6], 512, 512, 32
    $region9: #{tpu_custom_call.1} parent=1 // pred_fallthru
      _
    // Predicated region
    $region10: #{tpu_custom_call.1} parent=1 // pred_check
      _
    $region11: #{tpu_custom_call.1} parent=1 // pred_check_branch
      %42 = sbr.rel (0) target = $region13
    $region12: #{tpu_custom_call.1} parent=1 // pred_region
      %44 = vsyncadd [#allocation6], 0
      %s46 = sshll.u32 %s2, 4
      %s47 = int_to_ptr.hbm [resolvable:$true] %s46
      %s48 = sshll.u32 [#allocation7], 4
      %s49 = int_to_ptr.vmem [resolvable:$true] %s48
      %51 = dma.hbm_to_vmem [thread:$0]  %s47, 128, %s49, [#allocation6]
    $region13: #{tpu_custom_call.1} parent=1 // pred_fallthru
      _
    // Predicated region
    $region14: #{tpu_custom_call.1} parent=1 // pred_check
      _
    $region15: #{tpu_custom_call.1} parent=1 // pred_check_branch
      %53 = sbr.rel (0) target = $region17
    $region16: #{tpu_custom_call.1} parent=1 // pred_region
      %55 = vsyncadd [#allocation9], 0
      %s56 = sshll.u32 %s3, 4
      %s57 = int_to_ptr.hbm [resolvable:$true] %s56
      %s58 = sshll.u32 [#allocation8], 4
      %s59 = int_to_ptr.vmem [resolvable:$true] %s58
      %64 = dma.hbm_to_vmem [thread:$0]  %s57, 32768, %s59, [#allocation9], 256, 256, 16
    $region17: #{tpu_custom_call.1} parent=1 // pred_fallthru
      _
    // Predicated region
    $region18: #{tpu_custom_call.1} parent=1 // pred_check
      _
    $region19: #{tpu_custom_call.1} parent=1 // pred_check_branch
      %66 = sbr.rel (0) target = $region21
    $region20: #{tpu_custom_call.1} parent=1 // pred_region
      %68 = vsyncadd [#allocation9], 0
      %s70 = sshll.u32 %s4, 4
      %s71 = int_to_ptr.hbm [resolvable:$true] %s70
      %s72 = sshll.u32 [#allocation10], 4
      %s73 = int_to_ptr.vmem [resolvable:$true] %s72
      %75 = dma.hbm_to_vmem [thread:$0]  %s71, 64, %s73, [#allocation9]
    $region21: #{tpu_custom_call.1} parent=1 // pred_fallthru
      _
    // Predicated region
    $region22: #{tpu_custom_call.1} parent=1 // pred_check
      _
    $region23: #{tpu_custom_call.1} parent=1 // pred_check_branch
      %77 = sbr.rel (0) target = $region25
    $region24: #{tpu_custom_call.1} parent=1 // pred_region
      %79 = vsyncadd [#allocation12], 0
      %s80 = sshll.u32 %s5, 4
      %s81 = int_to_ptr.hbm [resolvable:$true] %s80
      %s82 = sshll.u32 [#allocation11], 4
      %s83 = int_to_ptr.vmem [resolvable:$true] %s82
      %88 = dma.hbm_to_vmem [thread:$0]  %s81, 4096, %s83, [#allocation12], 64, 64, 4
    $region25: #{tpu_custom_call.1} parent=1 // pred_fallthru
      _
    // Predicated region
    $region26: #{tpu_custom_call.1} parent=1 // pred_check
      _
    $region27: #{tpu_custom_call.1} parent=1 // pred_check_branch
      %90 = sbr.rel (0) target = $region29
    $region28: #{tpu_custom_call.1} parent=1 // pred_region
      _
    $region29: #{tpu_custom_call.1} parent=1 // pred_fallthru
      _
    // Predicated region
    $region30: #{tpu_custom_call.1} parent=1 // pred_check
      _
    $region31: #{tpu_custom_call.1} parent=1 // pred_check_branch
      %92 = sbr.rel (0) target = $region33
    $region32: #{tpu_custom_call.1} parent=1 // pred_region
      %94 = dma.done [#allocation3], 128
    $region33: #{tpu_custom_call.1} parent=1 // pred_fallthru
      _
    // Predicated region
    $region34: #{tpu_custom_call.1} parent=1 // pred_check
      _
    $region35: #{tpu_custom_call.1} parent=1 // pred_check_branch
      %96 = sbr.rel (0) target = $region37
    $region36: #{tpu_custom_call.1} parent=1 // pred_region
      %98 = dma.done [#allocation6], 32768
    $region37: #{tpu_custom_call.1} parent=1 // pred_fallthru
      _
    // Predicated region
    $region38: #{tpu_custom_call.1} parent=1 // pred_check
      _
    $region39: #{tpu_custom_call.1} parent=1 // pred_check_branch
      %100 = sbr.rel (0) target = $region41
    $region40: #{tpu_custom_call.1} parent=1 // pred_region
      %102 = dma.done [#allocation6], 128
    $region41: #{tpu_custom_call.1} parent=1 // pred_fallthru
      _
    // Predicated region
    $region42: #{tpu_custom_call.1} parent=1 // pred_check
      _
    $region43: #{tpu_custom_call.1} parent=1 // pred_check_branch
      %104 = sbr.rel (0) target = $region45
    $region44: #{tpu_custom_call.1} parent=1 // pred_region
      %106 = dma.done [#allocation9], 32768
    $region45: #{tpu_custom_call.1} parent=1 // pred_fallthru
      _
    // Predicated region
    $region46: #{tpu_custom_call.1} parent=1 // pred_check
      _
    $region47: #{tpu_custom_call.1} parent=1 // pred_check_branch
      %108 = sbr.rel (0) target = $region49
    $region48: #{tpu_custom_call.1} parent=1 // pred_region
      %110 = dma.done [#allocation9], 64
    $region49: #{tpu_custom_call.1} parent=1 // pred_fallthru
      _
    // Predicated region
    $region50: #{tpu_custom_call.1} parent=1 // pred_check
      _
    $region51: #{tpu_custom_call.1} parent=1 // pred_check_branch
      %112 = sbr.rel (0) target = $region53
    $region52: #{tpu_custom_call.1} parent=1 // pred_region
      %114 = dma.done [#allocation12], 4096
    $region53: #{tpu_custom_call.1} parent=1 // pred_fallthru
      _
    %v115 = vld [vmem:[#allocation2] sm:$0xff]
    %117 = vst [vmem:[#allocation1] ss:$4 sm:$0xff] %v115
    %v118 = vld.sshfl [vmem:[#allocation1] sm:$0xff pattern:$0x73625140]
    %v119 = vld.sshfl [vmem:[#allocation1 + $0x8] sm:$0xff pattern:$0x73625140]
    %v120 = vld.sshfl [vmem:[#allocation1 + $0x10] sm:$0xff pattern:$0x73625140]
    %v121 = vld.sshfl [vmem:[#allocation1 + $0x18] sm:$0xff pattern:$0x73625140]
    %v126 = vpack.c.bf16 %v118, %v118
    %v127 = vpack.c.bf16 %v119, %v119
    %v128 = vpack.c.bf16 %v120, %v120
    %v129 = vpack.c.bf16 %v121, %v121
    %v130 = vld [vmem:[#allocation5] sm:$0xff]
    %v131 = vld [vmem:[#allocation5 + $0x8] sm:$0xff]
    %v132 = vld [vmem:[#allocation5 + $0x10] sm:$0xff]
    %v133 = vld [vmem:[#allocation5 + $0x18] sm:$0xff]
    %v134 = vld [vmem:[#allocation5 + $0x20] sm:$0xff]
    %v135 = vld [vmem:[#allocation5 + $0x28] sm:$0xff]
    %v136 = vld [vmem:[#allocation5 + $0x30] sm:$0xff]
    %v137 = vld [vmem:[#allocation5 + $0x38] sm:$0xff]
    %v138 = vld [vmem:[#allocation5 + $0x40] sm:$0xff]
    %v139 = vld [vmem:[#allocation5 + $0x48] sm:$0xff]
    %v140 = vld [vmem:[#allocation5 + $0x50] sm:$0xff]
    %v141 = vld [vmem:[#allocation5 + $0x58] sm:$0xff]
    %v142 = vld [vmem:[#allocation5 + $0x60] sm:$0xff]
    %v143 = vld [vmem:[#allocation5 + $0x68] sm:$0xff]
    %v144 = vld [vmem:[#allocation5 + $0x70] sm:$0xff]
    %v145 = vld [vmem:[#allocation5 + $0x78] sm:$0xff]
    %v146 = vld [vmem:[#allocation5 + $0x80] sm:$0xff]
    %v147 = vld [vmem:[#allocation5 + $0x88] sm:$0xff]
    %v148 = vld [vmem:[#allocation5 + $0x90] sm:$0xff]
    %v149 = vld [vmem:[#allocation5 + $0x98] sm:$0xff]
    %v150 = vld [vmem:[#allocation5 + $0xa0] sm:$0xff]
    %v151 = vld [vmem:[#allocation5 + $0xa8] sm:$0xff]
    %v152 = vld [vmem:[#allocation5 + $0xb0] sm:$0xff]
    %v153 = vld [vmem:[#allocation5 + $0xb8] sm:$0xff]
    %v154 = vld [vmem:[#allocation5 + $0xc0] sm:$0xff]
    %v155 = vld [vmem:[#allocation5 + $0xc8] sm:$0xff]
    %v156 = vld [vmem:[#allocation5 + $0xd0] sm:$0xff]
    %v157 = vld [vmem:[#allocation5 + $0xd8] sm:$0xff]
    %v158 = vld [vmem:[#allocation5 + $0xe0] sm:$0xff]
    %v159 = vld [vmem:[#allocation5 + $0xe8] sm:$0xff]
    %v160 = vld [vmem:[#allocation5 + $0xf0] sm:$0xff]
    %v161 = vld [vmem:[#allocation5 + $0xf8] sm:$0xff]
    %v162 = vld [vmem:[#allocation5 + $0x100] sm:$0xff]
    %v163 = vld [vmem:[#allocation5 + $0x108] sm:$0xff]
    %v164 = vld [vmem:[#allocation5 + $0x110] sm:$0xff]
    %v165 = vld [vmem:[#allocation5 + $0x118] sm:$0xff]
    %v166 = vld [vmem:[#allocation5 + $0x120] sm:$0xff]
    %v167 = vld [vmem:[#allocation5 + $0x128] sm:$0xff]
    %v168 = vld [vmem:[#allocation5 + $0x130] sm:$0xff]
    %v169 = vld [vmem:[#allocation5 + $0x138] sm:$0xff]
    %v170 = vld [vmem:[#allocation5 + $0x140] sm:$0xff]
    %v171 = vld [vmem:[#allocation5 + $0x148] sm:$0xff]
    %v172 = vld [vmem:[#allocation5 + $0x150] sm:$0xff]
    %v173 = vld [vmem:[#allocation5 + $0x158] sm:$0xff]
    %v174 = vld [vmem:[#allocation5 + $0x160] sm:$0xff]
    %v175 = vld [vmem:[#allocation5 + $0x168] sm:$0xff]
    %v176 = vld [vmem:[#allocation5 + $0x170] sm:$0xff]
    %v177 = vld [vmem:[#allocation5 + $0x178] sm:$0xff]
    %v178 = vld [vmem:[#allocation5 + $0x180] sm:$0xff]
    %v179 = vld [vmem:[#allocation5 + $0x188] sm:$0xff]
    %v180 = vld [vmem:[#allocation5 + $0x190] sm:$0xff]
    %v181 = vld [vmem:[#allocation5 + $0x198] sm:$0xff]
    %v182 = vld [vmem:[#allocation5 + $0x1a0] sm:$0xff]
    %v183 = vld [vmem:[#allocation5 + $0x1a8] sm:$0xff]
    %v184 = vld [vmem:[#allocation5 + $0x1b0] sm:$0xff]
    %v185 = vld [vmem:[#allocation5 + $0x1b8] sm:$0xff]
    %v186 = vld [vmem:[#allocation5 + $0x1c0] sm:$0xff]
    %v187 = vld [vmem:[#allocation5 + $0x1c8] sm:$0xff]
    %v188 = vld [vmem:[#allocation5 + $0x1d0] sm:$0xff]
    %v189 = vld [vmem:[#allocation5 + $0x1d8] sm:$0xff]
    %v190 = vld [vmem:[#allocation5 + $0x1e0] sm:$0xff]
    %v191 = vld [vmem:[#allocation5 + $0x1e8] sm:$0xff]
    %v192 = vld [vmem:[#allocation5 + $0x1f0] sm:$0xff]
    %v193 = vld [vmem:[#allocation5 + $0x1f8] sm:$0xff]
    %v194 = vld [vmem:[#allocation5 + $0x200] sm:$0xff]
    %v195 = vld [vmem:[#allocation5 + $0x208] sm:$0xff]
    %v196 = vld [vmem:[#allocation5 + $0x210] sm:$0xff]
    %v197 = vld [vmem:[#allocation5 + $0x218] sm:$0xff]
    %v198 = vld [vmem:[#allocation5 + $0x220] sm:$0xff]
    %v199 = vld [vmem:[#allocation5 + $0x228] sm:$0xff]
    %v200 = vld [vmem:[#allocation5 + $0x230] sm:$0xff]
    %v201 = vld [vmem:[#allocation5 + $0x238] sm:$0xff]
    %v202 = vld [vmem:[#allocation5 + $0x240] sm:$0xff]
    %v203 = vld [vmem:[#allocation5 + $0x248] sm:$0xff]
    %v204 = vld [vmem:[#allocation5 + $0x250] sm:$0xff]
    %v205 = vld [vmem:[#allocation5 + $0x258] sm:$0xff]
    %v206 = vld [vmem:[#allocation5 + $0x260] sm:$0xff]
    %v207 = vld [vmem:[#allocation5 + $0x268] sm:$0xff]
    %v208 = vld [vmem:[#allocation5 + $0x270] sm:$0xff]
    %v209 = vld [vmem:[#allocation5 + $0x278] sm:$0xff]
    %v210 = vld [vmem:[#allocation5 + $0x280] sm:$0xff]
    %v211 = vld [vmem:[#allocation5 + $0x288] sm:$0xff]
    %v212 = vld [vmem:[#allocation5 + $0x290] sm:$0xff]
    %v213 = vld [vmem:[#allocation5 + $0x298] sm:$0xff]
    %v214 = vld [vmem:[#allocation5 + $0x2a0] sm:$0xff]
    %v215 = vld [vmem:[#allocation5 + $0x2a8] sm:$0xff]
    %v216 = vld [vmem:[#allocation5 + $0x2b0] sm:$0xff]
    %v217 = vld [vmem:[#allocation5 + $0x2b8] sm:$0xff]
    %v218 = vld [vmem:[#allocation5 + $0x2c0] sm:$0xff]
    %v219 = vld [vmem:[#allocation5 + $0x2c8] sm:$0xff]
    %v220 = vld [vmem:[#allocation5 + $0x2d0] sm:$0xff]
    %v221 = vld [vmem:[#allocation5 + $0x2d8] sm:$0xff]
    %v222 = vld [vmem:[#allocation5 + $0x2e0] sm:$0xff]
    %v223 = vld [vmem:[#allocation5 + $0x2e8] sm:$0xff]
    %v224 = vld [vmem:[#allocation5 + $0x2f0] sm:$0xff]
    %v225 = vld [vmem:[#allocation5 + $0x2f8] sm:$0xff]
    %v226 = vld [vmem:[#allocation5 + $0x300] sm:$0xff]
    %v227 = vld [vmem:[#allocation5 + $0x308] sm:$0xff]
    %v228 = vld [vmem:[#allocation5 + $0x310] sm:$0xff]
    %v229 = vld [vmem:[#allocation5 + $0x318] sm:$0xff]
    %v230 = vld [vmem:[#allocation5 + $0x320] sm:$0xff]
    %v231 = vld [vmem:[#allocation5 + $0x328] sm:$0xff]
    %v232 = vld [vmem:[#allocation5 + $0x330] sm:$0xff]
    %v233 = vld [vmem:[#allocation5 + $0x338] sm:$0xff]
    %v234 = vld [vmem:[#allocation5 + $0x340] sm:$0xff]
    %v235 = vld [vmem:[#allocation5 + $0x348] sm:$0xff]
    %v236 = vld [vmem:[#allocation5 + $0x350] sm:$0xff]
    %v237 = vld [vmem:[#allocation5 + $0x358] sm:$0xff]
    %v238 = vld [vmem:[#allocation5 + $0x360] sm:$0xff]
    %v239 = vld [vmem:[#allocation5 + $0x368] sm:$0xff]
    %v240 = vld [vmem:[#allocation5 + $0x370] sm:$0xff]
    %v241 = vld [vmem:[#allocation5 + $0x378] sm:$0xff]
    %v242 = vld [vmem:[#allocation5 + $0x380] sm:$0xff]
    %v243 = vld [vmem:[#allocation5 + $0x388] sm:$0xff]
    %v244 = vld [vmem:[#allocation5 + $0x390] sm:$0xff]
    %v245 = vld [vmem:[#allocation5 + $0x398] sm:$0xff]
    %v246 = vld [vmem:[#allocation5 + $0x3a0] sm:$0xff]
    %v247 = vld [vmem:[#allocation5 + $0x3a8] sm:$0xff]
    %v248 = vld [vmem:[#allocation5 + $0x3b0] sm:$0xff]
    %v249 = vld [vmem:[#allocation5 + $0x3b8] sm:$0xff]
    %v250 = vld [vmem:[#allocation5 + $0x3c0] sm:$0xff]
    %v251 = vld [vmem:[#allocation5 + $0x3c8] sm:$0xff]
    %v252 = vld [vmem:[#allocation5 + $0x3d0] sm:$0xff]
    %v253 = vld [vmem:[#allocation5 + $0x3d8] sm:$0xff]
    %v254 = vld [vmem:[#allocation5 + $0x3e0] sm:$0xff]
    %v255 = vld [vmem:[#allocation5 + $0x3e8] sm:$0xff]
    %v256 = vld [vmem:[#allocation5 + $0x3f0] sm:$0xff]
    %v257 = vld [vmem:[#allocation5 + $0x3f8] sm:$0xff]
    %v258 = vld [vmem:[#allocation5 + $0x400] sm:$0xff]
    %v259 = vld [vmem:[#allocation5 + $0x408] sm:$0xff]
    %v260 = vld [vmem:[#allocation5 + $0x410] sm:$0xff]
    %v261 = vld [vmem:[#allocation5 + $0x418] sm:$0xff]
    %v262 = vld [vmem:[#allocation5 + $0x420] sm:$0xff]
    %v263 = vld [vmem:[#allocation5 + $0x428] sm:$0xff]
    %v264 = vld [vmem:[#allocation5 + $0x430] sm:$0xff]
    %v265 = vld [vmem:[#allocation5 + $0x438] sm:$0xff]
    %v266 = vld [vmem:[#allocation5 + $0x440] sm:$0xff]
    %v267 = vld [vmem:[#allocation5 + $0x448] sm:$0xff]
    %v268 = vld [vmem:[#allocation5 + $0x450] sm:$0xff]
    %v269 = vld [vmem:[#allocation5 + $0x458] sm:$0xff]
    %v270 = vld [vmem:[#allocation5 + $0x460] sm:$0xff]
    %v271 = vld [vmem:[#allocation5 + $0x468] sm:$0xff]
    %v272 = vld [vmem:[#allocation5 + $0x470] sm:$0xff]
    %v273 = vld [vmem:[#allocation5 + $0x478] sm:$0xff]
    %v274 = vld [vmem:[#allocation5 + $0x480] sm:$0xff]
    %v275 = vld [vmem:[#allocation5 + $0x488] sm:$0xff]
    %v276 = vld [vmem:[#allocation5 + $0x490] sm:$0xff]
    %v277 = vld [vmem:[#allocation5 + $0x498] sm:$0xff]
    %v278 = vld [vmem:[#allocation5 + $0x4a0] sm:$0xff]
    %v279 = vld [vmem:[#allocation5 + $0x4a8] sm:$0xff]
    %v280 = vld [vmem:[#allocation5 + $0x4b0] sm:$0xff]
    %v281 = vld [vmem:[#allocation5 + $0x4b8] sm:$0xff]
    %v282 = vld [vmem:[#allocation5 + $0x4c0] sm:$0xff]
    %v283 = vld [vmem:[#allocation5 + $0x4c8] sm:$0xff]
    %v284 = vld [vmem:[#allocation5 + $0x4d0] sm:$0xff]
    %v285 = vld [vmem:[#allocation5 + $0x4d8] sm:$0xff]
    %v286 = vld [vmem:[#allocation5 + $0x4e0] sm:$0xff]
    %v287 = vld [vmem:[#allocation5 + $0x4e8] sm:$0xff]
    %v288 = vld [vmem:[#allocation5 + $0x4f0] sm:$0xff]
    %v289 = vld [vmem:[#allocation5 + $0x4f8] sm:$0xff]
    %v290 = vld [vmem:[#allocation5 + $0x500] sm:$0xff]
    %v291 = vld [vmem:[#allocation5 + $0x508] sm:$0xff]
    %v292 = vld [vmem:[#allocation5 + $0x510] sm:$0xff]
    %v293 = vld [vmem:[#allocation5 + $0x518] sm:$0xff]
    %v294 = vld [vmem:[#allocation5 + $0x520] sm:$0xff]
    %v295 = vld [vmem:[#allocation5 + $0x528] sm:$0xff]
    %v296 = vld [vmem:[#allocation5 + $0x530] sm:$0xff]
    %v297 = vld [vmem:[#allocation5 + $0x538] sm:$0xff]
    %v298 = vld [vmem:[#allocation5 + $0x540] sm:$0xff]
    %v299 = vld [vmem:[#allocation5 + $0x548] sm:$0xff]
    %v300 = vld [vmem:[#allocation5 + $0x550] sm:$0xff]
    %v301 = vld [vmem:[#allocation5 + $0x558] sm:$0xff]
    %v302 = vld [vmem:[#allocation5 + $0x560] sm:$0xff]
    %v303 = vld [vmem:[#allocation5 + $0x568] sm:$0xff]
    %v304 = vld [vmem:[#allocation5 + $0x570] sm:$0xff]
    %v305 = vld [vmem:[#allocation5 + $0x578] sm:$0xff]
    %v306 = vld [vmem:[#allocation5 + $0x580] sm:$0xff]
    %v307 = vld [vmem:[#allocation5 + $0x588] sm:$0xff]
    %v308 = vld [vmem:[#allocation5 + $0x590] sm:$0xff]
    %v309 = vld [vmem:[#allocation5 + $0x598] sm:$0xff]
    %v310 = vld [vmem:[#allocation5 + $0x5a0] sm:$0xff]
    %v311 = vld [vmem:[#allocation5 + $0x5a8] sm:$0xff]
    %v312 = vld [vmem:[#allocation5 + $0x5b0] sm:$0xff]
    %v313 = vld [vmem:[#allocation5 + $0x5b8] sm:$0xff]
    %v314 = vld [vmem:[#allocation5 + $0x5c0] sm:$0xff]
    %v315 = vld [vmem:[#allocation5 + $0x5c8] sm:$0xff]
    %v316 = vld [vmem:[#allocation5 + $0x5d0] sm:$0xff]
    %v317 = vld [vmem:[#allocation5 + $0x5d8] sm:$0xff]
    %v318 = vld [vmem:[#allocation5 + $0x5e0] sm:$0xff]
    %v319 = vld [vmem:[#allocation5 + $0x5e8] sm:$0xff]
    %v320 = vld [vmem:[#allocation5 + $0x5f0] sm:$0xff]
    %v321 = vld [vmem:[#allocation5 + $0x5f8] sm:$0xff]
    %v322 = vld [vmem:[#allocation5 + $0x600] sm:$0xff]
    %v323 = vld [vmem:[#allocation5 + $0x608] sm:$0xff]
    %v324 = vld [vmem:[#allocation5 + $0x610] sm:$0xff]
    %v325 = vld [vmem:[#allocation5 + $0x618] sm:$0xff]
    %v326 = vld [vmem:[#allocation5 + $0x620] sm:$0xff]
    %v327 = vld [vmem:[#allocation5 + $0x628] sm:$0xff]
    %v328 = vld [vmem:[#allocation5 + $0x630] sm:$0xff]
    %v329 = vld [vmem:[#allocation5 + $0x638] sm:$0xff]
    %v330 = vld [vmem:[#allocation5 + $0x640] sm:$0xff]
    %v331 = vld [vmem:[#allocation5 + $0x648] sm:$0xff]
    %v332 = vld [vmem:[#allocation5 + $0x650] sm:$0xff]
    %v333 = vld [vmem:[#allocation5 + $0x658] sm:$0xff]
    %v334 = vld [vmem:[#allocation5 + $0x660] sm:$0xff]
    %v335 = vld [vmem:[#allocation5 + $0x668] sm:$0xff]
    %v336 = vld [vmem:[#allocation5 + $0x670] sm:$0xff]
    %v337 = vld [vmem:[#allocation5 + $0x678] sm:$0xff]
    %v338 = vld [vmem:[#allocation5 + $0x680] sm:$0xff]
    %v339 = vld [vmem:[#allocation5 + $0x688] sm:$0xff]
    %v340 = vld [vmem:[#allocation5 + $0x690] sm:$0xff]
    %v341 = vld [vmem:[#allocation5 + $0x698] sm:$0xff]
    %v342 = vld [vmem:[#allocation5 + $0x6a0] sm:$0xff]
    %v343 = vld [vmem:[#allocation5 + $0x6a8] sm:$0xff]
    %v344 = vld [vmem:[#allocation5 + $0x6b0] sm:$0xff]
    %v345 = vld [vmem:[#allocation5 + $0x6b8] sm:$0xff]
    %v346 = vld [vmem:[#allocation5 + $0x6c0] sm:$0xff]
    %v347 = vld [vmem:[#allocation5 + $0x6c8] sm:$0xff]
    %v348 = vld [vmem:[#allocation5 + $0x6d0] sm:$0xff]
    %v349 = vld [vmem:[#allocation5 + $0x6d8] sm:$0xff]
    %v350 = vld [vmem:[#allocation5 + $0x6e0] sm:$0xff]
    %v351 = vld [vmem:[#allocation5 + $0x6e8] sm:$0xff]
    %v352 = vld [vmem:[#allocation5 + $0x6f0] sm:$0xff]
    %v353 = vld [vmem:[#allocation5 + $0x6f8] sm:$0xff]
    %v354 = vld [vmem:[#allocation5 + $0x700] sm:$0xff]
    %v355 = vld [vmem:[#allocation5 + $0x708] sm:$0xff]
    %v356 = vld [vmem:[#allocation5 + $0x710] sm:$0xff]
    %v357 = vld [vmem:[#allocation5 + $0x718] sm:$0xff]
    %v358 = vld [vmem:[#allocation5 + $0x720] sm:$0xff]
    %v359 = vld [vmem:[#allocation5 + $0x728] sm:$0xff]
    %v360 = vld [vmem:[#allocation5 + $0x730] sm:$0xff]
    %v361 = vld [vmem:[#allocation5 + $0x738] sm:$0xff]
    %v362 = vld [vmem:[#allocation5 + $0x740] sm:$0xff]
    %v363 = vld [vmem:[#allocation5 + $0x748] sm:$0xff]
    %v364 = vld [vmem:[#allocation5 + $0x750] sm:$0xff]
    %v365 = vld [vmem:[#allocation5 + $0x758] sm:$0xff]
    %v366 = vld [vmem:[#allocation5 + $0x760] sm:$0xff]
    %v367 = vld [vmem:[#allocation5 + $0x768] sm:$0xff]
    %v368 = vld [vmem:[#allocation5 + $0x770] sm:$0xff]
    %v369 = vld [vmem:[#allocation5 + $0x778] sm:$0xff]
    %v370 = vld [vmem:[#allocation5 + $0x780] sm:$0xff]
    %v371 = vld [vmem:[#allocation5 + $0x788] sm:$0xff]
    %v372 = vld [vmem:[#allocation5 + $0x790] sm:$0xff]
    %v373 = vld [vmem:[#allocation5 + $0x798] sm:$0xff]
    %v374 = vld [vmem:[#allocation5 + $0x7a0] sm:$0xff]
    %v375 = vld [vmem:[#allocation5 + $0x7a8] sm:$0xff]
    %v376 = vld [vmem:[#allocation5 + $0x7b0] sm:$0xff]
    %v377 = vld [vmem:[#allocation5 + $0x7b8] sm:$0xff]
    %v378 = vld [vmem:[#allocation5 + $0x7c0] sm:$0xff]
    %v379 = vld [vmem:[#allocation5 + $0x7c8] sm:$0xff]
    %v380 = vld [vmem:[#allocation5 + $0x7d0] sm:$0xff]
    %v381 = vld [vmem:[#allocation5 + $0x7d8] sm:$0xff]
    %v382 = vld [vmem:[#allocation5 + $0x7e0] sm:$0xff]
    %v383 = vld [vmem:[#allocation5 + $0x7e8] sm:$0xff]
    %v384 = vld [vmem:[#allocation5 + $0x7f0] sm:$0xff]
    %v385 = vld [vmem:[#allocation5 + $0x7f8] sm:$0xff]
    %v386 = vld [vmem:[#allocation7] sm:$0xff]
    %v388 = vperm.slane %v386, 0
    %v389 = vperm.slane %v386, 1
    %v390 = vperm.slane %v386, 2
    %v391 = vperm.slane %v386, 3
    %v392 = vperm.slane %v386, 4
    %v393 = vperm.slane %v386, 5
    %v394 = vperm.slane %v386, 6
    %v395 = vperm.slane %v386, 7
    %v660 = vunpack.c.l.b16 %v130
    %v661 = vunpack.c.h.b16 %v130
    %v662 = vunpack.c.l.b16 %v131
    %v663 = vunpack.c.h.b16 %v131
    %v664 = vunpack.c.l.b16 %v132
    %v665 = vunpack.c.h.b16 %v132
    %v666 = vunpack.c.l.b16 %v133
    %v667 = vunpack.c.h.b16 %v133
    %v668 = vunpack.c.l.b16 %v134
    %v669 = vunpack.c.h.b16 %v134
    %v670 = vunpack.c.l.b16 %v135
    %v671 = vunpack.c.h.b16 %v135
    %v672 = vunpack.c.l.b16 %v136
    %v673 = vunpack.c.h.b16 %v136
    %v674 = vunpack.c.l.b16 %v137
    %v675 = vunpack.c.h.b16 %v137
    %v676 = vunpack.c.l.b16 %v138
    %v677 = vunpack.c.h.b16 %v138
    %v678 = vunpack.c.l.b16 %v139
    %v679 = vunpack.c.h.b16 %v139
    %v680 = vunpack.c.l.b16 %v140
    %v681 = vunpack.c.h.b16 %v140
    %v682 = vunpack.c.l.b16 %v141
    %v683 = vunpack.c.h.b16 %v141
    %v684 = vunpack.c.l.b16 %v142
    %v685 = vunpack.c.h.b16 %v142
    %v686 = vunpack.c.l.b16 %v143
    %v687 = vunpack.c.h.b16 %v143
    %v688 = vunpack.c.l.b16 %v144
    %v689 = vunpack.c.h.b16 %v144
    %v690 = vunpack.c.l.b16 %v145
    %v691 = vunpack.c.h.b16 %v145
    %v692 = vunpack.c.l.b16 %v146
    %v693 = vunpack.c.h.b16 %v146
    %v694 = vunpack.c.l.b16 %v147
    %v695 = vunpack.c.h.b16 %v147
    %v696 = vunpack.c.l.b16 %v148
    %v697 = vunpack.c.h.b16 %v148
    %v698 = vunpack.c.l.b16 %v149
    %v699 = vunpack.c.h.b16 %v149
    %v700 = vunpack.c.l.b16 %v150
    %v701 = vunpack.c.h.b16 %v150
    %v702 = vunpack.c.l.b16 %v151
    %v703 = vunpack.c.h.b16 %v151
    %v704 = vunpack.c.l.b16 %v152
    %v705 = vunpack.c.h.b16 %v152
    %v706 = vunpack.c.l.b16 %v153
    %v707 = vunpack.c.h.b16 %v153
    %v708 = vunpack.c.l.b16 %v154
    %v709 = vunpack.c.h.b16 %v154
    %v710 = vunpack.c.l.b16 %v155
    %v711 = vunpack.c.h.b16 %v155
    %v712 = vunpack.c.l.b16 %v156
    %v713 = vunpack.c.h.b16 %v156
    %v714 = vunpack.c.l.b16 %v157
    %v715 = vunpack.c.h.b16 %v157
    %v716 = vunpack.c.l.b16 %v158
    %v717 = vunpack.c.h.b16 %v158
    %v718 = vunpack.c.l.b16 %v159
    %v719 = vunpack.c.h.b16 %v159
    %v720 = vunpack.c.l.b16 %v160
    %v721 = vunpack.c.h.b16 %v160
    %v722 = vunpack.c.l.b16 %v161
    %v723 = vunpack.c.h.b16 %v161
    %v724 = vunpack.c.l.b16 %v162
    %v725 = vunpack.c.h.b16 %v162
    %v726 = vunpack.c.l.b16 %v163
    %v727 = vunpack.c.h.b16 %v163
    %v728 = vunpack.c.l.b16 %v164
    %v729 = vunpack.c.h.b16 %v164
    %v730 = vunpack.c.l.b16 %v165
    %v731 = vunpack.c.h.b16 %v165
    %v732 = vunpack.c.l.b16 %v166
    %v733 = vunpack.c.h.b16 %v166
    %v734 = vunpack.c.l.b16 %v167
    %v735 = vunpack.c.h.b16 %v167
    %v736 = vunpack.c.l.b16 %v168
    %v737 = vunpack.c.h.b16 %v168
    %v738 = vunpack.c.l.b16 %v169
    %v739 = vunpack.c.h.b16 %v169
    %v740 = vunpack.c.l.b16 %v170
    %v741 = vunpack.c.h.b16 %v170
    %v742 = vunpack.c.l.b16 %v171
    %v743 = vunpack.c.h.b16 %v171
    %v744 = vunpack.c.l.b16 %v172
    %v745 = vunpack.c.h.b16 %v172
    %v746 = vunpack.c.l.b16 %v173
    %v747 = vunpack.c.h.b16 %v173
    %v748 = vunpack.c.l.b16 %v174
    %v749 = vunpack.c.h.b16 %v174
    %v750 = vunpack.c.l.b16 %v175
    %v751 = vunpack.c.h.b16 %v175
    %v752 = vunpack.c.l.b16 %v176
    %v753 = vunpack.c.h.b16 %v176
    %v754 = vunpack.c.l.b16 %v177
    %v755 = vunpack.c.h.b16 %v177
    %v756 = vunpack.c.l.b16 %v178
    %v757 = vunpack.c.h.b16 %v178
    %v758 = vunpack.c.l.b16 %v179
    %v759 = vunpack.c.h.b16 %v179
    %v760 = vunpack.c.l.b16 %v180
    %v761 = vunpack.c.h.b16 %v180
    %v762 = vunpack.c.l.b16 %v181
    %v763 = vunpack.c.h.b16 %v181
    %v764 = vunpack.c.l.b16 %v182
    %v765 = vunpack.c.h.b16 %v182
    %v766 = vunpack.c.l.b16 %v183
    %v767 = vunpack.c.h.b16 %v183
    %v768 = vunpack.c.l.b16 %v184
    %v769 = vunpack.c.h.b16 %v184
    %v770 = vunpack.c.l.b16 %v185
    %v771 = vunpack.c.h.b16 %v185
    %v772 = vunpack.c.l.b16 %v186
    %v773 = vunpack.c.h.b16 %v186
    %v774 = vunpack.c.l.b16 %v187
    %v775 = vunpack.c.h.b16 %v187
    %v776 = vunpack.c.l.b16 %v188
    %v777 = vunpack.c.h.b16 %v188
    %v778 = vunpack.c.l.b16 %v189
    %v779 = vunpack.c.h.b16 %v189
    %v780 = vunpack.c.l.b16 %v190
    %v781 = vunpack.c.h.b16 %v190
    %v782 = vunpack.c.l.b16 %v191
    %v783 = vunpack.c.h.b16 %v191
    %v784 = vunpack.c.l.b16 %v192
    %v785 = vunpack.c.h.b16 %v192
    %v786 = vunpack.c.l.b16 %v193
    %v787 = vunpack.c.h.b16 %v193
    %v788 = vunpack.c.l.b16 %v194
    %v789 = vunpack.c.h.b16 %v194
    %v790 = vunpack.c.l.b16 %v195
    %v791 = vunpack.c.h.b16 %v195
    %v792 = vunpack.c.l.b16 %v196
    %v793 = vunpack.c.h.b16 %v196
    %v794 = vunpack.c.l.b16 %v197
    %v795 = vunpack.c.h.b16 %v197
    %v796 = vunpack.c.l.b16 %v198
    %v797 = vunpack.c.h.b16 %v198
    %v798 = vunpack.c.l.b16 %v199
    %v799 = vunpack.c.h.b16 %v199
    %v800 = vunpack.c.l.b16 %v200
    %v801 = vunpack.c.h.b16 %v200
    %v802 = vunpack.c.l.b16 %v201
    %v803 = vunpack.c.h.b16 %v201
    %v804 = vunpack.c.l.b16 %v202
    %v805 = vunpack.c.h.b16 %v202
    %v806 = vunpack.c.l.b16 %v203
    %v807 = vunpack.c.h.b16 %v203
    %v808 = vunpack.c.l.b16 %v204
    %v809 = vunpack.c.h.b16 %v204
    %v810 = vunpack.c.l.b16 %v205
    %v811 = vunpack.c.h.b16 %v205
    %v812 = vunpack.c.l.b16 %v206
    %v813 = vunpack.c.h.b16 %v206
    %v814 = vunpack.c.l.b16 %v207
    %v815 = vunpack.c.h.b16 %v207
    %v816 = vunpack.c.l.b16 %v208
    %v817 = vunpack.c.h.b16 %v208
    %v818 = vunpack.c.l.b16 %v209
    %v819 = vunpack.c.h.b16 %v209
    %v820 = vunpack.c.l.b16 %v210
    %v821 = vunpack.c.h.b16 %v210
    %v822 = vunpack.c.l.b16 %v211
    %v823 = vunpack.c.h.b16 %v211
    %v824 = vunpack.c.l.b16 %v212
    %v825 = vunpack.c.h.b16 %v212
    %v826 = vunpack.c.l.b16 %v213
    %v827 = vunpack.c.h.b16 %v213
    %v828 = vunpack.c.l.b16 %v214
    %v829 = vunpack.c.h.b16 %v214
    %v830 = vunpack.c.l.b16 %v215
    %v831 = vunpack.c.h.b16 %v215
    %v832 = vunpack.c.l.b16 %v216
    %v833 = vunpack.c.h.b16 %v216
    %v834 = vunpack.c.l.b16 %v217
    %v835 = vunpack.c.h.b16 %v217
    %v836 = vunpack.c.l.b16 %v218
    %v837 = vunpack.c.h.b16 %v218
    %v838 = vunpack.c.l.b16 %v219
    %v839 = vunpack.c.h.b16 %v219
    %v840 = vunpack.c.l.b16 %v220
    %v841 = vunpack.c.h.b16 %v220
    %v842 = vunpack.c.l.b16 %v221
    %v843 = vunpack.c.h.b16 %v221
    %v844 = vunpack.c.l.b16 %v222
    %v845 = vunpack.c.h.b16 %v222
    %v846 = vunpack.c.l.b16 %v223
    %v847 = vunpack.c.h.b16 %v223
    %v848 = vunpack.c.l.b16 %v224
    %v849 = vunpack.c.h.b16 %v224
    %v850 = vunpack.c.l.b16 %v225
    %v851 = vunpack.c.h.b16 %v225
    %v852 = vunpack.c.l.b16 %v226
    %v853 = vunpack.c.h.b16 %v226
    %v854 = vunpack.c.l.b16 %v227
    %v855 = vunpack.c.h.b16 %v227
    %v856 = vunpack.c.l.b16 %v228
    %v857 = vunpack.c.h.b16 %v228
    %v858 = vunpack.c.l.b16 %v229
    %v859 = vunpack.c.h.b16 %v229
    %v860 = vunpack.c.l.b16 %v230
    %v861 = vunpack.c.h.b16 %v230
    %v862 = vunpack.c.l.b16 %v231
    %v863 = vunpack.c.h.b16 %v231
    %v864 = vunpack.c.l.b16 %v232
    %v865 = vunpack.c.h.b16 %v232
    %v866 = vunpack.c.l.b16 %v233
    %v867 = vunpack.c.h.b16 %v233
    %v868 = vunpack.c.l.b16 %v234
    %v869 = vunpack.c.h.b16 %v234
    %v870 = vunpack.c.l.b16 %v235
    %v871 = vunpack.c.h.b16 %v235
    %v872 = vunpack.c.l.b16 %v236
    %v873 = vunpack.c.h.b16 %v236
    %v874 = vunpack.c.l.b16 %v237
    %v875 = vunpack.c.h.b16 %v237
    %v876 = vunpack.c.l.b16 %v238
    %v877 = vunpack.c.h.b16 %v238
    %v878 = vunpack.c.l.b16 %v239
    %v879 = vunpack.c.h.b16 %v239
    %v880 = vunpack.c.l.b16 %v240
    %v881 = vunpack.c.h.b16 %v240
    %v882 = vunpack.c.l.b16 %v241
    %v883 = vunpack.c.h.b16 %v241
    %v884 = vunpack.c.l.b16 %v242
    %v885 = vunpack.c.h.b16 %v242
    %v886 = vunpack.c.l.b16 %v243
    %v887 = vunpack.c.h.b16 %v243
    %v888 = vunpack.c.l.b16 %v244
    %v889 = vunpack.c.h.b16 %v244
    %v890 = vunpack.c.l.b16 %v245
    %v891 = vunpack.c.h.b16 %v245
    %v892 = vunpack.c.l.b16 %v246
    %v893 = vunpack.c.h.b16 %v246
    %v894 = vunpack.c.l.b16 %v247
    %v895 = vunpack.c.h.b16 %v247
    %v896 = vunpack.c.l.b16 %v248
    %v897 = vunpack.c.h.b16 %v248
    %v898 = vunpack.c.l.b16 %v249
    %v899 = vunpack.c.h.b16 %v249
    %v900 = vunpack.c.l.b16 %v250
    %v901 = vunpack.c.h.b16 %v250
    %v902 = vunpack.c.l.b16 %v251
    %v903 = vunpack.c.h.b16 %v251
    %v904 = vunpack.c.l.b16 %v252
    %v905 = vunpack.c.h.b16 %v252
    %v906 = vunpack.c.l.b16 %v253
    %v907 = vunpack.c.h.b16 %v253
    %v908 = vunpack.c.l.b16 %v254
    %v909 = vunpack.c.h.b16 %v254
    %v910 = vunpack.c.l.b16 %v255
    %v911 = vunpack.c.h.b16 %v255
    %v912 = vunpack.c.l.b16 %v256
    %v913 = vunpack.c.h.b16 %v256
    %v914 = vunpack.c.l.b16 %v257
    %v915 = vunpack.c.h.b16 %v257
    %v916 = vunpack.c.l.b16 %v258
    %v917 = vunpack.c.h.b16 %v258
    %v918 = vunpack.c.l.b16 %v259
    %v919 = vunpack.c.h.b16 %v259
    %v920 = vunpack.c.l.b16 %v260
    %v921 = vunpack.c.h.b16 %v260
    %v922 = vunpack.c.l.b16 %v261
    %v923 = vunpack.c.h.b16 %v261
    %v924 = vunpack.c.l.b16 %v262
    %v925 = vunpack.c.h.b16 %v262
    %v926 = vunpack.c.l.b16 %v263
    %v927 = vunpack.c.h.b16 %v263
    %v928 = vunpack.c.l.b16 %v264
    %v929 = vunpack.c.h.b16 %v264
    %v930 = vunpack.c.l.b16 %v265
    %v931 = vunpack.c.h.b16 %v265
    %v932 = vunpack.c.l.b16 %v266
    %v933 = vunpack.c.h.b16 %v266
    %v934 = vunpack.c.l.b16 %v267
    %v935 = vunpack.c.h.b16 %v267
    %v936 = vunpack.c.l.b16 %v268
    %v937 = vunpack.c.h.b16 %v268
    %v938 = vunpack.c.l.b16 %v269
    %v939 = vunpack.c.h.b16 %v269
    %v940 = vunpack.c.l.b16 %v270
    %v941 = vunpack.c.h.b16 %v270
    %v942 = vunpack.c.l.b16 %v271
    %v943 = vunpack.c.h.b16 %v271
    %v944 = vunpack.c.l.b16 %v272
    %v945 = vunpack.c.h.b16 %v272
    %v946 = vunpack.c.l.b16 %v273
    %v947 = vunpack.c.h.b16 %v273
    %v948 = vunpack.c.l.b16 %v274
    %v949 = vunpack.c.h.b16 %v274
    %v950 = vunpack.c.l.b16 %v275
    %v951 = vunpack.c.h.b16 %v275
    %v952 = vunpack.c.l.b16 %v276
    %v953 = vunpack.c.h.b16 %v276
    %v954 = vunpack.c.l.b16 %v277
    %v955 = vunpack.c.h.b16 %v277
    %v956 = vunpack.c.l.b16 %v278
    %v957 = vunpack.c.h.b16 %v278
    %v958 = vunpack.c.l.b16 %v279
    %v959 = vunpack.c.h.b16 %v279
    %v960 = vunpack.c.l.b16 %v280
    %v961 = vunpack.c.h.b16 %v280
    %v962 = vunpack.c.l.b16 %v281
    %v963 = vunpack.c.h.b16 %v281
    %v964 = vunpack.c.l.b16 %v282
    %v965 = vunpack.c.h.b16 %v282
    %v966 = vunpack.c.l.b16 %v283
    %v967 = vunpack.c.h.b16 %v283
    %v968 = vunpack.c.l.b16 %v284
    %v969 = vunpack.c.h.b16 %v284
    %v970 = vunpack.c.l.b16 %v285
    %v971 = vunpack.c.h.b16 %v285
    %v972 = vunpack.c.l.b16 %v286
    %v973 = vunpack.c.h.b16 %v286
    %v974 = vunpack.c.l.b16 %v287
    %v975 = vunpack.c.h.b16 %v287
    %v976 = vunpack.c.l.b16 %v288
    %v977 = vunpack.c.h.b16 %v288
    %v978 = vunpack.c.l.b16 %v289
    %v979 = vunpack.c.h.b16 %v289
    %v980 = vunpack.c.l.b16 %v290
    %v981 = vunpack.c.h.b16 %v290
    %v982 = vunpack.c.l.b16 %v291
    %v983 = vunpack.c.h.b16 %v291
    %v984 = vunpack.c.l.b16 %v292
    %v985 = vunpack.c.h.b16 %v292
    %v986 = vunpack.c.l.b16 %v293
    %v987 = vunpack.c.h.b16 %v293
    %v988 = vunpack.c.l.b16 %v294
    %v989 = vunpack.c.h.b16 %v294
    %v990 = vunpack.c.l.b16 %v295
    %v991 = vunpack.c.h.b16 %v295
    %v992 = vunpack.c.l.b16 %v296
    %v993 = vunpack.c.h.b16 %v296
    %v994 = vunpack.c.l.b16 %v297
    %v995 = vunpack.c.h.b16 %v297
    %v996 = vunpack.c.l.b16 %v298
    %v997 = vunpack.c.h.b16 %v298
    %v998 = vunpack.c.l.b16 %v299
    %v999 = vunpack.c.h.b16 %v299
    %v1000 = vunpack.c.l.b16 %v300
    %v1001 = vunpack.c.h.b16 %v300
    %v1002 = vunpack.c.l.b16 %v301
    %v1003 = vunpack.c.h.b16 %v301
    %v1004 = vunpack.c.l.b16 %v302
    %v1005 = vunpack.c.h.b16 %v302
    %v1006 = vunpack.c.l.b16 %v303
    %v1007 = vunpack.c.h.b16 %v303
    %v1008 = vunpack.c.l.b16 %v304
    %v1009 = vunpack.c.h.b16 %v304
    %v1010 = vunpack.c.l.b16 %v305
    %v1011 = vunpack.c.h.b16 %v305
    %v1012 = vunpack.c.l.b16 %v306
    %v1013 = vunpack.c.h.b16 %v306
    %v1014 = vunpack.c.l.b16 %v307
    %v1015 = vunpack.c.h.b16 %v307
    %v1016 = vunpack.c.l.b16 %v308
    %v1017 = vunpack.c.h.b16 %v308
    %v1018 = vunpack.c.l.b16 %v309
    %v1019 = vunpack.c.h.b16 %v309
    %v1020 = vunpack.c.l.b16 %v310
    %v1021 = vunpack.c.h.b16 %v310
    %v1022 = vunpack.c.l.b16 %v311
    %v1023 = vunpack.c.h.b16 %v311
    %v1024 = vunpack.c.l.b16 %v312
    %v1025 = vunpack.c.h.b16 %v312
    %v1026 = vunpack.c.l.b16 %v313
    %v1027 = vunpack.c.h.b16 %v313
    %v1028 = vunpack.c.l.b16 %v314
    %v1029 = vunpack.c.h.b16 %v314
    %v1030 = vunpack.c.l.b16 %v315
    %v1031 = vunpack.c.h.b16 %v315
    %v1032 = vunpack.c.l.b16 %v316
    %v1033 = vunpack.c.h.b16 %v316
    %v1034 = vunpack.c.l.b16 %v317
    %v1035 = vunpack.c.h.b16 %v317
    %v1036 = vunpack.c.l.b16 %v318
    %v1037 = vunpack.c.h.b16 %v318
    %v1038 = vunpack.c.l.b16 %v319
    %v1039 = vunpack.c.h.b16 %v319
    %v1040 = vunpack.c.l.b16 %v320
    %v1041 = vunpack.c.h.b16 %v320
    %v1042 = vunpack.c.l.b16 %v321
    %v1043 = vunpack.c.h.b16 %v321
    %v1044 = vunpack.c.l.b16 %v322
    %v1045 = vunpack.c.h.b16 %v322
    %v1046 = vunpack.c.l.b16 %v323
    %v1047 = vunpack.c.h.b16 %v323
    %v1048 = vunpack.c.l.b16 %v324
    %v1049 = vunpack.c.h.b16 %v324
    %v1050 = vunpack.c.l.b16 %v325
    %v1051 = vunpack.c.h.b16 %v325
    %v1052 = vunpack.c.l.b16 %v326
    %v1053 = vunpack.c.h.b16 %v326
    %v1054 = vunpack.c.l.b16 %v327
    %v1055 = vunpack.c.h.b16 %v327
    %v1056 = vunpack.c.l.b16 %v328
    %v1057 = vunpack.c.h.b16 %v328
    %v1058 = vunpack.c.l.b16 %v329
    %v1059 = vunpack.c.h.b16 %v329
    %v1060 = vunpack.c.l.b16 %v330
    %v1061 = vunpack.c.h.b16 %v330
    %v1062 = vunpack.c.l.b16 %v331
    %v1063 = vunpack.c.h.b16 %v331
    %v1064 = vunpack.c.l.b16 %v332
    %v1065 = vunpack.c.h.b16 %v332
    %v1066 = vunpack.c.l.b16 %v333
    %v1067 = vunpack.c.h.b16 %v333
    %v1068 = vunpack.c.l.b16 %v334
    %v1069 = vunpack.c.h.b16 %v334
    %v1070 = vunpack.c.l.b16 %v335
    %v1071 = vunpack.c.h.b16 %v335
    %v1072 = vunpack.c.l.b16 %v336
    %v1073 = vunpack.c.h.b16 %v336
    %v1074 = vunpack.c.l.b16 %v337
    %v1075 = vunpack.c.h.b16 %v337
    %v1076 = vunpack.c.l.b16 %v338
    %v1077 = vunpack.c.h.b16 %v338
    %v1078 = vunpack.c.l.b16 %v339
    %v1079 = vunpack.c.h.b16 %v339
    %v1080 = vunpack.c.l.b16 %v340
    %v1081 = vunpack.c.h.b16 %v340
    %v1082 = vunpack.c.l.b16 %v341
    %v1083 = vunpack.c.h.b16 %v341
    %v1084 = vunpack.c.l.b16 %v342
    %v1085 = vunpack.c.h.b16 %v342
    %v1086 = vunpack.c.l.b16 %v343
    %v1087 = vunpack.c.h.b16 %v343
    %v1088 = vunpack.c.l.b16 %v344
    %v1089 = vunpack.c.h.b16 %v344
    %v1090 = vunpack.c.l.b16 %v345
    %v1091 = vunpack.c.h.b16 %v345
    %v1092 = vunpack.c.l.b16 %v346
    %v1093 = vunpack.c.h.b16 %v346
    %v1094 = vunpack.c.l.b16 %v347
    %v1095 = vunpack.c.h.b16 %v347
    %v1096 = vunpack.c.l.b16 %v348
    %v1097 = vunpack.c.h.b16 %v348
    %v1098 = vunpack.c.l.b16 %v349
    %v1099 = vunpack.c.h.b16 %v349
    %v1100 = vunpack.c.l.b16 %v350
    %v1101 = vunpack.c.h.b16 %v350
    %v1102 = vunpack.c.l.b16 %v351
    %v1103 = vunpack.c.h.b16 %v351
    %v1104 = vunpack.c.l.b16 %v352
    %v1105 = vunpack.c.h.b16 %v352
    %v1106 = vunpack.c.l.b16 %v353
    %v1107 = vunpack.c.h.b16 %v353
    %v1108 = vunpack.c.l.b16 %v354
    %v1109 = vunpack.c.h.b16 %v354
    %v1110 = vunpack.c.l.b16 %v355
    %v1111 = vunpack.c.h.b16 %v355
    %v1112 = vunpack.c.l.b16 %v356
    %v1113 = vunpack.c.h.b16 %v356
    %v1114 = vunpack.c.l.b16 %v357
    %v1115 = vunpack.c.h.b16 %v357
    %v1116 = vunpack.c.l.b16 %v358
    %v1117 = vunpack.c.h.b16 %v358
    %v1118 = vunpack.c.l.b16 %v359
    %v1119 = vunpack.c.h.b16 %v359
    %v1120 = vunpack.c.l.b16 %v360
    %v1121 = vunpack.c.h.b16 %v360
    %v1122 = vunpack.c.l.b16 %v361
    %v1123 = vunpack.c.h.b16 %v361
    %v1124 = vunpack.c.l.b16 %v362
    %v1125 = vunpack.c.h.b16 %v362
    %v1126 = vunpack.c.l.b16 %v363
    %v1127 = vunpack.c.h.b16 %v363
    %v1128 = vunpack.c.l.b16 %v364
    %v1129 = vunpack.c.h.b16 %v364
    %v1130 = vunpack.c.l.b16 %v365
    %v1131 = vunpack.c.h.b16 %v365
    %v1132 = vunpack.c.l.b16 %v366
    %v1133 = vunpack.c.h.b16 %v366
    %v1134 = vunpack.c.l.b16 %v367
    %v1135 = vunpack.c.h.b16 %v367
    %v1136 = vunpack.c.l.b16 %v368
    %v1137 = vunpack.c.h.b16 %v368
    %v1138 = vunpack.c.l.b16 %v369
    %v1139 = vunpack.c.h.b16 %v369
    %v1140 = vunpack.c.l.b16 %v370
    %v1141 = vunpack.c.h.b16 %v370
    %v1142 = vunpack.c.l.b16 %v371
    %v1143 = vunpack.c.h.b16 %v371
    %v1144 = vunpack.c.l.b16 %v372
    %v1145 = vunpack.c.h.b16 %v372
    %v1146 = vunpack.c.l.b16 %v373
    %v1147 = vunpack.c.h.b16 %v373
    %v1148 = vunpack.c.l.b16 %v374
    %v1149 = vunpack.c.h.b16 %v374
    %v1150 = vunpack.c.l.b16 %v375
    %v1151 = vunpack.c.h.b16 %v375
    %v1152 = vunpack.c.l.b16 %v376
    %v1153 = vunpack.c.h.b16 %v376
    %v1154 = vunpack.c.l.b16 %v377
    %v1155 = vunpack.c.h.b16 %v377
    %v1156 = vunpack.c.l.b16 %v378
    %v1157 = vunpack.c.h.b16 %v378
    %v1158 = vunpack.c.l.b16 %v379
    %v1159 = vunpack.c.h.b16 %v379
    %v1160 = vunpack.c.l.b16 %v380
    %v1161 = vunpack.c.h.b16 %v380
    %v1162 = vunpack.c.l.b16 %v381
    %v1163 = vunpack.c.h.b16 %v381
    %v1164 = vunpack.c.l.b16 %v382
    %v1165 = vunpack.c.h.b16 %v382
    %v1166 = vunpack.c.l.b16 %v383
    %v1167 = vunpack.c.h.b16 %v383
    %v1168 = vunpack.c.l.b16 %v384
    %v1169 = vunpack.c.h.b16 %v384
    %v1170 = vunpack.c.l.b16 %v385
    %v1171 = vunpack.c.h.b16 %v385
    %v1172 = vpack.c.b16 %v668, %v660
    %v1173 = vpack.c.b16 %v669, %v661
    %v1174 = vpack.c.b16 %v670, %v662
    %v1175 = vpack.c.b16 %v671, %v663
    %v1176 = vpack.c.b16 %v672, %v664
    %v1177 = vpack.c.b16 %v673, %v665
    %v1178 = vpack.c.b16 %v674, %v666
    %v1179 = vpack.c.b16 %v675, %v667
    %v1180 = vpack.c.b16 %v684, %v676
    %v1181 = vpack.c.b16 %v685, %v677
    %v1182 = vpack.c.b16 %v686, %v678
    %v1183 = vpack.c.b16 %v687, %v679
    %v1184 = vpack.c.b16 %v688, %v680
    %v1185 = vpack.c.b16 %v689, %v681
    %v1186 = vpack.c.b16 %v690, %v682
    %v1187 = vpack.c.b16 %v691, %v683
    %v1188 = vpack.c.b16 %v700, %v692
    %v1189 = vpack.c.b16 %v701, %v693
    %v1190 = vpack.c.b16 %v702, %v694
    %v1191 = vpack.c.b16 %v703, %v695
    %v1192 = vpack.c.b16 %v704, %v696
    %v1193 = vpack.c.b16 %v705, %v697
    %v1194 = vpack.c.b16 %v706, %v698
    %v1195 = vpack.c.b16 %v707, %v699
    %v1196 = vpack.c.b16 %v716, %v708
    %v1197 = vpack.c.b16 %v717, %v709
    %v1198 = vpack.c.b16 %v718, %v710
    %v1199 = vpack.c.b16 %v719, %v711
    %v1200 = vpack.c.b16 %v720, %v712
    %v1201 = vpack.c.b16 %v721, %v713
    %v1202 = vpack.c.b16 %v722, %v714
    %v1203 = vpack.c.b16 %v723, %v715
    %v1204 = vpack.c.b16 %v732, %v724
    %v1205 = vpack.c.b16 %v733, %v725
    %v1206 = vpack.c.b16 %v734, %v726
    %v1207 = vpack.c.b16 %v735, %v727
    %v1208 = vpack.c.b16 %v736, %v728
    %v1209 = vpack.c.b16 %v737, %v729
    %v1210 = vpack.c.b16 %v738, %v730
    %v1211 = vpack.c.b16 %v739, %v731
    %v1212 = vpack.c.b16 %v748, %v740
    %v1213 = vpack.c.b16 %v749, %v741
    %v1214 = vpack.c.b16 %v750, %v742
    %v1215 = vpack.c.b16 %v751, %v743
    %v1216 = vpack.c.b16 %v752, %v744
    %v1217 = vpack.c.b16 %v753, %v745
    %v1218 = vpack.c.b16 %v754, %v746
    %v1219 = vpack.c.b16 %v755, %v747
    %v1220 = vpack.c.b16 %v764, %v756
    %v1221 = vpack.c.b16 %v765, %v757
    %v1222 = vpack.c.b16 %v766, %v758
    %v1223 = vpack.c.b16 %v767, %v759
    %v1224 = vpack.c.b16 %v768, %v760
    %v1225 = vpack.c.b16 %v769, %v761
    %v1226 = vpack.c.b16 %v770, %v762
    %v1227 = vpack.c.b16 %v771, %v763
    %v1228 = vpack.c.b16 %v780, %v772
    %v1229 = vpack.c.b16 %v781, %v773
    %v1230 = vpack.c.b16 %v782, %v774
    %v1231 = vpack.c.b16 %v783, %v775
    %v1232 = vpack.c.b16 %v784, %v776
    %v1233 = vpack.c.b16 %v785, %v777
    %v1234 = vpack.c.b16 %v786, %v778
    %v1235 = vpack.c.b16 %v787, %v779
    %v1236 = vpack.c.b16 %v796, %v788
    %v1237 = vpack.c.b16 %v797, %v789
    %v1238 = vpack.c.b16 %v798, %v790
    %v1239 = vpack.c.b16 %v799, %v791
    %v1240 = vpack.c.b16 %v800, %v792
    %v1241 = vpack.c.b16 %v801, %v793
    %v1242 = vpack.c.b16 %v802, %v794
    %v1243 = vpack.c.b16 %v803, %v795
    %v1244 = vpack.c.b16 %v812, %v804
    %v1245 = vpack.c.b16 %v813, %v805
    %v1246 = vpack.c.b16 %v814, %v806
    %v1247 = vpack.c.b16 %v815, %v807
    %v1248 = vpack.c.b16 %v816, %v808
    %v1249 = vpack.c.b16 %v817, %v809
    %v1250 = vpack.c.b16 %v818, %v810
    %v1251 = vpack.c.b16 %v819, %v811
    %v1252 = vpack.c.b16 %v828, %v820
    %v1253 = vpack.c.b16 %v829, %v821
    %v1254 = vpack.c.b16 %v830, %v822
    %v1255 = vpack.c.b16 %v831, %v823
    %v1256 = vpack.c.b16 %v832, %v824
    %v1257 = vpack.c.b16 %v833, %v825
    %v1258 = vpack.c.b16 %v834, %v826
    %v1259 = vpack.c.b16 %v835, %v827
    %v1260 = vpack.c.b16 %v844, %v836
    %v1261 = vpack.c.b16 %v845, %v837
    %v1262 = vpack.c.b16 %v846, %v838
    %v1263 = vpack.c.b16 %v847, %v839
    %v1264 = vpack.c.b16 %v848, %v840
    %v1265 = vpack.c.b16 %v849, %v841
    %v1266 = vpack.c.b16 %v850, %v842
    %v1267 = vpack.c.b16 %v851, %v843
    %v1268 = vpack.c.b16 %v860, %v852
    %v1269 = vpack.c.b16 %v861, %v853
    %v1270 = vpack.c.b16 %v862, %v854
    %v1271 = vpack.c.b16 %v863, %v855
    %v1272 = vpack.c.b16 %v864, %v856
    %v1273 = vpack.c.b16 %v865, %v857
    %v1274 = vpack.c.b16 %v866, %v858
    %v1275 = vpack.c.b16 %v867, %v859
    %v1276 = vpack.c.b16 %v876, %v868
    %v1277 = vpack.c.b16 %v877, %v869
    %v1278 = vpack.c.b16 %v878, %v870
    %v1279 = vpack.c.b16 %v879, %v871
    %v1280 = vpack.c.b16 %v880, %v872
    %v1281 = vpack.c.b16 %v881, %v873
    %v1282 = vpack.c.b16 %v882, %v874
    %v1283 = vpack.c.b16 %v883, %v875
    %v1284 = vpack.c.b16 %v892, %v884
    %v1285 = vpack.c.b16 %v893, %v885
    %v1286 = vpack.c.b16 %v894, %v886
    %v1287 = vpack.c.b16 %v895, %v887
    %v1288 = vpack.c.b16 %v896, %v888
    %v1289 = vpack.c.b16 %v897, %v889
    %v1290 = vpack.c.b16 %v898, %v890
    %v1291 = vpack.c.b16 %v899, %v891
    %v1292 = vpack.c.b16 %v908, %v900
    %v1293 = vpack.c.b16 %v909, %v901
    %v1294 = vpack.c.b16 %v910, %v902
    %v1295 = vpack.c.b16 %v911, %v903
    %v1296 = vpack.c.b16 %v912, %v904
    %v1297 = vpack.c.b16 %v913, %v905
    %v1298 = vpack.c.b16 %v914, %v906
    %v1299 = vpack.c.b16 %v915, %v907
    %v1300 = vpack.c.b16 %v924, %v916
    %v1301 = vpack.c.b16 %v925, %v917
    %v1302 = vpack.c.b16 %v926, %v918
    %v1303 = vpack.c.b16 %v927, %v919
    %v1304 = vpack.c.b16 %v928, %v920
    %v1305 = vpack.c.b16 %v929, %v921
    %v1306 = vpack.c.b16 %v930, %v922
    %v1307 = vpack.c.b16 %v931, %v923
    %v1308 = vpack.c.b16 %v940, %v932
    %v1309 = vpack.c.b16 %v941, %v933
    %v1310 = vpack.c.b16 %v942, %v934
    %v1311 = vpack.c.b16 %v943, %v935
    %v1312 = vpack.c.b16 %v944, %v936
    %v1313 = vpack.c.b16 %v945, %v937
    %v1314 = vpack.c.b16 %v946, %v938
    %v1315 = vpack.c.b16 %v947, %v939
    %v1316 = vpack.c.b16 %v956, %v948
    %v1317 = vpack.c.b16 %v957, %v949
    %v1318 = vpack.c.b16 %v958, %v950
    %v1319 = vpack.c.b16 %v959, %v951
    %v1320 = vpack.c.b16 %v960, %v952
    %v1321 = vpack.c.b16 %v961, %v953
    %v1322 = vpack.c.b16 %v962, %v954
    %v1323 = vpack.c.b16 %v963, %v955
    %v1324 = vpack.c.b16 %v972, %v964
    %v1325 = vpack.c.b16 %v973, %v965
    %v1326 = vpack.c.b16 %v974, %v966
    %v1327 = vpack.c.b16 %v975, %v967
    %v1328 = vpack.c.b16 %v976, %v968
    %v1329 = vpack.c.b16 %v977, %v969
    %v1330 = vpack.c.b16 %v978, %v970
    %v1331 = vpack.c.b16 %v979, %v971
    %v1332 = vpack.c.b16 %v988, %v980
    %v1333 = vpack.c.b16 %v989, %v981
    %v1334 = vpack.c.b16 %v990, %v982
    %v1335 = vpack.c.b16 %v991, %v983
    %v1336 = vpack.c.b16 %v992, %v984
    %v1337 = vpack.c.b16 %v993, %v985
    %v1338 = vpack.c.b16 %v994, %v986
    %v1339 = vpack.c.b16 %v995, %v987
    %v1340 = vpack.c.b16 %v1004, %v996
    %v1341 = vpack.c.b16 %v1005, %v997
    %v1342 = vpack.c.b16 %v1006, %v998
    %v1343 = vpack.c.b16 %v1007, %v999
    %v1344 = vpack.c.b16 %v1008, %v1000
    %v1345 = vpack.c.b16 %v1009, %v1001
    %v1346 = vpack.c.b16 %v1010, %v1002
    %v1347 = vpack.c.b16 %v1011, %v1003
    %v1348 = vpack.c.b16 %v1020, %v1012
    %v1349 = vpack.c.b16 %v1021, %v1013
    %v1350 = vpack.c.b16 %v1022, %v1014
    %v1351 = vpack.c.b16 %v1023, %v1015
    %v1352 = vpack.c.b16 %v1024, %v1016
    %v1353 = vpack.c.b16 %v1025, %v1017
    %v1354 = vpack.c.b16 %v1026, %v1018
    %v1355 = vpack.c.b16 %v1027, %v1019
    %v1356 = vpack.c.b16 %v1036, %v1028
    %v1357 = vpack.c.b16 %v1037, %v1029
    %v1358 = vpack.c.b16 %v1038, %v1030
    %v1359 = vpack.c.b16 %v1039, %v1031
    %v1360 = vpack.c.b16 %v1040, %v1032
    %v1361 = vpack.c.b16 %v1041, %v1033
    %v1362 = vpack.c.b16 %v1042, %v1034
    %v1363 = vpack.c.b16 %v1043, %v1035
    %v1364 = vpack.c.b16 %v1052, %v1044
    %v1365 = vpack.c.b16 %v1053, %v1045
    %v1366 = vpack.c.b16 %v1054, %v1046
    %v1367 = vpack.c.b16 %v1055, %v1047
    %v1368 = vpack.c.b16 %v1056, %v1048
    %v1369 = vpack.c.b16 %v1057, %v1049
    %v1370 = vpack.c.b16 %v1058, %v1050
    %v1371 = vpack.c.b16 %v1059, %v1051
    %v1372 = vpack.c.b16 %v1068, %v1060
    %v1373 = vpack.c.b16 %v1069, %v1061
    %v1374 = vpack.c.b16 %v1070, %v1062
    %v1375 = vpack.c.b16 %v1071, %v1063
    %v1376 = vpack.c.b16 %v1072, %v1064
    %v1377 = vpack.c.b16 %v1073, %v1065
    %v1378 = vpack.c.b16 %v1074, %v1066
    %v1379 = vpack.c.b16 %v1075, %v1067
    %v1380 = vpack.c.b16 %v1084, %v1076
    %v1381 = vpack.c.b16 %v1085, %v1077
    %v1382 = vpack.c.b16 %v1086, %v1078
    %v1383 = vpack.c.b16 %v1087, %v1079
    %v1384 = vpack.c.b16 %v1088, %v1080
    %v1385 = vpack.c.b16 %v1089, %v1081
    %v1386 = vpack.c.b16 %v1090, %v1082
    %v1387 = vpack.c.b16 %v1091, %v1083
    %v1388 = vpack.c.b16 %v1100, %v1092
    %v1389 = vpack.c.b16 %v1101, %v1093
    %v1390 = vpack.c.b16 %v1102, %v1094
    %v1391 = vpack.c.b16 %v1103, %v1095
    %v1392 = vpack.c.b16 %v1104, %v1096
    %v1393 = vpack.c.b16 %v1105, %v1097
    %v1394 = vpack.c.b16 %v1106, %v1098
    %v1395 = vpack.c.b16 %v1107, %v1099
    %v1396 = vpack.c.b16 %v1116, %v1108
    %v1397 = vpack.c.b16 %v1117, %v1109
    %v1398 = vpack.c.b16 %v1118, %v1110
    %v1399 = vpack.c.b16 %v1119, %v1111
    %v1400 = vpack.c.b16 %v1120, %v1112
    %v1401 = vpack.c.b16 %v1121, %v1113
    %v1402 = vpack.c.b16 %v1122, %v1114
    %v1403 = vpack.c.b16 %v1123, %v1115
    %v1404 = vpack.c.b16 %v1132, %v1124
    %v1405 = vpack.c.b16 %v1133, %v1125
    %v1406 = vpack.c.b16 %v1134, %v1126
    %v1407 = vpack.c.b16 %v1135, %v1127
    %v1408 = vpack.c.b16 %v1136, %v1128
    %v1409 = vpack.c.b16 %v1137, %v1129
    %v1410 = vpack.c.b16 %v1138, %v1130
    %v1411 = vpack.c.b16 %v1139, %v1131
    %v1412 = vpack.c.b16 %v1148, %v1140
    %v1413 = vpack.c.b16 %v1149, %v1141
    %v1414 = vpack.c.b16 %v1150, %v1142
    %v1415 = vpack.c.b16 %v1151, %v1143
    %v1416 = vpack.c.b16 %v1152, %v1144
    %v1417 = vpack.c.b16 %v1153, %v1145
    %v1418 = vpack.c.b16 %v1154, %v1146
    %v1419 = vpack.c.b16 %v1155, %v1147
    %v1420 = vpack.c.b16 %v1164, %v1156
    %v1421 = vpack.c.b16 %v1165, %v1157
    %v1422 = vpack.c.b16 %v1166, %v1158
    %v1423 = vpack.c.b16 %v1167, %v1159
    %v1424 = vpack.c.b16 %v1168, %v1160
    %v1425 = vpack.c.b16 %v1169, %v1161
    %v1426 = vpack.c.b16 %v1170, %v1162
    %v1427 = vpack.c.b16 %v1171, %v1163
    %1684 = vmatpush.bf16.msra.mxu0 %v1228
    %1685 = vmatpush.bf16.msra.mxu0 %v1220
    %1686 = vmatpush.bf16.msra.mxu0 %v1212
    %1687 = vmatpush.bf16.msra.mxu0 %v1204
    %1688 = vmatpush.bf16.msra.mxu0 %v1196
    %1689 = vmatpush.bf16.msra.mxu0 %v1188
    %1690 = vmatpush.bf16.msra.mxu0 %v1180
    %1691 = vmatpush.bf16.msra.mxu0 %v1172
    %1692 = vmatmul.bf16.gmra.mxu0 %v126
    %v1693 = vpop.f32.mrf.mxu0
    %v1694 = vadd.f32 %v388, %v1693
    %v1695 = vpop.f32.mrf.mxu0
    %1696 = vdwg.mxu0
    %1697 = vmatpush.bf16.msra.mxu0 %v1292
    %1698 = vmatpush.bf16.msra.mxu0 %v1284
    %1699 = vmatpush.bf16.msra.mxu0 %v1276
    %1700 = vmatpush.bf16.msra.mxu0 %v1268
    %1701 = vmatpush.bf16.msra.mxu0 %v1260
    %1702 = vmatpush.bf16.msra.mxu0 %v1252
    %1703 = vmatpush.bf16.msra.mxu0 %v1244
    %1704 = vmatpush.bf16.msra.mxu0 %v1236
    %1705 = vmatmul.bf16.gmra.mxu0 %v127
    %v1706 = vpop.f32.mrf.mxu0
    %v1707 = vadd.f32 %v1694, %v1706
    %v1708 = vpop.f32.mrf.mxu0
    %1709 = vdwg.mxu0
    %1710 = vmatpush.bf16.msra.mxu0 %v1356
    %1711 = vmatpush.bf16.msra.mxu0 %v1348
    %1712 = vmatpush.bf16.msra.mxu0 %v1340
    %1713 = vmatpush.bf16.msra.mxu0 %v1332
    %1714 = vmatpush.bf16.msra.mxu0 %v1324
    %1715 = vmatpush.bf16.msra.mxu0 %v1316
    %1716 = vmatpush.bf16.msra.mxu0 %v1308
    %1717 = vmatpush.bf16.msra.mxu0 %v1300
    %1718 = vmatmul.bf16.gmra.mxu0 %v128
    %v1719 = vpop.f32.mrf.mxu0
    %v1720 = vadd.f32 %v1707, %v1719
    %v1721 = vpop.f32.mrf.mxu0
    %1722 = vdwg.mxu0
    %1723 = vmatpush.bf16.msra.mxu0 %v1420
    %1724 = vmatpush.bf16.msra.mxu0 %v1412
    %1725 = vmatpush.bf16.msra.mxu0 %v1404
    %1726 = vmatpush.bf16.msra.mxu0 %v1396
    %1727 = vmatpush.bf16.msra.mxu0 %v1388
    %1728 = vmatpush.bf16.msra.mxu0 %v1380
    %1729 = vmatpush.bf16.msra.mxu0 %v1372
    %1730 = vmatpush.bf16.msra.mxu0 %v1364
    %1731 = vmatmul.bf16.gmra.mxu0 %v129
    %v1732 = vpop.f32.mrf.mxu0
    %v1733 = vadd.f32 %v1720, %v1732
    %v1734 = vpop.f32.mrf.mxu0
    %1735 = vdwg.mxu0
    %1736 = vmatpush.bf16.msra.mxu0 %v1229
    %1737 = vmatpush.bf16.msra.mxu0 %v1221
    %1738 = vmatpush.bf16.msra.mxu0 %v1213
    %1739 = vmatpush.bf16.msra.mxu0 %v1205
    %1740 = vmatpush.bf16.msra.mxu0 %v1197
    %1741 = vmatpush.bf16.msra.mxu0 %v1189
    %1742 = vmatpush.bf16.msra.mxu0 %v1181
    %1743 = vmatpush.bf16.msra.mxu0 %v1173
    %1744 = vmatmul.bf16.gmra.mxu0 %v126
    %v1745 = vpop.f32.mrf.mxu0
    %v1746 = vadd.f32 %v389, %v1745
    %v1747 = vpop.f32.mrf.mxu0
    %1748 = vdwg.mxu0
    %1749 = vmatpush.bf16.msra.mxu0 %v1293
    %1750 = vmatpush.bf16.msra.mxu0 %v1285
    %1751 = vmatpush.bf16.msra.mxu0 %v1277
    %1752 = vmatpush.bf16.msra.mxu0 %v1269
    %1753 = vmatpush.bf16.msra.mxu0 %v1261
    %1754 = vmatpush.bf16.msra.mxu0 %v1253
    %1755 = vmatpush.bf16.msra.mxu0 %v1245
    %1756 = vmatpush.bf16.msra.mxu0 %v1237
    %1757 = vmatmul.bf16.gmra.mxu0 %v127
    %v1758 = vpop.f32.mrf.mxu0
    %v1759 = vadd.f32 %v1746, %v1758
    %v1760 = vpop.f32.mrf.mxu0
    %1761 = vdwg.mxu0
    %1762 = vmatpush.bf16.msra.mxu0 %v1357
    %1763 = vmatpush.bf16.msra.mxu0 %v1349
    %1764 = vmatpush.bf16.msra.mxu0 %v1341
    %1765 = vmatpush.bf16.msra.mxu0 %v1333
    %1766 = vmatpush.bf16.msra.mxu0 %v1325
    %1767 = vmatpush.bf16.msra.mxu0 %v1317
    %1768 = vmatpush.bf16.msra.mxu0 %v1309
    %1769 = vmatpush.bf16.msra.mxu0 %v1301
    %1770 = vmatmul.bf16.gmra.mxu0 %v128
    %v1771 = vpop.f32.mrf.mxu0
    %v1772 = vadd.f32 %v1759, %v1771
    %v1773 = vpop.f32.mrf.mxu0
    %1774 = vdwg.mxu0
    %1775 = vmatpush.bf16.msra.mxu0 %v1421
    %1776 = vmatpush.bf16.msra.mxu0 %v1413
    %1777 = vmatpush.bf16.msra.mxu0 %v1405
    %1778 = vmatpush.bf16.msra.mxu0 %v1397
    %1779 = vmatpush.bf16.msra.mxu0 %v1389
    %1780 = vmatpush.bf16.msra.mxu0 %v1381
    %1781 = vmatpush.bf16.msra.mxu0 %v1373
    %1782 = vmatpush.bf16.msra.mxu0 %v1365
    %1783 = vmatmul.bf16.gmra.mxu0 %v129
    %v1784 = vpop.f32.mrf.mxu0
    %v1785 = vadd.f32 %v1772, %v1784
    %v1786 = vpop.f32.mrf.mxu0
    %1787 = vdwg.mxu0
    %1788 = vmatpush.bf16.msra.mxu0 %v1230
    %1789 = vmatpush.bf16.msra.mxu0 %v1222
    %1790 = vmatpush.bf16.msra.mxu0 %v1214
    %1791 = vmatpush.bf16.msra.mxu0 %v1206
    %1792 = vmatpush.bf16.msra.mxu0 %v1198
    %1793 = vmatpush.bf16.msra.mxu0 %v1190
    %1794 = vmatpush.bf16.msra.mxu0 %v1182
    %1795 = vmatpush.bf16.msra.mxu0 %v1174
    %1796 = vmatmul.bf16.gmra.mxu0 %v126
    %v1797 = vpop.f32.mrf.mxu0
    %v1798 = vadd.f32 %v390, %v1797
    %v1799 = vpop.f32.mrf.mxu0
    %1800 = vdwg.mxu0
    %1801 = vmatpush.bf16.msra.mxu0 %v1294
    %1802 = vmatpush.bf16.msra.mxu0 %v1286
    %1803 = vmatpush.bf16.msra.mxu0 %v1278
    %1804 = vmatpush.bf16.msra.mxu0 %v1270
    %1805 = vmatpush.bf16.msra.mxu0 %v1262
    %1806 = vmatpush.bf16.msra.mxu0 %v1254
    %1807 = vmatpush.bf16.msra.mxu0 %v1246
    %1808 = vmatpush.bf16.msra.mxu0 %v1238
    %1809 = vmatmul.bf16.gmra.mxu0 %v127
    %v1810 = vpop.f32.mrf.mxu0
    %v1811 = vadd.f32 %v1798, %v1810
    %v1812 = vpop.f32.mrf.mxu0
    %1813 = vdwg.mxu0
    %1814 = vmatpush.bf16.msra.mxu0 %v1358
    %1815 = vmatpush.bf16.msra.mxu0 %v1350
    %1816 = vmatpush.bf16.msra.mxu0 %v1342
    %1817 = vmatpush.bf16.msra.mxu0 %v1334
    %1818 = vmatpush.bf16.msra.mxu0 %v1326
    %1819 = vmatpush.bf16.msra.mxu0 %v1318
    %1820 = vmatpush.bf16.msra.mxu0 %v1310
    %1821 = vmatpush.bf16.msra.mxu0 %v1302
    %1822 = vmatmul.bf16.gmra.mxu0 %v128
    %v1823 = vpop.f32.mrf.mxu0
    %v1824 = vadd.f32 %v1811, %v1823
    %v1825 = vpop.f32.mrf.mxu0
    %1826 = vdwg.mxu0
    %1827 = vmatpush.bf16.msra.mxu0 %v1422
    %1828 = vmatpush.bf16.msra.mxu0 %v1414
    %1829 = vmatpush.bf16.msra.mxu0 %v1406
    %1830 = vmatpush.bf16.msra.mxu0 %v1398
    %1831 = vmatpush.bf16.msra.mxu0 %v1390
    %1832 = vmatpush.bf16.msra.mxu0 %v1382
    %1833 = vmatpush.bf16.msra.mxu0 %v1374
    %1834 = vmatpush.bf16.msra.mxu0 %v1366
    %1835 = vmatmul.bf16.gmra.mxu0 %v129
    %v1836 = vpop.f32.mrf.mxu0
    %v1837 = vadd.f32 %v1824, %v1836
    %v1838 = vpop.f32.mrf.mxu0
    %1839 = vdwg.mxu0
    %1840 = vmatpush.bf16.msra.mxu0 %v1231
    %1841 = vmatpush.bf16.msra.mxu0 %v1223
    %1842 = vmatpush.bf16.msra.mxu0 %v1215
    %1843 = vmatpush.bf16.msra.mxu0 %v1207
    %1844 = vmatpush.bf16.msra.mxu0 %v1199
    %1845 = vmatpush.bf16.msra.mxu0 %v1191
    %1846 = vmatpush.bf16.msra.mxu0 %v1183
    %1847 = vmatpush.bf16.msra.mxu0 %v1175
    %1848 = vmatmul.bf16.gmra.mxu0 %v126
    %v1849 = vpop.f32.mrf.mxu0
    %v1850 = vadd.f32 %v391, %v1849
    %v1851 = vpop.f32.mrf.mxu0
    %1852 = vdwg.mxu0
    %1853 = vmatpush.bf16.msra.mxu0 %v1295
    %1854 = vmatpush.bf16.msra.mxu0 %v1287
    %1855 = vmatpush.bf16.msra.mxu0 %v1279
    %1856 = vmatpush.bf16.msra.mxu0 %v1271
    %1857 = vmatpush.bf16.msra.mxu0 %v1263
    %1858 = vmatpush.bf16.msra.mxu0 %v1255
    %1859 = vmatpush.bf16.msra.mxu0 %v1247
    %1860 = vmatpush.bf16.msra.mxu0 %v1239
    %1861 = vmatmul.bf16.gmra.mxu0 %v127
    %v1862 = vpop.f32.mrf.mxu0
    %v1863 = vadd.f32 %v1850, %v1862
    %v1864 = vpop.f32.mrf.mxu0
    %1865 = vdwg.mxu0
    %1866 = vmatpush.bf16.msra.mxu0 %v1359
    %1867 = vmatpush.bf16.msra.mxu0 %v1351
    %1868 = vmatpush.bf16.msra.mxu0 %v1343
    %1869 = vmatpush.bf16.msra.mxu0 %v1335
    %1870 = vmatpush.bf16.msra.mxu0 %v1327
    %1871 = vmatpush.bf16.msra.mxu0 %v1319
    %1872 = vmatpush.bf16.msra.mxu0 %v1311
    %1873 = vmatpush.bf16.msra.mxu0 %v1303
    %1874 = vmatmul.bf16.gmra.mxu0 %v128
    %v1875 = vpop.f32.mrf.mxu0
    %v1876 = vadd.f32 %v1863, %v1875
    %v1877 = vpop.f32.mrf.mxu0
    %1878 = vdwg.mxu0
    %1879 = vmatpush.bf16.msra.mxu0 %v1423
    %1880 = vmatpush.bf16.msra.mxu0 %v1415
    %1881 = vmatpush.bf16.msra.mxu0 %v1407
    %1882 = vmatpush.bf16.msra.mxu0 %v1399
    %1883 = vmatpush.bf16.msra.mxu0 %v1391
    %1884 = vmatpush.bf16.msra.mxu0 %v1383
    %1885 = vmatpush.bf16.msra.mxu0 %v1375
    %1886 = vmatpush.bf16.msra.mxu0 %v1367
    %1887 = vmatmul.bf16.gmra.mxu0 %v129
    %v1888 = vpop.f32.mrf.mxu0
    %v1889 = vadd.f32 %v1876, %v1888
    %v1890 = vpop.f32.mrf.mxu0
    %1891 = vdwg.mxu0
    %1892 = vmatpush.bf16.msra.mxu0 %v1232
    %1893 = vmatpush.bf16.msra.mxu0 %v1224
    %1894 = vmatpush.bf16.msra.mxu0 %v1216
    %1895 = vmatpush.bf16.msra.mxu0 %v1208
    %1896 = vmatpush.bf16.msra.mxu0 %v1200
    %1897 = vmatpush.bf16.msra.mxu0 %v1192
    %1898 = vmatpush.bf16.msra.mxu0 %v1184
    %1899 = vmatpush.bf16.msra.mxu0 %v1176
    %1900 = vmatmul.bf16.gmra.mxu0 %v126
    %v1901 = vpop.f32.mrf.mxu0
    %v1902 = vadd.f32 %v392, %v1901
    %v1903 = vpop.f32.mrf.mxu0
    %1904 = vdwg.mxu0
    %1905 = vmatpush.bf16.msra.mxu0 %v1296
    %1906 = vmatpush.bf16.msra.mxu0 %v1288
    %1907 = vmatpush.bf16.msra.mxu0 %v1280
    %1908 = vmatpush.bf16.msra.mxu0 %v1272
    %1909 = vmatpush.bf16.msra.mxu0 %v1264
    %1910 = vmatpush.bf16.msra.mxu0 %v1256
    %1911 = vmatpush.bf16.msra.mxu0 %v1248
    %1912 = vmatpush.bf16.msra.mxu0 %v1240
    %1913 = vmatmul.bf16.gmra.mxu0 %v127
    %v1914 = vpop.f32.mrf.mxu0
    %v1915 = vadd.f32 %v1902, %v1914
    %v1916 = vpop.f32.mrf.mxu0
    %1917 = vdwg.mxu0
    %1918 = vmatpush.bf16.msra.mxu0 %v1360
    %1919 = vmatpush.bf16.msra.mxu0 %v1352
    %1920 = vmatpush.bf16.msra.mxu0 %v1344
    %1921 = vmatpush.bf16.msra.mxu0 %v1336
    %1922 = vmatpush.bf16.msra.mxu0 %v1328
    %1923 = vmatpush.bf16.msra.mxu0 %v1320
    %1924 = vmatpush.bf16.msra.mxu0 %v1312
    %1925 = vmatpush.bf16.msra.mxu0 %v1304
    %1926 = vmatmul.bf16.gmra.mxu0 %v128
    %v1927 = vpop.f32.mrf.mxu0
    %v1928 = vadd.f32 %v1915, %v1927
    %v1929 = vpop.f32.mrf.mxu0
    %1930 = vdwg.mxu0
    %1931 = vmatpush.bf16.msra.mxu0 %v1424
    %1932 = vmatpush.bf16.msra.mxu0 %v1416
    %1933 = vmatpush.bf16.msra.mxu0 %v1408
    %1934 = vmatpush.bf16.msra.mxu0 %v1400
    %1935 = vmatpush.bf16.msra.mxu0 %v1392
    %1936 = vmatpush.bf16.msra.mxu0 %v1384
    %1937 = vmatpush.bf16.msra.mxu0 %v1376
    %1938 = vmatpush.bf16.msra.mxu0 %v1368
    %1939 = vmatmul.bf16.gmra.mxu0 %v129
    %v1940 = vpop.f32.mrf.mxu0
    %v1941 = vadd.f32 %v1928, %v1940
    %v1942 = vpop.f32.mrf.mxu0
    %1943 = vdwg.mxu0
    %1944 = vmatpush.bf16.msra.mxu0 %v1233
    %1945 = vmatpush.bf16.msra.mxu0 %v1225
    %1946 = vmatpush.bf16.msra.mxu0 %v1217
    %1947 = vmatpush.bf16.msra.mxu0 %v1209
    %1948 = vmatpush.bf16.msra.mxu0 %v1201
    %1949 = vmatpush.bf16.msra.mxu0 %v1193
    %1950 = vmatpush.bf16.msra.mxu0 %v1185
    %1951 = vmatpush.bf16.msra.mxu0 %v1177
    %1952 = vmatmul.bf16.gmra.mxu0 %v126
    %v1953 = vpop.f32.mrf.mxu0
    %v1954 = vadd.f32 %v393, %v1953
    %v1955 = vpop.f32.mrf.mxu0
    %1956 = vdwg.mxu0
    %1957 = vmatpush.bf16.msra.mxu0 %v1297
    %1958 = vmatpush.bf16.msra.mxu0 %v1289
    %1959 = vmatpush.bf16.msra.mxu0 %v1281
    %1960 = vmatpush.bf16.msra.mxu0 %v1273
    %1961 = vmatpush.bf16.msra.mxu0 %v1265
    %1962 = vmatpush.bf16.msra.mxu0 %v1257
    %1963 = vmatpush.bf16.msra.mxu0 %v1249
    %1964 = vmatpush.bf16.msra.mxu0 %v1241
    %1965 = vmatmul.bf16.gmra.mxu0 %v127
    %v1966 = vpop.f32.mrf.mxu0
    %v1967 = vadd.f32 %v1954, %v1966
    %v1968 = vpop.f32.mrf.mxu0
    %1969 = vdwg.mxu0
    %1970 = vmatpush.bf16.msra.mxu0 %v1361
    %1971 = vmatpush.bf16.msra.mxu0 %v1353
    %1972 = vmatpush.bf16.msra.mxu0 %v1345
    %1973 = vmatpush.bf16.msra.mxu0 %v1337
    %1974 = vmatpush.bf16.msra.mxu0 %v1329
    %1975 = vmatpush.bf16.msra.mxu0 %v1321
    %1976 = vmatpush.bf16.msra.mxu0 %v1313
    %1977 = vmatpush.bf16.msra.mxu0 %v1305
    %1978 = vmatmul.bf16.gmra.mxu0 %v128
    %v1979 = vpop.f32.mrf.mxu0
    %v1980 = vadd.f32 %v1967, %v1979
    %v1981 = vpop.f32.mrf.mxu0
    %1982 = vdwg.mxu0
    %1983 = vmatpush.bf16.msra.mxu0 %v1425
    %1984 = vmatpush.bf16.msra.mxu0 %v1417
    %1985 = vmatpush.bf16.msra.mxu0 %v1409
    %1986 = vmatpush.bf16.msra.mxu0 %v1401
    %1987 = vmatpush.bf16.msra.mxu0 %v1393
    %1988 = vmatpush.bf16.msra.mxu0 %v1385
    %1989 = vmatpush.bf16.msra.mxu0 %v1377
    %1990 = vmatpush.bf16.msra.mxu0 %v1369
    %1991 = vmatmul.bf16.gmra.mxu0 %v129
    %v1992 = vpop.f32.mrf.mxu0
    %v1993 = vadd.f32 %v1980, %v1992
    %v1994 = vpop.f32.mrf.mxu0
    %1995 = vdwg.mxu0
    %1996 = vmatpush.bf16.msra.mxu0 %v1234
    %1997 = vmatpush.bf16.msra.mxu0 %v1226
    %1998 = vmatpush.bf16.msra.mxu0 %v1218
    %1999 = vmatpush.bf16.msra.mxu0 %v1210
    %2000 = vmatpush.bf16.msra.mxu0 %v1202
    %2001 = vmatpush.bf16.msra.mxu0 %v1194
    %2002 = vmatpush.bf16.msra.mxu0 %v1186
    %2003 = vmatpush.bf16.msra.mxu0 %v1178
    %2004 = vmatmul.bf16.gmra.mxu0 %v126
    %v2005 = vpop.f32.mrf.mxu0
    %v2006 = vadd.f32 %v394, %v2005
    %v2007 = vpop.f32.mrf.mxu0
    %2008 = vdwg.mxu0
    %2009 = vmatpush.bf16.msra.mxu0 %v1298
    %2010 = vmatpush.bf16.msra.mxu0 %v1290
    %2011 = vmatpush.bf16.msra.mxu0 %v1282
    %2012 = vmatpush.bf16.msra.mxu0 %v1274
    %2013 = vmatpush.bf16.msra.mxu0 %v1266
    %2014 = vmatpush.bf16.msra.mxu0 %v1258
    %2015 = vmatpush.bf16.msra.mxu0 %v1250
    %2016 = vmatpush.bf16.msra.mxu0 %v1242
    %2017 = vmatmul.bf16.gmra.mxu0 %v127
    %v2018 = vpop.f32.mrf.mxu0
    %v2019 = vadd.f32 %v2006, %v2018
    %v2020 = vpop.f32.mrf.mxu0
    %2021 = vdwg.mxu0
    %2022 = vmatpush.bf16.msra.mxu0 %v1362
    %2023 = vmatpush.bf16.msra.mxu0 %v1354
    %2024 = vmatpush.bf16.msra.mxu0 %v1346
    %2025 = vmatpush.bf16.msra.mxu0 %v1338
    %2026 = vmatpush.bf16.msra.mxu0 %v1330
    %2027 = vmatpush.bf16.msra.mxu0 %v1322
    %2028 = vmatpush.bf16.msra.mxu0 %v1314
    %2029 = vmatpush.bf16.msra.mxu0 %v1306
    %2030 = vmatmul.bf16.gmra.mxu0 %v128
    %v2031 = vpop.f32.mrf.mxu0
    %v2032 = vadd.f32 %v2019, %v2031
    %v2033 = vpop.f32.mrf.mxu0
    %2034 = vdwg.mxu0
    %2035 = vmatpush.bf16.msra.mxu0 %v1426
    %2036 = vmatpush.bf16.msra.mxu0 %v1418
    %2037 = vmatpush.bf16.msra.mxu0 %v1410
    %2038 = vmatpush.bf16.msra.mxu0 %v1402
    %2039 = vmatpush.bf16.msra.mxu0 %v1394
    %2040 = vmatpush.bf16.msra.mxu0 %v1386
    %2041 = vmatpush.bf16.msra.mxu0 %v1378
    %2042 = vmatpush.bf16.msra.mxu0 %v1370
    %2043 = vmatmul.bf16.gmra.mxu0 %v129
    %v2044 = vpop.f32.mrf.mxu0
    %v2045 = vadd.f32 %v2032, %v2044
    %v2046 = vpop.f32.mrf.mxu0
    %2047 = vdwg.mxu0
    %2048 = vmatpush.bf16.msra.mxu0 %v1235
    %2049 = vmatpush.bf16.msra.mxu0 %v1227
    %2050 = vmatpush.bf16.msra.mxu0 %v1219
    %2051 = vmatpush.bf16.msra.mxu0 %v1211
    %2052 = vmatpush.bf16.msra.mxu0 %v1203
    %2053 = vmatpush.bf16.msra.mxu0 %v1195
    %2054 = vmatpush.bf16.msra.mxu0 %v1187
    %2055 = vmatpush.bf16.msra.mxu0 %v1179
    %2056 = vmatmul.bf16.gmra.mxu0 %v126
    %v2057 = vpop.f32.mrf.mxu0
    %v2058 = vadd.f32 %v395, %v2057
    %v2059 = vpop.f32.mrf.mxu0
    %2060 = vdwg.mxu0
    %2061 = vmatpush.bf16.msra.mxu0 %v1299
    %2062 = vmatpush.bf16.msra.mxu0 %v1291
    %2063 = vmatpush.bf16.msra.mxu0 %v1283
    %2064 = vmatpush.bf16.msra.mxu0 %v1275
    %2065 = vmatpush.bf16.msra.mxu0 %v1267
    %2066 = vmatpush.bf16.msra.mxu0 %v1259
    %2067 = vmatpush.bf16.msra.mxu0 %v1251
    %2068 = vmatpush.bf16.msra.mxu0 %v1243
    %2069 = vmatmul.bf16.gmra.mxu0 %v127
    %v2070 = vpop.f32.mrf.mxu0
    %v2071 = vadd.f32 %v2058, %v2070
    %v2072 = vpop.f32.mrf.mxu0
    %2073 = vdwg.mxu0
    %2074 = vmatpush.bf16.msra.mxu0 %v1363
    %2075 = vmatpush.bf16.msra.mxu0 %v1355
    %2076 = vmatpush.bf16.msra.mxu0 %v1347
    %2077 = vmatpush.bf16.msra.mxu0 %v1339
    %2078 = vmatpush.bf16.msra.mxu0 %v1331
    %2079 = vmatpush.bf16.msra.mxu0 %v1323
    %2080 = vmatpush.bf16.msra.mxu0 %v1315
    %2081 = vmatpush.bf16.msra.mxu0 %v1307
    %2082 = vmatmul.bf16.gmra.mxu0 %v128
    %v2083 = vpop.f32.mrf.mxu0
    %v2084 = vadd.f32 %v2071, %v2083
    %v2085 = vpop.f32.mrf.mxu0
    %2086 = vdwg.mxu0
    %2087 = vmatpush.bf16.msra.mxu0 %v1427
    %2088 = vmatpush.bf16.msra.mxu0 %v1419
    %2089 = vmatpush.bf16.msra.mxu0 %v1411
    %2090 = vmatpush.bf16.msra.mxu0 %v1403
    %2091 = vmatpush.bf16.msra.mxu0 %v1395
    %2092 = vmatpush.bf16.msra.mxu0 %v1387
    %2093 = vmatpush.bf16.msra.mxu0 %v1379
    %2094 = vmatpush.bf16.msra.mxu0 %v1371
    %2095 = vmatmul.bf16.gmra.mxu0 %v129
    %v2096 = vpop.f32.mrf.mxu0
    %v2097 = vadd.f32 %v2084, %v2096
    %v2098 = vpop.f32.mrf.mxu0
    %2099 = vdwg.mxu0
    %v2100 = vmax.f32 %v1733, 0.0
    %v2101 = vmax.f32 %v1785, 0.0
    %v2102 = vmax.f32 %v1837, 0.0
    %v2103 = vmax.f32 %v1889, 0.0
    %v2104 = vmax.f32 %v1941, 0.0
    %v2105 = vmax.f32 %v1993, 0.0
    %v2106 = vmax.f32 %v2045, 0.0
    %v2107 = vmax.f32 %v2097, 0.0
    %v2108 = vpack.c.bf16 %v2100, %v2100
    %v2109 = vpack.c.bf16 %v2101, %v2101
    %v2110 = vpack.c.bf16 %v2102, %v2102
    %v2111 = vpack.c.bf16 %v2103, %v2103
    %v2112 = vpack.c.bf16 %v2104, %v2104
    %v2113 = vpack.c.bf16 %v2105, %v2105
    %v2114 = vpack.c.bf16 %v2106, %v2106
    %v2115 = vpack.c.bf16 %v2107, %v2107
    %v2116 = vld [vmem:[#allocation8] sm:$0xff]
    %v2117 = vld [vmem:[#allocation8 + $0x8] sm:$0xff]
    %v2118 = vld [vmem:[#allocation8 + $0x10] sm:$0xff]
    %v2119 = vld [vmem:[#allocation8 + $0x18] sm:$0xff]
    %v2120 = vld [vmem:[#allocation8 + $0x20] sm:$0xff]
    %v2121 = vld [vmem:[#allocation8 + $0x28] sm:$0xff]
    %v2122 = vld [vmem:[#allocation8 + $0x30] sm:$0xff]
    %v2123 = vld [vmem:[#allocation8 + $0x38] sm:$0xff]
    %v2124 = vld [vmem:[#allocation8 + $0x40] sm:$0xff]
    %v2125 = vld [vmem:[#allocation8 + $0x48] sm:$0xff]
    %v2126 = vld [vmem:[#allocation8 + $0x50] sm:$0xff]
    %v2127 = vld [vmem:[#allocation8 + $0x58] sm:$0xff]
    %v2128 = vld [vmem:[#allocation8 + $0x60] sm:$0xff]
    %v2129 = vld [vmem:[#allocation8 + $0x68] sm:$0xff]
    %v2130 = vld [vmem:[#allocation8 + $0x70] sm:$0xff]
    %v2131 = vld [vmem:[#allocation8 + $0x78] sm:$0xff]
    %v2132 = vld [vmem:[#allocation8 + $0x80] sm:$0xff]
    %v2133 = vld [vmem:[#allocation8 + $0x88] sm:$0xff]
    %v2134 = vld [vmem:[#allocation8 + $0x90] sm:$0xff]
    %v2135 = vld [vmem:[#allocation8 + $0x98] sm:$0xff]
    %v2136 = vld [vmem:[#allocation8 + $0xa0] sm:$0xff]
    %v2137 = vld [vmem:[#allocation8 + $0xa8] sm:$0xff]
    %v2138 = vld [vmem:[#allocation8 + $0xb0] sm:$0xff]
    %v2139 = vld [vmem:[#allocation8 + $0xb8] sm:$0xff]
    %v2140 = vld [vmem:[#allocation8 + $0xc0] sm:$0xff]
    %v2141 = vld [vmem:[#allocation8 + $0xc8] sm:$0xff]
    %v2142 = vld [vmem:[#allocation8 + $0xd0] sm:$0xff]
    %v2143 = vld [vmem:[#allocation8 + $0xd8] sm:$0xff]
    %v2144 = vld [vmem:[#allocation8 + $0xe0] sm:$0xff]
    %v2145 = vld [vmem:[#allocation8 + $0xe8] sm:$0xff]
    %v2146 = vld [vmem:[#allocation8 + $0xf0] sm:$0xff]
    %v2147 = vld [vmem:[#allocation8 + $0xf8] sm:$0xff]
    %v2148 = vld [vmem:[#allocation8 + $0x100] sm:$0xff]
    %v2149 = vld [vmem:[#allocation8 + $0x108] sm:$0xff]
    %v2150 = vld [vmem:[#allocation8 + $0x110] sm:$0xff]
    %v2151 = vld [vmem:[#allocation8 + $0x118] sm:$0xff]
    %v2152 = vld [vmem:[#allocation8 + $0x120] sm:$0xff]
    %v2153 = vld [vmem:[#allocation8 + $0x128] sm:$0xff]
    %v2154 = vld [vmem:[#allocation8 + $0x130] sm:$0xff]
    %v2155 = vld [vmem:[#allocation8 + $0x138] sm:$0xff]
    %v2156 = vld [vmem:[#allocation8 + $0x140] sm:$0xff]
    %v2157 = vld [vmem:[#allocation8 + $0x148] sm:$0xff]
    %v2158 = vld [vmem:[#allocation8 + $0x150] sm:$0xff]
    %v2159 = vld [vmem:[#allocation8 + $0x158] sm:$0xff]
    %v2160 = vld [vmem:[#allocation8 + $0x160] sm:$0xff]
    %v2161 = vld [vmem:[#allocation8 + $0x168] sm:$0xff]
    %v2162 = vld [vmem:[#allocation8 + $0x170] sm:$0xff]
    %v2163 = vld [vmem:[#allocation8 + $0x178] sm:$0xff]
    %v2164 = vld [vmem:[#allocation8 + $0x180] sm:$0xff]
    %v2165 = vld [vmem:[#allocation8 + $0x188] sm:$0xff]
    %v2166 = vld [vmem:[#allocation8 + $0x190] sm:$0xff]
    %v2167 = vld [vmem:[#allocation8 + $0x198] sm:$0xff]
    %v2168 = vld [vmem:[#allocation8 + $0x1a0] sm:$0xff]
    %v2169 = vld [vmem:[#allocation8 + $0x1a8] sm:$0xff]
    %v2170 = vld [vmem:[#allocation8 + $0x1b0] sm:$0xff]
    %v2171 = vld [vmem:[#allocation8 + $0x1b8] sm:$0xff]
    %v2172 = vld [vmem:[#allocation8 + $0x1c0] sm:$0xff]
    %v2173 = vld [vmem:[#allocation8 + $0x1c8] sm:$0xff]
    %v2174 = vld [vmem:[#allocation8 + $0x1d0] sm:$0xff]
    %v2175 = vld [vmem:[#allocation8 + $0x1d8] sm:$0xff]
    %v2176 = vld [vmem:[#allocation8 + $0x1e0] sm:$0xff]
    %v2177 = vld [vmem:[#allocation8 + $0x1e8] sm:$0xff]
    %v2178 = vld [vmem:[#allocation8 + $0x1f0] sm:$0xff]
    %v2179 = vld [vmem:[#allocation8 + $0x1f8] sm:$0xff]
    %v2180 = vld [vmem:[#allocation8 + $0x200] sm:$0xff]
    %v2181 = vld [vmem:[#allocation8 + $0x208] sm:$0xff]
    %v2182 = vld [vmem:[#allocation8 + $0x210] sm:$0xff]
    %v2183 = vld [vmem:[#allocation8 + $0x218] sm:$0xff]
    %v2184 = vld [vmem:[#allocation8 + $0x220] sm:$0xff]
    %v2185 = vld [vmem:[#allocation8 + $0x228] sm:$0xff]
    %v2186 = vld [vmem:[#allocation8 + $0x230] sm:$0xff]
    %v2187 = vld [vmem:[#allocation8 + $0x238] sm:$0xff]
    %v2188 = vld [vmem:[#allocation8 + $0x240] sm:$0xff]
    %v2189 = vld [vmem:[#allocation8 + $0x248] sm:$0xff]
    %v2190 = vld [vmem:[#allocation8 + $0x250] sm:$0xff]
    %v2191 = vld [vmem:[#allocation8 + $0x258] sm:$0xff]
    %v2192 = vld [vmem:[#allocation8 + $0x260] sm:$0xff]
    %v2193 = vld [vmem:[#allocation8 + $0x268] sm:$0xff]
    %v2194 = vld [vmem:[#allocation8 + $0x270] sm:$0xff]
    %v2195 = vld [vmem:[#allocation8 + $0x278] sm:$0xff]
    %v2196 = vld [vmem:[#allocation8 + $0x280] sm:$0xff]
    %v2197 = vld [vmem:[#allocation8 + $0x288] sm:$0xff]
    %v2198 = vld [vmem:[#allocation8 + $0x290] sm:$0xff]
    %v2199 = vld [vmem:[#allocation8 + $0x298] sm:$0xff]
    %v2200 = vld [vmem:[#allocation8 + $0x2a0] sm:$0xff]
    %v2201 = vld [vmem:[#allocation8 + $0x2a8] sm:$0xff]
    %v2202 = vld [vmem:[#allocation8 + $0x2b0] sm:$0xff]
    %v2203 = vld [vmem:[#allocation8 + $0x2b8] sm:$0xff]
    %v2204 = vld [vmem:[#allocation8 + $0x2c0] sm:$0xff]
    %v2205 = vld [vmem:[#allocation8 + $0x2c8] sm:$0xff]
    %v2206 = vld [vmem:[#allocation8 + $0x2d0] sm:$0xff]
    %v2207 = vld [vmem:[#allocation8 + $0x2d8] sm:$0xff]
    %v2208 = vld [vmem:[#allocation8 + $0x2e0] sm:$0xff]
    %v2209 = vld [vmem:[#allocation8 + $0x2e8] sm:$0xff]
    %v2210 = vld [vmem:[#allocation8 + $0x2f0] sm:$0xff]
    %v2211 = vld [vmem:[#allocation8 + $0x2f8] sm:$0xff]
    %v2212 = vld [vmem:[#allocation8 + $0x300] sm:$0xff]
    %v2213 = vld [vmem:[#allocation8 + $0x308] sm:$0xff]
    %v2214 = vld [vmem:[#allocation8 + $0x310] sm:$0xff]
    %v2215 = vld [vmem:[#allocation8 + $0x318] sm:$0xff]
    %v2216 = vld [vmem:[#allocation8 + $0x320] sm:$0xff]
    %v2217 = vld [vmem:[#allocation8 + $0x328] sm:$0xff]
    %v2218 = vld [vmem:[#allocation8 + $0x330] sm:$0xff]
    %v2219 = vld [vmem:[#allocation8 + $0x338] sm:$0xff]
    %v2220 = vld [vmem:[#allocation8 + $0x340] sm:$0xff]
    %v2221 = vld [vmem:[#allocation8 + $0x348] sm:$0xff]
    %v2222 = vld [vmem:[#allocation8 + $0x350] sm:$0xff]
    %v2223 = vld [vmem:[#allocation8 + $0x358] sm:$0xff]
    %v2224 = vld [vmem:[#allocation8 + $0x360] sm:$0xff]
    %v2225 = vld [vmem:[#allocation8 + $0x368] sm:$0xff]
    %v2226 = vld [vmem:[#allocation8 + $0x370] sm:$0xff]
    %v2227 = vld [vmem:[#allocation8 + $0x378] sm:$0xff]
    %v2228 = vld [vmem:[#allocation8 + $0x380] sm:$0xff]
    %v2229 = vld [vmem:[#allocation8 + $0x388] sm:$0xff]
    %v2230 = vld [vmem:[#allocation8 + $0x390] sm:$0xff]
    %v2231 = vld [vmem:[#allocation8 + $0x398] sm:$0xff]
    %v2232 = vld [vmem:[#allocation8 + $0x3a0] sm:$0xff]
    %v2233 = vld [vmem:[#allocation8 + $0x3a8] sm:$0xff]
    %v2234 = vld [vmem:[#allocation8 + $0x3b0] sm:$0xff]
    %v2235 = vld [vmem:[#allocation8 + $0x3b8] sm:$0xff]
    %v2236 = vld [vmem:[#allocation8 + $0x3c0] sm:$0xff]
    %v2237 = vld [vmem:[#allocation8 + $0x3c8] sm:$0xff]
    %v2238 = vld [vmem:[#allocation8 + $0x3d0] sm:$0xff]
    %v2239 = vld [vmem:[#allocation8 + $0x3d8] sm:$0xff]
    %v2240 = vld [vmem:[#allocation8 + $0x3e0] sm:$0xff]
    %v2241 = vld [vmem:[#allocation8 + $0x3e8] sm:$0xff]
    %v2242 = vld [vmem:[#allocation8 + $0x3f0] sm:$0xff]
    %v2243 = vld [vmem:[#allocation8 + $0x3f8] sm:$0xff]
    %v2244 = vld [vmem:[#allocation8 + $0x400] sm:$0xff]
    %v2245 = vld [vmem:[#allocation8 + $0x408] sm:$0xff]
    %v2246 = vld [vmem:[#allocation8 + $0x410] sm:$0xff]
    %v2247 = vld [vmem:[#allocation8 + $0x418] sm:$0xff]
    %v2248 = vld [vmem:[#allocation8 + $0x420] sm:$0xff]
    %v2249 = vld [vmem:[#allocation8 + $0x428] sm:$0xff]
    %v2250 = vld [vmem:[#allocation8 + $0x430] sm:$0xff]
    %v2251 = vld [vmem:[#allocation8 + $0x438] sm:$0xff]
    %v2252 = vld [vmem:[#allocation8 + $0x440] sm:$0xff]
    %v2253 = vld [vmem:[#allocation8 + $0x448] sm:$0xff]
    %v2254 = vld [vmem:[#allocation8 + $0x450] sm:$0xff]
    %v2255 = vld [vmem:[#allocation8 + $0x458] sm:$0xff]
    %v2256 = vld [vmem:[#allocation8 + $0x460] sm:$0xff]
    %v2257 = vld [vmem:[#allocation8 + $0x468] sm:$0xff]
    %v2258 = vld [vmem:[#allocation8 + $0x470] sm:$0xff]
    %v2259 = vld [vmem:[#allocation8 + $0x478] sm:$0xff]
    %v2260 = vld [vmem:[#allocation8 + $0x480] sm:$0xff]
    %v2261 = vld [vmem:[#allocation8 + $0x488] sm:$0xff]
    %v2262 = vld [vmem:[#allocation8 + $0x490] sm:$0xff]
    %v2263 = vld [vmem:[#allocation8 + $0x498] sm:$0xff]
    %v2264 = vld [vmem:[#allocation8 + $0x4a0] sm:$0xff]
    %v2265 = vld [vmem:[#allocation8 + $0x4a8] sm:$0xff]
    %v2266 = vld [vmem:[#allocation8 + $0x4b0] sm:$0xff]
    %v2267 = vld [vmem:[#allocation8 + $0x4b8] sm:$0xff]
    %v2268 = vld [vmem:[#allocation8 + $0x4c0] sm:$0xff]
    %v2269 = vld [vmem:[#allocation8 + $0x4c8] sm:$0xff]
    %v2270 = vld [vmem:[#allocation8 + $0x4d0] sm:$0xff]
    %v2271 = vld [vmem:[#allocation8 + $0x4d8] sm:$0xff]
    %v2272 = vld [vmem:[#allocation8 + $0x4e0] sm:$0xff]
    %v2273 = vld [vmem:[#allocation8 + $0x4e8] sm:$0xff]
    %v2274 = vld [vmem:[#allocation8 + $0x4f0] sm:$0xff]
    %v2275 = vld [vmem:[#allocation8 + $0x4f8] sm:$0xff]
    %v2276 = vld [vmem:[#allocation8 + $0x500] sm:$0xff]
    %v2277 = vld [vmem:[#allocation8 + $0x508] sm:$0xff]
    %v2278 = vld [vmem:[#allocation8 + $0x510] sm:$0xff]
    %v2279 = vld [vmem:[#allocation8 + $0x518] sm:$0xff]
    %v2280 = vld [vmem:[#allocation8 + $0x520] sm:$0xff]
    %v2281 = vld [vmem:[#allocation8 + $0x528] sm:$0xff]
    %v2282 = vld [vmem:[#allocation8 + $0x530] sm:$0xff]
    %v2283 = vld [vmem:[#allocation8 + $0x538] sm:$0xff]
    %v2284 = vld [vmem:[#allocation8 + $0x540] sm:$0xff]
    %v2285 = vld [vmem:[#allocation8 + $0x548] sm:$0xff]
    %v2286 = vld [vmem:[#allocation8 + $0x550] sm:$0xff]
    %v2287 = vld [vmem:[#allocation8 + $0x558] sm:$0xff]
    %v2288 = vld [vmem:[#allocation8 + $0x560] sm:$0xff]
    %v2289 = vld [vmem:[#allocation8 + $0x568] sm:$0xff]
    %v2290 = vld [vmem:[#allocation8 + $0x570] sm:$0xff]
    %v2291 = vld [vmem:[#allocation8 + $0x578] sm:$0xff]
    %v2292 = vld [vmem:[#allocation8 + $0x580] sm:$0xff]
    %v2293 = vld [vmem:[#allocation8 + $0x588] sm:$0xff]
    %v2294 = vld [vmem:[#allocation8 + $0x590] sm:$0xff]
    %v2295 = vld [vmem:[#allocation8 + $0x598] sm:$0xff]
    %v2296 = vld [vmem:[#allocation8 + $0x5a0] sm:$0xff]
    %v2297 = vld [vmem:[#allocation8 + $0x5a8] sm:$0xff]
    %v2298 = vld [vmem:[#allocation8 + $0x5b0] sm:$0xff]
    %v2299 = vld [vmem:[#allocation8 + $0x5b8] sm:$0xff]
    %v2300 = vld [vmem:[#allocation8 + $0x5c0] sm:$0xff]
    %v2301 = vld [vmem:[#allocation8 + $0x5c8] sm:$0xff]
    %v2302 = vld [vmem:[#allocation8 + $0x5d0] sm:$0xff]
    %v2303 = vld [vmem:[#allocation8 + $0x5d8] sm:$0xff]
    %v2304 = vld [vmem:[#allocation8 + $0x5e0] sm:$0xff]
    %v2305 = vld [vmem:[#allocation8 + $0x5e8] sm:$0xff]
    %v2306 = vld [vmem:[#allocation8 + $0x5f0] sm:$0xff]
    %v2307 = vld [vmem:[#allocation8 + $0x5f8] sm:$0xff]
    %v2308 = vld [vmem:[#allocation8 + $0x600] sm:$0xff]
    %v2309 = vld [vmem:[#allocation8 + $0x608] sm:$0xff]
    %v2310 = vld [vmem:[#allocation8 + $0x610] sm:$0xff]
    %v2311 = vld [vmem:[#allocation8 + $0x618] sm:$0xff]
    %v2312 = vld [vmem:[#allocation8 + $0x620] sm:$0xff]
    %v2313 = vld [vmem:[#allocation8 + $0x628] sm:$0xff]
    %v2314 = vld [vmem:[#allocation8 + $0x630] sm:$0xff]
    %v2315 = vld [vmem:[#allocation8 + $0x638] sm:$0xff]
    %v2316 = vld [vmem:[#allocation8 + $0x640] sm:$0xff]
    %v2317 = vld [vmem:[#allocation8 + $0x648] sm:$0xff]
    %v2318 = vld [vmem:[#allocation8 + $0x650] sm:$0xff]
    %v2319 = vld [vmem:[#allocation8 + $0x658] sm:$0xff]
    %v2320 = vld [vmem:[#allocation8 + $0x660] sm:$0xff]
    %v2321 = vld [vmem:[#allocation8 + $0x668] sm:$0xff]
    %v2322 = vld [vmem:[#allocation8 + $0x670] sm:$0xff]
    %v2323 = vld [vmem:[#allocation8 + $0x678] sm:$0xff]
    %v2324 = vld [vmem:[#allocation8 + $0x680] sm:$0xff]
    %v2325 = vld [vmem:[#allocation8 + $0x688] sm:$0xff]
    %v2326 = vld [vmem:[#allocation8 + $0x690] sm:$0xff]
    %v2327 = vld [vmem:[#allocation8 + $0x698] sm:$0xff]
    %v2328 = vld [vmem:[#allocation8 + $0x6a0] sm:$0xff]
    %v2329 = vld [vmem:[#allocation8 + $0x6a8] sm:$0xff]
    %v2330 = vld [vmem:[#allocation8 + $0x6b0] sm:$0xff]
    %v2331 = vld [vmem:[#allocation8 + $0x6b8] sm:$0xff]
    %v2332 = vld [vmem:[#allocation8 + $0x6c0] sm:$0xff]
    %v2333 = vld [vmem:[#allocation8 + $0x6c8] sm:$0xff]
    %v2334 = vld [vmem:[#allocation8 + $0x6d0] sm:$0xff]
    %v2335 = vld [vmem:[#allocation8 + $0x6d8] sm:$0xff]
    %v2336 = vld [vmem:[#allocation8 + $0x6e0] sm:$0xff]
    %v2337 = vld [vmem:[#allocation8 + $0x6e8] sm:$0xff]
    %v2338 = vld [vmem:[#allocation8 + $0x6f0] sm:$0xff]
    %v2339 = vld [vmem:[#allocation8 + $0x6f8] sm:$0xff]
    %v2340 = vld [vmem:[#allocation8 + $0x700] sm:$0xff]
    %v2341 = vld [vmem:[#allocation8 + $0x708] sm:$0xff]
    %v2342 = vld [vmem:[#allocation8 + $0x710] sm:$0xff]
    %v2343 = vld [vmem:[#allocation8 + $0x718] sm:$0xff]
    %v2344 = vld [vmem:[#allocation8 + $0x720] sm:$0xff]
    %v2345 = vld [vmem:[#allocation8 + $0x728] sm:$0xff]
    %v2346 = vld [vmem:[#allocation8 + $0x730] sm:$0xff]
    %v2347 = vld [vmem:[#allocation8 + $0x738] sm:$0xff]
    %v2348 = vld [vmem:[#allocation8 + $0x740] sm:$0xff]
    %v2349 = vld [vmem:[#allocation8 + $0x748] sm:$0xff]
    %v2350 = vld [vmem:[#allocation8 + $0x750] sm:$0xff]
    %v2351 = vld [vmem:[#allocation8 + $0x758] sm:$0xff]
    %v2352 = vld [vmem:[#allocation8 + $0x760] sm:$0xff]
    %v2353 = vld [vmem:[#allocation8 + $0x768] sm:$0xff]
    %v2354 = vld [vmem:[#allocation8 + $0x770] sm:$0xff]
    %v2355 = vld [vmem:[#allocation8 + $0x778] sm:$0xff]
    %v2356 = vld [vmem:[#allocation8 + $0x780] sm:$0xff]
    %v2357 = vld [vmem:[#allocation8 + $0x788] sm:$0xff]
    %v2358 = vld [vmem:[#allocation8 + $0x790] sm:$0xff]
    %v2359 = vld [vmem:[#allocation8 + $0x798] sm:$0xff]
    %v2360 = vld [vmem:[#allocation8 + $0x7a0] sm:$0xff]
    %v2361 = vld [vmem:[#allocation8 + $0x7a8] sm:$0xff]
    %v2362 = vld [vmem:[#allocation8 + $0x7b0] sm:$0xff]
    %v2363 = vld [vmem:[#allocation8 + $0x7b8] sm:$0xff]
    %v2364 = vld [vmem:[#allocation8 + $0x7c0] sm:$0xff]
    %v2365 = vld [vmem:[#allocation8 + $0x7c8] sm:$0xff]
    %v2366 = vld [vmem:[#allocation8 + $0x7d0] sm:$0xff]
    %v2367 = vld [vmem:[#allocation8 + $0x7d8] sm:$0xff]
    %v2368 = vld [vmem:[#allocation8 + $0x7e0] sm:$0xff]
    %v2369 = vld [vmem:[#allocation8 + $0x7e8] sm:$0xff]
    %v2370 = vld [vmem:[#allocation8 + $0x7f0] sm:$0xff]
    %v2371 = vld [vmem:[#allocation8 + $0x7f8] sm:$0xff]
    %v2372 = vld [vmem:[#allocation10] sm:$0xf]
    %v2374 = vperm.slane %v2372, 0
    %v2375 = vperm.slane %v2372, 1
    %v2376 = vperm.slane %v2372, 2
    %v2377 = vperm.slane %v2372, 3
    %v2638 = vunpack.c.l.b16 %v2116
    %v2639 = vunpack.c.h.b16 %v2116
    %v2640 = vunpack.c.l.b16 %v2117
    %v2641 = vunpack.c.h.b16 %v2117
    %v2642 = vunpack.c.l.b16 %v2118
    %v2643 = vunpack.c.h.b16 %v2118
    %v2644 = vunpack.c.l.b16 %v2119
    %v2645 = vunpack.c.h.b16 %v2119
    %v2646 = vunpack.c.l.b16 %v2120
    %v2647 = vunpack.c.h.b16 %v2120
    %v2648 = vunpack.c.l.b16 %v2121
    %v2649 = vunpack.c.h.b16 %v2121
    %v2650 = vunpack.c.l.b16 %v2122
    %v2651 = vunpack.c.h.b16 %v2122
    %v2652 = vunpack.c.l.b16 %v2123
    %v2653 = vunpack.c.h.b16 %v2123
    %v2654 = vunpack.c.l.b16 %v2124
    %v2655 = vunpack.c.h.b16 %v2124
    %v2656 = vunpack.c.l.b16 %v2125
    %v2657 = vunpack.c.h.b16 %v2125
    %v2658 = vunpack.c.l.b16 %v2126
    %v2659 = vunpack.c.h.b16 %v2126
    %v2660 = vunpack.c.l.b16 %v2127
    %v2661 = vunpack.c.h.b16 %v2127
    %v2662 = vunpack.c.l.b16 %v2128
    %v2663 = vunpack.c.h.b16 %v2128
    %v2664 = vunpack.c.l.b16 %v2129
    %v2665 = vunpack.c.h.b16 %v2129
    %v2666 = vunpack.c.l.b16 %v2130
    %v2667 = vunpack.c.h.b16 %v2130
    %v2668 = vunpack.c.l.b16 %v2131
    %v2669 = vunpack.c.h.b16 %v2131
    %v2670 = vunpack.c.l.b16 %v2132
    %v2671 = vunpack.c.h.b16 %v2132
    %v2672 = vunpack.c.l.b16 %v2133
    %v2673 = vunpack.c.h.b16 %v2133
    %v2674 = vunpack.c.l.b16 %v2134
    %v2675 = vunpack.c.h.b16 %v2134
    %v2676 = vunpack.c.l.b16 %v2135
    %v2677 = vunpack.c.h.b16 %v2135
    %v2678 = vunpack.c.l.b16 %v2136
    %v2679 = vunpack.c.h.b16 %v2136
    %v2680 = vunpack.c.l.b16 %v2137
    %v2681 = vunpack.c.h.b16 %v2137
    %v2682 = vunpack.c.l.b16 %v2138
    %v2683 = vunpack.c.h.b16 %v2138
    %v2684 = vunpack.c.l.b16 %v2139
    %v2685 = vunpack.c.h.b16 %v2139
    %v2686 = vunpack.c.l.b16 %v2140
    %v2687 = vunpack.c.h.b16 %v2140
    %v2688 = vunpack.c.l.b16 %v2141
    %v2689 = vunpack.c.h.b16 %v2141
    %v2690 = vunpack.c.l.b16 %v2142
    %v2691 = vunpack.c.h.b16 %v2142
    %v2692 = vunpack.c.l.b16 %v2143
    %v2693 = vunpack.c.h.b16 %v2143
    %v2694 = vunpack.c.l.b16 %v2144
    %v2695 = vunpack.c.h.b16 %v2144
    %v2696 = vunpack.c.l.b16 %v2145
    %v2697 = vunpack.c.h.b16 %v2145
    %v2698 = vunpack.c.l.b16 %v2146
    %v2699 = vunpack.c.h.b16 %v2146
    %v2700 = vunpack.c.l.b16 %v2147
    %v2701 = vunpack.c.h.b16 %v2147
    %v2702 = vunpack.c.l.b16 %v2148
    %v2703 = vunpack.c.h.b16 %v2148
    %v2704 = vunpack.c.l.b16 %v2149
    %v2705 = vunpack.c.h.b16 %v2149
    %v2706 = vunpack.c.l.b16 %v2150
    %v2707 = vunpack.c.h.b16 %v2150
    %v2708 = vunpack.c.l.b16 %v2151
    %v2709 = vunpack.c.h.b16 %v2151
    %v2710 = vunpack.c.l.b16 %v2152
    %v2711 = vunpack.c.h.b16 %v2152
    %v2712 = vunpack.c.l.b16 %v2153
    %v2713 = vunpack.c.h.b16 %v2153
    %v2714 = vunpack.c.l.b16 %v2154
    %v2715 = vunpack.c.h.b16 %v2154
    %v2716 = vunpack.c.l.b16 %v2155
    %v2717 = vunpack.c.h.b16 %v2155
    %v2718 = vunpack.c.l.b16 %v2156
    %v2719 = vunpack.c.h.b16 %v2156
    %v2720 = vunpack.c.l.b16 %v2157
    %v2721 = vunpack.c.h.b16 %v2157
    %v2722 = vunpack.c.l.b16 %v2158
    %v2723 = vunpack.c.h.b16 %v2158
    %v2724 = vunpack.c.l.b16 %v2159
    %v2725 = vunpack.c.h.b16 %v2159
    %v2726 = vunpack.c.l.b16 %v2160
    %v2727 = vunpack.c.h.b16 %v2160
    %v2728 = vunpack.c.l.b16 %v2161
    %v2729 = vunpack.c.h.b16 %v2161
    %v2730 = vunpack.c.l.b16 %v2162
    %v2731 = vunpack.c.h.b16 %v2162
    %v2732 = vunpack.c.l.b16 %v2163
    %v2733 = vunpack.c.h.b16 %v2163
    %v2734 = vunpack.c.l.b16 %v2164
    %v2735 = vunpack.c.h.b16 %v2164
    %v2736 = vunpack.c.l.b16 %v2165
    %v2737 = vunpack.c.h.b16 %v2165
    %v2738 = vunpack.c.l.b16 %v2166
    %v2739 = vunpack.c.h.b16 %v2166
    %v2740 = vunpack.c.l.b16 %v2167
    %v2741 = vunpack.c.h.b16 %v2167
    %v2742 = vunpack.c.l.b16 %v2168
    %v2743 = vunpack.c.h.b16 %v2168
    %v2744 = vunpack.c.l.b16 %v2169
    %v2745 = vunpack.c.h.b16 %v2169
    %v2746 = vunpack.c.l.b16 %v2170
    %v2747 = vunpack.c.h.b16 %v2170
    %v2748 = vunpack.c.l.b16 %v2171
    %v2749 = vunpack.c.h.b16 %v2171
    %v2750 = vunpack.c.l.b16 %v2172
    %v2751 = vunpack.c.h.b16 %v2172
    %v2752 = vunpack.c.l.b16 %v2173
    %v2753 = vunpack.c.h.b16 %v2173
    %v2754 = vunpack.c.l.b16 %v2174
    %v2755 = vunpack.c.h.b16 %v2174
    %v2756 = vunpack.c.l.b16 %v2175
    %v2757 = vunpack.c.h.b16 %v2175
    %v2758 = vunpack.c.l.b16 %v2176
    %v2759 = vunpack.c.h.b16 %v2176
    %v2760 = vunpack.c.l.b16 %v2177
    %v2761 = vunpack.c.h.b16 %v2177
    %v2762 = vunpack.c.l.b16 %v2178
    %v2763 = vunpack.c.h.b16 %v2178
    %v2764 = vunpack.c.l.b16 %v2179
    %v2765 = vunpack.c.h.b16 %v2179
    %v2766 = vunpack.c.l.b16 %v2180
    %v2767 = vunpack.c.h.b16 %v2180
    %v2768 = vunpack.c.l.b16 %v2181
    %v2769 = vunpack.c.h.b16 %v2181
    %v2770 = vunpack.c.l.b16 %v2182
    %v2771 = vunpack.c.h.b16 %v2182
    %v2772 = vunpack.c.l.b16 %v2183
    %v2773 = vunpack.c.h.b16 %v2183
    %v2774 = vunpack.c.l.b16 %v2184
    %v2775 = vunpack.c.h.b16 %v2184
    %v2776 = vunpack.c.l.b16 %v2185
    %v2777 = vunpack.c.h.b16 %v2185
    %v2778 = vunpack.c.l.b16 %v2186
    %v2779 = vunpack.c.h.b16 %v2186
    %v2780 = vunpack.c.l.b16 %v2187
    %v2781 = vunpack.c.h.b16 %v2187
    %v2782 = vunpack.c.l.b16 %v2188
    %v2783 = vunpack.c.h.b16 %v2188
    %v2784 = vunpack.c.l.b16 %v2189
    %v2785 = vunpack.c.h.b16 %v2189
    %v2786 = vunpack.c.l.b16 %v2190
    %v2787 = vunpack.c.h.b16 %v2190
    %v2788 = vunpack.c.l.b16 %v2191
    %v2789 = vunpack.c.h.b16 %v2191
    %v2790 = vunpack.c.l.b16 %v2192
    %v2791 = vunpack.c.h.b16 %v2192
    %v2792 = vunpack.c.l.b16 %v2193
    %v2793 = vunpack.c.h.b16 %v2193
    %v2794 = vunpack.c.l.b16 %v2194
    %v2795 = vunpack.c.h.b16 %v2194
    %v2796 = vunpack.c.l.b16 %v2195
    %v2797 = vunpack.c.h.b16 %v2195
    %v2798 = vunpack.c.l.b16 %v2196
    %v2799 = vunpack.c.h.b16 %v2196
    %v2800 = vunpack.c.l.b16 %v2197
    %v2801 = vunpack.c.h.b16 %v2197
    %v2802 = vunpack.c.l.b16 %v2198
    %v2803 = vunpack.c.h.b16 %v2198
    %v2804 = vunpack.c.l.b16 %v2199
    %v2805 = vunpack.c.h.b16 %v2199
    %v2806 = vunpack.c.l.b16 %v2200
    %v2807 = vunpack.c.h.b16 %v2200
    %v2808 = vunpack.c.l.b16 %v2201
    %v2809 = vunpack.c.h.b16 %v2201
    %v2810 = vunpack.c.l.b16 %v2202
    %v2811 = vunpack.c.h.b16 %v2202
    %v2812 = vunpack.c.l.b16 %v2203
    %v2813 = vunpack.c.h.b16 %v2203
    %v2814 = vunpack.c.l.b16 %v2204
    %v2815 = vunpack.c.h.b16 %v2204
    %v2816 = vunpack.c.l.b16 %v2205
    %v2817 = vunpack.c.h.b16 %v2205
    %v2818 = vunpack.c.l.b16 %v2206
    %v2819 = vunpack.c.h.b16 %v2206
    %v2820 = vunpack.c.l.b16 %v2207
    %v2821 = vunpack.c.h.b16 %v2207
    %v2822 = vunpack.c.l.b16 %v2208
    %v2823 = vunpack.c.h.b16 %v2208
    %v2824 = vunpack.c.l.b16 %v2209
    %v2825 = vunpack.c.h.b16 %v2209
    %v2826 = vunpack.c.l.b16 %v2210
    %v2827 = vunpack.c.h.b16 %v2210
    %v2828 = vunpack.c.l.b16 %v2211
    %v2829 = vunpack.c.h.b16 %v2211
    %v2830 = vunpack.c.l.b16 %v2212
    %v2831 = vunpack.c.h.b16 %v2212
    %v2832 = vunpack.c.l.b16 %v2213
    %v2833 = vunpack.c.h.b16 %v2213
    %v2834 = vunpack.c.l.b16 %v2214
    %v2835 = vunpack.c.h.b16 %v2214
    %v2836 = vunpack.c.l.b16 %v2215
    %v2837 = vunpack.c.h.b16 %v2215
    %v2838 = vunpack.c.l.b16 %v2216
    %v2839 = vunpack.c.h.b16 %v2216
    %v2840 = vunpack.c.l.b16 %v2217
    %v2841 = vunpack.c.h.b16 %v2217
    %v2842 = vunpack.c.l.b16 %v2218
    %v2843 = vunpack.c.h.b16 %v2218
    %v2844 = vunpack.c.l.b16 %v2219
    %v2845 = vunpack.c.h.b16 %v2219
    %v2846 = vunpack.c.l.b16 %v2220
    %v2847 = vunpack.c.h.b16 %v2220
    %v2848 = vunpack.c.l.b16 %v2221
    %v2849 = vunpack.c.h.b16 %v2221
    %v2850 = vunpack.c.l.b16 %v2222
    %v2851 = vunpack.c.h.b16 %v2222
    %v2852 = vunpack.c.l.b16 %v2223
    %v2853 = vunpack.c.h.b16 %v2223
    %v2854 = vunpack.c.l.b16 %v2224
    %v2855 = vunpack.c.h.b16 %v2224
    %v2856 = vunpack.c.l.b16 %v2225
    %v2857 = vunpack.c.h.b16 %v2225
    %v2858 = vunpack.c.l.b16 %v2226
    %v2859 = vunpack.c.h.b16 %v2226
    %v2860 = vunpack.c.l.b16 %v2227
    %v2861 = vunpack.c.h.b16 %v2227
    %v2862 = vunpack.c.l.b16 %v2228
    %v2863 = vunpack.c.h.b16 %v2228
    %v2864 = vunpack.c.l.b16 %v2229
    %v2865 = vunpack.c.h.b16 %v2229
    %v2866 = vunpack.c.l.b16 %v2230
    %v2867 = vunpack.c.h.b16 %v2230
    %v2868 = vunpack.c.l.b16 %v2231
    %v2869 = vunpack.c.h.b16 %v2231
    %v2870 = vunpack.c.l.b16 %v2232
    %v2871 = vunpack.c.h.b16 %v2232
    %v2872 = vunpack.c.l.b16 %v2233
    %v2873 = vunpack.c.h.b16 %v2233
    %v2874 = vunpack.c.l.b16 %v2234
    %v2875 = vunpack.c.h.b16 %v2234
    %v2876 = vunpack.c.l.b16 %v2235
    %v2877 = vunpack.c.h.b16 %v2235
    %v2878 = vunpack.c.l.b16 %v2236
    %v2879 = vunpack.c.h.b16 %v2236
    %v2880 = vunpack.c.l.b16 %v2237
    %v2881 = vunpack.c.h.b16 %v2237
    %v2882 = vunpack.c.l.b16 %v2238
    %v2883 = vunpack.c.h.b16 %v2238
    %v2884 = vunpack.c.l.b16 %v2239
    %v2885 = vunpack.c.h.b16 %v2239
    %v2886 = vunpack.c.l.b16 %v2240
    %v2887 = vunpack.c.h.b16 %v2240
    %v2888 = vunpack.c.l.b16 %v2241
    %v2889 = vunpack.c.h.b16 %v2241
    %v2890 = vunpack.c.l.b16 %v2242
    %v2891 = vunpack.c.h.b16 %v2242
    %v2892 = vunpack.c.l.b16 %v2243
    %v2893 = vunpack.c.h.b16 %v2243
    %v2894 = vunpack.c.l.b16 %v2244
    %v2895 = vunpack.c.h.b16 %v2244
    %v2896 = vunpack.c.l.b16 %v2245
    %v2897 = vunpack.c.h.b16 %v2245
    %v2898 = vunpack.c.l.b16 %v2246
    %v2899 = vunpack.c.h.b16 %v2246
    %v2900 = vunpack.c.l.b16 %v2247
    %v2901 = vunpack.c.h.b16 %v2247
    %v2902 = vunpack.c.l.b16 %v2248
    %v2903 = vunpack.c.h.b16 %v2248
    %v2904 = vunpack.c.l.b16 %v2249
    %v2905 = vunpack.c.h.b16 %v2249
    %v2906 = vunpack.c.l.b16 %v2250
    %v2907 = vunpack.c.h.b16 %v2250
    %v2908 = vunpack.c.l.b16 %v2251
    %v2909 = vunpack.c.h.b16 %v2251
    %v2910 = vunpack.c.l.b16 %v2252
    %v2911 = vunpack.c.h.b16 %v2252
    %v2912 = vunpack.c.l.b16 %v2253
    %v2913 = vunpack.c.h.b16 %v2253
    %v2914 = vunpack.c.l.b16 %v2254
    %v2915 = vunpack.c.h.b16 %v2254
    %v2916 = vunpack.c.l.b16 %v2255
    %v2917 = vunpack.c.h.b16 %v2255
    %v2918 = vunpack.c.l.b16 %v2256
    %v2919 = vunpack.c.h.b16 %v2256
    %v2920 = vunpack.c.l.b16 %v2257
    %v2921 = vunpack.c.h.b16 %v2257
    %v2922 = vunpack.c.l.b16 %v2258
    %v2923 = vunpack.c.h.b16 %v2258
    %v2924 = vunpack.c.l.b16 %v2259
    %v2925 = vunpack.c.h.b16 %v2259
    %v2926 = vunpack.c.l.b16 %v2260
    %v2927 = vunpack.c.h.b16 %v2260
    %v2928 = vunpack.c.l.b16 %v2261
    %v2929 = vunpack.c.h.b16 %v2261
    %v2930 = vunpack.c.l.b16 %v2262
    %v2931 = vunpack.c.h.b16 %v2262
    %v2932 = vunpack.c.l.b16 %v2263
    %v2933 = vunpack.c.h.b16 %v2263
    %v2934 = vunpack.c.l.b16 %v2264
    %v2935 = vunpack.c.h.b16 %v2264
    %v2936 = vunpack.c.l.b16 %v2265
    %v2937 = vunpack.c.h.b16 %v2265
    %v2938 = vunpack.c.l.b16 %v2266
    %v2939 = vunpack.c.h.b16 %v2266
    %v2940 = vunpack.c.l.b16 %v2267
    %v2941 = vunpack.c.h.b16 %v2267
    %v2942 = vunpack.c.l.b16 %v2268
    %v2943 = vunpack.c.h.b16 %v2268
    %v2944 = vunpack.c.l.b16 %v2269
    %v2945 = vunpack.c.h.b16 %v2269
    %v2946 = vunpack.c.l.b16 %v2270
    %v2947 = vunpack.c.h.b16 %v2270
    %v2948 = vunpack.c.l.b16 %v2271
    %v2949 = vunpack.c.h.b16 %v2271
    %v2950 = vunpack.c.l.b16 %v2272
    %v2951 = vunpack.c.h.b16 %v2272
    %v2952 = vunpack.c.l.b16 %v2273
    %v2953 = vunpack.c.h.b16 %v2273
    %v2954 = vunpack.c.l.b16 %v2274
    %v2955 = vunpack.c.h.b16 %v2274
    %v2956 = vunpack.c.l.b16 %v2275
    %v2957 = vunpack.c.h.b16 %v2275
    %v2958 = vunpack.c.l.b16 %v2276
    %v2959 = vunpack.c.h.b16 %v2276
    %v2960 = vunpack.c.l.b16 %v2277
    %v2961 = vunpack.c.h.b16 %v2277
    %v2962 = vunpack.c.l.b16 %v2278
    %v2963 = vunpack.c.h.b16 %v2278
    %v2964 = vunpack.c.l.b16 %v2279
    %v2965 = vunpack.c.h.b16 %v2279
    %v2966 = vunpack.c.l.b16 %v2280
    %v2967 = vunpack.c.h.b16 %v2280
    %v2968 = vunpack.c.l.b16 %v2281
    %v2969 = vunpack.c.h.b16 %v2281
    %v2970 = vunpack.c.l.b16 %v2282
    %v2971 = vunpack.c.h.b16 %v2282
    %v2972 = vunpack.c.l.b16 %v2283
    %v2973 = vunpack.c.h.b16 %v2283
    %v2974 = vunpack.c.l.b16 %v2284
    %v2975 = vunpack.c.h.b16 %v2284
    %v2976 = vunpack.c.l.b16 %v2285
    %v2977 = vunpack.c.h.b16 %v2285
    %v2978 = vunpack.c.l.b16 %v2286
    %v2979 = vunpack.c.h.b16 %v2286
    %v2980 = vunpack.c.l.b16 %v2287
    %v2981 = vunpack.c.h.b16 %v2287
    %v2982 = vunpack.c.l.b16 %v2288
    %v2983 = vunpack.c.h.b16 %v2288
    %v2984 = vunpack.c.l.b16 %v2289
    %v2985 = vunpack.c.h.b16 %v2289
    %v2986 = vunpack.c.l.b16 %v2290
    %v2987 = vunpack.c.h.b16 %v2290
    %v2988 = vunpack.c.l.b16 %v2291
    %v2989 = vunpack.c.h.b16 %v2291
    %v2990 = vunpack.c.l.b16 %v2292
    %v2991 = vunpack.c.h.b16 %v2292
    %v2992 = vunpack.c.l.b16 %v2293
    %v2993 = vunpack.c.h.b16 %v2293
    %v2994 = vunpack.c.l.b16 %v2294
    %v2995 = vunpack.c.h.b16 %v2294
    %v2996 = vunpack.c.l.b16 %v2295
    %v2997 = vunpack.c.h.b16 %v2295
    %v2998 = vunpack.c.l.b16 %v2296
    %v2999 = vunpack.c.h.b16 %v2296
    %v3000 = vunpack.c.l.b16 %v2297
    %v3001 = vunpack.c.h.b16 %v2297
    %v3002 = vunpack.c.l.b16 %v2298
    %v3003 = vunpack.c.h.b16 %v2298
    %v3004 = vunpack.c.l.b16 %v2299
    %v3005 = vunpack.c.h.b16 %v2299
    %v3006 = vunpack.c.l.b16 %v2300
    %v3007 = vunpack.c.h.b16 %v2300
    %v3008 = vunpack.c.l.b16 %v2301
    %v3009 = vunpack.c.h.b16 %v2301
    %v3010 = vunpack.c.l.b16 %v2302
    %v3011 = vunpack.c.h.b16 %v2302
    %v3012 = vunpack.c.l.b16 %v2303
    %v3013 = vunpack.c.h.b16 %v2303
    %v3014 = vunpack.c.l.b16 %v2304
    %v3015 = vunpack.c.h.b16 %v2304
    %v3016 = vunpack.c.l.b16 %v2305
    %v3017 = vunpack.c.h.b16 %v2305
    %v3018 = vunpack.c.l.b16 %v2306
    %v3019 = vunpack.c.h.b16 %v2306
    %v3020 = vunpack.c.l.b16 %v2307
    %v3021 = vunpack.c.h.b16 %v2307
    %v3022 = vunpack.c.l.b16 %v2308
    %v3023 = vunpack.c.h.b16 %v2308
    %v3024 = vunpack.c.l.b16 %v2309
    %v3025 = vunpack.c.h.b16 %v2309
    %v3026 = vunpack.c.l.b16 %v2310
    %v3027 = vunpack.c.h.b16 %v2310
    %v3028 = vunpack.c.l.b16 %v2311
    %v3029 = vunpack.c.h.b16 %v2311
    %v3030 = vunpack.c.l.b16 %v2312
    %v3031 = vunpack.c.h.b16 %v2312
    %v3032 = vunpack.c.l.b16 %v2313
    %v3033 = vunpack.c.h.b16 %v2313
    %v3034 = vunpack.c.l.b16 %v2314
    %v3035 = vunpack.c.h.b16 %v2314
    %v3036 = vunpack.c.l.b16 %v2315
    %v3037 = vunpack.c.h.b16 %v2315
    %v3038 = vunpack.c.l.b16 %v2316
    %v3039 = vunpack.c.h.b16 %v2316
    %v3040 = vunpack.c.l.b16 %v2317
    %v3041 = vunpack.c.h.b16 %v2317
    %v3042 = vunpack.c.l.b16 %v2318
    %v3043 = vunpack.c.h.b16 %v2318
    %v3044 = vunpack.c.l.b16 %v2319
    %v3045 = vunpack.c.h.b16 %v2319
    %v3046 = vunpack.c.l.b16 %v2320
    %v3047 = vunpack.c.h.b16 %v2320
    %v3048 = vunpack.c.l.b16 %v2321
    %v3049 = vunpack.c.h.b16 %v2321
    %v3050 = vunpack.c.l.b16 %v2322
    %v3051 = vunpack.c.h.b16 %v2322
    %v3052 = vunpack.c.l.b16 %v2323
    %v3053 = vunpack.c.h.b16 %v2323
    %v3054 = vunpack.c.l.b16 %v2324
    %v3055 = vunpack.c.h.b16 %v2324
    %v3056 = vunpack.c.l.b16 %v2325
    %v3057 = vunpack.c.h.b16 %v2325
    %v3058 = vunpack.c.l.b16 %v2326
    %v3059 = vunpack.c.h.b16 %v2326
    %v3060 = vunpack.c.l.b16 %v2327
    %v3061 = vunpack.c.h.b16 %v2327
    %v3062 = vunpack.c.l.b16 %v2328
    %v3063 = vunpack.c.h.b16 %v2328
    %v3064 = vunpack.c.l.b16 %v2329
    %v3065 = vunpack.c.h.b16 %v2329
    %v3066 = vunpack.c.l.b16 %v2330
    %v3067 = vunpack.c.h.b16 %v2330
    %v3068 = vunpack.c.l.b16 %v2331
    %v3069 = vunpack.c.h.b16 %v2331
    %v3070 = vunpack.c.l.b16 %v2332
    %v3071 = vunpack.c.h.b16 %v2332
    %v3072 = vunpack.c.l.b16 %v2333
    %v3073 = vunpack.c.h.b16 %v2333
    %v3074 = vunpack.c.l.b16 %v2334
    %v3075 = vunpack.c.h.b16 %v2334
    %v3076 = vunpack.c.l.b16 %v2335
    %v3077 = vunpack.c.h.b16 %v2335
    %v3078 = vunpack.c.l.b16 %v2336
    %v3079 = vunpack.c.h.b16 %v2336
    %v3080 = vunpack.c.l.b16 %v2337
    %v3081 = vunpack.c.h.b16 %v2337
    %v3082 = vunpack.c.l.b16 %v2338
    %v3083 = vunpack.c.h.b16 %v2338
    %v3084 = vunpack.c.l.b16 %v2339
    %v3085 = vunpack.c.h.b16 %v2339
    %v3086 = vunpack.c.l.b16 %v2340
    %v3087 = vunpack.c.h.b16 %v2340
    %v3088 = vunpack.c.l.b16 %v2341
    %v3089 = vunpack.c.h.b16 %v2341
    %v3090 = vunpack.c.l.b16 %v2342
    %v3091 = vunpack.c.h.b16 %v2342
    %v3092 = vunpack.c.l.b16 %v2343
    %v3093 = vunpack.c.h.b16 %v2343
    %v3094 = vunpack.c.l.b16 %v2344
    %v3095 = vunpack.c.h.b16 %v2344
    %v3096 = vunpack.c.l.b16 %v2345
    %v3097 = vunpack.c.h.b16 %v2345
    %v3098 = vunpack.c.l.b16 %v2346
    %v3099 = vunpack.c.h.b16 %v2346
    %v3100 = vunpack.c.l.b16 %v2347
    %v3101 = vunpack.c.h.b16 %v2347
    %v3102 = vunpack.c.l.b16 %v2348
    %v3103 = vunpack.c.h.b16 %v2348
    %v3104 = vunpack.c.l.b16 %v2349
    %v3105 = vunpack.c.h.b16 %v2349
    %v3106 = vunpack.c.l.b16 %v2350
    %v3107 = vunpack.c.h.b16 %v2350
    %v3108 = vunpack.c.l.b16 %v2351
    %v3109 = vunpack.c.h.b16 %v2351
    %v3110 = vunpack.c.l.b16 %v2352
    %v3111 = vunpack.c.h.b16 %v2352
    %v3112 = vunpack.c.l.b16 %v2353
    %v3113 = vunpack.c.h.b16 %v2353
    %v3114 = vunpack.c.l.b16 %v2354
    %v3115 = vunpack.c.h.b16 %v2354
    %v3116 = vunpack.c.l.b16 %v2355
    %v3117 = vunpack.c.h.b16 %v2355
    %v3118 = vunpack.c.l.b16 %v2356
    %v3119 = vunpack.c.h.b16 %v2356
    %v3120 = vunpack.c.l.b16 %v2357
    %v3121 = vunpack.c.h.b16 %v2357
    %v3122 = vunpack.c.l.b16 %v2358
    %v3123 = vunpack.c.h.b16 %v2358
    %v3124 = vunpack.c.l.b16 %v2359
    %v3125 = vunpack.c.h.b16 %v2359
    %v3126 = vunpack.c.l.b16 %v2360
    %v3127 = vunpack.c.h.b16 %v2360
    %v3128 = vunpack.c.l.b16 %v2361
    %v3129 = vunpack.c.h.b16 %v2361
    %v3130 = vunpack.c.l.b16 %v2362
    %v3131 = vunpack.c.h.b16 %v2362
    %v3132 = vunpack.c.l.b16 %v2363
    %v3133 = vunpack.c.h.b16 %v2363
    %v3134 = vunpack.c.l.b16 %v2364
    %v3135 = vunpack.c.h.b16 %v2364
    %v3136 = vunpack.c.l.b16 %v2365
    %v3137 = vunpack.c.h.b16 %v2365
    %v3138 = vunpack.c.l.b16 %v2366
    %v3139 = vunpack.c.h.b16 %v2366
    %v3140 = vunpack.c.l.b16 %v2367
    %v3141 = vunpack.c.h.b16 %v2367
    %v3142 = vunpack.c.l.b16 %v2368
    %v3143 = vunpack.c.h.b16 %v2368
    %v3144 = vunpack.c.l.b16 %v2369
    %v3145 = vunpack.c.h.b16 %v2369
    %v3146 = vunpack.c.l.b16 %v2370
    %v3147 = vunpack.c.h.b16 %v2370
    %v3148 = vunpack.c.l.b16 %v2371
    %v3149 = vunpack.c.h.b16 %v2371
    %v3150 = vpack.c.b16 %v2642, %v2638
    %v3151 = vpack.c.b16 %v2643, %v2639
    %v3152 = vpack.c.b16 %v2644, %v2640
    %v3153 = vpack.c.b16 %v2645, %v2641
    %v3154 = vpack.c.b16 %v2650, %v2646
    %v3155 = vpack.c.b16 %v2651, %v2647
    %v3156 = vpack.c.b16 %v2652, %v2648
    %v3157 = vpack.c.b16 %v2653, %v2649
    %v3158 = vpack.c.b16 %v2658, %v2654
    %v3159 = vpack.c.b16 %v2659, %v2655
    %v3160 = vpack.c.b16 %v2660, %v2656
    %v3161 = vpack.c.b16 %v2661, %v2657
    %v3162 = vpack.c.b16 %v2666, %v2662
    %v3163 = vpack.c.b16 %v2667, %v2663
    %v3164 = vpack.c.b16 %v2668, %v2664
    %v3165 = vpack.c.b16 %v2669, %v2665
    %v3166 = vpack.c.b16 %v2674, %v2670
    %v3167 = vpack.c.b16 %v2675, %v2671
    %v3168 = vpack.c.b16 %v2676, %v2672
    %v3169 = vpack.c.b16 %v2677, %v2673
    %v3170 = vpack.c.b16 %v2682, %v2678
    %v3171 = vpack.c.b16 %v2683, %v2679
    %v3172 = vpack.c.b16 %v2684, %v2680
    %v3173 = vpack.c.b16 %v2685, %v2681
    %v3174 = vpack.c.b16 %v2690, %v2686
    %v3175 = vpack.c.b16 %v2691, %v2687
    %v3176 = vpack.c.b16 %v2692, %v2688
    %v3177 = vpack.c.b16 %v2693, %v2689
    %v3178 = vpack.c.b16 %v2698, %v2694
    %v3179 = vpack.c.b16 %v2699, %v2695
    %v3180 = vpack.c.b16 %v2700, %v2696
    %v3181 = vpack.c.b16 %v2701, %v2697
    %v3182 = vpack.c.b16 %v2706, %v2702
    %v3183 = vpack.c.b16 %v2707, %v2703
    %v3184 = vpack.c.b16 %v2708, %v2704
    %v3185 = vpack.c.b16 %v2709, %v2705
    %v3186 = vpack.c.b16 %v2714, %v2710
    %v3187 = vpack.c.b16 %v2715, %v2711
    %v3188 = vpack.c.b16 %v2716, %v2712
    %v3189 = vpack.c.b16 %v2717, %v2713
    %v3190 = vpack.c.b16 %v2722, %v2718
    %v3191 = vpack.c.b16 %v2723, %v2719
    %v3192 = vpack.c.b16 %v2724, %v2720
    %v3193 = vpack.c.b16 %v2725, %v2721
    %v3194 = vpack.c.b16 %v2730, %v2726
    %v3195 = vpack.c.b16 %v2731, %v2727
    %v3196 = vpack.c.b16 %v2732, %v2728
    %v3197 = vpack.c.b16 %v2733, %v2729
    %v3198 = vpack.c.b16 %v2738, %v2734
    %v3199 = vpack.c.b16 %v2739, %v2735
    %v3200 = vpack.c.b16 %v2740, %v2736
    %v3201 = vpack.c.b16 %v2741, %v2737
    %v3202 = vpack.c.b16 %v2746, %v2742
    %v3203 = vpack.c.b16 %v2747, %v2743
    %v3204 = vpack.c.b16 %v2748, %v2744
    %v3205 = vpack.c.b16 %v2749, %v2745
    %v3206 = vpack.c.b16 %v2754, %v2750
    %v3207 = vpack.c.b16 %v2755, %v2751
    %v3208 = vpack.c.b16 %v2756, %v2752
    %v3209 = vpack.c.b16 %v2757, %v2753
    %v3210 = vpack.c.b16 %v2762, %v2758
    %v3211 = vpack.c.b16 %v2763, %v2759
    %v3212 = vpack.c.b16 %v2764, %v2760
    %v3213 = vpack.c.b16 %v2765, %v2761
    %v3214 = vpack.c.b16 %v2770, %v2766
    %v3215 = vpack.c.b16 %v2771, %v2767
    %v3216 = vpack.c.b16 %v2772, %v2768
    %v3217 = vpack.c.b16 %v2773, %v2769
    %v3218 = vpack.c.b16 %v2778, %v2774
    %v3219 = vpack.c.b16 %v2779, %v2775
    %v3220 = vpack.c.b16 %v2780, %v2776
    %v3221 = vpack.c.b16 %v2781, %v2777
    %v3222 = vpack.c.b16 %v2786, %v2782
    %v3223 = vpack.c.b16 %v2787, %v2783
    %v3224 = vpack.c.b16 %v2788, %v2784
    %v3225 = vpack.c.b16 %v2789, %v2785
    %v3226 = vpack.c.b16 %v2794, %v2790
    %v3227 = vpack.c.b16 %v2795, %v2791
    %v3228 = vpack.c.b16 %v2796, %v2792
    %v3229 = vpack.c.b16 %v2797, %v2793
    %v3230 = vpack.c.b16 %v2802, %v2798
    %v3231 = vpack.c.b16 %v2803, %v2799
    %v3232 = vpack.c.b16 %v2804, %v2800
    %v3233 = vpack.c.b16 %v2805, %v2801
    %v3234 = vpack.c.b16 %v2810, %v2806
    %v3235 = vpack.c.b16 %v2811, %v2807
    %v3236 = vpack.c.b16 %v2812, %v2808
    %v3237 = vpack.c.b16 %v2813, %v2809
    %v3238 = vpack.c.b16 %v2818, %v2814
    %v3239 = vpack.c.b16 %v2819, %v2815
    %v3240 = vpack.c.b16 %v2820, %v2816
    %v3241 = vpack.c.b16 %v2821, %v2817
    %v3242 = vpack.c.b16 %v2826, %v2822
    %v3243 = vpack.c.b16 %v2827, %v2823
    %v3244 = vpack.c.b16 %v2828, %v2824
    %v3245 = vpack.c.b16 %v2829, %v2825
    %v3246 = vpack.c.b16 %v2834, %v2830
    %v3247 = vpack.c.b16 %v2835, %v2831
    %v3248 = vpack.c.b16 %v2836, %v2832
    %v3249 = vpack.c.b16 %v2837, %v2833
    %v3250 = vpack.c.b16 %v2842, %v2838
    %v3251 = vpack.c.b16 %v2843, %v2839
    %v3252 = vpack.c.b16 %v2844, %v2840
    %v3253 = vpack.c.b16 %v2845, %v2841
    %v3254 = vpack.c.b16 %v2850, %v2846
    %v3255 = vpack.c.b16 %v2851, %v2847
    %v3256 = vpack.c.b16 %v2852, %v2848
    %v3257 = vpack.c.b16 %v2853, %v2849
    %v3258 = vpack.c.b16 %v2858, %v2854
    %v3259 = vpack.c.b16 %v2859, %v2855
    %v3260 = vpack.c.b16 %v2860, %v2856
    %v3261 = vpack.c.b16 %v2861, %v2857
    %v3262 = vpack.c.b16 %v2866, %v2862
    %v3263 = vpack.c.b16 %v2867, %v2863
    %v3264 = vpack.c.b16 %v2868, %v2864
    %v3265 = vpack.c.b16 %v2869, %v2865
    %v3266 = vpack.c.b16 %v2874, %v2870
    %v3267 = vpack.c.b16 %v2875, %v2871
    %v3268 = vpack.c.b16 %v2876, %v2872
    %v3269 = vpack.c.b16 %v2877, %v2873
    %v3270 = vpack.c.b16 %v2882, %v2878
    %v3271 = vpack.c.b16 %v2883, %v2879
    %v3272 = vpack.c.b16 %v2884, %v2880
    %v3273 = vpack.c.b16 %v2885, %v2881
    %v3274 = vpack.c.b16 %v2890, %v2886
    %v3275 = vpack.c.b16 %v2891, %v2887
    %v3276 = vpack.c.b16 %v2892, %v2888
    %v3277 = vpack.c.b16 %v2893, %v2889
    %v3278 = vpack.c.b16 %v2898, %v2894
    %v3279 = vpack.c.b16 %v2899, %v2895
    %v3280 = vpack.c.b16 %v2900, %v2896
    %v3281 = vpack.c.b16 %v2901, %v2897
    %v3282 = vpack.c.b16 %v2906, %v2902
    %v3283 = vpack.c.b16 %v2907, %v2903
    %v3284 = vpack.c.b16 %v2908, %v2904
    %v3285 = vpack.c.b16 %v2909, %v2905
    %v3286 = vpack.c.b16 %v2914, %v2910
    %v3287 = vpack.c.b16 %v2915, %v2911
    %v3288 = vpack.c.b16 %v2916, %v2912
    %v3289 = vpack.c.b16 %v2917, %v2913
    %v3290 = vpack.c.b16 %v2922, %v2918
    %v3291 = vpack.c.b16 %v2923, %v2919
    %v3292 = vpack.c.b16 %v2924, %v2920
    %v3293 = vpack.c.b16 %v2925, %v2921
    %v3294 = vpack.c.b16 %v2930, %v2926
    %v3295 = vpack.c.b16 %v2931, %v2927
    %v3296 = vpack.c.b16 %v2932, %v2928
    %v3297 = vpack.c.b16 %v2933, %v2929
    %v3298 = vpack.c.b16 %v2938, %v2934
    %v3299 = vpack.c.b16 %v2939, %v2935
    %v3300 = vpack.c.b16 %v2940, %v2936
    %v3301 = vpack.c.b16 %v2941, %v2937
    %v3302 = vpack.c.b16 %v2946, %v2942
    %v3303 = vpack.c.b16 %v2947, %v2943
    %v3304 = vpack.c.b16 %v2948, %v2944
    %v3305 = vpack.c.b16 %v2949, %v2945
    %v3306 = vpack.c.b16 %v2954, %v2950
    %v3307 = vpack.c.b16 %v2955, %v2951
    %v3308 = vpack.c.b16 %v2956, %v2952
    %v3309 = vpack.c.b16 %v2957, %v2953
    %v3310 = vpack.c.b16 %v2962, %v2958
    %v3311 = vpack.c.b16 %v2963, %v2959
    %v3312 = vpack.c.b16 %v2964, %v2960
    %v3313 = vpack.c.b16 %v2965, %v2961
    %v3314 = vpack.c.b16 %v2970, %v2966
    %v3315 = vpack.c.b16 %v2971, %v2967
    %v3316 = vpack.c.b16 %v2972, %v2968
    %v3317 = vpack.c.b16 %v2973, %v2969
    %v3318 = vpack.c.b16 %v2978, %v2974
    %v3319 = vpack.c.b16 %v2979, %v2975
    %v3320 = vpack.c.b16 %v2980, %v2976
    %v3321 = vpack.c.b16 %v2981, %v2977
    %v3322 = vpack.c.b16 %v2986, %v2982
    %v3323 = vpack.c.b16 %v2987, %v2983
    %v3324 = vpack.c.b16 %v2988, %v2984
    %v3325 = vpack.c.b16 %v2989, %v2985
    %v3326 = vpack.c.b16 %v2994, %v2990
    %v3327 = vpack.c.b16 %v2995, %v2991
    %v3328 = vpack.c.b16 %v2996, %v2992
    %v3329 = vpack.c.b16 %v2997, %v2993
    %v3330 = vpack.c.b16 %v3002, %v2998
    %v3331 = vpack.c.b16 %v3003, %v2999
    %v3332 = vpack.c.b16 %v3004, %v3000
    %v3333 = vpack.c.b16 %v3005, %v3001
    %v3334 = vpack.c.b16 %v3010, %v3006
    %v3335 = vpack.c.b16 %v3011, %v3007
    %v3336 = vpack.c.b16 %v3012, %v3008
    %v3337 = vpack.c.b16 %v3013, %v3009
    %v3338 = vpack.c.b16 %v3018, %v3014
    %v3339 = vpack.c.b16 %v3019, %v3015
    %v3340 = vpack.c.b16 %v3020, %v3016
    %v3341 = vpack.c.b16 %v3021, %v3017
    %v3342 = vpack.c.b16 %v3026, %v3022
    %v3343 = vpack.c.b16 %v3027, %v3023
    %v3344 = vpack.c.b16 %v3028, %v3024
    %v3345 = vpack.c.b16 %v3029, %v3025
    %v3346 = vpack.c.b16 %v3034, %v3030
    %v3347 = vpack.c.b16 %v3035, %v3031
    %v3348 = vpack.c.b16 %v3036, %v3032
    %v3349 = vpack.c.b16 %v3037, %v3033
    %v3350 = vpack.c.b16 %v3042, %v3038
    %v3351 = vpack.c.b16 %v3043, %v3039
    %v3352 = vpack.c.b16 %v3044, %v3040
    %v3353 = vpack.c.b16 %v3045, %v3041
    %v3354 = vpack.c.b16 %v3050, %v3046
    %v3355 = vpack.c.b16 %v3051, %v3047
    %v3356 = vpack.c.b16 %v3052, %v3048
    %v3357 = vpack.c.b16 %v3053, %v3049
    %v3358 = vpack.c.b16 %v3058, %v3054
    %v3359 = vpack.c.b16 %v3059, %v3055
    %v3360 = vpack.c.b16 %v3060, %v3056
    %v3361 = vpack.c.b16 %v3061, %v3057
    %v3362 = vpack.c.b16 %v3066, %v3062
    %v3363 = vpack.c.b16 %v3067, %v3063
    %v3364 = vpack.c.b16 %v3068, %v3064
    %v3365 = vpack.c.b16 %v3069, %v3065
    %v3366 = vpack.c.b16 %v3074, %v3070
    %v3367 = vpack.c.b16 %v3075, %v3071
    %v3368 = vpack.c.b16 %v3076, %v3072
    %v3369 = vpack.c.b16 %v3077, %v3073
    %v3370 = vpack.c.b16 %v3082, %v3078
    %v3371 = vpack.c.b16 %v3083, %v3079
    %v3372 = vpack.c.b16 %v3084, %v3080
    %v3373 = vpack.c.b16 %v3085, %v3081
    %v3374 = vpack.c.b16 %v3090, %v3086
    %v3375 = vpack.c.b16 %v3091, %v3087
    %v3376 = vpack.c.b16 %v3092, %v3088
    %v3377 = vpack.c.b16 %v3093, %v3089
    %v3378 = vpack.c.b16 %v3098, %v3094
    %v3379 = vpack.c.b16 %v3099, %v3095
    %v3380 = vpack.c.b16 %v3100, %v3096
    %v3381 = vpack.c.b16 %v3101, %v3097
    %v3382 = vpack.c.b16 %v3106, %v3102
    %v3383 = vpack.c.b16 %v3107, %v3103
    %v3384 = vpack.c.b16 %v3108, %v3104
    %v3385 = vpack.c.b16 %v3109, %v3105
    %v3386 = vpack.c.b16 %v3114, %v3110
    %v3387 = vpack.c.b16 %v3115, %v3111
    %v3388 = vpack.c.b16 %v3116, %v3112
    %v3389 = vpack.c.b16 %v3117, %v3113
    %v3390 = vpack.c.b16 %v3122, %v3118
    %v3391 = vpack.c.b16 %v3123, %v3119
    %v3392 = vpack.c.b16 %v3124, %v3120
    %v3393 = vpack.c.b16 %v3125, %v3121
    %v3394 = vpack.c.b16 %v3130, %v3126
    %v3395 = vpack.c.b16 %v3131, %v3127
    %v3396 = vpack.c.b16 %v3132, %v3128
    %v3397 = vpack.c.b16 %v3133, %v3129
    %v3398 = vpack.c.b16 %v3138, %v3134
    %v3399 = vpack.c.b16 %v3139, %v3135
    %v3400 = vpack.c.b16 %v3140, %v3136
    %v3401 = vpack.c.b16 %v3141, %v3137
    %v3402 = vpack.c.b16 %v3146, %v3142
    %v3403 = vpack.c.b16 %v3147, %v3143
    %v3404 = vpack.c.b16 %v3148, %v3144
    %v3405 = vpack.c.b16 %v3149, %v3145
    %3662 = vmatpush.bf16.msra.mxu0 %v3178
    %3663 = vmatpush.bf16.msra.mxu0 %v3174
    %3664 = vmatpush.bf16.msra.mxu0 %v3170
    %3665 = vmatpush.bf16.msra.mxu0 %v3166
    %3666 = vmatpush.bf16.msra.mxu0 %v3162
    %3667 = vmatpush.bf16.msra.mxu0 %v3158
    %3668 = vmatpush.bf16.msra.mxu0 %v3154
    %3669 = vmatpush.bf16.msra.mxu0 %v3150
    %3670 = vmatmul.bf16.gmra.mxu0 %v2108
    %v3671 = vpop.f32.mrf.mxu0
    %v3672 = vadd.f32 %v2374, %v3671
    %v3673 = vpop.f32.mrf.mxu0
    %3674 = vdwg.mxu0
    %3675 = vmatpush.bf16.msra.mxu0 %v3210
    %3676 = vmatpush.bf16.msra.mxu0 %v3206
    %3677 = vmatpush.bf16.msra.mxu0 %v3202
    %3678 = vmatpush.bf16.msra.mxu0 %v3198
    %3679 = vmatpush.bf16.msra.mxu0 %v3194
    %3680 = vmatpush.bf16.msra.mxu0 %v3190
    %3681 = vmatpush.bf16.msra.mxu0 %v3186
    %3682 = vmatpush.bf16.msra.mxu0 %v3182
    %3683 = vmatmul.bf16.gmra.mxu0 %v2109
    %v3684 = vpop.f32.mrf.mxu0
    %v3685 = vadd.f32 %v3672, %v3684
    %v3686 = vpop.f32.mrf.mxu0
    %3687 = vdwg.mxu0
    %3688 = vmatpush.bf16.msra.mxu0 %v3242
    %3689 = vmatpush.bf16.msra.mxu0 %v3238
    %3690 = vmatpush.bf16.msra.mxu0 %v3234
    %3691 = vmatpush.bf16.msra.mxu0 %v3230
    %3692 = vmatpush.bf16.msra.mxu0 %v3226
    %3693 = vmatpush.bf16.msra.mxu0 %v3222
    %3694 = vmatpush.bf16.msra.mxu0 %v3218
    %3695 = vmatpush.bf16.msra.mxu0 %v3214
    %3696 = vmatmul.bf16.gmra.mxu0 %v2110
    %v3697 = vpop.f32.mrf.mxu0
    %v3698 = vadd.f32 %v3685, %v3697
    %v3699 = vpop.f32.mrf.mxu0
    %3700 = vdwg.mxu0
    %3701 = vmatpush.bf16.msra.mxu0 %v3274
    %3702 = vmatpush.bf16.msra.mxu0 %v3270
    %3703 = vmatpush.bf16.msra.mxu0 %v3266
    %3704 = vmatpush.bf16.msra.mxu0 %v3262
    %3705 = vmatpush.bf16.msra.mxu0 %v3258
    %3706 = vmatpush.bf16.msra.mxu0 %v3254
    %3707 = vmatpush.bf16.msra.mxu0 %v3250
    %3708 = vmatpush.bf16.msra.mxu0 %v3246
    %3709 = vmatmul.bf16.gmra.mxu0 %v2111
    %v3710 = vpop.f32.mrf.mxu0
    %v3711 = vadd.f32 %v3698, %v3710
    %v3712 = vpop.f32.mrf.mxu0
    %3713 = vdwg.mxu0
    %3714 = vmatpush.bf16.msra.mxu0 %v3306
    %3715 = vmatpush.bf16.msra.mxu0 %v3302
    %3716 = vmatpush.bf16.msra.mxu0 %v3298
    %3717 = vmatpush.bf16.msra.mxu0 %v3294
    %3718 = vmatpush.bf16.msra.mxu0 %v3290
    %3719 = vmatpush.bf16.msra.mxu0 %v3286
    %3720 = vmatpush.bf16.msra.mxu0 %v3282
    %3721 = vmatpush.bf16.msra.mxu0 %v3278
    %3722 = vmatmul.bf16.gmra.mxu0 %v2112
    %v3723 = vpop.f32.mrf.mxu0
    %v3724 = vadd.f32 %v3711, %v3723
    %v3725 = vpop.f32.mrf.mxu0
    %3726 = vdwg.mxu0
    %3727 = vmatpush.bf16.msra.mxu0 %v3338
    %3728 = vmatpush.bf16.msra.mxu0 %v3334
    %3729 = vmatpush.bf16.msra.mxu0 %v3330
    %3730 = vmatpush.bf16.msra.mxu0 %v3326
    %3731 = vmatpush.bf16.msra.mxu0 %v3322
    %3732 = vmatpush.bf16.msra.mxu0 %v3318
    %3733 = vmatpush.bf16.msra.mxu0 %v3314
    %3734 = vmatpush.bf16.msra.mxu0 %v3310
    %3735 = vmatmul.bf16.gmra.mxu0 %v2113
    %v3736 = vpop.f32.mrf.mxu0
    %v3737 = vadd.f32 %v3724, %v3736
    %v3738 = vpop.f32.mrf.mxu0
    %3739 = vdwg.mxu0
    %3740 = vmatpush.bf16.msra.mxu0 %v3370
    %3741 = vmatpush.bf16.msra.mxu0 %v3366
    %3742 = vmatpush.bf16.msra.mxu0 %v3362
    %3743 = vmatpush.bf16.msra.mxu0 %v3358
    %3744 = vmatpush.bf16.msra.mxu0 %v3354
    %3745 = vmatpush.bf16.msra.mxu0 %v3350
    %3746 = vmatpush.bf16.msra.mxu0 %v3346
    %3747 = vmatpush.bf16.msra.mxu0 %v3342
    %3748 = vmatmul.bf16.gmra.mxu0 %v2114
    %v3749 = vpop.f32.mrf.mxu0
    %v3750 = vadd.f32 %v3737, %v3749
    %v3751 = vpop.f32.mrf.mxu0
    %3752 = vdwg.mxu0
    %3753 = vmatpush.bf16.msra.mxu0 %v3402
    %3754 = vmatpush.bf16.msra.mxu0 %v3398
    %3755 = vmatpush.bf16.msra.mxu0 %v3394
    %3756 = vmatpush.bf16.msra.mxu0 %v3390
    %3757 = vmatpush.bf16.msra.mxu0 %v3386
    %3758 = vmatpush.bf16.msra.mxu0 %v3382
    %3759 = vmatpush.bf16.msra.mxu0 %v3378
    %3760 = vmatpush.bf16.msra.mxu0 %v3374
    %3761 = vmatmul.bf16.gmra.mxu0 %v2115
    %v3762 = vpop.f32.mrf.mxu0
    %v3763 = vadd.f32 %v3750, %v3762
    %v3764 = vpop.f32.mrf.mxu0
    %3765 = vdwg.mxu0
    %3766 = vmatpush.bf16.msra.mxu0 %v3179
    %3767 = vmatpush.bf16.msra.mxu0 %v3175
    %3768 = vmatpush.bf16.msra.mxu0 %v3171
    %3769 = vmatpush.bf16.msra.mxu0 %v3167
    %3770 = vmatpush.bf16.msra.mxu0 %v3163
    %3771 = vmatpush.bf16.msra.mxu0 %v3159
    %3772 = vmatpush.bf16.msra.mxu0 %v3155
    %3773 = vmatpush.bf16.msra.mxu0 %v3151
    %3774 = vmatmul.bf16.gmra.mxu0 %v2108
    %v3775 = vpop.f32.mrf.mxu0
    %v3776 = vadd.f32 %v2375, %v3775
    %v3777 = vpop.f32.mrf.mxu0
    %3778 = vdwg.mxu0
    %3779 = vmatpush.bf16.msra.mxu0 %v3211
    %3780 = vmatpush.bf16.msra.mxu0 %v3207
    %3781 = vmatpush.bf16.msra.mxu0 %v3203
    %3782 = vmatpush.bf16.msra.mxu0 %v3199
    %3783 = vmatpush.bf16.msra.mxu0 %v3195
    %3784 = vmatpush.bf16.msra.mxu0 %v3191
    %3785 = vmatpush.bf16.msra.mxu0 %v3187
    %3786 = vmatpush.bf16.msra.mxu0 %v3183
    %3787 = vmatmul.bf16.gmra.mxu0 %v2109
    %v3788 = vpop.f32.mrf.mxu0
    %v3789 = vadd.f32 %v3776, %v3788
    %v3790 = vpop.f32.mrf.mxu0
    %3791 = vdwg.mxu0
    %3792 = vmatpush.bf16.msra.mxu0 %v3243
    %3793 = vmatpush.bf16.msra.mxu0 %v3239
    %3794 = vmatpush.bf16.msra.mxu0 %v3235
    %3795 = vmatpush.bf16.msra.mxu0 %v3231
    %3796 = vmatpush.bf16.msra.mxu0 %v3227
    %3797 = vmatpush.bf16.msra.mxu0 %v3223
    %3798 = vmatpush.bf16.msra.mxu0 %v3219
    %3799 = vmatpush.bf16.msra.mxu0 %v3215
    %3800 = vmatmul.bf16.gmra.mxu0 %v2110
    %v3801 = vpop.f32.mrf.mxu0
    %v3802 = vadd.f32 %v3789, %v3801
    %v3803 = vpop.f32.mrf.mxu0
    %3804 = vdwg.mxu0
    %3805 = vmatpush.bf16.msra.mxu0 %v3275
    %3806 = vmatpush.bf16.msra.mxu0 %v3271
    %3807 = vmatpush.bf16.msra.mxu0 %v3267
    %3808 = vmatpush.bf16.msra.mxu0 %v3263
    %3809 = vmatpush.bf16.msra.mxu0 %v3259
    %3810 = vmatpush.bf16.msra.mxu0 %v3255
    %3811 = vmatpush.bf16.msra.mxu0 %v3251
    %3812 = vmatpush.bf16.msra.mxu0 %v3247
    %3813 = vmatmul.bf16.gmra.mxu0 %v2111
    %v3814 = vpop.f32.mrf.mxu0
    %v3815 = vadd.f32 %v3802, %v3814
    %v3816 = vpop.f32.mrf.mxu0
    %3817 = vdwg.mxu0
    %3818 = vmatpush.bf16.msra.mxu0 %v3307
    %3819 = vmatpush.bf16.msra.mxu0 %v3303
    %3820 = vmatpush.bf16.msra.mxu0 %v3299
    %3821 = vmatpush.bf16.msra.mxu0 %v3295
    %3822 = vmatpush.bf16.msra.mxu0 %v3291
    %3823 = vmatpush.bf16.msra.mxu0 %v3287
    %3824 = vmatpush.bf16.msra.mxu0 %v3283
    %3825 = vmatpush.bf16.msra.mxu0 %v3279
    %3826 = vmatmul.bf16.gmra.mxu0 %v2112
    %v3827 = vpop.f32.mrf.mxu0
    %v3828 = vadd.f32 %v3815, %v3827
    %v3829 = vpop.f32.mrf.mxu0
    %3830 = vdwg.mxu0
    %3831 = vmatpush.bf16.msra.mxu0 %v3339
    %3832 = vmatpush.bf16.msra.mxu0 %v3335
    %3833 = vmatpush.bf16.msra.mxu0 %v3331
    %3834 = vmatpush.bf16.msra.mxu0 %v3327
    %3835 = vmatpush.bf16.msra.mxu0 %v3323
    %3836 = vmatpush.bf16.msra.mxu0 %v3319
    %3837 = vmatpush.bf16.msra.mxu0 %v3315
    %3838 = vmatpush.bf16.msra.mxu0 %v3311
    %3839 = vmatmul.bf16.gmra.mxu0 %v2113
    %v3840 = vpop.f32.mrf.mxu0
    %v3841 = vadd.f32 %v3828, %v3840
    %v3842 = vpop.f32.mrf.mxu0
    %3843 = vdwg.mxu0
    %3844 = vmatpush.bf16.msra.mxu0 %v3371
    %3845 = vmatpush.bf16.msra.mxu0 %v3367
    %3846 = vmatpush.bf16.msra.mxu0 %v3363
    %3847 = vmatpush.bf16.msra.mxu0 %v3359
    %3848 = vmatpush.bf16.msra.mxu0 %v3355
    %3849 = vmatpush.bf16.msra.mxu0 %v3351
    %3850 = vmatpush.bf16.msra.mxu0 %v3347
    %3851 = vmatpush.bf16.msra.mxu0 %v3343
    %3852 = vmatmul.bf16.gmra.mxu0 %v2114
    %v3853 = vpop.f32.mrf.mxu0
    %v3854 = vadd.f32 %v3841, %v3853
    %v3855 = vpop.f32.mrf.mxu0
    %3856 = vdwg.mxu0
    %3857 = vmatpush.bf16.msra.mxu0 %v3403
    %3858 = vmatpush.bf16.msra.mxu0 %v3399
    %3859 = vmatpush.bf16.msra.mxu0 %v3395
    %3860 = vmatpush.bf16.msra.mxu0 %v3391
    %3861 = vmatpush.bf16.msra.mxu0 %v3387
    %3862 = vmatpush.bf16.msra.mxu0 %v3383
    %3863 = vmatpush.bf16.msra.mxu0 %v3379
    %3864 = vmatpush.bf16.msra.mxu0 %v3375
    %3865 = vmatmul.bf16.gmra.mxu0 %v2115
    %v3866 = vpop.f32.mrf.mxu0
    %v3867 = vadd.f32 %v3854, %v3866
    %v3868 = vpop.f32.mrf.mxu0
    %3869 = vdwg.mxu0
    %3870 = vmatpush.bf16.msra.mxu0 %v3180
    %3871 = vmatpush.bf16.msra.mxu0 %v3176
    %3872 = vmatpush.bf16.msra.mxu0 %v3172
    %3873 = vmatpush.bf16.msra.mxu0 %v3168
    %3874 = vmatpush.bf16.msra.mxu0 %v3164
    %3875 = vmatpush.bf16.msra.mxu0 %v3160
    %3876 = vmatpush.bf16.msra.mxu0 %v3156
    %3877 = vmatpush.bf16.msra.mxu0 %v3152
    %3878 = vmatmul.bf16.gmra.mxu0 %v2108
    %v3879 = vpop.f32.mrf.mxu0
    %v3880 = vadd.f32 %v2376, %v3879
    %v3881 = vpop.f32.mrf.mxu0
    %3882 = vdwg.mxu0
    %3883 = vmatpush.bf16.msra.mxu0 %v3212
    %3884 = vmatpush.bf16.msra.mxu0 %v3208
    %3885 = vmatpush.bf16.msra.mxu0 %v3204
    %3886 = vmatpush.bf16.msra.mxu0 %v3200
    %3887 = vmatpush.bf16.msra.mxu0 %v3196
    %3888 = vmatpush.bf16.msra.mxu0 %v3192
    %3889 = vmatpush.bf16.msra.mxu0 %v3188
    %3890 = vmatpush.bf16.msra.mxu0 %v3184
    %3891 = vmatmul.bf16.gmra.mxu0 %v2109
    %v3892 = vpop.f32.mrf.mxu0
    %v3893 = vadd.f32 %v3880, %v3892
    %v3894 = vpop.f32.mrf.mxu0
    %3895 = vdwg.mxu0
    %3896 = vmatpush.bf16.msra.mxu0 %v3244
    %3897 = vmatpush.bf16.msra.mxu0 %v3240
    %3898 = vmatpush.bf16.msra.mxu0 %v3236
    %3899 = vmatpush.bf16.msra.mxu0 %v3232
    %3900 = vmatpush.bf16.msra.mxu0 %v3228
    %3901 = vmatpush.bf16.msra.mxu0 %v3224
    %3902 = vmatpush.bf16.msra.mxu0 %v3220
    %3903 = vmatpush.bf16.msra.mxu0 %v3216
    %3904 = vmatmul.bf16.gmra.mxu0 %v2110
    %v3905 = vpop.f32.mrf.mxu0
    %v3906 = vadd.f32 %v3893, %v3905
    %v3907 = vpop.f32.mrf.mxu0
    %3908 = vdwg.mxu0
    %3909 = vmatpush.bf16.msra.mxu0 %v3276
    %3910 = vmatpush.bf16.msra.mxu0 %v3272
    %3911 = vmatpush.bf16.msra.mxu0 %v3268
    %3912 = vmatpush.bf16.msra.mxu0 %v3264
    %3913 = vmatpush.bf16.msra.mxu0 %v3260
    %3914 = vmatpush.bf16.msra.mxu0 %v3256
    %3915 = vmatpush.bf16.msra.mxu0 %v3252
    %3916 = vmatpush.bf16.msra.mxu0 %v3248
    %3917 = vmatmul.bf16.gmra.mxu0 %v2111
    %v3918 = vpop.f32.mrf.mxu0
    %v3919 = vadd.f32 %v3906, %v3918
    %v3920 = vpop.f32.mrf.mxu0
    %3921 = vdwg.mxu0
    %3922 = vmatpush.bf16.msra.mxu0 %v3308
    %3923 = vmatpush.bf16.msra.mxu0 %v3304
    %3924 = vmatpush.bf16.msra.mxu0 %v3300
    %3925 = vmatpush.bf16.msra.mxu0 %v3296
    %3926 = vmatpush.bf16.msra.mxu0 %v3292
    %3927 = vmatpush.bf16.msra.mxu0 %v3288
    %3928 = vmatpush.bf16.msra.mxu0 %v3284
    %3929 = vmatpush.bf16.msra.mxu0 %v3280
    %3930 = vmatmul.bf16.gmra.mxu0 %v2112
    %v3931 = vpop.f32.mrf.mxu0
    %v3932 = vadd.f32 %v3919, %v3931
    %v3933 = vpop.f32.mrf.mxu0
    %3934 = vdwg.mxu0
    %3935 = vmatpush.bf16.msra.mxu0 %v3340
    %3936 = vmatpush.bf16.msra.mxu0 %v3336
    %3937 = vmatpush.bf16.msra.mxu0 %v3332
    %3938 = vmatpush.bf16.msra.mxu0 %v3328
    %3939 = vmatpush.bf16.msra.mxu0 %v3324
    %3940 = vmatpush.bf16.msra.mxu0 %v3320
    %3941 = vmatpush.bf16.msra.mxu0 %v3316
    %3942 = vmatpush.bf16.msra.mxu0 %v3312
    %3943 = vmatmul.bf16.gmra.mxu0 %v2113
    %v3944 = vpop.f32.mrf.mxu0
    %v3945 = vadd.f32 %v3932, %v3944
    %v3946 = vpop.f32.mrf.mxu0
    %3947 = vdwg.mxu0
    %3948 = vmatpush.bf16.msra.mxu0 %v3372
    %3949 = vmatpush.bf16.msra.mxu0 %v3368
    %3950 = vmatpush.bf16.msra.mxu0 %v3364
    %3951 = vmatpush.bf16.msra.mxu0 %v3360
    %3952 = vmatpush.bf16.msra.mxu0 %v3356
    %3953 = vmatpush.bf16.msra.mxu0 %v3352
    %3954 = vmatpush.bf16.msra.mxu0 %v3348
    %3955 = vmatpush.bf16.msra.mxu0 %v3344
    %3956 = vmatmul.bf16.gmra.mxu0 %v2114
    %v3957 = vpop.f32.mrf.mxu0
    %v3958 = vadd.f32 %v3945, %v3957
    %v3959 = vpop.f32.mrf.mxu0
    %3960 = vdwg.mxu0
    %3961 = vmatpush.bf16.msra.mxu0 %v3404
    %3962 = vmatpush.bf16.msra.mxu0 %v3400
    %3963 = vmatpush.bf16.msra.mxu0 %v3396
    %3964 = vmatpush.bf16.msra.mxu0 %v3392
    %3965 = vmatpush.bf16.msra.mxu0 %v3388
    %3966 = vmatpush.bf16.msra.mxu0 %v3384
    %3967 = vmatpush.bf16.msra.mxu0 %v3380
    %3968 = vmatpush.bf16.msra.mxu0 %v3376
    %3969 = vmatmul.bf16.gmra.mxu0 %v2115
    %v3970 = vpop.f32.mrf.mxu0
    %v3971 = vadd.f32 %v3958, %v3970
    %v3972 = vpop.f32.mrf.mxu0
    %3973 = vdwg.mxu0
    %3974 = vmatpush.bf16.msra.mxu0 %v3181
    %3975 = vmatpush.bf16.msra.mxu0 %v3177
    %3976 = vmatpush.bf16.msra.mxu0 %v3173
    %3977 = vmatpush.bf16.msra.mxu0 %v3169
    %3978 = vmatpush.bf16.msra.mxu0 %v3165
    %3979 = vmatpush.bf16.msra.mxu0 %v3161
    %3980 = vmatpush.bf16.msra.mxu0 %v3157
    %3981 = vmatpush.bf16.msra.mxu0 %v3153
    %3982 = vmatmul.bf16.gmra.mxu0 %v2108
    %v3983 = vpop.f32.mrf.mxu0
    %v3984 = vadd.f32 %v2377, %v3983
    %v3985 = vpop.f32.mrf.mxu0
    %3986 = vdwg.mxu0
    %3987 = vmatpush.bf16.msra.mxu0 %v3213
    %3988 = vmatpush.bf16.msra.mxu0 %v3209
    %3989 = vmatpush.bf16.msra.mxu0 %v3205
    %3990 = vmatpush.bf16.msra.mxu0 %v3201
    %3991 = vmatpush.bf16.msra.mxu0 %v3197
    %3992 = vmatpush.bf16.msra.mxu0 %v3193
    %3993 = vmatpush.bf16.msra.mxu0 %v3189
    %3994 = vmatpush.bf16.msra.mxu0 %v3185
    %3995 = vmatmul.bf16.gmra.mxu0 %v2109
    %v3996 = vpop.f32.mrf.mxu0
    %v3997 = vadd.f32 %v3984, %v3996
    %v3998 = vpop.f32.mrf.mxu0
    %3999 = vdwg.mxu0
    %4000 = vmatpush.bf16.msra.mxu0 %v3245
    %4001 = vmatpush.bf16.msra.mxu0 %v3241
    %4002 = vmatpush.bf16.msra.mxu0 %v3237
    %4003 = vmatpush.bf16.msra.mxu0 %v3233
    %4004 = vmatpush.bf16.msra.mxu0 %v3229
    %4005 = vmatpush.bf16.msra.mxu0 %v3225
    %4006 = vmatpush.bf16.msra.mxu0 %v3221
    %4007 = vmatpush.bf16.msra.mxu0 %v3217
    %4008 = vmatmul.bf16.gmra.mxu0 %v2110
    %v4009 = vpop.f32.mrf.mxu0
    %v4010 = vadd.f32 %v3997, %v4009
    %v4011 = vpop.f32.mrf.mxu0
    %4012 = vdwg.mxu0
    %4013 = vmatpush.bf16.msra.mxu0 %v3277
    %4014 = vmatpush.bf16.msra.mxu0 %v3273
    %4015 = vmatpush.bf16.msra.mxu0 %v3269
    %4016 = vmatpush.bf16.msra.mxu0 %v3265
    %4017 = vmatpush.bf16.msra.mxu0 %v3261
    %4018 = vmatpush.bf16.msra.mxu0 %v3257
    %4019 = vmatpush.bf16.msra.mxu0 %v3253
    %4020 = vmatpush.bf16.msra.mxu0 %v3249
    %4021 = vmatmul.bf16.gmra.mxu0 %v2111
    %v4022 = vpop.f32.mrf.mxu0
    %v4023 = vadd.f32 %v4010, %v4022
    %v4024 = vpop.f32.mrf.mxu0
    %4025 = vdwg.mxu0
    %4026 = vmatpush.bf16.msra.mxu0 %v3309
    %4027 = vmatpush.bf16.msra.mxu0 %v3305
    %4028 = vmatpush.bf16.msra.mxu0 %v3301
    %4029 = vmatpush.bf16.msra.mxu0 %v3297
    %4030 = vmatpush.bf16.msra.mxu0 %v3293
    %4031 = vmatpush.bf16.msra.mxu0 %v3289
    %4032 = vmatpush.bf16.msra.mxu0 %v3285
    %4033 = vmatpush.bf16.msra.mxu0 %v3281
    %4034 = vmatmul.bf16.gmra.mxu0 %v2112
    %v4035 = vpop.f32.mrf.mxu0
    %v4036 = vadd.f32 %v4023, %v4035
    %v4037 = vpop.f32.mrf.mxu0
    %4038 = vdwg.mxu0
    %4039 = vmatpush.bf16.msra.mxu0 %v3341
    %4040 = vmatpush.bf16.msra.mxu0 %v3337
    %4041 = vmatpush.bf16.msra.mxu0 %v3333
    %4042 = vmatpush.bf16.msra.mxu0 %v3329
    %4043 = vmatpush.bf16.msra.mxu0 %v3325
    %4044 = vmatpush.bf16.msra.mxu0 %v3321
    %4045 = vmatpush.bf16.msra.mxu0 %v3317
    %4046 = vmatpush.bf16.msra.mxu0 %v3313
    %4047 = vmatmul.bf16.gmra.mxu0 %v2113
    %v4048 = vpop.f32.mrf.mxu0
    %v4049 = vadd.f32 %v4036, %v4048
    %v4050 = vpop.f32.mrf.mxu0
    %4051 = vdwg.mxu0
    %4052 = vmatpush.bf16.msra.mxu0 %v3373
    %4053 = vmatpush.bf16.msra.mxu0 %v3369
    %4054 = vmatpush.bf16.msra.mxu0 %v3365
    %4055 = vmatpush.bf16.msra.mxu0 %v3361
    %4056 = vmatpush.bf16.msra.mxu0 %v3357
    %4057 = vmatpush.bf16.msra.mxu0 %v3353
    %4058 = vmatpush.bf16.msra.mxu0 %v3349
    %4059 = vmatpush.bf16.msra.mxu0 %v3345
    %4060 = vmatmul.bf16.gmra.mxu0 %v2114
    %v4061 = vpop.f32.mrf.mxu0
    %v4062 = vadd.f32 %v4049, %v4061
    %v4063 = vpop.f32.mrf.mxu0
    %4064 = vdwg.mxu0
    %4065 = vmatpush.bf16.msra.mxu0 %v3405
    %4066 = vmatpush.bf16.msra.mxu0 %v3401
    %4067 = vmatpush.bf16.msra.mxu0 %v3397
    %4068 = vmatpush.bf16.msra.mxu0 %v3393
    %4069 = vmatpush.bf16.msra.mxu0 %v3389
    %4070 = vmatpush.bf16.msra.mxu0 %v3385
    %4071 = vmatpush.bf16.msra.mxu0 %v3381
    %4072 = vmatpush.bf16.msra.mxu0 %v3377
    %4073 = vmatmul.bf16.gmra.mxu0 %v2115
    %v4074 = vpop.f32.mrf.mxu0
    %v4075 = vadd.f32 %v4062, %v4074
    %v4076 = vpop.f32.mrf.mxu0
    %4077 = vdwg.mxu0
    %v4078 = vmax.f32 %v3763, 0.0
    %v4079 = vmax.f32 %v3867, 0.0
    %v4080 = vmax.f32 %v3971, 0.0
    %v4081 = vmax.f32 %v4075, 0.0
    %v4082 = vpack.c.bf16 %v4078, %v4078
    %v4083 = vpack.c.bf16 %v4079, %v4079
    %v4084 = vpack.c.bf16 %v4080, %v4080
    %v4085 = vpack.c.bf16 %v4081, %v4081
    %v4086 = vld [vmem:[#allocation11] sm:$0xf]
    %v4087 = vld [vmem:[#allocation11 + $0x4] sm:$0xf]
    %v4088 = vld [vmem:[#allocation11 + $0x8] sm:$0xf]
    %v4089 = vld [vmem:[#allocation11 + $0xc] sm:$0xf]
    %v4090 = vld [vmem:[#allocation11 + $0x10] sm:$0xf]
    %v4091 = vld [vmem:[#allocation11 + $0x14] sm:$0xf]
    %v4092 = vld [vmem:[#allocation11 + $0x18] sm:$0xf]
    %v4093 = vld [vmem:[#allocation11 + $0x1c] sm:$0xf]
    %v4094 = vld [vmem:[#allocation11 + $0x20] sm:$0xf]
    %v4095 = vld [vmem:[#allocation11 + $0x24] sm:$0xf]
    %v4096 = vld [vmem:[#allocation11 + $0x28] sm:$0xf]
    %v4097 = vld [vmem:[#allocation11 + $0x2c] sm:$0xf]
    %v4098 = vld [vmem:[#allocation11 + $0x30] sm:$0xf]
    %v4099 = vld [vmem:[#allocation11 + $0x34] sm:$0xf]
    %v4100 = vld [vmem:[#allocation11 + $0x38] sm:$0xf]
    %v4101 = vld [vmem:[#allocation11 + $0x3c] sm:$0xf]
    %v4102 = vld [vmem:[#allocation11 + $0x40] sm:$0xf]
    %v4103 = vld [vmem:[#allocation11 + $0x44] sm:$0xf]
    %v4104 = vld [vmem:[#allocation11 + $0x48] sm:$0xf]
    %v4105 = vld [vmem:[#allocation11 + $0x4c] sm:$0xf]
    %v4106 = vld [vmem:[#allocation11 + $0x50] sm:$0xf]
    %v4107 = vld [vmem:[#allocation11 + $0x54] sm:$0xf]
    %v4108 = vld [vmem:[#allocation11 + $0x58] sm:$0xf]
    %v4109 = vld [vmem:[#allocation11 + $0x5c] sm:$0xf]
    %v4110 = vld [vmem:[#allocation11 + $0x60] sm:$0xf]
    %v4111 = vld [vmem:[#allocation11 + $0x64] sm:$0xf]
    %v4112 = vld [vmem:[#allocation11 + $0x68] sm:$0xf]
    %v4113 = vld [vmem:[#allocation11 + $0x6c] sm:$0xf]
    %v4114 = vld [vmem:[#allocation11 + $0x70] sm:$0xf]
    %v4115 = vld [vmem:[#allocation11 + $0x74] sm:$0xf]
    %v4116 = vld [vmem:[#allocation11 + $0x78] sm:$0xf]
    %v4117 = vld [vmem:[#allocation11 + $0x7c] sm:$0xf]
    %v4118 = vld [vmem:[#allocation11 + $0x80] sm:$0xf]
    %v4119 = vld [vmem:[#allocation11 + $0x84] sm:$0xf]
    %v4120 = vld [vmem:[#allocation11 + $0x88] sm:$0xf]
    %v4121 = vld [vmem:[#allocation11 + $0x8c] sm:$0xf]
    %v4122 = vld [vmem:[#allocation11 + $0x90] sm:$0xf]
    %v4123 = vld [vmem:[#allocation11 + $0x94] sm:$0xf]
    %v4124 = vld [vmem:[#allocation11 + $0x98] sm:$0xf]
    %v4125 = vld [vmem:[#allocation11 + $0x9c] sm:$0xf]
    %v4126 = vld [vmem:[#allocation11 + $0xa0] sm:$0xf]
    %v4127 = vld [vmem:[#allocation11 + $0xa4] sm:$0xf]
    %v4128 = vld [vmem:[#allocation11 + $0xa8] sm:$0xf]
    %v4129 = vld [vmem:[#allocation11 + $0xac] sm:$0xf]
    %v4130 = vld [vmem:[#allocation11 + $0xb0] sm:$0xf]
    %v4131 = vld [vmem:[#allocation11 + $0xb4] sm:$0xf]
    %v4132 = vld [vmem:[#allocation11 + $0xb8] sm:$0xf]
    %v4133 = vld [vmem:[#allocation11 + $0xbc] sm:$0xf]
    %v4134 = vld [vmem:[#allocation11 + $0xc0] sm:$0xf]
    %v4135 = vld [vmem:[#allocation11 + $0xc4] sm:$0xf]
    %v4136 = vld [vmem:[#allocation11 + $0xc8] sm:$0xf]
    %v4137 = vld [vmem:[#allocation11 + $0xcc] sm:$0xf]
    %v4138 = vld [vmem:[#allocation11 + $0xd0] sm:$0xf]
    %v4139 = vld [vmem:[#allocation11 + $0xd4] sm:$0xf]
    %v4140 = vld [vmem:[#allocation11 + $0xd8] sm:$0xf]
    %v4141 = vld [vmem:[#allocation11 + $0xdc] sm:$0xf]
    %v4142 = vld [vmem:[#allocation11 + $0xe0] sm:$0xf]
    %v4143 = vld [vmem:[#allocation11 + $0xe4] sm:$0xf]
    %v4144 = vld [vmem:[#allocation11 + $0xe8] sm:$0xf]
    %v4145 = vld [vmem:[#allocation11 + $0xec] sm:$0xf]
    %v4146 = vld [vmem:[#allocation11 + $0xf0] sm:$0xf]
    %v4147 = vld [vmem:[#allocation11 + $0xf4] sm:$0xf]
    %v4148 = vld [vmem:[#allocation11 + $0xf8] sm:$0xf]
    %v4149 = vld [vmem:[#allocation11 + $0xfc] sm:$0xf]
    %v4150 = vld [vmem:[%s6] sm:$0x1]
    %v4152 = vperm.slane %v4150, 0
    %v4218 = vunpack.c.l.b16 %v4086
    %v4219 = vunpack.c.l.b16 %v4087
    %v4220 = vunpack.c.l.b16 %v4088
    %v4221 = vunpack.c.l.b16 %v4089
    %v4222 = vunpack.c.l.b16 %v4090
    %v4223 = vunpack.c.l.b16 %v4091
    %v4224 = vunpack.c.l.b16 %v4092
    %v4225 = vunpack.c.l.b16 %v4093
    %v4226 = vunpack.c.l.b16 %v4094
    %v4227 = vunpack.c.l.b16 %v4095
    %v4228 = vunpack.c.l.b16 %v4096
    %v4229 = vunpack.c.l.b16 %v4097
    %v4230 = vunpack.c.l.b16 %v4098
    %v4231 = vunpack.c.l.b16 %v4099
    %v4232 = vunpack.c.l.b16 %v4100
    %v4233 = vunpack.c.l.b16 %v4101
    %v4234 = vunpack.c.l.b16 %v4102
    %v4235 = vunpack.c.l.b16 %v4103
    %v4236 = vunpack.c.l.b16 %v4104
    %v4237 = vunpack.c.l.b16 %v4105
    %v4238 = vunpack.c.l.b16 %v4106
    %v4239 = vunpack.c.l.b16 %v4107
    %v4240 = vunpack.c.l.b16 %v4108
    %v4241 = vunpack.c.l.b16 %v4109
    %v4242 = vunpack.c.l.b16 %v4110
    %v4243 = vunpack.c.l.b16 %v4111
    %v4244 = vunpack.c.l.b16 %v4112
    %v4245 = vunpack.c.l.b16 %v4113
    %v4246 = vunpack.c.l.b16 %v4114
    %v4247 = vunpack.c.l.b16 %v4115
    %v4248 = vunpack.c.l.b16 %v4116
    %v4249 = vunpack.c.l.b16 %v4117
    %v4250 = vunpack.c.l.b16 %v4118
    %v4251 = vunpack.c.l.b16 %v4119
    %v4252 = vunpack.c.l.b16 %v4120
    %v4253 = vunpack.c.l.b16 %v4121
    %v4254 = vunpack.c.l.b16 %v4122
    %v4255 = vunpack.c.l.b16 %v4123
    %v4256 = vunpack.c.l.b16 %v4124
    %v4257 = vunpack.c.l.b16 %v4125
    %v4258 = vunpack.c.l.b16 %v4126
    %v4259 = vunpack.c.l.b16 %v4127
    %v4260 = vunpack.c.l.b16 %v4128
    %v4261 = vunpack.c.l.b16 %v4129
    %v4262 = vunpack.c.l.b16 %v4130
    %v4263 = vunpack.c.l.b16 %v4131
    %v4264 = vunpack.c.l.b16 %v4132
    %v4265 = vunpack.c.l.b16 %v4133
    %v4266 = vunpack.c.l.b16 %v4134
    %v4267 = vunpack.c.l.b16 %v4135
    %v4268 = vunpack.c.l.b16 %v4136
    %v4269 = vunpack.c.l.b16 %v4137
    %v4270 = vunpack.c.l.b16 %v4138
    %v4271 = vunpack.c.l.b16 %v4139
    %v4272 = vunpack.c.l.b16 %v4140
    %v4273 = vunpack.c.l.b16 %v4141
    %v4274 = vunpack.c.l.b16 %v4142
    %v4275 = vunpack.c.l.b16 %v4143
    %v4276 = vunpack.c.l.b16 %v4144
    %v4277 = vunpack.c.l.b16 %v4145
    %v4278 = vunpack.c.l.b16 %v4146
    %v4279 = vunpack.c.l.b16 %v4147
    %v4280 = vunpack.c.l.b16 %v4148
    %v4281 = vunpack.c.l.b16 %v4149
    %v4282 = vpack.c.b16 %v4219, %v4218
    %v4283 = vpack.c.b16 %v4221, %v4220
    %v4284 = vpack.c.b16 %v4223, %v4222
    %v4285 = vpack.c.b16 %v4225, %v4224
    %v4286 = vpack.c.b16 %v4227, %v4226
    %v4287 = vpack.c.b16 %v4229, %v4228
    %v4288 = vpack.c.b16 %v4231, %v4230
    %v4289 = vpack.c.b16 %v4233, %v4232
    %v4290 = vpack.c.b16 %v4235, %v4234
    %v4291 = vpack.c.b16 %v4237, %v4236
    %v4292 = vpack.c.b16 %v4239, %v4238
    %v4293 = vpack.c.b16 %v4241, %v4240
    %v4294 = vpack.c.b16 %v4243, %v4242
    %v4295 = vpack.c.b16 %v4245, %v4244
    %v4296 = vpack.c.b16 %v4247, %v4246
    %v4297 = vpack.c.b16 %v4249, %v4248
    %v4298 = vpack.c.b16 %v4251, %v4250
    %v4299 = vpack.c.b16 %v4253, %v4252
    %v4300 = vpack.c.b16 %v4255, %v4254
    %v4301 = vpack.c.b16 %v4257, %v4256
    %v4302 = vpack.c.b16 %v4259, %v4258
    %v4303 = vpack.c.b16 %v4261, %v4260
    %v4304 = vpack.c.b16 %v4263, %v4262
    %v4305 = vpack.c.b16 %v4265, %v4264
    %v4306 = vpack.c.b16 %v4267, %v4266
    %v4307 = vpack.c.b16 %v4269, %v4268
    %v4308 = vpack.c.b16 %v4271, %v4270
    %v4309 = vpack.c.b16 %v4273, %v4272
    %v4310 = vpack.c.b16 %v4275, %v4274
    %v4311 = vpack.c.b16 %v4277, %v4276
    %v4312 = vpack.c.b16 %v4279, %v4278
    %v4313 = vpack.c.b16 %v4281, %v4280
    %4346 = vmatpush.bf16.msra.mxu0 %v4289
    %4347 = vmatpush.bf16.msra.mxu0 %v4288
    %4348 = vmatpush.bf16.msra.mxu0 %v4287
    %4349 = vmatpush.bf16.msra.mxu0 %v4286
    %4350 = vmatpush.bf16.msra.mxu0 %v4285
    %4351 = vmatpush.bf16.msra.mxu0 %v4284
    %4352 = vmatpush.bf16.msra.mxu0 %v4283
    %4353 = vmatpush.bf16.msra.mxu0 %v4282
    %4354 = vmatmul.bf16.gmra.mxu0 %v4082
    %v4355 = vpop.f32.mrf.mxu0
    %v4356 = vadd.f32 %v4152, %v4355
    %v4357 = vpop.f32.mrf.mxu0
    %4358 = vdwg.mxu0
    %4359 = vmatpush.bf16.msra.mxu0 %v4297
    %4360 = vmatpush.bf16.msra.mxu0 %v4296
    %4361 = vmatpush.bf16.msra.mxu0 %v4295
    %4362 = vmatpush.bf16.msra.mxu0 %v4294
    %4363 = vmatpush.bf16.msra.mxu0 %v4293
    %4364 = vmatpush.bf16.msra.mxu0 %v4292
    %4365 = vmatpush.bf16.msra.mxu0 %v4291
    %4366 = vmatpush.bf16.msra.mxu0 %v4290
    %4367 = vmatmul.bf16.gmra.mxu0 %v4083
    %v4368 = vpop.f32.mrf.mxu0
    %v4369 = vadd.f32 %v4356, %v4368
    %v4370 = vpop.f32.mrf.mxu0
    %4371 = vdwg.mxu0
    %4372 = vmatpush.bf16.msra.mxu0 %v4305
    %4373 = vmatpush.bf16.msra.mxu0 %v4304
    %4374 = vmatpush.bf16.msra.mxu0 %v4303
    %4375 = vmatpush.bf16.msra.mxu0 %v4302
    %4376 = vmatpush.bf16.msra.mxu0 %v4301
    %4377 = vmatpush.bf16.msra.mxu0 %v4300
    %4378 = vmatpush.bf16.msra.mxu0 %v4299
    %4379 = vmatpush.bf16.msra.mxu0 %v4298
    %4380 = vmatmul.bf16.gmra.mxu0 %v4084
    %v4381 = vpop.f32.mrf.mxu0
    %v4382 = vadd.f32 %v4369, %v4381
    %v4383 = vpop.f32.mrf.mxu0
    %4384 = vdwg.mxu0
    %4385 = vmatpush.bf16.msra.mxu0 %v4313
    %4386 = vmatpush.bf16.msra.mxu0 %v4312
    %4387 = vmatpush.bf16.msra.mxu0 %v4311
    %4388 = vmatpush.bf16.msra.mxu0 %v4310
    %4389 = vmatpush.bf16.msra.mxu0 %v4309
    %4390 = vmatpush.bf16.msra.mxu0 %v4308
    %4391 = vmatpush.bf16.msra.mxu0 %v4307
    %4392 = vmatpush.bf16.msra.mxu0 %v4306
    %4393 = vmatmul.bf16.gmra.mxu0 %v4085
    %v4394 = vpop.f32.mrf.mxu0
    %v4395 = vadd.f32 %v4382, %v4394
    %v4396 = vpop.f32.mrf.mxu0
    %4397 = vdwg.mxu0
    %4398 = vst [vmem:[#allocation13] sm:$0x3] %v4395
    // Predicated region
    $region54: #{tpu_custom_call.1} parent=1 // pred_check
      _
    $region55: #{tpu_custom_call.1} parent=1 // pred_check_branch
      %4400 = sbr.rel (0) target = $region57
    $region56: #{tpu_custom_call.1} parent=1 // pred_region
      %4402 = vsyncadd [#allocation4], 0
      %s4404 = sshll.u32 [#allocation13], 4
      %s4405 = int_to_ptr.vmem [resolvable:$true] %s4404
      %s4406 = sshll.u32 %s7, 4
      %s4407 = int_to_ptr.hbm [resolvable:$true] %s4406
      %4409 = dma.vmem_to_hbm [thread:$0]  %s4405, 32, %s4407, [#allocation4]
    $region57: #{tpu_custom_call.1} parent=1 // pred_fallthru
      _
    // Predicated region
    $region58: #{tpu_custom_call.1} parent=1 // pred_check
      _
    $region59: #{tpu_custom_call.1} parent=1 // pred_check_branch
      %4411 = sbr.rel (0) target = $region61
    $region60: #{tpu_custom_call.1} parent=1 // pred_region
      %4413 = dma.done [#allocation4], 32
    $region61: #{tpu_custom_call.1} parent=1 // pred_fallthru
      _
    %4414 = vsyncpa [#allocation3], 1
    %4415 = vsyncpa [#allocation6], 1
    %4416 = vsyncpa [#allocation9], 1
    %4417 = vsyncpa [#allocation12], 1
    %4418 = vsyncpa [#allocation4], 1

// kernel: tpu_custom_call.1
$region0: #{tpu_custom_call.1}
  #allocation0 [shape = 'u32[]', space=smem, size = 0x4, offset = 0x4, fixed_abs, tag = 'smem constant byte address 0x4 - core index']
  #allocation1 [shape = 'u32[72,128]{1,0:T(1,128)}', space=vmem, size = 0x9000, scoped, tag = 'internal scratch']
  %s0 = inlined_call_operand.hbm [shape: f32[2,512], index: 0, kind: input, shape index: {}]
  %s1 = inlined_call_operand.hbm [shape: bf16[512,1024], index: 1, kind: input, shape index: {}]
  %s2 = inlined_call_operand.hbm [shape: f32[1,1024], index: 2, kind: input, shape index: {}]
  %s3 = inlined_call_operand.hbm [shape: bf16[1024,512], index: 3, kind: input, shape index: {}]
  %s4 = inlined_call_operand.hbm [shape: f32[1,512], index: 4, kind: input, shape index: {}]
  %s5 = inlined_call_operand.hbm [shape: bf16[512,128], index: 5, kind: input, shape index: {}]
  %s6 = inlined_call_operand.vmem [shape: f32[1,128], index: 6, kind: input, shape index: {}]
  %s7 = inlined_call_operand.hbm [shape: f32[2,128], index: 7, kind: output, shape index: {}]
  %s8 = sld [smem:[#allocation0]]
  $region62: #{tpu_custom_call.1} parent=0
    _
  %s10 = ssub.s32 1, %s8
  %s11 = scalar_select 0, %s10, %s8
  $region1: #{tpu_custom_call.1} parent=0
    #allocation2 [shape = 'u8[4096]{0}', space=vmem, size = 0x1000, scoped, tag = 'input window, operand 0, single buffered']
    #allocation3 [shape = 's32[1]{0}', space=sflag, size = 0x4, scoped, tag = 'scoped memory for tpu_custom_call.1']
    #allocation4 [shape = 's32[1]{0}', space=sflag, size = 0x4, scoped, tag = 'scoped memory for tpu_custom_call.1']
    #allocation5 [shape = 'u8[1048576]{0}', space=vmem, size = 0x100000, scoped, tag = 'input window, operand 1, single buffered']
    #allocation6 [shape = 's32[1]{0}', space=sflag, size = 0x4, scoped, tag = 'scoped memory for tpu_custom_call.1']
    #allocation7 [shape = 'u8[4096]{0}', space=vmem, size = 0x1000, scoped, tag = 'input window, operand 2, single buffered']
    #allocation8 [shape = 'u8[1048576]{0}', space=vmem, size = 0x100000, scoped, tag = 'input window, operand 3, single buffered']
    #allocation9 [shape = 's32[1]{0}', space=sflag, size = 0x4, scoped, tag = 'scoped memory for tpu_custom_call.1']
    #allocation10 [shape = 'u8[2048]{0}', space=vmem, size = 0x800, scoped, tag = 'input window, operand 4, single buffered']
    #allocation11 [shape = 'u8[131072]{0}', space=vmem, size = 0x20000, scoped, tag = 'input window, operand 5, single buffered']
    #allocation12 [shape = 's32[1]{0}', space=sflag, size = 0x4, scoped, tag = 'scoped memory for tpu_custom_call.1']
    #allocation13 [shape = 'u8[1024]{0}', space=vmem, size = 0x400, scoped, tag = 'output window, operand 0, single buffered']
    %12 = vsyncpa [#allocation3], 0
    %13 = vsyncpa [#allocation6], 0
    %14 = vsyncpa [#allocation9], 0
    %15 = vsyncpa [#allocation12], 0
    %16 = vsyncpa [#allocation4], 0
    // Predicated region
    $region2: #{tpu_custom_call.1} parent=1 // pred_check
      _
    $region3: #{tpu_custom_call.1} parent=1 // pred_check_branch
      %18 = sbr.rel (0) target = $region5
    $region4: #{tpu_custom_call.1} parent=1 // pred_region
      %20 = vsyncadd [#allocation3], 0
      %s22 = sshll.u32 %s0, 4
      %s23 = int_to_ptr.hbm [resolvable:$true] %s22
      %s24 = sshll.u32 [#allocation2], 4
      %s25 = int_to_ptr.vmem [resolvable:$true] %s24
      %27 = dma.hbm_to_vmem [thread:$0]  %s23, 128, %s25, [#allocation3]
    $region5: #{tpu_custom_call.1} parent=1 // pred_fallthru
      _
    // Predicated region
    $region6: #{tpu_custom_call.1} parent=1 // pred_check
      _
    $region7: #{tpu_custom_call.1} parent=1 // pred_check_branch
      %29 = sbr.rel (0) target = $region9
    $region8: #{tpu_custom_call.1} parent=1 // pred_region
      %31 = vsyncadd [#allocation6], 0
      %s32 = sshll.u32 %s1, 4
      %s33 = int_to_ptr.hbm [resolvable:$true] %s32
      %s34 = sshll.u32 [#allocation5], 4
      %s35 = int_to_ptr.vmem [resolvable:$true] %s34
      %40 = dma.hbm_to_vmem [thread:$0]  %s33, 32768, %s35, [#allocation6], 512, 512, 32
    $region9: #{tpu_custom_call.1} parent=1 // pred_fallthru
      _
    // Predicated region
    $region10: #{tpu_custom_call.1} parent=1 // pred_check
      _
    $region11: #{tpu_custom_call.1} parent=1 // pred_check_branch
      %42 = sbr.rel (0) target = $region13
    $region12: #{tpu_custom_call.1} parent=1 // pred_region
      %44 = vsyncadd [#allocation6], 0
      %s46 = sshll.u32 %s2, 4
      %s47 = int_to_ptr.hbm [resolvable:$true] %s46
      %s48 = sshll.u32 [#allocation7], 4
      %s49 = int_to_ptr.vmem [resolvable:$true] %s48
      %51 = dma.hbm_to_vmem [thread:$0]  %s47, 128, %s49, [#allocation6]
    $region13: #{tpu_custom_call.1} parent=1 // pred_fallthru
      _
    // Predicated region
    $region14: #{tpu_custom_call.1} parent=1 // pred_check
      _
    $region15: #{tpu_custom_call.1} parent=1 // pred_check_branch
      %53 = sbr.rel (0) target = $region17
    $region16: #{tpu_custom_call.1} parent=1 // pred_region
      %55 = vsyncadd [#allocation9], 0
      %s56 = sshll.u32 %s3, 4
      %s57 = int_to_ptr.hbm [resolvable:$true] %s56
      %s58 = sshll.u32 [#allocation8], 4
      %s59 = int_to_ptr.vmem [resolvable:$true] %s58
      %64 = dma.hbm_to_vmem [thread:$0]  %s57, 32768, %s59, [#allocation9], 256, 256, 16
    $region17: #{tpu_custom_call.1} parent=1 // pred_fallthru
      _
    // Predicated region
    $region18: #{tpu_custom_call.1} parent=1 // pred_check
      _
    $region19: #{tpu_custom_call.1} parent=1 // pred_check_branch
      %66 = sbr.rel (0) target = $region21
    $region20: #{tpu_custom_call.1} parent=1 // pred_region
      %68 = vsyncadd [#allocation9], 0
      %s70 = sshll.u32 %s4, 4
      %s71 = int_to_ptr.hbm [resolvable:$true] %s70
      %s72 = sshll.u32 [#allocation10], 4
      %s73 = int_to_ptr.vmem [resolvable:$true] %s72
      %75 = dma.hbm_to_vmem [thread:$0]  %s71, 64, %s73, [#allocation9]
    $region21: #{tpu_custom_call.1} parent=1 // pred_fallthru
      _
    // Predicated region
    $region22: #{tpu_custom_call.1} parent=1 // pred_check
      _
    $region23: #{tpu_custom_call.1} parent=1 // pred_check_branch
      %77 = sbr.rel (0) target = $region25
    $region24: #{tpu_custom_call.1} parent=1 // pred_region
      %79 = vsyncadd [#allocation12], 0
      %s80 = sshll.u32 %s5, 4
      %s81 = int_to_ptr.hbm [resolvable:$true] %s80
      %s82 = sshll.u32 [#allocation11], 4
      %s83 = int_to_ptr.vmem [resolvable:$true] %s82
      %88 = dma.hbm_to_vmem [thread:$0]  %s81, 4096, %s83, [#allocation12], 64, 64, 4
    $region25: #{tpu_custom_call.1} parent=1 // pred_fallthru
      _
    // Predicated region
    $region26: #{tpu_custom_call.1} parent=1 // pred_check
      _
    $region27: #{tpu_custom_call.1} parent=1 // pred_check_branch
      %90 = sbr.rel (0) target = $region29
    $region28: #{tpu_custom_call.1} parent=1 // pred_region
      _
    $region29: #{tpu_custom_call.1} parent=1 // pred_fallthru
      _
    // Predicated region
    $region30: #{tpu_custom_call.1} parent=1 // pred_check
      _
    $region31: #{tpu_custom_call.1} parent=1 // pred_check_branch
      %92 = sbr.rel (0) target = $region33
    $region32: #{tpu_custom_call.1} parent=1 // pred_region
      %94 = dma.done [#allocation3], 128
    $region33: #{tpu_custom_call.1} parent=1 // pred_fallthru
      _
    // Predicated region
    $region34: #{tpu_custom_call.1} parent=1 // pred_check
      _
    $region35: #{tpu_custom_call.1} parent=1 // pred_check_branch
      %96 = sbr.rel (0) target = $region37
    $region36: #{tpu_custom_call.1} parent=1 // pred_region
      %98 = dma.done [#allocation6], 32768
    $region37: #{tpu_custom_call.1} parent=1 // pred_fallthru
      _
    // Predicated region
    $region38: #{tpu_custom_call.1} parent=1 // pred_check
      _
    $region39: #{tpu_custom_call.1} parent=1 // pred_check_branch
      %100 = sbr.rel (0) target = $region41
    $region40: #{tpu_custom_call.1} parent=1 // pred_region
      %102 = dma.done [#allocation6], 128
    $region41: #{tpu_custom_call.1} parent=1 // pred_fallthru
      _
    // Predicated region
    $region42: #{tpu_custom_call.1} parent=1 // pred_check
      _
    $region43: #{tpu_custom_call.1} parent=1 // pred_check_branch
      %104 = sbr.rel (0) target = $region45
    $region44: #{tpu_custom_call.1} parent=1 // pred_region
      %106 = dma.done [#allocation9], 32768
    $region45: #{tpu_custom_call.1} parent=1 // pred_fallthru
      _
    // Predicated region
    $region46: #{tpu_custom_call.1} parent=1 // pred_check
      _
    $region47: #{tpu_custom_call.1} parent=1 // pred_check_branch
      %108 = sbr.rel (0) target = $region49
    $region48: #{tpu_custom_call.1} parent=1 // pred_region
      %110 = dma.done [#allocation9], 64
    $region49: #{tpu_custom_call.1} parent=1 // pred_fallthru
      _
    // Predicated region
    $region50: #{tpu_custom_call.1} parent=1 // pred_check
      _
    $region51: #{tpu_custom_call.1} parent=1 // pred_check_branch
      %112 = sbr.rel (0) target = $region53
    $region52: #{tpu_custom_call.1} parent=1 // pred_region
      %114 = dma.done [#allocation12], 4096
    $region53: #{tpu_custom_call.1} parent=1 // pred_fallthru
      _
    %v115 = vld [vmem:[#allocation2] sm:$0xff]
    %117 = vst [vmem:[#allocation1] ss:$4 sm:$0xff] %v115
    %v118 = vld.sshfl [vmem:[#allocation1] sm:$0xff pattern:$0x73625140]
    %v119 = vld.sshfl [vmem:[#allocation1 + $0x8] sm:$0xff pattern:$0x73625140]
    %v120 = vld.sshfl [vmem:[#allocation1 + $0x10] sm:$0xff pattern:$0x73625140]
    %v121 = vld.sshfl [vmem:[#allocation1 + $0x18] sm:$0xff pattern:$0x73625140]
    %v126 = vpack.c.bf16 %v118, %v118
    %v127 = vpack.c.bf16 %v119, %v119
    %v128 = vpack.c.bf16 %v120, %v120
    %v129 = vpack.c.bf16 %v121, %v121
    %v130 = vld [vmem:[#allocation5] sm:$0xff]
    %v131 = vld [vmem:[#allocation5 + $0x8] sm:$0xff]
    %v132 = vld [vmem:[#allocation5 + $0x10] sm:$0xff]
    %v133 = vld [vmem:[#allocation5 + $0x18] sm:$0xff]
    %v134 = vld [vmem:[#allocation5 + $0x20] sm:$0xff]
    %v135 = vld [vmem:[#allocation5 + $0x28] sm:$0xff]
    %v136 = vld [vmem:[#allocation5 + $0x30] sm:$0xff]
    %v137 = vld [vmem:[#allocation5 + $0x38] sm:$0xff]
    %v138 = vld [vmem:[#allocation5 + $0x40] sm:$0xff]
    %v139 = vld [vmem:[#allocation5 + $0x48] sm:$0xff]
    %v140 = vld [vmem:[#allocation5 + $0x50] sm:$0xff]
    %v141 = vld [vmem:[#allocation5 + $0x58] sm:$0xff]
    %v142 = vld [vmem:[#allocation5 + $0x60] sm:$0xff]
    %v143 = vld [vmem:[#allocation5 + $0x68] sm:$0xff]
    %v144 = vld [vmem:[#allocation5 + $0x70] sm:$0xff]
    %v145 = vld [vmem:[#allocation5 + $0x78] sm:$0xff]
    %v146 = vld [vmem:[#allocation5 + $0x80] sm:$0xff]
    %v147 = vld [vmem:[#allocation5 + $0x88] sm:$0xff]
    %v148 = vld [vmem:[#allocation5 + $0x90] sm:$0xff]
    %v149 = vld [vmem:[#allocation5 + $0x98] sm:$0xff]
    %v150 = vld [vmem:[#allocation5 + $0xa0] sm:$0xff]
    %v151 = vld [vmem:[#allocation5 + $0xa8] sm:$0xff]
    %v152 = vld [vmem:[#allocation5 + $0xb0] sm:$0xff]
    %v153 = vld [vmem:[#allocation5 + $0xb8] sm:$0xff]
    %v154 = vld [vmem:[#allocation5 + $0xc0] sm:$0xff]
    %v155 = vld [vmem:[#allocation5 + $0xc8] sm:$0xff]
    %v156 = vld [vmem:[#allocation5 + $0xd0] sm:$0xff]
    %v157 = vld [vmem:[#allocation5 + $0xd8] sm:$0xff]
    %v158 = vld [vmem:[#allocation5 + $0xe0] sm:$0xff]
    %v159 = vld [vmem:[#allocation5 + $0xe8] sm:$0xff]
    %v160 = vld [vmem:[#allocation5 + $0xf0] sm:$0xff]
    %v161 = vld [vmem:[#allocation5 + $0xf8] sm:$0xff]
    %v162 = vld [vmem:[#allocation5 + $0x100] sm:$0xff]
    %v163 = vld [vmem:[#allocation5 + $0x108] sm:$0xff]
    %v164 = vld [vmem:[#allocation5 + $0x110] sm:$0xff]
    %v165 = vld [vmem:[#allocation5 + $0x118] sm:$0xff]
    %v166 = vld [vmem:[#allocation5 + $0x120] sm:$0xff]
    %v167 = vld [vmem:[#allocation5 + $0x128] sm:$0xff]
    %v168 = vld [vmem:[#allocation5 + $0x130] sm:$0xff]
    %v169 = vld [vmem:[#allocation5 + $0x138] sm:$0xff]
    %v170 = vld [vmem:[#allocation5 + $0x140] sm:$0xff]
    %v171 = vld [vmem:[#allocation5 + $0x148] sm:$0xff]
    %v172 = vld [vmem:[#allocation5 + $0x150] sm:$0xff]
    %v173 = vld [vmem:[#allocation5 + $0x158] sm:$0xff]
    %v174 = vld [vmem:[#allocation5 + $0x160] sm:$0xff]
    %v175 = vld [vmem:[#allocation5 + $0x168] sm:$0xff]
    %v176 = vld [vmem:[#allocation5 + $0x170] sm:$0xff]
    %v177 = vld [vmem:[#allocation5 + $0x178] sm:$0xff]
    %v178 = vld [vmem:[#allocation5 + $0x180] sm:$0xff]
    %v179 = vld [vmem:[#allocation5 + $0x188] sm:$0xff]
    %v180 = vld [vmem:[#allocation5 + $0x190] sm:$0xff]
    %v181 = vld [vmem:[#allocation5 + $0x198] sm:$0xff]
    %v182 = vld [vmem:[#allocation5 + $0x1a0] sm:$0xff]
    %v183 = vld [vmem:[#allocation5 + $0x1a8] sm:$0xff]
    %v184 = vld [vmem:[#allocation5 + $0x1b0] sm:$0xff]
    %v185 = vld [vmem:[#allocation5 + $0x1b8] sm:$0xff]
    %v186 = vld [vmem:[#allocation5 + $0x1c0] sm:$0xff]
    %v187 = vld [vmem:[#allocation5 + $0x1c8] sm:$0xff]
    %v188 = vld [vmem:[#allocation5 + $0x1d0] sm:$0xff]
    %v189 = vld [vmem:[#allocation5 + $0x1d8] sm:$0xff]
    %v190 = vld [vmem:[#allocation5 + $0x1e0] sm:$0xff]
    %v191 = vld [vmem:[#allocation5 + $0x1e8] sm:$0xff]
    %v192 = vld [vmem:[#allocation5 + $0x1f0] sm:$0xff]
    %v193 = vld [vmem:[#allocation5 + $0x1f8] sm:$0xff]
    %v194 = vld [vmem:[#allocation5 + $0x200] sm:$0xff]
    %v195 = vld [vmem:[#allocation5 + $0x208] sm:$0xff]
    %v196 = vld [vmem:[#allocation5 + $0x210] sm:$0xff]
    %v197 = vld [vmem:[#allocation5 + $0x218] sm:$0xff]
    %v198 = vld [vmem:[#allocation5 + $0x220] sm:$0xff]
    %v199 = vld [vmem:[#allocation5 + $0x228] sm:$0xff]
    %v200 = vld [vmem:[#allocation5 + $0x230] sm:$0xff]
    %v201 = vld [vmem:[#allocation5 + $0x238] sm:$0xff]
    %v202 = vld [vmem:[#allocation5 + $0x240] sm:$0xff]
    %v203 = vld [vmem:[#allocation5 + $0x248] sm:$0xff]
    %v204 = vld [vmem:[#allocation5 + $0x250] sm:$0xff]
    %v205 = vld [vmem:[#allocation5 + $0x258] sm:$0xff]
    %v206 = vld [vmem:[#allocation5 + $0x260] sm:$0xff]
    %v207 = vld [vmem:[#allocation5 + $0x268] sm:$0xff]
    %v208 = vld [vmem:[#allocation5 + $0x270] sm:$0xff]
    %v209 = vld [vmem:[#allocation5 + $0x278] sm:$0xff]
    %v210 = vld [vmem:[#allocation5 + $0x280] sm:$0xff]
    %v211 = vld [vmem:[#allocation5 + $0x288] sm:$0xff]
    %v212 = vld [vmem:[#allocation5 + $0x290] sm:$0xff]
    %v213 = vld [vmem:[#allocation5 + $0x298] sm:$0xff]
    %v214 = vld [vmem:[#allocation5 + $0x2a0] sm:$0xff]
    %v215 = vld [vmem:[#allocation5 + $0x2a8] sm:$0xff]
    %v216 = vld [vmem:[#allocation5 + $0x2b0] sm:$0xff]
    %v217 = vld [vmem:[#allocation5 + $0x2b8] sm:$0xff]
    %v218 = vld [vmem:[#allocation5 + $0x2c0] sm:$0xff]
    %v219 = vld [vmem:[#allocation5 + $0x2c8] sm:$0xff]
    %v220 = vld [vmem:[#allocation5 + $0x2d0] sm:$0xff]
    %v221 = vld [vmem:[#allocation5 + $0x2d8] sm:$0xff]
    %v222 = vld [vmem:[#allocation5 + $0x2e0] sm:$0xff]
    %v223 = vld [vmem:[#allocation5 + $0x2e8] sm:$0xff]
    %v224 = vld [vmem:[#allocation5 + $0x2f0] sm:$0xff]
    %v225 = vld [vmem:[#allocation5 + $0x2f8] sm:$0xff]
    %v226 = vld [vmem:[#allocation5 + $0x300] sm:$0xff]
    %v227 = vld [vmem:[#allocation5 + $0x308] sm:$0xff]
    %v228 = vld [vmem:[#allocation5 + $0x310] sm:$0xff]
    %v229 = vld [vmem:[#allocation5 + $0x318] sm:$0xff]
    %v230 = vld [vmem:[#allocation5 + $0x320] sm:$0xff]
    %v231 = vld [vmem:[#allocation5 + $0x328] sm:$0xff]
    %v232 = vld [vmem:[#allocation5 + $0x330] sm:$0xff]
    %v233 = vld [vmem:[#allocation5 + $0x338] sm:$0xff]
    %v234 = vld [vmem:[#allocation5 + $0x340] sm:$0xff]
    %v235 = vld [vmem:[#allocation5 + $0x348] sm:$0xff]
    %v236 = vld [vmem:[#allocation5 + $0x350] sm:$0xff]
    %v237 = vld [vmem:[#allocation5 + $0x358] sm:$0xff]
    %v238 = vld [vmem:[#allocation5 + $0x360] sm:$0xff]
    %v239 = vld [vmem:[#allocation5 + $0x368] sm:$0xff]
    %v240 = vld [vmem:[#allocation5 + $0x370] sm:$0xff]
    %v241 = vld [vmem:[#allocation5 + $0x378] sm:$0xff]
    %v242 = vld [vmem:[#allocation5 + $0x380] sm:$0xff]
    %v243 = vld [vmem:[#allocation5 + $0x388] sm:$0xff]
    %v244 = vld [vmem:[#allocation5 + $0x390] sm:$0xff]
    %v245 = vld [vmem:[#allocation5 + $0x398] sm:$0xff]
    %v246 = vld [vmem:[#allocation5 + $0x3a0] sm:$0xff]
    %v247 = vld [vmem:[#allocation5 + $0x3a8] sm:$0xff]
    %v248 = vld [vmem:[#allocation5 + $0x3b0] sm:$0xff]
    %v249 = vld [vmem:[#allocation5 + $0x3b8] sm:$0xff]
    %v250 = vld [vmem:[#allocation5 + $0x3c0] sm:$0xff]
    %v251 = vld [vmem:[#allocation5 + $0x3c8] sm:$0xff]
    %v252 = vld [vmem:[#allocation5 + $0x3d0] sm:$0xff]
    %v253 = vld [vmem:[#allocation5 + $0x3d8] sm:$0xff]
    %v254 = vld [vmem:[#allocation5 + $0x3e0] sm:$0xff]
    %v255 = vld [vmem:[#allocation5 + $0x3e8] sm:$0xff]
    %v256 = vld [vmem:[#allocation5 + $0x3f0] sm:$0xff]
    %v257 = vld [vmem:[#allocation5 + $0x3f8] sm:$0xff]
    %v258 = vld [vmem:[#allocation5 + $0x400] sm:$0xff]
    %v259 = vld [vmem:[#allocation5 + $0x408] sm:$0xff]
    %v260 = vld [vmem:[#allocation5 + $0x410] sm:$0xff]
    %v261 = vld [vmem:[#allocation5 + $0x418] sm:$0xff]
    %v262 = vld [vmem:[#allocation5 + $0x420] sm:$0xff]
    %v263 = vld [vmem:[#allocation5 + $0x428] sm:$0xff]
    %v264 = vld [vmem:[#allocation5 + $0x430] sm:$0xff]
    %v265 = vld [vmem:[#allocation5 + $0x438] sm:$0xff]
    %v266 = vld [vmem:[#allocation5 + $0x440] sm:$0xff]
    %v267 = vld [vmem:[#allocation5 + $0x448] sm:$0xff]
    %v268 = vld [vmem:[#allocation5 + $0x450] sm:$0xff]
    %v269 = vld [vmem:[#allocation5 + $0x458] sm:$0xff]
    %v270 = vld [vmem:[#allocation5 + $0x460] sm:$0xff]
    %v271 = vld [vmem:[#allocation5 + $0x468] sm:$0xff]
    %v272 = vld [vmem:[#allocation5 + $0x470] sm:$0xff]
    %v273 = vld [vmem:[#allocation5 + $0x478] sm:$0xff]
    %v274 = vld [vmem:[#allocation5 + $0x480] sm:$0xff]
    %v275 = vld [vmem:[#allocation5 + $0x488] sm:$0xff]
    %v276 = vld [vmem:[#allocation5 + $0x490] sm:$0xff]
    %v277 = vld [vmem:[#allocation5 + $0x498] sm:$0xff]
    %v278 = vld [vmem:[#allocation5 + $0x4a0] sm:$0xff]
    %v279 = vld [vmem:[#allocation5 + $0x4a8] sm:$0xff]
    %v280 = vld [vmem:[#allocation5 + $0x4b0] sm:$0xff]
    %v281 = vld [vmem:[#allocation5 + $0x4b8] sm:$0xff]
    %v282 = vld [vmem:[#allocation5 + $0x4c0] sm:$0xff]
    %v283 = vld [vmem:[#allocation5 + $0x4c8] sm:$0xff]
    %v284 = vld [vmem:[#allocation5 + $0x4d0] sm:$0xff]
    %v285 = vld [vmem:[#allocation5 + $0x4d8] sm:$0xff]
    %v286 = vld [vmem:[#allocation5 + $0x4e0] sm:$0xff]
    %v287 = vld [vmem:[#allocation5 + $0x4e8] sm:$0xff]
    %v288 = vld [vmem:[#allocation5 + $0x4f0] sm:$0xff]
    %v289 = vld [vmem:[#allocation5 + $0x4f8] sm:$0xff]
    %v290 = vld [vmem:[#allocation5 + $0x500] sm:$0xff]
    %v291 = vld [vmem:[#allocation5 + $0x508] sm:$0xff]
    %v292 = vld [vmem:[#allocation5 + $0x510] sm:$0xff]
    %v293 = vld [vmem:[#allocation5 + $0x518] sm:$0xff]
    %v294 = vld [vmem:[#allocation5 + $0x520] sm:$0xff]
    %v295 = vld [vmem:[#allocation5 + $0x528] sm:$0xff]
    %v296 = vld [vmem:[#allocation5 + $0x530] sm:$0xff]
    %v297 = vld [vmem:[#allocation5 + $0x538] sm:$0xff]
    %v298 = vld [vmem:[#allocation5 + $0x540] sm:$0xff]
    %v299 = vld [vmem:[#allocation5 + $0x548] sm:$0xff]
    %v300 = vld [vmem:[#allocation5 + $0x550] sm:$0xff]
    %v301 = vld [vmem:[#allocation5 + $0x558] sm:$0xff]
    %v302 = vld [vmem:[#allocation5 + $0x560] sm:$0xff]
    %v303 = vld [vmem:[#allocation5 + $0x568] sm:$0xff]
    %v304 = vld [vmem:[#allocation5 + $0x570] sm:$0xff]
    %v305 = vld [vmem:[#allocation5 + $0x578] sm:$0xff]
    %v306 = vld [vmem:[#allocation5 + $0x580] sm:$0xff]
    %v307 = vld [vmem:[#allocation5 + $0x588] sm:$0xff]
    %v308 = vld [vmem:[#allocation5 + $0x590] sm:$0xff]
    %v309 = vld [vmem:[#allocation5 + $0x598] sm:$0xff]
    %v310 = vld [vmem:[#allocation5 + $0x5a0] sm:$0xff]
    %v311 = vld [vmem:[#allocation5 + $0x5a8] sm:$0xff]
    %v312 = vld [vmem:[#allocation5 + $0x5b0] sm:$0xff]
    %v313 = vld [vmem:[#allocation5 + $0x5b8] sm:$0xff]
    %v314 = vld [vmem:[#allocation5 + $0x5c0] sm:$0xff]
    %v315 = vld [vmem:[#allocation5 + $0x5c8] sm:$0xff]
    %v316 = vld [vmem:[#allocation5 + $0x5d0] sm:$0xff]
    %v317 = vld [vmem:[#allocation5 + $0x5d8] sm:$0xff]
    %v318 = vld [vmem:[#allocation5 + $0x5e0] sm:$0xff]
    %v319 = vld [vmem:[#allocation5 + $0x5e8] sm:$0xff]
    %v320 = vld [vmem:[#allocation5 + $0x5f0] sm:$0xff]
    %v321 = vld [vmem:[#allocation5 + $0x5f8] sm:$0xff]
    %v322 = vld [vmem:[#allocation5 + $0x600] sm:$0xff]
    %v323 = vld [vmem:[#allocation5 + $0x608] sm:$0xff]
    %v324 = vld [vmem:[#allocation5 + $0x610] sm:$0xff]
    %v325 = vld [vmem:[#allocation5 + $0x618] sm:$0xff]
    %v326 = vld [vmem:[#allocation5 + $0x620] sm:$0xff]
    %v327 = vld [vmem:[#allocation5 + $0x628] sm:$0xff]
    %v328 = vld [vmem:[#allocation5 + $0x630] sm:$0xff]
    %v329 = vld [vmem:[#allocation5 + $0x638] sm:$0xff]
    %v330 = vld [vmem:[#allocation5 + $0x640] sm:$0xff]
    %v331 = vld [vmem:[#allocation5 + $0x648] sm:$0xff]
    %v332 = vld [vmem:[#allocation5 + $0x650] sm:$0xff]
    %v333 = vld [vmem:[#allocation5 + $0x658] sm:$0xff]
    %v334 = vld [vmem:[#allocation5 + $0x660] sm:$0xff]
    %v335 = vld [vmem:[#allocation5 + $0x668] sm:$0xff]
    %v336 = vld [vmem:[#allocation5 + $0x670] sm:$0xff]
    %v337 = vld [vmem:[#allocation5 + $0x678] sm:$0xff]
    %v338 = vld [vmem:[#allocation5 + $0x680] sm:$0xff]
    %v339 = vld [vmem:[#allocation5 + $0x688] sm:$0xff]
    %v340 = vld [vmem:[#allocation5 + $0x690] sm:$0xff]
    %v341 = vld [vmem:[#allocation5 + $0x698] sm:$0xff]
    %v342 = vld [vmem:[#allocation5 + $0x6a0] sm:$0xff]
    %v343 = vld [vmem:[#allocation5 + $0x6a8] sm:$0xff]
    %v344 = vld [vmem:[#allocation5 + $0x6b0] sm:$0xff]
    %v345 = vld [vmem:[#allocation5 + $0x6b8] sm:$0xff]
    %v346 = vld [vmem:[#allocation5 + $0x6c0] sm:$0xff]
    %v347 = vld [vmem:[#allocation5 + $0x6c8] sm:$0xff]
    %v348 = vld [vmem:[#allocation5 + $0x6d0] sm:$0xff]
    %v349 = vld [vmem:[#allocation5 + $0x6d8] sm:$0xff]
    %v350 = vld [vmem:[#allocation5 + $0x6e0] sm:$0xff]
    %v351 = vld [vmem:[#allocation5 + $0x6e8] sm:$0xff]
    %v352 = vld [vmem:[#allocation5 + $0x6f0] sm:$0xff]
    %v353 = vld [vmem:[#allocation5 + $0x6f8] sm:$0xff]
    %v354 = vld [vmem:[#allocation5 + $0x700] sm:$0xff]
    %v355 = vld [vmem:[#allocation5 + $0x708] sm:$0xff]
    %v356 = vld [vmem:[#allocation5 + $0x710] sm:$0xff]
    %v357 = vld [vmem:[#allocation5 + $0x718] sm:$0xff]
    %v358 = vld [vmem:[#allocation5 + $0x720] sm:$0xff]
    %v359 = vld [vmem:[#allocation5 + $0x728] sm:$0xff]
    %v360 = vld [vmem:[#allocation5 + $0x730] sm:$0xff]
    %v361 = vld [vmem:[#allocation5 + $0x738] sm:$0xff]
    %v362 = vld [vmem:[#allocation5 + $0x740] sm:$0xff]
    %v363 = vld [vmem:[#allocation5 + $0x748] sm:$0xff]
    %v364 = vld [vmem:[#allocation5 + $0x750] sm:$0xff]
    %v365 = vld [vmem:[#allocation5 + $0x758] sm:$0xff]
    %v366 = vld [vmem:[#allocation5 + $0x760] sm:$0xff]
    %v367 = vld [vmem:[#allocation5 + $0x768] sm:$0xff]
    %v368 = vld [vmem:[#allocation5 + $0x770] sm:$0xff]
    %v369 = vld [vmem:[#allocation5 + $0x778] sm:$0xff]
    %v370 = vld [vmem:[#allocation5 + $0x780] sm:$0xff]
    %v371 = vld [vmem:[#allocation5 + $0x788] sm:$0xff]
    %v372 = vld [vmem:[#allocation5 + $0x790] sm:$0xff]
    %v373 = vld [vmem:[#allocation5 + $0x798] sm:$0xff]
    %v374 = vld [vmem:[#allocation5 + $0x7a0] sm:$0xff]
    %v375 = vld [vmem:[#allocation5 + $0x7a8] sm:$0xff]
    %v376 = vld [vmem:[#allocation5 + $0x7b0] sm:$0xff]
    %v377 = vld [vmem:[#allocation5 + $0x7b8] sm:$0xff]
    %v378 = vld [vmem:[#allocation5 + $0x7c0] sm:$0xff]
    %v379 = vld [vmem:[#allocation5 + $0x7c8] sm:$0xff]
    %v380 = vld [vmem:[#allocation5 + $0x7d0] sm:$0xff]
    %v381 = vld [vmem:[#allocation5 + $0x7d8] sm:$0xff]
    %v382 = vld [vmem:[#allocation5 + $0x7e0] sm:$0xff]
    %v383 = vld [vmem:[#allocation5 + $0x7e8] sm:$0xff]
    %v384 = vld [vmem:[#allocation5 + $0x7f0] sm:$0xff]
    %v385 = vld [vmem:[#allocation5 + $0x7f8] sm:$0xff]
    %v386 = vld [vmem:[#allocation7] sm:$0xff]
    %v388 = vperm.slane %v386, 0
    %v389 = vperm.slane %v386, 1
    %v390 = vperm.slane %v386, 2
    %v391 = vperm.slane %v386, 3
    %v392 = vperm.slane %v386, 4
    %v393 = vperm.slane %v386, 5
    %v394 = vperm.slane %v386, 6
    %v395 = vperm.slane %v386, 7
    %v660 = vunpack.c.l.b16 %v130
    %v661 = vunpack.c.h.b16 %v130
    %v662 = vunpack.c.l.b16 %v131
    %v663 = vunpack.c.h.b16 %v131
    %v664 = vunpack.c.l.b16 %v132
    %v665 = vunpack.c.h.b16 %v132
    %v666 = vunpack.c.l.b16 %v133
    %v667 = vunpack.c.h.b16 %v133
    %v668 = vunpack.c.l.b16 %v134
    %v669 = vunpack.c.h.b16 %v134
    %v670 = vunpack.c.l.b16 %v135
    %v671 = vunpack.c.h.b16 %v135
    %v672 = vunpack.c.l.b16 %v136
    %v673 = vunpack.c.h.b16 %v136
    %v674 = vunpack.c.l.b16 %v137
    %v675 = vunpack.c.h.b16 %v137
    %v676 = vunpack.c.l.b16 %v138
    %v677 = vunpack.c.h.b16 %v138
    %v678 = vunpack.c.l.b16 %v139
    %v679 = vunpack.c.h.b16 %v139
    %v680 = vunpack.c.l.b16 %v140
    %v681 = vunpack.c.h.b16 %v140
    %v682 = vunpack.c.l.b16 %v141
    %v683 = vunpack.c.h.b16 %v141
    %v684 = vunpack.c.l.b16 %v142
    %v685 = vunpack.c.h.b16 %v142
    %v686 = vunpack.c.l.b16 %v143
    %v687 = vunpack.c.h.b16 %v143
    %v688 = vunpack.c.l.b16 %v144
    %v689 = vunpack.c.h.b16 %v144
    %v690 = vunpack.c.l.b16 %v145
    %v691 = vunpack.c.h.b16 %v145
    %v692 = vunpack.c.l.b16 %v146
    %v693 = vunpack.c.h.b16 %v146
    %v694 = vunpack.c.l.b16 %v147
    %v695 = vunpack.c.h.b16 %v147
    %v696 = vunpack.c.l.b16 %v148
    %v697 = vunpack.c.h.b16 %v148
    %v698 = vunpack.c.l.b16 %v149
    %v699 = vunpack.c.h.b16 %v149
    %v700 = vunpack.c.l.b16 %v150
    %v701 = vunpack.c.h.b16 %v150
    %v702 = vunpack.c.l.b16 %v151
    %v703 = vunpack.c.h.b16 %v151
    %v704 = vunpack.c.l.b16 %v152
    %v705 = vunpack.c.h.b16 %v152
    %v706 = vunpack.c.l.b16 %v153
    %v707 = vunpack.c.h.b16 %v153
    %v708 = vunpack.c.l.b16 %v154
    %v709 = vunpack.c.h.b16 %v154
    %v710 = vunpack.c.l.b16 %v155
    %v711 = vunpack.c.h.b16 %v155
    %v712 = vunpack.c.l.b16 %v156
    %v713 = vunpack.c.h.b16 %v156
    %v714 = vunpack.c.l.b16 %v157
    %v715 = vunpack.c.h.b16 %v157
    %v716 = vunpack.c.l.b16 %v158
    %v717 = vunpack.c.h.b16 %v158
    %v718 = vunpack.c.l.b16 %v159
    %v719 = vunpack.c.h.b16 %v159
    %v720 = vunpack.c.l.b16 %v160
    %v721 = vunpack.c.h.b16 %v160
    %v722 = vunpack.c.l.b16 %v161
    %v723 = vunpack.c.h.b16 %v161
    %v724 = vunpack.c.l.b16 %v162
    %v725 = vunpack.c.h.b16 %v162
    %v726 = vunpack.c.l.b16 %v163
    %v727 = vunpack.c.h.b16 %v163
    %v728 = vunpack.c.l.b16 %v164
    %v729 = vunpack.c.h.b16 %v164
    %v730 = vunpack.c.l.b16 %v165
    %v731 = vunpack.c.h.b16 %v165
    %v732 = vunpack.c.l.b16 %v166
    %v733 = vunpack.c.h.b16 %v166
    %v734 = vunpack.c.l.b16 %v167
    %v735 = vunpack.c.h.b16 %v167
    %v736 = vunpack.c.l.b16 %v168
    %v737 = vunpack.c.h.b16 %v168
    %v738 = vunpack.c.l.b16 %v169
    %v739 = vunpack.c.h.b16 %v169
    %v740 = vunpack.c.l.b16 %v170
    %v741 = vunpack.c.h.b16 %v170
    %v742 = vunpack.c.l.b16 %v171
    %v743 = vunpack.c.h.b16 %v171
    %v744 = vunpack.c.l.b16 %v172
    %v745 = vunpack.c.h.b16 %v172
    %v746 = vunpack.c.l.b16 %v173
    %v747 = vunpack.c.h.b16 %v173
    %v748 = vunpack.c.l.b16 %v174
    %v749 = vunpack.c.h.b16 %v174
    %v750 = vunpack.c.l.b16 %v175
    %v751 = vunpack.c.h.b16 %v175
    %v752 = vunpack.c.l.b16 %v176
    %v753 = vunpack.c.h.b16 %v176
    %v754 = vunpack.c.l.b16 %v177
    %v755 = vunpack.c.h.b16 %v177
    %v756 = vunpack.c.l.b16 %v178
    %v757 = vunpack.c.h.b16 %v178
    %v758 = vunpack.c.l.b16 %v179
    %v759 = vunpack.c.h.b16 %v179
    %v760 = vunpack.c.l.b16 %v180
    %v761 = vunpack.c.h.b16 %v180
    %v762 = vunpack.c.l.b16 %v181
    %v763 = vunpack.c.h.b16 %v181
    %v764 = vunpack.c.l.b16 %v182
    %v765 = vunpack.c.h.b16 %v182
    %v766 = vunpack.c.l.b16 %v183
    %v767 = vunpack.c.h.b16 %v183
    %v768 = vunpack.c.l.b16 %v184
    %v769 = vunpack.c.h.b16 %v184
    %v770 = vunpack.c.l.b16 %v185
    %v771 = vunpack.c.h.b16 %v185
    %v772 = vunpack.c.l.b16 %v186
    %v773 = vunpack.c.h.b16 %v186
    %v774 = vunpack.c.l.b16 %v187
    %v775 = vunpack.c.h.b16 %v187
    %v776 = vunpack.c.l.b16 %v188
    %v777 = vunpack.c.h.b16 %v188
    %v778 = vunpack.c.l.b16 %v189
    %v779 = vunpack.c.h.b16 %v189
    %v780 = vunpack.c.l.b16 %v190
    %v781 = vunpack.c.h.b16 %v190
    %v782 = vunpack.c.l.b16 %v191
    %v783 = vunpack.c.h.b16 %v191
    %v784 = vunpack.c.l.b16 %v192
    %v785 = vunpack.c.h.b16 %v192
    %v786 = vunpack.c.l.b16 %v193
    %v787 = vunpack.c.h.b16 %v193
    %v788 = vunpack.c.l.b16 %v194
    %v789 = vunpack.c.h.b16 %v194
    %v790 = vunpack.c.l.b16 %v195
    %v791 = vunpack.c.h.b16 %v195
    %v792 = vunpack.c.l.b16 %v196
    %v793 = vunpack.c.h.b16 %v196
    %v794 = vunpack.c.l.b16 %v197
    %v795 = vunpack.c.h.b16 %v197
    %v796 = vunpack.c.l.b16 %v198
    %v797 = vunpack.c.h.b16 %v198
    %v798 = vunpack.c.l.b16 %v199
    %v799 = vunpack.c.h.b16 %v199
    %v800 = vunpack.c.l.b16 %v200
    %v801 = vunpack.c.h.b16 %v200
    %v802 = vunpack.c.l.b16 %v201
    %v803 = vunpack.c.h.b16 %v201
    %v804 = vunpack.c.l.b16 %v202
    %v805 = vunpack.c.h.b16 %v202
    %v806 = vunpack.c.l.b16 %v203
    %v807 = vunpack.c.h.b16 %v203
    %v808 = vunpack.c.l.b16 %v204
    %v809 = vunpack.c.h.b16 %v204
    %v810 = vunpack.c.l.b16 %v205
    %v811 = vunpack.c.h.b16 %v205
    %v812 = vunpack.c.l.b16 %v206
    %v813 = vunpack.c.h.b16 %v206
    %v814 = vunpack.c.l.b16 %v207
    %v815 = vunpack.c.h.b16 %v207
    %v816 = vunpack.c.l.b16 %v208
    %v817 = vunpack.c.h.b16 %v208
    %v818 = vunpack.c.l.b16 %v209
    %v819 = vunpack.c.h.b16 %v209
    %v820 = vunpack.c.l.b16 %v210
    %v821 = vunpack.c.h.b16 %v210
    %v822 = vunpack.c.l.b16 %v211
    %v823 = vunpack.c.h.b16 %v211
    %v824 = vunpack.c.l.b16 %v212
    %v825 = vunpack.c.h.b16 %v212
    %v826 = vunpack.c.l.b16 %v213
    %v827 = vunpack.c.h.b16 %v213
    %v828 = vunpack.c.l.b16 %v214
    %v829 = vunpack.c.h.b16 %v214
    %v830 = vunpack.c.l.b16 %v215
    %v831 = vunpack.c.h.b16 %v215
    %v832 = vunpack.c.l.b16 %v216
    %v833 = vunpack.c.h.b16 %v216
    %v834 = vunpack.c.l.b16 %v217
    %v835 = vunpack.c.h.b16 %v217
    %v836 = vunpack.c.l.b16 %v218
    %v837 = vunpack.c.h.b16 %v218
    %v838 = vunpack.c.l.b16 %v219
    %v839 = vunpack.c.h.b16 %v219
    %v840 = vunpack.c.l.b16 %v220
    %v841 = vunpack.c.h.b16 %v220
    %v842 = vunpack.c.l.b16 %v221
    %v843 = vunpack.c.h.b16 %v221
    %v844 = vunpack.c.l.b16 %v222
    %v845 = vunpack.c.h.b16 %v222
    %v846 = vunpack.c.l.b16 %v223
    %v847 = vunpack.c.h.b16 %v223
    %v848 = vunpack.c.l.b16 %v224
    %v849 = vunpack.c.h.b16 %v224
    %v850 = vunpack.c.l.b16 %v225
    %v851 = vunpack.c.h.b16 %v225
    %v852 = vunpack.c.l.b16 %v226
    %v853 = vunpack.c.h.b16 %v226
    %v854 = vunpack.c.l.b16 %v227
    %v855 = vunpack.c.h.b16 %v227
    %v856 = vunpack.c.l.b16 %v228
    %v857 = vunpack.c.h.b16 %v228
    %v858 = vunpack.c.l.b16 %v229
    %v859 = vunpack.c.h.b16 %v229
    %v860 = vunpack.c.l.b16 %v230
    %v861 = vunpack.c.h.b16 %v230
    %v862 = vunpack.c.l.b16 %v231
    %v863 = vunpack.c.h.b16 %v231
    %v864 = vunpack.c.l.b16 %v232
    %v865 = vunpack.c.h.b16 %v232
    %v866 = vunpack.c.l.b16 %v233
    %v867 = vunpack.c.h.b16 %v233
    %v868 = vunpack.c.l.b16 %v234
    %v869 = vunpack.c.h.b16 %v234
    %v870 = vunpack.c.l.b16 %v235
    %v871 = vunpack.c.h.b16 %v235
    %v872 = vunpack.c.l.b16 %v236
    %v873 = vunpack.c.h.b16 %v236
    %v874 = vunpack.c.l.b16 %v237
    %v875 = vunpack.c.h.b16 %v237
    %v876 = vunpack.c.l.b16 %v238
    %v877 = vunpack.c.h.b16 %v238
    %v878 = vunpack.c.l.b16 %v239
    %v879 = vunpack.c.h.b16 %v239
    %v880 = vunpack.c.l.b16 %v240
    %v881 = vunpack.c.h.b16 %v240
    %v882 = vunpack.c.l.b16 %v241
    %v883 = vunpack.c.h.b16 %v241
    %v884 = vunpack.c.l.b16 %v242
    %v885 = vunpack.c.h.b16 %v242
    %v886 = vunpack.c.l.b16 %v243
    %v887 = vunpack.c.h.b16 %v243
    %v888 = vunpack.c.l.b16 %v244
    %v889 = vunpack.c.h.b16 %v244
    %v890 = vunpack.c.l.b16 %v245
    %v891 = vunpack.c.h.b16 %v245
    %v892 = vunpack.c.l.b16 %v246
    %v893 = vunpack.c.h.b16 %v246
    %v894 = vunpack.c.l.b16 %v247
    %v895 = vunpack.c.h.b16 %v247
    %v896 = vunpack.c.l.b16 %v248
    %v897 = vunpack.c.h.b16 %v248
    %v898 = vunpack.c.l.b16 %v249
    %v899 = vunpack.c.h.b16 %v249
    %v900 = vunpack.c.l.b16 %v250
    %v901 = vunpack.c.h.b16 %v250
    %v902 = vunpack.c.l.b16 %v251
    %v903 = vunpack.c.h.b16 %v251
    %v904 = vunpack.c.l.b16 %v252
    %v905 = vunpack.c.h.b16 %v252
    %v906 = vunpack.c.l.b16 %v253
    %v907 = vunpack.c.h.b16 %v253
    %v908 = vunpack.c.l.b16 %v254
    %v909 = vunpack.c.h.b16 %v254
    %v910 = vunpack.c.l.b16 %v255
    %v911 = vunpack.c.h.b16 %v255
    %v912 = vunpack.c.l.b16 %v256
    %v913 = vunpack.c.h.b16 %v256
    %v914 = vunpack.c.l.b16 %v257
    %v915 = vunpack.c.h.b16 %v257
    %v916 = vunpack.c.l.b16 %v258
    %v917 = vunpack.c.h.b16 %v258
    %v918 = vunpack.c.l.b16 %v259
    %v919 = vunpack.c.h.b16 %v259
    %v920 = vunpack.c.l.b16 %v260
    %v921 = vunpack.c.h.b16 %v260
    %v922 = vunpack.c.l.b16 %v261
    %v923 = vunpack.c.h.b16 %v261
    %v924 = vunpack.c.l.b16 %v262
    %v925 = vunpack.c.h.b16 %v262
    %v926 = vunpack.c.l.b16 %v263
    %v927 = vunpack.c.h.b16 %v263
    %v928 = vunpack.c.l.b16 %v264
    %v929 = vunpack.c.h.b16 %v264
    %v930 = vunpack.c.l.b16 %v265
    %v931 = vunpack.c.h.b16 %v265
    %v932 = vunpack.c.l.b16 %v266
    %v933 = vunpack.c.h.b16 %v266
    %v934 = vunpack.c.l.b16 %v267
    %v935 = vunpack.c.h.b16 %v267
    %v936 = vunpack.c.l.b16 %v268
    %v937 = vunpack.c.h.b16 %v268
    %v938 = vunpack.c.l.b16 %v269
    %v939 = vunpack.c.h.b16 %v269
    %v940 = vunpack.c.l.b16 %v270
    %v941 = vunpack.c.h.b16 %v270
    %v942 = vunpack.c.l.b16 %v271
    %v943 = vunpack.c.h.b16 %v271
    %v944 = vunpack.c.l.b16 %v272
    %v945 = vunpack.c.h.b16 %v272
    %v946 = vunpack.c.l.b16 %v273
    %v947 = vunpack.c.h.b16 %v273
    %v948 = vunpack.c.l.b16 %v274
    %v949 = vunpack.c.h.b16 %v274
    %v950 = vunpack.c.l.b16 %v275
    %v951 = vunpack.c.h.b16 %v275
    %v952 = vunpack.c.l.b16 %v276
    %v953 = vunpack.c.h.b16 %v276
    %v954 = vunpack.c.l.b16 %v277
    %v955 = vunpack.c.h.b16 %v277
    %v956 = vunpack.c.l.b16 %v278
    %v957 = vunpack.c.h.b16 %v278
    %v958 = vunpack.c.l.b16 %v279
    %v959 = vunpack.c.h.b16 %v279
    %v960 = vunpack.c.l.b16 %v280
    %v961 = vunpack.c.h.b16 %v280
    %v962 = vunpack.c.l.b16 %v281
    %v963 = vunpack.c.h.b16 %v281
    %v964 = vunpack.c.l.b16 %v282
    %v965 = vunpack.c.h.b16 %v282
    %v966 = vunpack.c.l.b16 %v283
    %v967 = vunpack.c.h.b16 %v283
    %v968 = vunpack.c.l.b16 %v284
    %v969 = vunpack.c.h.b16 %v284
    %v970 = vunpack.c.l.b16 %v285
    %v971 = vunpack.c.h.b16 %v285
    %v972 = vunpack.c.l.b16 %v286
    %v973 = vunpack.c.h.b16 %v286
    %v974 = vunpack.c.l.b16 %v287
    %v975 = vunpack.c.h.b16 %v287
    %v976 = vunpack.c.l.b16 %v288
    %v977 = vunpack.c.h.b16 %v288
    %v978 = vunpack.c.l.b16 %v289
    %v979 = vunpack.c.h.b16 %v289
    %v980 = vunpack.c.l.b16 %v290
    %v981 = vunpack.c.h.b16 %v290
    %v982 = vunpack.c.l.b16 %v291
    %v983 = vunpack.c.h.b16 %v291
    %v984 = vunpack.c.l.b16 %v292
    %v985 = vunpack.c.h.b16 %v292
    %v986 = vunpack.c.l.b16 %v293
    %v987 = vunpack.c.h.b16 %v293
    %v988 = vunpack.c.l.b16 %v294
    %v989 = vunpack.c.h.b16 %v294
    %v990 = vunpack.c.l.b16 %v295
    %v991 = vunpack.c.h.b16 %v295
    %v992 = vunpack.c.l.b16 %v296
    %v993 = vunpack.c.h.b16 %v296
    %v994 = vunpack.c.l.b16 %v297
    %v995 = vunpack.c.h.b16 %v297
    %v996 = vunpack.c.l.b16 %v298
    %v997 = vunpack.c.h.b16 %v298
    %v998 = vunpack.c.l.b16 %v299
    %v999 = vunpack.c.h.b16 %v299
    %v1000 = vunpack.c.l.b16 %v300
    %v1001 = vunpack.c.h.b16 %v300
    %v1002 = vunpack.c.l.b16 %v301
    %v1003 = vunpack.c.h.b16 %v301
    %v1004 = vunpack.c.l.b16 %v302
    %v1005 = vunpack.c.h.b16 %v302
    %v1006 = vunpack.c.l.b16 %v303
    %v1007 = vunpack.c.h.b16 %v303
    %v1008 = vunpack.c.l.b16 %v304
    %v1009 = vunpack.c.h.b16 %v304
    %v1010 = vunpack.c.l.b16 %v305
    %v1011 = vunpack.c.h.b16 %v305
    %v1012 = vunpack.c.l.b16 %v306
    %v1013 = vunpack.c.h.b16 %v306
    %v1014 = vunpack.c.l.b16 %v307
    %v1015 = vunpack.c.h.b16 %v307
    %v1016 = vunpack.c.l.b16 %v308
    %v1017 = vunpack.c.h.b16 %v308
    %v1018 = vunpack.c.l.b16 %v309
    %v1019 = vunpack.c.h.b16 %v309
    %v1020 = vunpack.c.l.b16 %v310
    %v1021 = vunpack.c.h.b16 %v310
    %v1022 = vunpack.c.l.b16 %v311
    %v1023 = vunpack.c.h.b16 %v311
    %v1024 = vunpack.c.l.b16 %v312
    %v1025 = vunpack.c.h.b16 %v312
    %v1026 = vunpack.c.l.b16 %v313
    %v1027 = vunpack.c.h.b16 %v313
    %v1028 = vunpack.c.l.b16 %v314
    %v1029 = vunpack.c.h.b16 %v314
    %v1030 = vunpack.c.l.b16 %v315
    %v1031 = vunpack.c.h.b16 %v315
    %v1032 = vunpack.c.l.b16 %v316
    %v1033 = vunpack.c.h.b16 %v316
    %v1034 = vunpack.c.l.b16 %v317
    %v1035 = vunpack.c.h.b16 %v317
    %v1036 = vunpack.c.l.b16 %v318
    %v1037 = vunpack.c.h.b16 %v318
    %v1038 = vunpack.c.l.b16 %v319
    %v1039 = vunpack.c.h.b16 %v319
    %v1040 = vunpack.c.l.b16 %v320
    %v1041 = vunpack.c.h.b16 %v320
    %v1042 = vunpack.c.l.b16 %v321
    %v1043 = vunpack.c.h.b16 %v321
    %v1044 = vunpack.c.l.b16 %v322
    %v1045 = vunpack.c.h.b16 %v322
    %v1046 = vunpack.c.l.b16 %v323
    %v1047 = vunpack.c.h.b16 %v323
    %v1048 = vunpack.c.l.b16 %v324
    %v1049 = vunpack.c.h.b16 %v324
    %v1050 = vunpack.c.l.b16 %v325
    %v1051 = vunpack.c.h.b16 %v325
    %v1052 = vunpack.c.l.b16 %v326
    %v1053 = vunpack.c.h.b16 %v326
    %v1054 = vunpack.c.l.b16 %v327
    %v1055 = vunpack.c.h.b16 %v327
    %v1056 = vunpack.c.l.b16 %v328
    %v1057 = vunpack.c.h.b16 %v328
    %v1058 = vunpack.c.l.b16 %v329
    %v1059 = vunpack.c.h.b16 %v329
    %v1060 = vunpack.c.l.b16 %v330
    %v1061 = vunpack.c.h.b16 %v330
    %v1062 = vunpack.c.l.b16 %v331
    %v1063 = vunpack.c.h.b16 %v331
    %v1064 = vunpack.c.l.b16 %v332
    %v1065 = vunpack.c.h.b16 %v332
    %v1066 = vunpack.c.l.b16 %v333
    %v1067 = vunpack.c.h.b16 %v333
    %v1068 = vunpack.c.l.b16 %v334
    %v1069 = vunpack.c.h.b16 %v334
    %v1070 = vunpack.c.l.b16 %v335
    %v1071 = vunpack.c.h.b16 %v335
    %v1072 = vunpack.c.l.b16 %v336
    %v1073 = vunpack.c.h.b16 %v336
    %v1074 = vunpack.c.l.b16 %v337
    %v1075 = vunpack.c.h.b16 %v337
    %v1076 = vunpack.c.l.b16 %v338
    %v1077 = vunpack.c.h.b16 %v338
    %v1078 = vunpack.c.l.b16 %v339
    %v1079 = vunpack.c.h.b16 %v339
    %v1080 = vunpack.c.l.b16 %v340
    %v1081 = vunpack.c.h.b16 %v340
    %v1082 = vunpack.c.l.b16 %v341
    %v1083 = vunpack.c.h.b16 %v341
    %v1084 = vunpack.c.l.b16 %v342
    %v1085 = vunpack.c.h.b16 %v342
    %v1086 = vunpack.c.l.b16 %v343
    %v1087 = vunpack.c.h.b16 %v343
    %v1088 = vunpack.c.l.b16 %v344
    %v1089 = vunpack.c.h.b16 %v344
    %v1090 = vunpack.c.l.b16 %v345
    %v1091 = vunpack.c.h.b16 %v345
    %v1092 = vunpack.c.l.b16 %v346
    %v1093 = vunpack.c.h.b16 %v346
    %v1094 = vunpack.c.l.b16 %v347
    %v1095 = vunpack.c.h.b16 %v347
    %v1096 = vunpack.c.l.b16 %v348
    %v1097 = vunpack.c.h.b16 %v348
    %v1098 = vunpack.c.l.b16 %v349
    %v1099 = vunpack.c.h.b16 %v349
    %v1100 = vunpack.c.l.b16 %v350
    %v1101 = vunpack.c.h.b16 %v350
    %v1102 = vunpack.c.l.b16 %v351
    %v1103 = vunpack.c.h.b16 %v351
    %v1104 = vunpack.c.l.b16 %v352
    %v1105 = vunpack.c.h.b16 %v352
    %v1106 = vunpack.c.l.b16 %v353
    %v1107 = vunpack.c.h.b16 %v353
    %v1108 = vunpack.c.l.b16 %v354
    %v1109 = vunpack.c.h.b16 %v354
    %v1110 = vunpack.c.l.b16 %v355
    %v1111 = vunpack.c.h.b16 %v355
    %v1112 = vunpack.c.l.b16 %v356
    %v1113 = vunpack.c.h.b16 %v356
    %v1114 = vunpack.c.l.b16 %v357
    %v1115 = vunpack.c.h.b16 %v357
    %v1116 = vunpack.c.l.b16 %v358
    %v1117 = vunpack.c.h.b16 %v358
    %v1118 = vunpack.c.l.b16 %v359
    %v1119 = vunpack.c.h.b16 %v359
    %v1120 = vunpack.c.l.b16 %v360
    %v1121 = vunpack.c.h.b16 %v360
    %v1122 = vunpack.c.l.b16 %v361
    %v1123 = vunpack.c.h.b16 %v361
    %v1124 = vunpack.c.l.b16 %v362
    %v1125 = vunpack.c.h.b16 %v362
    %v1126 = vunpack.c.l.b16 %v363
    %v1127 = vunpack.c.h.b16 %v363
    %v1128 = vunpack.c.l.b16 %v364
    %v1129 = vunpack.c.h.b16 %v364
    %v1130 = vunpack.c.l.b16 %v365
    %v1131 = vunpack.c.h.b16 %v365
    %v1132 = vunpack.c.l.b16 %v366
    %v1133 = vunpack.c.h.b16 %v366
    %v1134 = vunpack.c.l.b16 %v367
    %v1135 = vunpack.c.h.b16 %v367
    %v1136 = vunpack.c.l.b16 %v368
    %v1137 = vunpack.c.h.b16 %v368
    %v1138 = vunpack.c.l.b16 %v369
    %v1139 = vunpack.c.h.b16 %v369
    %v1140 = vunpack.c.l.b16 %v370
    %v1141 = vunpack.c.h.b16 %v370
    %v1142 = vunpack.c.l.b16 %v371
    %v1143 = vunpack.c.h.b16 %v371
    %v1144 = vunpack.c.l.b16 %v372
    %v1145 = vunpack.c.h.b16 %v372
    %v1146 = vunpack.c.l.b16 %v373
    %v1147 = vunpack.c.h.b16 %v373
    %v1148 = vunpack.c.l.b16 %v374
    %v1149 = vunpack.c.h.b16 %v374
    %v1150 = vunpack.c.l.b16 %v375
    %v1151 = vunpack.c.h.b16 %v375
    %v1152 = vunpack.c.l.b16 %v376
    %v1153 = vunpack.c.h.b16 %v376
    %v1154 = vunpack.c.l.b16 %v377
    %v1155 = vunpack.c.h.b16 %v377
    %v1156 = vunpack.c.l.b16 %v378
    %v1157 = vunpack.c.h.b16 %v378
    %v1158 = vunpack.c.l.b16 %v379
    %v1159 = vunpack.c.h.b16 %v379
    %v1160 = vunpack.c.l.b16 %v380
    %v1161 = vunpack.c.h.b16 %v380
    %v1162 = vunpack.c.l.b16 %v381
    %v1163 = vunpack.c.h.b16 %v381
    %v1164 = vunpack.c.l.b16 %v382
    %v1165 = vunpack.c.h.b16 %v382
    %v1166 = vunpack.c.l.b16 %v383
    %v1167 = vunpack.c.h.b16 %v383
    %v1168 = vunpack.c.l.b16 %v384
    %v1169 = vunpack.c.h.b16 %v384
    %v1170 = vunpack.c.l.b16 %v385
    %v1171 = vunpack.c.h.b16 %v385
    %v1172 = vpack.c.b16 %v668, %v660
    %v1173 = vpack.c.b16 %v669, %v661
    %v1174 = vpack.c.b16 %v670, %v662
    %v1175 = vpack.c.b16 %v671, %v663
    %v1176 = vpack.c.b16 %v672, %v664
    %v1177 = vpack.c.b16 %v673, %v665
    %v1178 = vpack.c.b16 %v674, %v666
    %v1179 = vpack.c.b16 %v675, %v667
    %v1180 = vpack.c.b16 %v684, %v676
    %v1181 = vpack.c.b16 %v685, %v677
    %v1182 = vpack.c.b16 %v686, %v678
    %v1183 = vpack.c.b16 %v687, %v679
    %v1184 = vpack.c.b16 %v688, %v680
    %v1185 = vpack.c.b16 %v689, %v681
    %v1186 = vpack.c.b16 %v690, %v682
    %v1187 = vpack.c.b16 %v691, %v683
    %v1188 = vpack.c.b16 %v700, %v692
    %v1189 = vpack.c.b16 %v701, %v693
    %v1190 = vpack.c.b16 %v702, %v694
    %v1191 = vpack.c.b16 %v703, %v695
    %v1192 = vpack.c.b16 %v704, %v696
    %v1193 = vpack.c.b16 %v705, %v697
    %v1194 = vpack.c.b16 %v706, %v698
    %v1195 = vpack.c.b16 %v707, %v699
    %v1196 = vpack.c.b16 %v716, %v708
    %v1197 = vpack.c.b16 %v717, %v709
    %v1198 = vpack.c.b16 %v718, %v710
    %v1199 = vpack.c.b16 %v719, %v711
    %v1200 = vpack.c.b16 %v720, %v712
    %v1201 = vpack.c.b16 %v721, %v713
    %v1202 = vpack.c.b16 %v722, %v714
    %v1203 = vpack.c.b16 %v723, %v715
    %v1204 = vpack.c.b16 %v732, %v724
    %v1205 = vpack.c.b16 %v733, %v725
    %v1206 = vpack.c.b16 %v734, %v726
    %v1207 = vpack.c.b16 %v735, %v727
    %v1208 = vpack.c.b16 %v736, %v728
    %v1209 = vpack.c.b16 %v737, %v729
    %v1210 = vpack.c.b16 %v738, %v730
    %v1211 = vpack.c.b16 %v739, %v731
    %v1212 = vpack.c.b16 %v748, %v740
    %v1213 = vpack.c.b16 %v749, %v741
    %v1214 = vpack.c.b16 %v750, %v742
    %v1215 = vpack.c.b16 %v751, %v743
    %v1216 = vpack.c.b16 %v752, %v744
    %v1217 = vpack.c.b16 %v753, %v745
    %v1218 = vpack.c.b16 %v754, %v746
    %v1219 = vpack.c.b16 %v755, %v747
    %v1220 = vpack.c.b16 %v764, %v756
    %v1221 = vpack.c.b16 %v765, %v757
    %v1222 = vpack.c.b16 %v766, %v758
    %v1223 = vpack.c.b16 %v767, %v759
    %v1224 = vpack.c.b16 %v768, %v760
    %v1225 = vpack.c.b16 %v769, %v761
    %v1226 = vpack.c.b16 %v770, %v762
    %v1227 = vpack.c.b16 %v771, %v763
    %v1228 = vpack.c.b16 %v780, %v772
    %v1229 = vpack.c.b16 %v781, %v773
    %v1230 = vpack.c.b16 %v782, %v774
    %v1231 = vpack.c.b16 %v783, %v775
    %v1232 = vpack.c.b16 %v784, %v776
    %v1233 = vpack.c.b16 %v785, %v777
    %v1234 = vpack.c.b16 %v786, %v778
    %v1235 = vpack.c.b16 %v787, %v779
    %v1236 = vpack.c.b16 %v796, %v788
    %v1237 = vpack.c.b16 %v797, %v789
    %v1238 = vpack.c.b16 %v798, %v790
    %v1239 = vpack.c.b16 %v799, %v791
    %v1240 = vpack.c.b16 %v800, %v792
    %v1241 = vpack.c.b16 %v801, %v793
    %v1242 = vpack.c.b16 %v802, %v794
    %v1243 = vpack.c.b16 %v803, %v795
    %v1244 = vpack.c.b16 %v812, %v804
    %v1245 = vpack.c.b16 %v813, %v805
    %v1246 = vpack.c.b16 %v814, %v806
    %v1247 = vpack.c.b16 %v815, %v807
    %v1248 = vpack.c.b16 %v816, %v808
    %v1249 = vpack.c.b16 %v817, %v809
    %v1250 = vpack.c.b16 %v818, %v810
    %v1251 = vpack.c.b16 %v819, %v811
    %v1252 = vpack.c.b16 %v828, %v820
    %v1253 = vpack.c.b16 %v829, %v821
    %v1254 = vpack.c.b16 %v830, %v822
    %v1255 = vpack.c.b16 %v831, %v823
    %v1256 = vpack.c.b16 %v832, %v824
    %v1257 = vpack.c.b16 %v833, %v825
    %v1258 = vpack.c.b16 %v834, %v826
    %v1259 = vpack.c.b16 %v835, %v827
    %v1260 = vpack.c.b16 %v844, %v836
    %v1261 = vpack.c.b16 %v845, %v837
    %v1262 = vpack.c.b16 %v846, %v838
    %v1263 = vpack.c.b16 %v847, %v839
    %v1264 = vpack.c.b16 %v848, %v840
    %v1265 = vpack.c.b16 %v849, %v841
    %v1266 = vpack.c.b16 %v850, %v842
    %v1267 = vpack.c.b16 %v851, %v843
    %v1268 = vpack.c.b16 %v860, %v852
    %v1269 = vpack.c.b16 %v861, %v853
    %v1270 = vpack.c.b16 %v862, %v854
    %v1271 = vpack.c.b16 %v863, %v855
    %v1272 = vpack.c.b16 %v864, %v856
    %v1273 = vpack.c.b16 %v865, %v857
    %v1274 = vpack.c.b16 %v866, %v858
    %v1275 = vpack.c.b16 %v867, %v859
    %v1276 = vpack.c.b16 %v876, %v868
    %v1277 = vpack.c.b16 %v877, %v869
    %v1278 = vpack.c.b16 %v878, %v870
    %v1279 = vpack.c.b16 %v879, %v871
    %v1280 = vpack.c.b16 %v880, %v872
    %v1281 = vpack.c.b16 %v881, %v873
    %v1282 = vpack.c.b16 %v882, %v874
    %v1283 = vpack.c.b16 %v883, %v875
    %v1284 = vpack.c.b16 %v892, %v884
    %v1285 = vpack.c.b16 %v893, %v885
    %v1286 = vpack.c.b16 %v894, %v886
    %v1287 = vpack.c.b16 %v895, %v887
    %v1288 = vpack.c.b16 %v896, %v888
    %v1289 = vpack.c.b16 %v897, %v889
    %v1290 = vpack.c.b16 %v898, %v890
    %v1291 = vpack.c.b16 %v899, %v891
    %v1292 = vpack.c.b16 %v908, %v900
    %v1293 = vpack.c.b16 %v909, %v901
    %v1294 = vpack.c.b16 %v910, %v902
    %v1295 = vpack.c.b16 %v911, %v903
    %v1296 = vpack.c.b16 %v912, %v904
    %v1297 = vpack.c.b16 %v913, %v905
    %v1298 = vpack.c.b16 %v914, %v906
    %v1299 = vpack.c.b16 %v915, %v907
    %v1300 = vpack.c.b16 %v924, %v916
    %v1301 = vpack.c.b16 %v925, %v917
    %v1302 = vpack.c.b16 %v926, %v918
    %v1303 = vpack.c.b16 %v927, %v919
    %v1304 = vpack.c.b16 %v928, %v920
    %v1305 = vpack.c.b16 %v929, %v921
    %v1306 = vpack.c.b16 %v930, %v922
    %v1307 = vpack.c.b16 %v931, %v923
    %v1308 = vpack.c.b16 %v940, %v932
    %v1309 = vpack.c.b16 %v941, %v933
    %v1310 = vpack.c.b16 %v942, %v934
    %v1311 = vpack.c.b16 %v943, %v935
    %v1312 = vpack.c.b16 %v944, %v936
    %v1313 = vpack.c.b16 %v945, %v937
    %v1314 = vpack.c.b16 %v946, %v938
    %v1315 = vpack.c.b16 %v947, %v939
    %v1316 = vpack.c.b16 %v956, %v948
    %v1317 = vpack.c.b16 %v957, %v949
    %v1318 = vpack.c.b16 %v958, %v950
    %v1319 = vpack.c.b16 %v959, %v951
    %v1320 = vpack.c.b16 %v960, %v952
    %v1321 = vpack.c.b16 %v961, %v953
    %v1322 = vpack.c.b16 %v962, %v954
    %v1323 = vpack.c.b16 %v963, %v955
    %v1324 = vpack.c.b16 %v972, %v964
    %v1325 = vpack.c.b16 %v973, %v965
    %v1326 = vpack.c.b16 %v974, %v966
    %v1327 = vpack.c.b16 %v975, %v967
    %v1328 = vpack.c.b16 %v976, %v968
    %v1329 = vpack.c.b16 %v977, %v969
    %v1330 = vpack.c.b16 %v978, %v970
    %v1331 = vpack.c.b16 %v979, %v971
    %v1332 = vpack.c.b16 %v988, %v980
    %v1333 = vpack.c.b16 %v989, %v981
    %v1334 = vpack.c.b16 %v990, %v982
    %v1335 = vpack.c.b16 %v991, %v983
    %v1336 = vpack.c.b16 %v992, %v984
    %v1337 = vpack.c.b16 %v993, %v985
    %v1338 = vpack.c.b16 %v994, %v986
    %v1339 = vpack.c.b16 %v995, %v987
    %v1340 = vpack.c.b16 %v1004, %v996
    %v1341 = vpack.c.b16 %v1005, %v997
    %v1342 = vpack.c.b16 %v1006, %v998
    %v1343 = vpack.c.b16 %v1007, %v999
    %v1344 = vpack.c.b16 %v1008, %v1000
    %v1345 = vpack.c.b16 %v1009, %v1001
    %v1346 = vpack.c.b16 %v1010, %v1002
    %v1347 = vpack.c.b16 %v1011, %v1003
    %v1348 = vpack.c.b16 %v1020, %v1012
    %v1349 = vpack.c.b16 %v1021, %v1013
    %v1350 = vpack.c.b16 %v1022, %v1014
    %v1351 = vpack.c.b16 %v1023, %v1015
    %v1352 = vpack.c.b16 %v1024, %v1016
    %v1353 = vpack.c.b16 %v1025, %v1017
    %v1354 = vpack.c.b16 %v1026, %v1018
    %v1355 = vpack.c.b16 %v1027, %v1019
    %v1356 = vpack.c.b16 %v1036, %v1028
    %v1357 = vpack.c.b16 %v1037, %v1029
    %v1358 = vpack.c.b16 %v1038, %v1030
    %v1359 = vpack.c.b16 %v1039, %v1031
    %v1360 = vpack.c.b16 %v1040, %v1032
    %v1361 = vpack.c.b16 %v1041, %v1033
    %v1362 = vpack.c.b16 %v1042, %v1034
    %v1363 = vpack.c.b16 %v1043, %v1035
    %v1364 = vpack.c.b16 %v1052, %v1044
    %v1365 = vpack.c.b16 %v1053, %v1045
    %v1366 = vpack.c.b16 %v1054, %v1046
    %v1367 = vpack.c.b16 %v1055, %v1047
    %v1368 = vpack.c.b16 %v1056, %v1048
    %v1369 = vpack.c.b16 %v1057, %v1049
    %v1370 = vpack.c.b16 %v1058, %v1050
    %v1371 = vpack.c.b16 %v1059, %v1051
    %v1372 = vpack.c.b16 %v1068, %v1060
    %v1373 = vpack.c.b16 %v1069, %v1061
    %v1374 = vpack.c.b16 %v1070, %v1062
    %v1375 = vpack.c.b16 %v1071, %v1063
    %v1376 = vpack.c.b16 %v1072, %v1064
    %v1377 = vpack.c.b16 %v1073, %v1065
    %v1378 = vpack.c.b16 %v1074, %v1066
    %v1379 = vpack.c.b16 %v1075, %v1067
    %v1380 = vpack.c.b16 %v1084, %v1076
    %v1381 = vpack.c.b16 %v1085, %v1077
    %v1382 = vpack.c.b16 %v1086, %v1078
    %v1383 = vpack.c.b16 %v1087, %v1079
    %v1384 = vpack.c.b16 %v1088, %v1080
    %v1385 = vpack.c.b16 %v1089, %v1081
    %v1386 = vpack.c.b16 %v1090, %v1082
    %v1387 = vpack.c.b16 %v1091, %v1083
    %v1388 = vpack.c.b16 %v1100, %v1092
    %v1389 = vpack.c.b16 %v1101, %v1093
    %v1390 = vpack.c.b16 %v1102, %v1094
    %v1391 = vpack.c.b16 %v1103, %v1095
    %v1392 = vpack.c.b16 %v1104, %v1096
    %v1393 = vpack.c.b16 %v1105, %v1097
    %v1394 = vpack.c.b16 %v1106, %v1098
    %v1395 = vpack.c.b16 %v1107, %v1099
    %v1396 = vpack.c.b16 %v1116, %v1108
    %v1397 = vpack.c.b16 %v1117, %v1109
    %v1398 = vpack.c.b16 %v1118, %v1110
    %v1399 = vpack.c.b16 %v1119, %v1111
    %v1400 = vpack.c.b16 %v1120, %v1112
    %v1401 = vpack.c.b16 %v1121, %v1113
    %v1402 = vpack.c.b16 %v1122, %v1114
    %v1403 = vpack.c.b16 %v1123, %v1115
    %v1404 = vpack.c.b16 %v1132, %v1124
    %v1405 = vpack.c.b16 %v1133, %v1125
    %v1406 = vpack.c.b16 %v1134, %v1126
    %v1407 = vpack.c.b16 %v1135, %v1127
    %v1408 = vpack.c.b16 %v1136, %v1128
    %v1409 = vpack.c.b16 %v1137, %v1129
    %v1410 = vpack.c.b16 %v1138, %v1130
    %v1411 = vpack.c.b16 %v1139, %v1131
    %v1412 = vpack.c.b16 %v1148, %v1140
    %v1413 = vpack.c.b16 %v1149, %v1141
    %v1414 = vpack.c.b16 %v1150, %v1142
    %v1415 = vpack.c.b16 %v1151, %v1143
    %v1416 = vpack.c.b16 %v1152, %v1144
    %v1417 = vpack.c.b16 %v1153, %v1145
    %v1418 = vpack.c.b16 %v1154, %v1146
    %v1419 = vpack.c.b16 %v1155, %v1147
    %v1420 = vpack.c.b16 %v1164, %v1156
    %v1421 = vpack.c.b16 %v1165, %v1157
    %v1422 = vpack.c.b16 %v1166, %v1158
    %v1423 = vpack.c.b16 %v1167, %v1159
    %v1424 = vpack.c.b16 %v1168, %v1160
    %v1425 = vpack.c.b16 %v1169, %v1161
    %v1426 = vpack.c.b16 %v1170, %v1162
    %v1427 = vpack.c.b16 %v1171, %v1163
    %1684 = vmatpush.bf16.msra.mxu0 %v1228
    %1685 = vmatpush.bf16.msra.mxu0 %v1220
    %1686 = vmatpush.bf16.msra.mxu0 %v1212
    %1687 = vmatpush.bf16.msra.mxu0 %v1204
    %1688 = vmatpush.bf16.msra.mxu0 %v1196
    %1689 = vmatpush.bf16.msra.mxu0 %v1188
    %1690 = vmatpush.bf16.msra.mxu0 %v1180
    %1691 = vmatpush.bf16.msra.mxu0 %v1172
    %1692 = vmatmul.bf16.gmra.mxu0 %v126
    %v1693 = vpop.f32.mrf.mxu0
    %v1694 = vadd.f32 %v388, %v1693
    %v1695 = vpop.f32.mrf.mxu0
    %1696 = vdwg.mxu0
    %1697 = vmatpush.bf16.msra.mxu0 %v1292
    %1698 = vmatpush.bf16.msra.mxu0 %v1284
    %1699 = vmatpush.bf16.msra.mxu0 %v1276
    %1700 = vmatpush.bf16.msra.mxu0 %v1268
    %1701 = vmatpush.bf16.msra.mxu0 %v1260
    %1702 = vmatpush.bf16.msra.mxu0 %v1252
    %1703 = vmatpush.bf16.msra.mxu0 %v1244
    %1704 = vmatpush.bf16.msra.mxu0 %v1236
    %1705 = vmatmul.bf16.gmra.mxu0 %v127
    %v1706 = vpop.f32.mrf.mxu0
    %v1707 = vadd.f32 %v1694, %v1706
    %v1708 = vpop.f32.mrf.mxu0
    %1709 = vdwg.mxu0
    %1710 = vmatpush.bf16.msra.mxu0 %v1356
    %1711 = vmatpush.bf16.msra.mxu0 %v1348
    %1712 = vmatpush.bf16.msra.mxu0 %v1340
    %1713 = vmatpush.bf16.msra.mxu0 %v1332
    %1714 = vmatpush.bf16.msra.mxu0 %v1324
    %1715 = vmatpush.bf16.msra.mxu0 %v1316
    %1716 = vmatpush.bf16.msra.mxu0 %v1308
    %1717 = vmatpush.bf16.msra.mxu0 %v1300
    %1718 = vmatmul.bf16.gmra.mxu0 %v128
    %v1719 = vpop.f32.mrf.mxu0
    %v1720 = vadd.f32 %v1707, %v1719
    %v1721 = vpop.f32.mrf.mxu0
    %1722 = vdwg.mxu0
    %1723 = vmatpush.bf16.msra.mxu0 %v1420
    %1724 = vmatpush.bf16.msra.mxu0 %v1412
    %1725 = vmatpush.bf16.msra.mxu0 %v1404
    %1726 = vmatpush.bf16.msra.mxu0 %v1396
    %1727 = vmatpush.bf16.msra.mxu0 %v1388
    %1728 = vmatpush.bf16.msra.mxu0 %v1380
    %1729 = vmatpush.bf16.msra.mxu0 %v1372
    %1730 = vmatpush.bf16.msra.mxu0 %v1364
    %1731 = vmatmul.bf16.gmra.mxu0 %v129
    %v1732 = vpop.f32.mrf.mxu0
    %v1733 = vadd.f32 %v1720, %v1732
    %v1734 = vpop.f32.mrf.mxu0
    %1735 = vdwg.mxu0
    %1736 = vmatpush.bf16.msra.mxu0 %v1229
    %1737 = vmatpush.bf16.msra.mxu0 %v1221
    %1738 = vmatpush.bf16.msra.mxu0 %v1213
    %1739 = vmatpush.bf16.msra.mxu0 %v1205
    %1740 = vmatpush.bf16.msra.mxu0 %v1197
    %1741 = vmatpush.bf16.msra.mxu0 %v1189
    %1742 = vmatpush.bf16.msra.mxu0 %v1181
    %1743 = vmatpush.bf16.msra.mxu0 %v1173
    %1744 = vmatmul.bf16.gmra.mxu0 %v126
    %v1745 = vpop.f32.mrf.mxu0
    %v1746 = vadd.f32 %v389, %v1745
    %v1747 = vpop.f32.mrf.mxu0
    %1748 = vdwg.mxu0
    %1749 = vmatpush.bf16.msra.mxu0 %v1293
    %1750 = vmatpush.bf16.msra.mxu0 %v1285
    %1751 = vmatpush.bf16.msra.mxu0 %v1277
    %1752 = vmatpush.bf16.msra.mxu0 %v1269
    %1753 = vmatpush.bf16.msra.mxu0 %v1261
    %1754 = vmatpush.bf16.msra.mxu0 %v1253
    %1755 = vmatpush.bf16.msra.mxu0 %v1245
    %1756 = vmatpush.bf16.msra.mxu0 %v1237
    %1757 = vmatmul.bf16.gmra.mxu0 %v127
    %v1758 = vpop.f32.mrf.mxu0
    %v1759 = vadd.f32 %v1746, %v1758
    %v1760 = vpop.f32.mrf.mxu0
    %1761 = vdwg.mxu0
    %1762 = vmatpush.bf16.msra.mxu0 %v1357
    %1763 = vmatpush.bf16.msra.mxu0 %v1349
    %1764 = vmatpush.bf16.msra.mxu0 %v1341
    %1765 = vmatpush.bf16.msra.mxu0 %v1333
    %1766 = vmatpush.bf16.msra.mxu0 %v1325
    %1767 = vmatpush.bf16.msra.mxu0 %v1317
    %1768 = vmatpush.bf16.msra.mxu0 %v1309
    %1769 = vmatpush.bf16.msra.mxu0 %v1301
    %1770 = vmatmul.bf16.gmra.mxu0 %v128
    %v1771 = vpop.f32.mrf.mxu0
    %v1772 = vadd.f32 %v1759, %v1771
    %v1773 = vpop.f32.mrf.mxu0
    %1774 = vdwg.mxu0
    %1775 = vmatpush.bf16.msra.mxu0 %v1421
    %1776 = vmatpush.bf16.msra.mxu0 %v1413
    %1777 = vmatpush.bf16.msra.mxu0 %v1405
    %1778 = vmatpush.bf16.msra.mxu0 %v1397
    %1779 = vmatpush.bf16.msra.mxu0 %v1389
    %1780 = vmatpush.bf16.msra.mxu0 %v1381
    %1781 = vmatpush.bf16.msra.mxu0 %v1373
    %1782 = vmatpush.bf16.msra.mxu0 %v1365
    %1783 = vmatmul.bf16.gmra.mxu0 %v129
    %v1784 = vpop.f32.mrf.mxu0
    %v1785 = vadd.f32 %v1772, %v1784
    %v1786 = vpop.f32.mrf.mxu0
    %1787 = vdwg.mxu0
    %1788 = vmatpush.bf16.msra.mxu0 %v1230
    %1789 = vmatpush.bf16.msra.mxu0 %v1222
    %1790 = vmatpush.bf16.msra.mxu0 %v1214
    %1791 = vmatpush.bf16.msra.mxu0 %v1206
    %1792 = vmatpush.bf16.msra.mxu0 %v1198
    %1793 = vmatpush.bf16.msra.mxu0 %v1190
    %1794 = vmatpush.bf16.msra.mxu0 %v1182
    %1795 = vmatpush.bf16.msra.mxu0 %v1174
    %1796 = vmatmul.bf16.gmra.mxu0 %v126
    %v1797 = vpop.f32.mrf.mxu0
    %v1798 = vadd.f32 %v390, %v1797
    %v1799 = vpop.f32.mrf.mxu0
    %1800 = vdwg.mxu0
    %1801 = vmatpush.bf16.msra.mxu0 %v1294
    %1802 = vmatpush.bf16.msra.mxu0 %v1286
    %1803 = vmatpush.bf16.msra.mxu0 %v1278
    %1804 = vmatpush.bf16.msra.mxu0 %v1270
    %1805 = vmatpush.bf16.msra.mxu0 %v1262
    %1806 = vmatpush.bf16.msra.mxu0 %v1254
    %1807 = vmatpush.bf16.msra.mxu0 %v1246
    %1808 = vmatpush.bf16.msra.mxu0 %v1238
    %1809 = vmatmul.bf16.gmra.mxu0 %v127
    %v1810 = vpop.f32.mrf.mxu0
    %v1811 = vadd.f32 %v1798, %v1810
    %v1812 = vpop.f32.mrf.mxu0
    %1813 = vdwg.mxu0
    %1814 = vmatpush.bf16.msra.mxu0 %v1358
    %1815 = vmatpush.bf16.msra.mxu0 %v1350
    %1816 = vmatpush.bf16.msra.mxu0 %v1342
    %1817 = vmatpush.bf16.msra.mxu0 %v1334
    %1818 = vmatpush.bf16.msra.mxu0 %v1326
    %1819 = vmatpush.bf16.msra.mxu0 %v1318
    %1820 = vmatpush.bf16.msra.mxu0 %v1310
    %1821 = vmatpush.bf16.msra.mxu0 %v1302
    %1822 = vmatmul.bf16.gmra.mxu0 %v128
    %v1823 = vpop.f32.mrf.mxu0
    %v1824 = vadd.f32 %v1811, %v1823
    %v1825 = vpop.f32.mrf.mxu0
    %1826 = vdwg.mxu0
    %1827 = vmatpush.bf16.msra.mxu0 %v1422
    %1828 = vmatpush.bf16.msra.mxu0 %v1414
    %1829 = vmatpush.bf16.msra.mxu0 %v1406
    %1830 = vmatpush.bf16.msra.mxu0 %v1398
    %1831 = vmatpush.bf16.msra.mxu0 %v1390
    %1832 = vmatpush.bf16.msra.mxu0 %v1382
    %1833 = vmatpush.bf16.msra.mxu0 %v1374
    %1834 = vmatpush.bf16.msra.mxu0 %v1366
    %1835 = vmatmul.bf16.gmra.mxu0 %v129
    %v1836 = vpop.f32.mrf.mxu0
    %v1837 = vadd.f32 %v1824, %v1836
    %v1838 = vpop.f32.mrf.mxu0
    %1839 = vdwg.mxu0
    %1840 = vmatpush.bf16.msra.mxu0 %v1231
    %1841 = vmatpush.bf16.msra.mxu0 %v1223
    %1842 = vmatpush.bf16.msra.mxu0 %v1215
    %1843 = vmatpush.bf16.msra.mxu0 %v1207
    %1844 = vmatpush.bf16.msra.mxu0 %v1199
    %1845 = vmatpush.bf16.msra.mxu0 %v1191
    %1846 = vmatpush.bf16.msra.mxu0 %v1183
    %1847 = vmatpush.bf16.msra.mxu0 %v1175
    %1848 = vmatmul.bf16.gmra.mxu0 %v126
    %v1849 = vpop.f32.mrf.mxu0
    %v1850 = vadd.f32 %v391, %v1849
    %v1851 = vpop.f32.mrf.mxu0
    %1852 = vdwg.mxu0
    %1853 = vmatpush.bf16.msra.mxu0 %v1295
    %1854 = vmatpush.bf16.msra.mxu0 %v1287
    %1855 = vmatpush.bf16.msra.mxu0 %v1279
    %1856 = vmatpush.bf16.msra.mxu0 %v1271
    %1857 = vmatpush.bf16.msra.mxu0 %v1263
    %1858 = vmatpush.bf16.msra.mxu0 %v1255
    %1859 = vmatpush.bf16.msra.mxu0 %v1247
    %1860 = vmatpush.bf16.msra.mxu0 %v1239
    %1861 = vmatmul.bf16.gmra.mxu0 %v127
    %v1862 = vpop.f32.mrf.mxu0
    %v1863 = vadd.f32 %v1850, %v1862
    %v1864 = vpop.f32.mrf.mxu0
    %1865 = vdwg.mxu0
    %1866 = vmatpush.bf16.msra.mxu0 %v1359
    %1867 = vmatpush.bf16.msra.mxu0 %v1351
    %1868 = vmatpush.bf16.msra.mxu0 %v1343
    %1869 = vmatpush.bf16.msra.mxu0 %v1335
    %1870 = vmatpush.bf16.msra.mxu0 %v1327
    %1871 = vmatpush.bf16.msra.mxu0 %v1319
    %1872 = vmatpush.bf16.msra.mxu0 %v1311
    %1873 = vmatpush.bf16.msra.mxu0 %v1303
    %1874 = vmatmul.bf16.gmra.mxu0 %v128
    %v1875 = vpop.f32.mrf.mxu0
    %v1876 = vadd.f32 %v1863, %v1875
    %v1877 = vpop.f32.mrf.mxu0
    %1878 = vdwg.mxu0
    %1879 = vmatpush.bf16.msra.mxu0 %v1423
    %1880 = vmatpush.bf16.msra.mxu0 %v1415
    %1881 = vmatpush.bf16.msra.mxu0 %v1407
    %1882 = vmatpush.bf16.msra.mxu0 %v1399
    %1883 = vmatpush.bf16.msra.mxu0 %v1391
    %1884 = vmatpush.bf16.msra.mxu0 %v1383
    %1885 = vmatpush.bf16.msra.mxu0 %v1375
    %1886 = vmatpush.bf16.msra.mxu0 %v1367
    %1887 = vmatmul.bf16.gmra.mxu0 %v129
    %v1888 = vpop.f32.mrf.mxu0
    %v1889 = vadd.f32 %v1876, %v1888
    %v1890 = vpop.f32.mrf.mxu0
    %1891 = vdwg.mxu0
    %1892 = vmatpush.bf16.msra.mxu0 %v1232
    %1893 = vmatpush.bf16.msra.mxu0 %v1224
    %1894 = vmatpush.bf16.msra.mxu0 %v1216
    %1895 = vmatpush.bf16.msra.mxu0 %v1208
    %1896 = vmatpush.bf16.msra.mxu0 %v1200
    %1897 = vmatpush.bf16.msra.mxu0 %v1192
    %1898 = vmatpush.bf16.msra.mxu0 %v1184
    %1899 = vmatpush.bf16.msra.mxu0 %v1176
    %1900 = vmatmul.bf16.gmra.mxu0 %v126
    %v1901 = vpop.f32.mrf.mxu0
    %v1902 = vadd.f32 %v392, %v1901
    %v1903 = vpop.f32.mrf.mxu0
    %1904 = vdwg.mxu0
    %1905 = vmatpush.bf16.msra.mxu0 %v1296
    %1906 = vmatpush.bf16.msra.mxu0 %v1288
    %1907 = vmatpush.bf16.msra.mxu0 %v1280
    %1908 = vmatpush.bf16.msra.mxu0 %v1272
    %1909 = vmatpush.bf16.msra.mxu0 %v1264
    %1910 = vmatpush.bf16.msra.mxu0 %v1256
    %1911 = vmatpush.bf16.msra.mxu0 %v1248
    %1912 = vmatpush.bf16.msra.mxu0 %v1240
    %1913 = vmatmul.bf16.gmra.mxu0 %v127
    %v1914 = vpop.f32.mrf.mxu0
    %v1915 = vadd.f32 %v1902, %v1914
    %v1916 = vpop.f32.mrf.mxu0
    %1917 = vdwg.mxu0
    %1918 = vmatpush.bf16.msra.mxu0 %v1360
    %1919 = vmatpush.bf16.msra.mxu0 %v1352
    %1920 = vmatpush.bf16.msra.mxu0 %v1344
    %1921 = vmatpush.bf16.msra.mxu0 %v1336
    %1922 = vmatpush.bf16.msra.mxu0 %v1328
    %1923 = vmatpush.bf16.msra.mxu0 %v1320
    %1924 = vmatpush.bf16.msra.mxu0 %v1312
    %1925 = vmatpush.bf16.msra.mxu0 %v1304
    %1926 = vmatmul.bf16.gmra.mxu0 %v128
    %v1927 = vpop.f32.mrf.mxu0
    %v1928 = vadd.f32 %v1915, %v1927
    %v1929 = vpop.f32.mrf.mxu0
    %1930 = vdwg.mxu0
    %1931 = vmatpush.bf16.msra.mxu0 %v1424
    %1932 = vmatpush.bf16.msra.mxu0 %v1416
    %1933 = vmatpush.bf16.msra.mxu0 %v1408
    %1934 = vmatpush.bf16.msra.mxu0 %v1400
    %1935 = vmatpush.bf16.msra.mxu0 %v1392
    %1936 = vmatpush.bf16.msra.mxu0 %v1384
    %1937 = vmatpush.bf16.msra.mxu0 %v1376
    %1938 = vmatpush.bf16.msra.mxu0 %v1368
    %1939 = vmatmul.bf16.gmra.mxu0 %v129
    %v1940 = vpop.f32.mrf.mxu0
    %v1941 = vadd.f32 %v1928, %v1940
    %v1942 = vpop.f32.mrf.mxu0
    %1943 = vdwg.mxu0
    %1944 = vmatpush.bf16.msra.mxu0 %v1233
    %1945 = vmatpush.bf16.msra.mxu0 %v1225
    %1946 = vmatpush.bf16.msra.mxu0 %v1217
    %1947 = vmatpush.bf16.msra.mxu0 %v1209
    %1948 = vmatpush.bf16.msra.mxu0 %v1201
    %1949 = vmatpush.bf16.msra.mxu0 %v1193
    %1950 = vmatpush.bf16.msra.mxu0 %v1185
    %1951 = vmatpush.bf16.msra.mxu0 %v1177
    %1952 = vmatmul.bf16.gmra.mxu0 %v126
    %v1953 = vpop.f32.mrf.mxu0
    %v1954 = vadd.f32 %v393, %v1953
    %v1955 = vpop.f32.mrf.mxu0
    %1956 = vdwg.mxu0
    %1957 = vmatpush.bf16.msra.mxu0 %v1297
    %1958 = vmatpush.bf16.msra.mxu0 %v1289
    %1959 = vmatpush.bf16.msra.mxu0 %v1281
    %1960 = vmatpush.bf16.msra.mxu0 %v1273
    %1961 = vmatpush.bf16.msra.mxu0 %v1265
    %1962 = vmatpush.bf16.msra.mxu0 %v1257
    %1963 = vmatpush.bf16.msra.mxu0 %v1249
    %1964 = vmatpush.bf16.msra.mxu0 %v1241
    %1965 = vmatmul.bf16.gmra.mxu0 %v127
    %v1966 = vpop.f32.mrf.mxu0
    %v1967 = vadd.f32 %v1954, %v1966
    %v1968 = vpop.f32.mrf.mxu0
    %1969 = vdwg.mxu0
    %1970 = vmatpush.bf16.msra.mxu0 %v1361
    %1971 = vmatpush.bf16.msra.mxu0 %v1353
    %1972 = vmatpush.bf16.msra.mxu0 %v1345
    %1973 = vmatpush.bf16.msra.mxu0 %v1337
    %1974 = vmatpush.bf16.msra.mxu0 %v1329
    %1975 = vmatpush.bf16.msra.mxu0 %v1321
    %1976 = vmatpush.bf16.msra.mxu0 %v1313
    %1977 = vmatpush.bf16.msra.mxu0 %v1305
    %1978 = vmatmul.bf16.gmra.mxu0 %v128
    %v1979 = vpop.f32.mrf.mxu0
    %v1980 = vadd.f32 %v1967, %v1979
    %v1981 = vpop.f32.mrf.mxu0
    %1982 = vdwg.mxu0
    %1983 = vmatpush.bf16.msra.mxu0 %v1425
    %1984 = vmatpush.bf16.msra.mxu0 %v1417
    %1985 = vmatpush.bf16.msra.mxu0 %v1409
    %1986 = vmatpush.bf16.msra.mxu0 %v1401
    %1987 = vmatpush.bf16.msra.mxu0 %v1393
    %1988 = vmatpush.bf16.msra.mxu0 %v1385
    %1989 = vmatpush.bf16.msra.mxu0 %v1377
    %1990 = vmatpush.bf16.msra.mxu0 %v1369
    %1991 = vmatmul.bf16.gmra.mxu0 %v129
    %v1992 = vpop.f32.mrf.mxu0
    %v1993 = vadd.f32 %v1980, %v1992
    %v1994 = vpop.f32.mrf.mxu0
    %1995 = vdwg.mxu0
    %1996 = vmatpush.bf16.msra.mxu0 %v1234
    %1997 = vmatpush.bf16.msra.mxu0 %v1226
    %1998 = vmatpush.bf16.msra.mxu0 %v1218
    %1999 = vmatpush.bf16.msra.mxu0 %v1210
    %2000 = vmatpush.bf16.msra.mxu0 %v1202
    %2001 = vmatpush.bf16.msra.mxu0 %v1194
    %2002 = vmatpush.bf16.msra.mxu0 %v1186
    %2003 = vmatpush.bf16.msra.mxu0 %v1178
    %2004 = vmatmul.bf16.gmra.mxu0 %v126
    %v2005 = vpop.f32.mrf.mxu0
    %v2006 = vadd.f32 %v394, %v2005
    %v2007 = vpop.f32.mrf.mxu0
    %2008 = vdwg.mxu0
    %2009 = vmatpush.bf16.msra.mxu0 %v1298
    %2010 = vmatpush.bf16.msra.mxu0 %v1290
    %2011 = vmatpush.bf16.msra.mxu0 %v1282
    %2012 = vmatpush.bf16.msra.mxu0 %v1274
    %2013 = vmatpush.bf16.msra.mxu0 %v1266
    %2014 = vmatpush.bf16.msra.mxu0 %v1258
    %2015 = vmatpush.bf16.msra.mxu0 %v1250
    %2016 = vmatpush.bf16.msra.mxu0 %v1242
    %2017 = vmatmul.bf16.gmra.mxu0 %v127
    %v2018 = vpop.f32.mrf.mxu0
    %v2019 = vadd.f32 %v2006, %v2018
    %v2020 = vpop.f32.mrf.mxu0
    %2021 = vdwg.mxu0
    %2022 = vmatpush.bf16.msra.mxu0 %v1362
    %2023 = vmatpush.bf16.msra.mxu0 %v1354
    %2024 = vmatpush.bf16.msra.mxu0 %v1346
    %2025 = vmatpush.bf16.msra.mxu0 %v1338
    %2026 = vmatpush.bf16.msra.mxu0 %v1330
    %2027 = vmatpush.bf16.msra.mxu0 %v1322
    %2028 = vmatpush.bf16.msra.mxu0 %v1314
    %2029 = vmatpush.bf16.msra.mxu0 %v1306
    %2030 = vmatmul.bf16.gmra.mxu0 %v128
    %v2031 = vpop.f32.mrf.mxu0
    %v2032 = vadd.f32 %v2019, %v2031
    %v2033 = vpop.f32.mrf.mxu0
    %2034 = vdwg.mxu0
    %2035 = vmatpush.bf16.msra.mxu0 %v1426
    %2036 = vmatpush.bf16.msra.mxu0 %v1418
    %2037 = vmatpush.bf16.msra.mxu0 %v1410
    %2038 = vmatpush.bf16.msra.mxu0 %v1402
    %2039 = vmatpush.bf16.msra.mxu0 %v1394
    %2040 = vmatpush.bf16.msra.mxu0 %v1386
    %2041 = vmatpush.bf16.msra.mxu0 %v1378
    %2042 = vmatpush.bf16.msra.mxu0 %v1370
    %2043 = vmatmul.bf16.gmra.mxu0 %v129
    %v2044 = vpop.f32.mrf.mxu0
    %v2045 = vadd.f32 %v2032, %v2044
    %v2046 = vpop.f32.mrf.mxu0
    %2047 = vdwg.mxu0
    %2048 = vmatpush.bf16.msra.mxu0 %v1235
    %2049 = vmatpush.bf16.msra.mxu0 %v1227
    %2050 = vmatpush.bf16.msra.mxu0 %v1219
    %2051 = vmatpush.bf16.msra.mxu0 %v1211
    %2052 = vmatpush.bf16.msra.mxu0 %v1203
    %2053 = vmatpush.bf16.msra.mxu0 %v1195
    %2054 = vmatpush.bf16.msra.mxu0 %v1187
    %2055 = vmatpush.bf16.msra.mxu0 %v1179
    %2056 = vmatmul.bf16.gmra.mxu0 %v126
    %v2057 = vpop.f32.mrf.mxu0
    %v2058 = vadd.f32 %v395, %v2057
    %v2059 = vpop.f32.mrf.mxu0
    %2060 = vdwg.mxu0
    %2061 = vmatpush.bf16.msra.mxu0 %v1299
    %2062 = vmatpush.bf16.msra.mxu0 %v1291
    %2063 = vmatpush.bf16.msra.mxu0 %v1283
    %2064 = vmatpush.bf16.msra.mxu0 %v1275
    %2065 = vmatpush.bf16.msra.mxu0 %v1267
    %2066 = vmatpush.bf16.msra.mxu0 %v1259
    %2067 = vmatpush.bf16.msra.mxu0 %v1251
    %2068 = vmatpush.bf16.msra.mxu0 %v1243
    %2069 = vmatmul.bf16.gmra.mxu0 %v127
    %v2070 = vpop.f32.mrf.mxu0
    %v2071 = vadd.f32 %v2058, %v2070
    %v2072 = vpop.f32.mrf.mxu0
    %2073 = vdwg.mxu0
    %2074 = vmatpush.bf16.msra.mxu0 %v1363
    %2075 = vmatpush.bf16.msra.mxu0 %v1355
    %2076 = vmatpush.bf16.msra.mxu0 %v1347
    %2077 = vmatpush.bf16.msra.mxu0 %v1339
    %2078 = vmatpush.bf16.msra.mxu0 %v1331
    %2079 = vmatpush.bf16.msra.mxu0 %v1323
    %2080 = vmatpush.bf16.msra.mxu0 %v1315
    %2081 = vmatpush.bf16.msra.mxu0 %v1307
    %2082 = vmatmul.bf16.gmra.mxu0 %v128
    %v2083 = vpop.f32.mrf.mxu0
    %v2084 = vadd.f32 %v2071, %v2083
    %v2085 = vpop.f32.mrf.mxu0
    %2086 = vdwg.mxu0
    %2087 = vmatpush.bf16.msra.mxu0 %v1427
    %2088 = vmatpush.bf16.msra.mxu0 %v1419
    %2089 = vmatpush.bf16.msra.mxu0 %v1411
    %2090 = vmatpush.bf16.msra.mxu0 %v1403
    %2091 = vmatpush.bf16.msra.mxu0 %v1395
    %2092 = vmatpush.bf16.msra.mxu0 %v1387
    %2093 = vmatpush.bf16.msra.mxu0 %v1379
    %2094 = vmatpush.bf16.msra.mxu0 %v1371
    %2095 = vmatmul.bf16.gmra.mxu0 %v129
    %v2096 = vpop.f32.mrf.mxu0
    %v2097 = vadd.f32 %v2084, %v2096
    %v2098 = vpop.f32.mrf.mxu0
    %2099 = vdwg.mxu0
    %v2100 = vmax.f32 %v1733, 0.0
    %v2101 = vmax.f32 %v1785, 0.0
    %v2102 = vmax.f32 %v1837, 0.0
    %v2103 = vmax.f32 %v1889, 0.0
    %v2104 = vmax.f32 %v1941, 0.0
    %v2105 = vmax.f32 %v1993, 0.0
    %v2106 = vmax.f32 %v2045, 0.0
    %v2107 = vmax.f32 %v2097, 0.0
    %v2108 = vpack.c.bf16 %v2100, %v2100
    %v2109 = vpack.c.bf16 %v2101, %v2101
    %v2110 = vpack.c.bf16 %v2102, %v2102
    %v2111 = vpack.c.bf16 %v2103, %v2103
    %v2112 = vpack.c.bf16 %v2104, %v2104
    %v2113 = vpack.c.bf16 %v2105, %v2105
    %v2114 = vpack.c.bf16 %v2106, %v2106
    %v2115 = vpack.c.bf16 %v2107, %v2107
    %v2116 = vld [vmem:[#allocation8] sm:$0xff]
    %v2117 = vld [vmem:[#allocation8 + $0x8] sm:$0xff]
    %v2118 = vld [vmem:[#allocation8 + $0x10] sm:$0xff]
    %v2119 = vld [vmem:[#allocation8 + $0x18] sm:$0xff]
    %v2120 = vld [vmem:[#allocation8 + $0x20] sm:$0xff]
    %v2121 = vld [vmem:[#allocation8 + $0x28] sm:$0xff]
    %v2122 = vld [vmem:[#allocation8 + $0x30] sm:$0xff]
    %v2123 = vld [vmem:[#allocation8 + $0x38] sm:$0xff]
    %v2124 = vld [vmem:[#allocation8 + $0x40] sm:$0xff]
    %v2125 = vld [vmem:[#allocation8 + $0x48] sm:$0xff]
    %v2126 = vld [vmem:[#allocation8 + $0x50] sm:$0xff]
    %v2127 = vld [vmem:[#allocation8 + $0x58] sm:$0xff]
    %v2128 = vld [vmem:[#allocation8 + $0x60] sm:$0xff]
    %v2129 = vld [vmem:[#allocation8 + $0x68] sm:$0xff]
    %v2130 = vld [vmem:[#allocation8 + $0x70] sm:$0xff]
    %v2131 = vld [vmem:[#allocation8 + $0x78] sm:$0xff]
    %v2132 = vld [vmem:[#allocation8 + $0x80] sm:$0xff]
    %v2133 = vld [vmem:[#allocation8 + $0x88] sm:$0xff]
    %v2134 = vld [vmem:[#allocation8 + $0x90] sm:$0xff]
    %v2135 = vld [vmem:[#allocation8 + $0x98] sm:$0xff]
    %v2136 = vld [vmem:[#allocation8 + $0xa0] sm:$0xff]
    %v2137 = vld [vmem:[#allocation8 + $0xa8] sm:$0xff]
    %v2138 = vld [vmem:[#allocation8 + $0xb0] sm:$0xff]
    %v2139 = vld [vmem:[#allocation8 + $0xb8] sm:$0xff]
    %v2140 = vld [vmem:[#allocation8 + $0xc0] sm:$0xff]
    %v2141 = vld [vmem:[#allocation8 + $0xc8] sm:$0xff]
    %v2142 = vld [vmem:[#allocation8 + $0xd0] sm:$0xff]
    %v2143 = vld [vmem:[#allocation8 + $0xd8] sm:$0xff]
    %v2144 = vld [vmem:[#allocation8 + $0xe0] sm:$0xff]
    %v2145 = vld [vmem:[#allocation8 + $0xe8] sm:$0xff]
    %v2146 = vld [vmem:[#allocation8 + $0xf0] sm:$0xff]
    %v2147 = vld [vmem:[#allocation8 + $0xf8] sm:$0xff]
    %v2148 = vld [vmem:[#allocation8 + $0x100] sm:$0xff]
    %v2149 = vld [vmem:[#allocation8 + $0x108] sm:$0xff]
    %v2150 = vld [vmem:[#allocation8 + $0x110] sm:$0xff]
    %v2151 = vld [vmem:[#allocation8 + $0x118] sm:$0xff]
    %v2152 = vld [vmem:[#allocation8 + $0x120] sm:$0xff]
    %v2153 = vld [vmem:[#allocation8 + $0x128] sm:$0xff]
    %v2154 = vld [vmem:[#allocation8 + $0x130] sm:$0xff]
    %v2155 = vld [vmem:[#allocation8 + $0x138] sm:$0xff]
    %v2156 = vld [vmem:[#allocation8 + $0x140] sm:$0xff]
    %v2157 = vld [vmem:[#allocation8 + $0x148] sm:$0xff]
    %v2158 = vld [vmem:[#allocation8 + $0x150] sm:$0xff]
    %v2159 = vld [vmem:[#allocation8 + $0x158] sm:$0xff]
    %v2160 = vld [vmem:[#allocation8 + $0x160] sm:$0xff]
    %v2161 = vld [vmem:[#allocation8 + $0x168] sm:$0xff]
    %v2162 = vld [vmem:[#allocation8 + $0x170] sm:$0xff]
    %v2163 = vld [vmem:[#allocation8 + $0x178] sm:$0xff]
    %v2164 = vld [vmem:[#allocation8 + $0x180] sm:$0xff]
    %v2165 = vld [vmem:[#allocation8 + $0x188] sm:$0xff]
    %v2166 = vld [vmem:[#allocation8 + $0x190] sm:$0xff]
    %v2167 = vld [vmem:[#allocation8 + $0x198] sm:$0xff]
    %v2168 = vld [vmem:[#allocation8 + $0x1a0] sm:$0xff]
    %v2169 = vld [vmem:[#allocation8 + $0x1a8] sm:$0xff]
    %v2170 = vld [vmem:[#allocation8 + $0x1b0] sm:$0xff]
    %v2171 = vld [vmem:[#allocation8 + $0x1b8] sm:$0xff]
    %v2172 = vld [vmem:[#allocation8 + $0x1c0] sm:$0xff]
    %v2173 = vld [vmem:[#allocation8 + $0x1c8] sm:$0xff]
    %v2174 = vld [vmem:[#allocation8 + $0x1d0] sm:$0xff]
    %v2175 = vld [vmem:[#allocation8 + $0x1d8] sm:$0xff]
    %v2176 = vld [vmem:[#allocation8 + $0x1e0] sm:$0xff]
    %v2177 = vld [vmem:[#allocation8 + $0x1e8] sm:$0xff]
    %v2178 = vld [vmem:[#allocation8 + $0x1f0] sm:$0xff]
    %v2179 = vld [vmem:[#allocation8 + $0x1f8] sm:$0xff]
    %v2180 = vld [vmem:[#allocation8 + $0x200] sm:$0xff]
    %v2181 = vld [vmem:[#allocation8 + $0x208] sm:$0xff]
    %v2182 = vld [vmem:[#allocation8 + $0x210] sm:$0xff]
    %v2183 = vld [vmem:[#allocation8 + $0x218] sm:$0xff]
    %v2184 = vld [vmem:[#allocation8 + $0x220] sm:$0xff]
    %v2185 = vld [vmem:[#allocation8 + $0x228] sm:$0xff]
    %v2186 = vld [vmem:[#allocation8 + $0x230] sm:$0xff]
    %v2187 = vld [vmem:[#allocation8 + $0x238] sm:$0xff]
    %v2188 = vld [vmem:[#allocation8 + $0x240] sm:$0xff]
    %v2189 = vld [vmem:[#allocation8 + $0x248] sm:$0xff]
    %v2190 = vld [vmem:[#allocation8 + $0x250] sm:$0xff]
    %v2191 = vld [vmem:[#allocation8 + $0x258] sm:$0xff]
    %v2192 = vld [vmem:[#allocation8 + $0x260] sm:$0xff]
    %v2193 = vld [vmem:[#allocation8 + $0x268] sm:$0xff]
    %v2194 = vld [vmem:[#allocation8 + $0x270] sm:$0xff]
    %v2195 = vld [vmem:[#allocation8 + $0x278] sm:$0xff]
    %v2196 = vld [vmem:[#allocation8 + $0x280] sm:$0xff]
    %v2197 = vld [vmem:[#allocation8 + $0x288] sm:$0xff]
    %v2198 = vld [vmem:[#allocation8 + $0x290] sm:$0xff]
    %v2199 = vld [vmem:[#allocation8 + $0x298] sm:$0xff]
    %v2200 = vld [vmem:[#allocation8 + $0x2a0] sm:$0xff]
    %v2201 = vld [vmem:[#allocation8 + $0x2a8] sm:$0xff]
    %v2202 = vld [vmem:[#allocation8 + $0x2b0] sm:$0xff]
    %v2203 = vld [vmem:[#allocation8 + $0x2b8] sm:$0xff]
    %v2204 = vld [vmem:[#allocation8 + $0x2c0] sm:$0xff]
    %v2205 = vld [vmem:[#allocation8 + $0x2c8] sm:$0xff]
    %v2206 = vld [vmem:[#allocation8 + $0x2d0] sm:$0xff]
    %v2207 = vld [vmem:[#allocation8 + $0x2d8] sm:$0xff]
    %v2208 = vld [vmem:[#allocation8 + $0x2e0] sm:$0xff]
    %v2209 = vld [vmem:[#allocation8 + $0x2e8] sm:$0xff]
    %v2210 = vld [vmem:[#allocation8 + $0x2f0] sm:$0xff]
    %v2211 = vld [vmem:[#allocation8 + $0x2f8] sm:$0xff]
    %v2212 = vld [vmem:[#allocation8 + $0x300] sm:$0xff]
    %v2213 = vld [vmem:[#allocation8 + $0x308] sm:$0xff]
    %v2214 = vld [vmem:[#allocation8 + $0x310] sm:$0xff]
    %v2215 = vld [vmem:[#allocation8 + $0x318] sm:$0xff]
    %v2216 = vld [vmem:[#allocation8 + $0x320] sm:$0xff]
    %v2217 = vld [vmem:[#allocation8 + $0x328] sm:$0xff]
    %v2218 = vld [vmem:[#allocation8 + $0x330] sm:$0xff]
    %v2219 = vld [vmem:[#allocation8 + $0x338] sm:$0xff]
    %v2220 = vld [vmem:[#allocation8 + $0x340] sm:$0xff]
    %v2221 = vld [vmem:[#allocation8 + $0x348] sm:$0xff]
    %v2222 = vld [vmem:[#allocation8 + $0x350] sm:$0xff]
    %v2223 = vld [vmem:[#allocation8 + $0x358] sm:$0xff]
    %v2224 = vld [vmem:[#allocation8 + $0x360] sm:$0xff]
    %v2225 = vld [vmem:[#allocation8 + $0x368] sm:$0xff]
    %v2226 = vld [vmem:[#allocation8 + $0x370] sm:$0xff]
    %v2227 = vld [vmem:[#allocation8 + $0x378] sm:$0xff]
    %v2228 = vld [vmem:[#allocation8 + $0x380] sm:$0xff]
    %v2229 = vld [vmem:[#allocation8 + $0x388] sm:$0xff]
    %v2230 = vld [vmem:[#allocation8 + $0x390] sm:$0xff]
    %v2231 = vld [vmem:[#allocation8 + $0x398] sm:$0xff]
    %v2232 = vld [vmem:[#allocation8 + $0x3a0] sm:$0xff]
    %v2233 = vld [vmem:[#allocation8 + $0x3a8] sm:$0xff]
    %v2234 = vld [vmem:[#allocation8 + $0x3b0] sm:$0xff]
    %v2235 = vld [vmem:[#allocation8 + $0x3b8] sm:$0xff]
    %v2236 = vld [vmem:[#allocation8 + $0x3c0] sm:$0xff]
    %v2237 = vld [vmem:[#allocation8 + $0x3c8] sm:$0xff]
    %v2238 = vld [vmem:[#allocation8 + $0x3d0] sm:$0xff]
    %v2239 = vld [vmem:[#allocation8 + $0x3d8] sm:$0xff]
    %v2240 = vld [vmem:[#allocation8 + $0x3e0] sm:$0xff]
    %v2241 = vld [vmem:[#allocation8 + $0x3e8] sm:$0xff]
    %v2242 = vld [vmem:[#allocation8 + $0x3f0] sm:$0xff]
    %v2243 = vld [vmem:[#allocation8 + $0x3f8] sm:$0xff]
    %v2244 = vld [vmem:[#allocation8 + $0x400] sm:$0xff]
    %v2245 = vld [vmem:[#allocation8 + $0x408] sm:$0xff]
    %v2246 = vld [vmem:[#allocation8 + $0x410] sm:$0xff]
    %v2247 = vld [vmem:[#allocation8 + $0x418] sm:$0xff]
    %v2248 = vld [vmem:[#allocation8 + $0x420] sm:$0xff]
    %v2249 = vld [vmem:[#allocation8 + $0x428] sm:$0xff]
    %v2250 = vld [vmem:[#allocation8 + $0x430] sm:$0xff]
    %v2251 = vld [vmem:[#allocation8 + $0x438] sm:$0xff]
    %v2252 = vld [vmem:[#allocation8 + $0x440] sm:$0xff]
    %v2253 = vld [vmem:[#allocation8 + $0x448] sm:$0xff]
    %v2254 = vld [vmem:[#allocation8 + $0x450] sm:$0xff]
    %v2255 = vld [vmem:[#allocation8 + $0x458] sm:$0xff]
    %v2256 = vld [vmem:[#allocation8 + $0x460] sm:$0xff]
    %v2257 = vld [vmem:[#allocation8 + $0x468] sm:$0xff]
    %v2258 = vld [vmem:[#allocation8 + $0x470] sm:$0xff]
    %v2259 = vld [vmem:[#allocation8 + $0x478] sm:$0xff]
    %v2260 = vld [vmem:[#allocation8 + $0x480] sm:$0xff]
    %v2261 = vld [vmem:[#allocation8 + $0x488] sm:$0xff]
    %v2262 = vld [vmem:[#allocation8 + $0x490] sm:$0xff]
    %v2263 = vld [vmem:[#allocation8 + $0x498] sm:$0xff]
    %v2264 = vld [vmem:[#allocation8 + $0x4a0] sm:$0xff]
    %v2265 = vld [vmem:[#allocation8 + $0x4a8] sm:$0xff]
    %v2266 = vld [vmem:[#allocation8 + $0x4b0] sm:$0xff]
    %v2267 = vld [vmem:[#allocation8 + $0x4b8] sm:$0xff]
    %v2268 = vld [vmem:[#allocation8 + $0x4c0] sm:$0xff]
    %v2269 = vld [vmem:[#allocation8 + $0x4c8] sm:$0xff]
    %v2270 = vld [vmem:[#allocation8 + $0x4d0] sm:$0xff]
    %v2271 = vld [vmem:[#allocation8 + $0x4d8] sm:$0xff]
    %v2272 = vld [vmem:[#allocation8 + $0x4e0] sm:$0xff]
    %v2273 = vld [vmem:[#allocation8 + $0x4e8] sm:$0xff]
    %v2274 = vld [vmem:[#allocation8 + $0x4f0] sm:$0xff]
    %v2275 = vld [vmem:[#allocation8 + $0x4f8] sm:$0xff]
    %v2276 = vld [vmem:[#allocation8 + $0x500] sm:$0xff]
    %v2277 = vld [vmem:[#allocation8 + $0x508] sm:$0xff]
    %v2278 = vld [vmem:[#allocation8 + $0x510] sm:$0xff]
    %v2279 = vld [vmem:[#allocation8 + $0x518] sm:$0xff]
    %v2280 = vld [vmem:[#allocation8 + $0x520] sm:$0xff]
    %v2281 = vld [vmem:[#allocation8 + $0x528] sm:$0xff]
    %v2282 = vld [vmem:[#allocation8 + $0x530] sm:$0xff]
    %v2283 = vld [vmem:[#allocation8 + $0x538] sm:$0xff]
    %v2284 = vld [vmem:[#allocation8 + $0x540] sm:$0xff]
    %v2285 = vld [vmem:[#allocation8 + $0x548] sm:$0xff]
    %v2286 = vld [vmem:[#allocation8 + $0x550] sm:$0xff]
    %v2287 = vld [vmem:[#allocation8 + $0x558] sm:$0xff]
    %v2288 = vld [vmem:[#allocation8 + $0x560] sm:$0xff]
    %v2289 = vld [vmem:[#allocation8 + $0x568] sm:$0xff]
    %v2290 = vld [vmem:[#allocation8 + $0x570] sm:$0xff]
    %v2291 = vld [vmem:[#allocation8 + $0x578] sm:$0xff]
    %v2292 = vld [vmem:[#allocation8 + $0x580] sm:$0xff]
    %v2293 = vld [vmem:[#allocation8 + $0x588] sm:$0xff]
    %v2294 = vld [vmem:[#allocation8 + $0x590] sm:$0xff]
    %v2295 = vld [vmem:[#allocation8 + $0x598] sm:$0xff]
    %v2296 = vld [vmem:[#allocation8 + $0x5a0] sm:$0xff]
    %v2297 = vld [vmem:[#allocation8 + $0x5a8] sm:$0xff]
    %v2298 = vld [vmem:[#allocation8 + $0x5b0] sm:$0xff]
    %v2299 = vld [vmem:[#allocation8 + $0x5b8] sm:$0xff]
    %v2300 = vld [vmem:[#allocation8 + $0x5c0] sm:$0xff]
    %v2301 = vld [vmem:[#allocation8 + $0x5c8] sm:$0xff]
    %v2302 = vld [vmem:[#allocation8 + $0x5d0] sm:$0xff]
    %v2303 = vld [vmem:[#allocation8 + $0x5d8] sm:$0xff]
    %v2304 = vld [vmem:[#allocation8 + $0x5e0] sm:$0xff]
    %v2305 = vld [vmem:[#allocation8 + $0x5e8] sm:$0xff]
    %v2306 = vld [vmem:[#allocation8 + $0x5f0] sm:$0xff]
    %v2307 = vld [vmem:[#allocation8 + $0x5f8] sm:$0xff]
    %v2308 = vld [vmem:[#allocation8 + $0x600] sm:$0xff]
    %v2309 = vld [vmem:[#allocation8 + $0x608] sm:$0xff]
    %v2310 = vld [vmem:[#allocation8 + $0x610] sm:$0xff]
    %v2311 = vld [vmem:[#allocation8 + $0x618] sm:$0xff]
    %v2312 = vld [vmem:[#allocation8 + $0x620] sm:$0xff]
    %v2313 = vld [vmem:[#allocation8 + $0x628] sm:$0xff]
    %v2314 = vld [vmem:[#allocation8 + $0x630] sm:$0xff]
    %v2315 = vld [vmem:[#allocation8 + $0x638] sm:$0xff]
    %v2316 = vld [vmem:[#allocation8 + $0x640] sm:$0xff]
    %v2317 = vld [vmem:[#allocation8 + $0x648] sm:$0xff]
    %v2318 = vld [vmem:[#allocation8 + $0x650] sm:$0xff]
    %v2319 = vld [vmem:[#allocation8 + $0x658] sm:$0xff]
    %v2320 = vld [vmem:[#allocation8 + $0x660] sm:$0xff]
    %v2321 = vld [vmem:[#allocation8 + $0x668] sm:$0xff]
    %v2322 = vld [vmem:[#allocation8 + $0x670] sm:$0xff]
    %v2323 = vld [vmem:[#allocation8 + $0x678] sm:$0xff]
    %v2324 = vld [vmem:[#allocation8 + $0x680] sm:$0xff]
    %v2325 = vld [vmem:[#allocation8 + $0x688] sm:$0xff]
    %v2326 = vld [vmem:[#allocation8 + $0x690] sm:$0xff]
    %v2327 = vld [vmem:[#allocation8 + $0x698] sm:$0xff]
    %v2328 = vld [vmem:[#allocation8 + $0x6a0] sm:$0xff]
    %v2329 = vld [vmem:[#allocation8 + $0x6a8] sm:$0xff]
    %v2330 = vld [vmem:[#allocation8 + $0x6b0] sm:$0xff]
    %v2331 = vld [vmem:[#allocation8 + $0x6b8] sm:$0xff]
    %v2332 = vld [vmem:[#allocation8 + $0x6c0] sm:$0xff]
    %v2333 = vld [vmem:[#allocation8 + $0x6c8] sm:$0xff]
    %v2334 = vld [vmem:[#allocation8 + $0x6d0] sm:$0xff]
    %v2335 = vld [vmem:[#allocation8 + $0x6d8] sm:$0xff]
    %v2336 = vld [vmem:[#allocation8 + $0x6e0] sm:$0xff]
    %v2337 = vld [vmem:[#allocation8 + $0x6e8] sm:$0xff]
    %v2338 = vld [vmem:[#allocation8 + $0x6f0] sm:$0xff]
    %v2339 = vld [vmem:[#allocation8 + $0x6f8] sm:$0xff]
    %v2340 = vld [vmem:[#allocation8 + $0x700] sm:$0xff]
    %v2341 = vld [vmem:[#allocation8 + $0x708] sm:$0xff]
    %v2342 = vld [vmem:[#allocation8 + $0x710] sm:$0xff]
    %v2343 = vld [vmem:[#allocation8 + $0x718] sm:$0xff]
    %v2344 = vld [vmem:[#allocation8 + $0x720] sm:$0xff]
    %v2345 = vld [vmem:[#allocation8 + $0x728] sm:$0xff]
    %v2346 = vld [vmem:[#allocation8 + $0x730] sm:$0xff]
    %v2347 = vld [vmem:[#allocation8 + $0x738] sm:$0xff]
    %v2348 = vld [vmem:[#allocation8 + $0x740] sm:$0xff]
    %v2349 = vld [vmem:[#allocation8 + $0x748] sm:$0xff]
    %v2350 = vld [vmem:[#allocation8 + $0x750] sm:$0xff]
    %v2351 = vld [vmem:[#allocation8 + $0x758] sm:$0xff]
    %v2352 = vld [vmem:[#allocation8 + $0x760] sm:$0xff]
    %v2353 = vld [vmem:[#allocation8 + $0x768] sm:$0xff]
    %v2354 = vld [vmem:[#allocation8 + $0x770] sm:$0xff]
    %v2355 = vld [vmem:[#allocation8 + $0x778] sm:$0xff]
    %v2356 = vld [vmem:[#allocation8 + $0x780] sm:$0xff]
    %v2357 = vld [vmem:[#allocation8 + $0x788] sm:$0xff]
    %v2358 = vld [vmem:[#allocation8 + $0x790] sm:$0xff]
    %v2359 = vld [vmem:[#allocation8 + $0x798] sm:$0xff]
    %v2360 = vld [vmem:[#allocation8 + $0x7a0] sm:$0xff]
    %v2361 = vld [vmem:[#allocation8 + $0x7a8] sm:$0xff]
    %v2362 = vld [vmem:[#allocation8 + $0x7b0] sm:$0xff]
    %v2363 = vld [vmem:[#allocation8 + $0x7b8] sm:$0xff]
    %v2364 = vld [vmem:[#allocation8 + $0x7c0] sm:$0xff]
    %v2365 = vld [vmem:[#allocation8 + $0x7c8] sm:$0xff]
    %v2366 = vld [vmem:[#allocation8 + $0x7d0] sm:$0xff]
    %v2367 = vld [vmem:[#allocation8 + $0x7d8] sm:$0xff]
    %v2368 = vld [vmem:[#allocation8 + $0x7e0] sm:$0xff]
    %v2369 = vld [vmem:[#allocation8 + $0x7e8] sm:$0xff]
    %v2370 = vld [vmem:[#allocation8 + $0x7f0] sm:$0xff]
    %v2371 = vld [vmem:[#allocation8 + $0x7f8] sm:$0xff]
    %v2372 = vld [vmem:[#allocation10] sm:$0xf]
    %v2374 = vperm.slane %v2372, 0
    %v2375 = vperm.slane %v2372, 1
    %v2376 = vperm.slane %v2372, 2
    %v2377 = vperm.slane %v2372, 3
    %v2638 = vunpack.c.l.b16 %v2116
    %v2639 = vunpack.c.h.b16 %v2116
    %v2640 = vunpack.c.l.b16 %v2117
    %v2641 = vunpack.c.h.b16 %v2117
    %v2642 = vunpack.c.l.b16 %v2118
    %v2643 = vunpack.c.h.b16 %v2118
    %v2644 = vunpack.c.l.b16 %v2119
    %v2645 = vunpack.c.h.b16 %v2119
    %v2646 = vunpack.c.l.b16 %v2120
    %v2647 = vunpack.c.h.b16 %v2120
    %v2648 = vunpack.c.l.b16 %v2121
    %v2649 = vunpack.c.h.b16 %v2121
    %v2650 = vunpack.c.l.b16 %v2122
    %v2651 = vunpack.c.h.b16 %v2122
    %v2652 = vunpack.c.l.b16 %v2123
    %v2653 = vunpack.c.h.b16 %v2123
    %v2654 = vunpack.c.l.b16 %v2124
    %v2655 = vunpack.c.h.b16 %v2124
    %v2656 = vunpack.c.l.b16 %v2125
    %v2657 = vunpack.c.h.b16 %v2125
    %v2658 = vunpack.c.l.b16 %v2126
    %v2659 = vunpack.c.h.b16 %v2126
    %v2660 = vunpack.c.l.b16 %v2127
    %v2661 = vunpack.c.h.b16 %v2127
    %v2662 = vunpack.c.l.b16 %v2128
    %v2663 = vunpack.c.h.b16 %v2128
    %v2664 = vunpack.c.l.b16 %v2129
    %v2665 = vunpack.c.h.b16 %v2129
    %v2666 = vunpack.c.l.b16 %v2130
    %v2667 = vunpack.c.h.b16 %v2130
    %v2668 = vunpack.c.l.b16 %v2131
    %v2669 = vunpack.c.h.b16 %v2131
    %v2670 = vunpack.c.l.b16 %v2132
    %v2671 = vunpack.c.h.b16 %v2132
    %v2672 = vunpack.c.l.b16 %v2133
    %v2673 = vunpack.c.h.b16 %v2133
    %v2674 = vunpack.c.l.b16 %v2134
    %v2675 = vunpack.c.h.b16 %v2134
    %v2676 = vunpack.c.l.b16 %v2135
    %v2677 = vunpack.c.h.b16 %v2135
    %v2678 = vunpack.c.l.b16 %v2136
    %v2679 = vunpack.c.h.b16 %v2136
    %v2680 = vunpack.c.l.b16 %v2137
    %v2681 = vunpack.c.h.b16 %v2137
    %v2682 = vunpack.c.l.b16 %v2138
    %v2683 = vunpack.c.h.b16 %v2138
    %v2684 = vunpack.c.l.b16 %v2139
    %v2685 = vunpack.c.h.b16 %v2139
    %v2686 = vunpack.c.l.b16 %v2140
    %v2687 = vunpack.c.h.b16 %v2140
    %v2688 = vunpack.c.l.b16 %v2141
    %v2689 = vunpack.c.h.b16 %v2141
    %v2690 = vunpack.c.l.b16 %v2142
    %v2691 = vunpack.c.h.b16 %v2142
    %v2692 = vunpack.c.l.b16 %v2143
    %v2693 = vunpack.c.h.b16 %v2143
    %v2694 = vunpack.c.l.b16 %v2144
    %v2695 = vunpack.c.h.b16 %v2144
    %v2696 = vunpack.c.l.b16 %v2145
    %v2697 = vunpack.c.h.b16 %v2145
    %v2698 = vunpack.c.l.b16 %v2146
    %v2699 = vunpack.c.h.b16 %v2146
    %v2700 = vunpack.c.l.b16 %v2147
    %v2701 = vunpack.c.h.b16 %v2147
    %v2702 = vunpack.c.l.b16 %v2148
    %v2703 = vunpack.c.h.b16 %v2148
    %v2704 = vunpack.c.l.b16 %v2149
    %v2705 = vunpack.c.h.b16 %v2149
    %v2706 = vunpack.c.l.b16 %v2150
    %v2707 = vunpack.c.h.b16 %v2150
    %v2708 = vunpack.c.l.b16 %v2151
    %v2709 = vunpack.c.h.b16 %v2151
    %v2710 = vunpack.c.l.b16 %v2152
    %v2711 = vunpack.c.h.b16 %v2152
    %v2712 = vunpack.c.l.b16 %v2153
    %v2713 = vunpack.c.h.b16 %v2153
    %v2714 = vunpack.c.l.b16 %v2154
    %v2715 = vunpack.c.h.b16 %v2154
    %v2716 = vunpack.c.l.b16 %v2155
    %v2717 = vunpack.c.h.b16 %v2155
    %v2718 = vunpack.c.l.b16 %v2156
    %v2719 = vunpack.c.h.b16 %v2156
    %v2720 = vunpack.c.l.b16 %v2157
    %v2721 = vunpack.c.h.b16 %v2157
    %v2722 = vunpack.c.l.b16 %v2158
    %v2723 = vunpack.c.h.b16 %v2158
    %v2724 = vunpack.c.l.b16 %v2159
    %v2725 = vunpack.c.h.b16 %v2159
    %v2726 = vunpack.c.l.b16 %v2160
    %v2727 = vunpack.c.h.b16 %v2160
    %v2728 = vunpack.c.l.b16 %v2161
    %v2729 = vunpack.c.h.b16 %v2161
    %v2730 = vunpack.c.l.b16 %v2162
    %v2731 = vunpack.c.h.b16 %v2162
    %v2732 = vunpack.c.l.b16 %v2163
    %v2733 = vunpack.c.h.b16 %v2163
    %v2734 = vunpack.c.l.b16 %v2164
    %v2735 = vunpack.c.h.b16 %v2164
    %v2736 = vunpack.c.l.b16 %v2165
    %v2737 = vunpack.c.h.b16 %v2165
    %v2738 = vunpack.c.l.b16 %v2166
    %v2739 = vunpack.c.h.b16 %v2166
    %v2740 = vunpack.c.l.b16 %v2167
    %v2741 = vunpack.c.h.b16 %v2167
    %v2742 = vunpack.c.l.b16 %v2168
    %v2743 = vunpack.c.h.b16 %v2168
    %v2744 = vunpack.c.l.b16 %v2169
    %v2745 = vunpack.c.h.b16 %v2169
    %v2746 = vunpack.c.l.b16 %v2170
    %v2747 = vunpack.c.h.b16 %v2170
    %v2748 = vunpack.c.l.b16 %v2171
    %v2749 = vunpack.c.h.b16 %v2171
    %v2750 = vunpack.c.l.b16 %v2172
    %v2751 = vunpack.c.h.b16 %v2172
    %v2752 = vunpack.c.l.b16 %v2173
    %v2753 = vunpack.c.h.b16 %v2173
    %v2754 = vunpack.c.l.b16 %v2174
    %v2755 = vunpack.c.h.b16 %v2174
    %v2756 = vunpack.c.l.b16 %v2175
    %v2757 = vunpack.c.h.b16 %v2175
    %v2758 = vunpack.c.l.b16 %v2176
    %v2759 = vunpack.c.h.b16 %v2176
    %v2760 = vunpack.c.l.b16 %v2177
    %v2761 = vunpack.c.h.b16 %v2177
    %v2762 = vunpack.c.l.b16 %v2178
    %v2763 = vunpack.c.h.b16 %v2178
    %v2764 = vunpack.c.l.b16 %v2179
    %v2765 = vunpack.c.h.b16 %v2179
    %v2766 = vunpack.c.l.b16 %v2180
    %v2767 = vunpack.c.h.b16 %v2180
    %v2768 = vunpack.c.l.b16 %v2181
    %v2769 = vunpack.c.h.b16 %v2181
    %v2770 = vunpack.c.l.b16 %v2182
    %v2771 = vunpack.c.h.b16 %v2182
    %v2772 = vunpack.c.l.b16 %v2183
    %v2773 = vunpack.c.h.b16 %v2183
    %v2774 = vunpack.c.l.b16 %v2184
    %v2775 = vunpack.c.h.b16 %v2184
    %v2776 = vunpack.c.l.b16 %v2185
    %v2777 = vunpack.c.h.b16 %v2185
    %v2778 = vunpack.c.l.b16 %v2186
    %v2779 = vunpack.c.h.b16 %v2186
    %v2780 = vunpack.c.l.b16 %v2187
    %v2781 = vunpack.c.h.b16 %v2187
    %v2782 = vunpack.c.l.b16 %v2188
    %v2783 = vunpack.c.h.b16 %v2188
    %v2784 = vunpack.c.l.b16 %v2189
    %v2785 = vunpack.c.h.b16 %v2189
    %v2786 = vunpack.c.l.b16 %v2190
    %v2787 = vunpack.c.h.b16 %v2190
    %v2788 = vunpack.c.l.b16 %v2191
    %v2789 = vunpack.c.h.b16 %v2191
    %v2790 = vunpack.c.l.b16 %v2192
    %v2791 = vunpack.c.h.b16 %v2192
    %v2792 = vunpack.c.l.b16 %v2193
    %v2793 = vunpack.c.h.b16 %v2193
    %v2794 = vunpack.c.l.b16 %v2194
    %v2795 = vunpack.c.h.b16 %v2194
    %v2796 = vunpack.c.l.b16 %v2195
    %v2797 = vunpack.c.h.b16 %v2195
    %v2798 = vunpack.c.l.b16 %v2196
    %v2799 = vunpack.c.h.b16 %v2196
    %v2800 = vunpack.c.l.b16 %v2197
    %v2801 = vunpack.c.h.b16 %v2197
    %v2802 = vunpack.c.l.b16 %v2198
    %v2803 = vunpack.c.h.b16 %v2198
    %v2804 = vunpack.c.l.b16 %v2199
    %v2805 = vunpack.c.h.b16 %v2199
    %v2806 = vunpack.c.l.b16 %v2200
    %v2807 = vunpack.c.h.b16 %v2200
    %v2808 = vunpack.c.l.b16 %v2201
    %v2809 = vunpack.c.h.b16 %v2201
    %v2810 = vunpack.c.l.b16 %v2202
    %v2811 = vunpack.c.h.b16 %v2202
    %v2812 = vunpack.c.l.b16 %v2203
    %v2813 = vunpack.c.h.b16 %v2203
    %v2814 = vunpack.c.l.b16 %v2204
    %v2815 = vunpack.c.h.b16 %v2204
    %v2816 = vunpack.c.l.b16 %v2205
    %v2817 = vunpack.c.h.b16 %v2205
    %v2818 = vunpack.c.l.b16 %v2206
    %v2819 = vunpack.c.h.b16 %v2206
    %v2820 = vunpack.c.l.b16 %v2207
    %v2821 = vunpack.c.h.b16 %v2207
    %v2822 = vunpack.c.l.b16 %v2208
    %v2823 = vunpack.c.h.b16 %v2208
    %v2824 = vunpack.c.l.b16 %v2209
    %v2825 = vunpack.c.h.b16 %v2209
    %v2826 = vunpack.c.l.b16 %v2210
    %v2827 = vunpack.c.h.b16 %v2210
    %v2828 = vunpack.c.l.b16 %v2211
    %v2829 = vunpack.c.h.b16 %v2211
    %v2830 = vunpack.c.l.b16 %v2212
    %v2831 = vunpack.c.h.b16 %v2212
    %v2832 = vunpack.c.l.b16 %v2213
    %v2833 = vunpack.c.h.b16 %v2213
    %v2834 = vunpack.c.l.b16 %v2214
    %v2835 = vunpack.c.h.b16 %v2214
    %v2836 = vunpack.c.l.b16 %v2215
    %v2837 = vunpack.c.h.b16 %v2215
    %v2838 = vunpack.c.l.b16 %v2216
    %v2839 = vunpack.c.h.b16 %v2216
    %v2840 = vunpack.c.l.b16 %v2217
    %v2841 = vunpack.c.h.b16 %v2217
    %v2842 = vunpack.c.l.b16 %v2218
    %v2843 = vunpack.c.h.b16 %v2218
    %v2844 = vunpack.c.l.b16 %v2219
    %v2845 = vunpack.c.h.b16 %v2219
    %v2846 = vunpack.c.l.b16 %v2220
    %v2847 = vunpack.c.h.b16 %v2220
    %v2848 = vunpack.c.l.b16 %v2221
    %v2849 = vunpack.c.h.b16 %v2221
    %v2850 = vunpack.c.l.b16 %v2222
    %v2851 = vunpack.c.h.b16 %v2222
    %v2852 = vunpack.c.l.b16 %v2223
    %v2853 = vunpack.c.h.b16 %v2223
    %v2854 = vunpack.c.l.b16 %v2224
    %v2855 = vunpack.c.h.b16 %v2224
    %v2856 = vunpack.c.l.b16 %v2225
    %v2857 = vunpack.c.h.b16 %v2225
    %v2858 = vunpack.c.l.b16 %v2226
    %v2859 = vunpack.c.h.b16 %v2226
    %v2860 = vunpack.c.l.b16 %v2227
    %v2861 = vunpack.c.h.b16 %v2227
    %v2862 = vunpack.c.l.b16 %v2228
    %v2863 = vunpack.c.h.b16 %v2228
    %v2864 = vunpack.c.l.b16 %v2229
    %v2865 = vunpack.c.h.b16 %v2229
    %v2866 = vunpack.c.l.b16 %v2230
    %v2867 = vunpack.c.h.b16 %v2230
    %v2868 = vunpack.c.l.b16 %v2231
    %v2869 = vunpack.c.h.b16 %v2231
    %v2870 = vunpack.c.l.b16 %v2232
    %v2871 = vunpack.c.h.b16 %v2232
    %v2872 = vunpack.c.l.b16 %v2233
    %v2873 = vunpack.c.h.b16 %v2233
    %v2874 = vunpack.c.l.b16 %v2234
    %v2875 = vunpack.c.h.b16 %v2234
    %v2876 = vunpack.c.l.b16 %v2235
    %v2877 = vunpack.c.h.b16 %v2235
    %v2878 = vunpack.c.l.b16 %v2236
    %v2879 = vunpack.c.h.b16 %v2236
    %v2880 = vunpack.c.l.b16 %v2237
    %v2881 = vunpack.c.h.b16 %v2237
    %v2882 = vunpack.c.l.b16 %v2238
    %v2883 = vunpack.c.h.b16 %v2238
    %v2884 = vunpack.c.l.b16 %v2239
    %v2885 = vunpack.c.h.b16 %v2239
    %v2886 = vunpack.c.l.b16 %v2240
    %v2887 = vunpack.c.h.b16 %v2240
    %v2888 = vunpack.c.l.b16 %v2241
    %v2889 = vunpack.c.h.b16 %v2241
    %v2890 = vunpack.c.l.b16 %v2242
    %v2891 = vunpack.c.h.b16 %v2242
    %v2892 = vunpack.c.l.b16 %v2243
    %v2893 = vunpack.c.h.b16 %v2243
    %v2894 = vunpack.c.l.b16 %v2244
    %v2895 = vunpack.c.h.b16 %v2244
    %v2896 = vunpack.c.l.b16 %v2245
    %v2897 = vunpack.c.h.b16 %v2245
    %v2898 = vunpack.c.l.b16 %v2246
    %v2899 = vunpack.c.h.b16 %v2246
    %v2900 = vunpack.c.l.b16 %v2247
    %v2901 = vunpack.c.h.b16 %v2247
    %v2902 = vunpack.c.l.b16 %v2248
    %v2903 = vunpack.c.h.b16 %v2248
    %v2904 = vunpack.c.l.b16 %v2249
    %v2905 = vunpack.c.h.b16 %v2249
    %v2906 = vunpack.c.l.b16 %v2250
    %v2907 = vunpack.c.h.b16 %v2250
    %v2908 = vunpack.c.l.b16 %v2251
    %v2909 = vunpack.c.h.b16 %v2251
    %v2910 = vunpack.c.l.b16 %v2252
    %v2911 = vunpack.c.h.b16 %v2252
    %v2912 = vunpack.c.l.b16 %v2253
    %v2913 = vunpack.c.h.b16 %v2253
    %v2914 = vunpack.c.l.b16 %v2254
    %v2915 = vunpack.c.h.b16 %v2254
    %v2916 = vunpack.c.l.b16 %v2255
    %v2917 = vunpack.c.h.b16 %v2255
    %v2918 = vunpack.c.l.b16 %v2256
    %v2919 = vunpack.c.h.b16 %v2256
    %v2920 = vunpack.c.l.b16 %v2257
    %v2921 = vunpack.c.h.b16 %v2257
    %v2922 = vunpack.c.l.b16 %v2258
    %v2923 = vunpack.c.h.b16 %v2258
    %v2924 = vunpack.c.l.b16 %v2259
    %v2925 = vunpack.c.h.b16 %v2259
    %v2926 = vunpack.c.l.b16 %v2260
    %v2927 = vunpack.c.h.b16 %v2260
    %v2928 = vunpack.c.l.b16 %v2261
    %v2929 = vunpack.c.h.b16 %v2261
    %v2930 = vunpack.c.l.b16 %v2262
    %v2931 = vunpack.c.h.b16 %v2262
    %v2932 = vunpack.c.l.b16 %v2263
    %v2933 = vunpack.c.h.b16 %v2263
    %v2934 = vunpack.c.l.b16 %v2264
    %v2935 = vunpack.c.h.b16 %v2264
    %v2936 = vunpack.c.l.b16 %v2265
    %v2937 = vunpack.c.h.b16 %v2265
    %v2938 = vunpack.c.l.b16 %v2266
    %v2939 = vunpack.c.h.b16 %v2266
    %v2940 = vunpack.c.l.b16 %v2267
    %v2941 = vunpack.c.h.b16 %v2267
    %v2942 = vunpack.c.l.b16 %v2268
    %v2943 = vunpack.c.h.b16 %v2268
    %v2944 = vunpack.c.l.b16 %v2269
    %v2945 = vunpack.c.h.b16 %v2269
    %v2946 = vunpack.c.l.b16 %v2270
    %v2947 = vunpack.c.h.b16 %v2270
    %v2948 = vunpack.c.l.b16 %v2271
    %v2949 = vunpack.c.h.b16 %v2271
    %v2950 = vunpack.c.l.b16 %v2272
    %v2951 = vunpack.c.h.b16 %v2272
    %v2952 = vunpack.c.l.b16 %v2273
    %v2953 = vunpack.c.h.b16 %v2273
    %v2954 = vunpack.c.l.b16 %v2274
    %v2955 = vunpack.c.h.b16 %v2274
    %v2956 = vunpack.c.l.b16 %v2275
    %v2957 = vunpack.c.h.b16 %v2275
    %v2958 = vunpack.c.l.b16 %v2276
    %v2959 = vunpack.c.h.b16 %v2276
    %v2960 = vunpack.c.l.b16 %v2277
    %v2961 = vunpack.c.h.b16 %v2277
    %v2962 = vunpack.c.l.b16 %v2278
    %v2963 = vunpack.c.h.b16 %v2278
    %v2964 = vunpack.c.l.b16 %v2279
    %v2965 = vunpack.c.h.b16 %v2279
    %v2966 = vunpack.c.l.b16 %v2280
    %v2967 = vunpack.c.h.b16 %v2280
    %v2968 = vunpack.c.l.b16 %v2281
    %v2969 = vunpack.c.h.b16 %v2281
    %v2970 = vunpack.c.l.b16 %v2282
    %v2971 = vunpack.c.h.b16 %v2282
    %v2972 = vunpack.c.l.b16 %v2283
    %v2973 = vunpack.c.h.b16 %v2283
    %v2974 = vunpack.c.l.b16 %v2284
    %v2975 = vunpack.c.h.b16 %v2284
    %v2976 = vunpack.c.l.b16 %v2285
    %v2977 = vunpack.c.h.b16 %v2285
    %v2978 = vunpack.c.l.b16 %v2286
    %v2979 = vunpack.c.h.b16 %v2286
    %v2980 = vunpack.c.l.b16 %v2287
    %v2981 = vunpack.c.h.b16 %v2287
    %v2982 = vunpack.c.l.b16 %v2288
    %v2983 = vunpack.c.h.b16 %v2288
    %v2984 = vunpack.c.l.b16 %v2289
    %v2985 = vunpack.c.h.b16 %v2289
    %v2986 = vunpack.c.l.b16 %v2290
    %v2987 = vunpack.c.h.b16 %v2290
    %v2988 = vunpack.c.l.b16 %v2291
    %v2989 = vunpack.c.h.b16 %v2291
    %v2990 = vunpack.c.l.b16 %v2292
    %v2991 = vunpack.c.h.b16 %v2292
    %v2992 = vunpack.c.l.b16 %v2293
    %v2993 = vunpack.c.h.b16 %v2293
    %v2994 = vunpack.c.l.b16 %v2294
    %v2995 = vunpack.c.h.b16 %v2294
    %v2996 = vunpack.c.l.b16 %v2295
    %v2997 = vunpack.c.h.b16 %v2295
    %v2998 = vunpack.c.l.b16 %v2296
    %v2999 = vunpack.c.h.b16 %v2296
    %v3000 = vunpack.c.l.b16 %v2297
    %v3001 = vunpack.c.h.b16 %v2297
    %v3002 = vunpack.c.l.b16 %v2298
    %v3003 = vunpack.c.h.b16 %v2298
    %v3004 = vunpack.c.l.b16 %v2299
    %v3005 = vunpack.c.h.b16 %v2299
    %v3006 = vunpack.c.l.b16 %v2300
    %v3007 = vunpack.c.h.b16 %v2300
    %v3008 = vunpack.c.l.b16 %v2301
    %v3009 = vunpack.c.h.b16 %v2301
    %v3010 = vunpack.c.l.b16 %v2302
    %v3011 = vunpack.c.h.b16 %v2302
    %v3012 = vunpack.c.l.b16 %v2303
    %v3013 = vunpack.c.h.b16 %v2303
    %v3014 = vunpack.c.l.b16 %v2304
    %v3015 = vunpack.c.h.b16 %v2304
    %v3016 = vunpack.c.l.b16 %v2305
    %v3017 = vunpack.c.h.b16 %v2305
    %v3018 = vunpack.c.l.b16 %v2306
    %v3019 = vunpack.c.h.b16 %v2306
    %v3020 = vunpack.c.l.b16 %v2307
    %v3021 = vunpack.c.h.b16 %v2307
    %v3022 = vunpack.c.l.b16 %v2308
    %v3023 = vunpack.c.h.b16 %v2308
    %v3024 = vunpack.c.l.b16 %v2309
    %v3025 = vunpack.c.h.b16 %v2309
    %v3026 = vunpack.c.l.b16 %v2310
    %v3027 = vunpack.c.h.b16 %v2310
    %v3028 = vunpack.c.l.b16 %v2311
    %v3029 = vunpack.c.h.b16 %v2311
    %v3030 = vunpack.c.l.b16 %v2312
    %v3031 = vunpack.c.h.b16 %v2312
    %v3032 = vunpack.c.l.b16 %v2313
    %v3033 = vunpack.c.h.b16 %v2313
    %v3034 = vunpack.c.l.b16 %v2314
    %v3035 = vunpack.c.h.b16 %v2314
    %v3036 = vunpack.c.l.b16 %v2315
    %v3037 = vunpack.c.h.b16 %v2315
    %v3038 = vunpack.c.l.b16 %v2316
    %v3039 = vunpack.c.h.b16 %v2316
    %v3040 = vunpack.c.l.b16 %v2317
    %v3041 = vunpack.c.h.b16 %v2317
    %v3042 = vunpack.c.l.b16 %v2318
    %v3043 = vunpack.c.h.b16 %v2318
    %v3044 = vunpack.c.l.b16 %v2319
    %v3045 = vunpack.c.h.b16 %v2319
    %v3046 = vunpack.c.l.b16 %v2320
    %v3047 = vunpack.c.h.b16 %v2320
    %v3048 = vunpack.c.l.b16 %v2321
    %v3049 = vunpack.c.h.b16 %v2321
    %v3050 = vunpack.c.l.b16 %v2322
    %v3051 = vunpack.c.h.b16 %v2322
    %v3052 = vunpack.c.l.b16 %v2323
    %v3053 = vunpack.c.h.b16 %v2323
    %v3054 = vunpack.c.l.b16 %v2324
    %v3055 = vunpack.c.h.b16 %v2324
    %v3056 = vunpack.c.l.b16 %v2325
    %v3057 = vunpack.c.h.b16 %v2325
    %v3058 = vunpack.c.l.b16 %v2326
    %v3059 = vunpack.c.h.b16 %v2326
    %v3060 = vunpack.c.l.b16 %v2327
    %v3061 = vunpack.c.h.b16 %v2327
    %v3062 = vunpack.c.l.b16 %v2328
    %v3063 = vunpack.c.h.b16 %v2328
    %v3064 = vunpack.c.l.b16 %v2329
    %v3065 = vunpack.c.h.b16 %v2329
    %v3066 = vunpack.c.l.b16 %v2330
    %v3067 = vunpack.c.h.b16 %v2330
    %v3068 = vunpack.c.l.b16 %v2331
    %v3069 = vunpack.c.h.b16 %v2331
    %v3070 = vunpack.c.l.b16 %v2332
    %v3071 = vunpack.c.h.b16 %v2332
    %v3072 = vunpack.c.l.b16 %v2333
    %v3073 = vunpack.c.h.b16 %v2333
    %v3074 = vunpack.c.l.b16 %v2334
    %v3075 = vunpack.c.h.b16 %v2334
    %v3076 = vunpack.c.l.b16 %v2335
    %v3077 = vunpack.c.h.b16 %v2335
    %v3078 = vunpack.c.l.b16 %v2336
    %v3079 = vunpack.c.h.b16 %v2336
    %v3080 = vunpack.c.l.b16 %v2337
    %v3081 = vunpack.c.h.b16 %v2337
    %v3082 = vunpack.c.l.b16 %v2338
    %v3083 = vunpack.c.h.b16 %v2338
    %v3084 = vunpack.c.l.b16 %v2339
    %v3085 = vunpack.c.h.b16 %v2339
    %v3086 = vunpack.c.l.b16 %v2340
    %v3087 = vunpack.c.h.b16 %v2340
    %v3088 = vunpack.c.l.b16 %v2341
    %v3089 = vunpack.c.h.b16 %v2341
    %v3090 = vunpack.c.l.b16 %v2342
    %v3091 = vunpack.c.h.b16 %v2342
    %v3092 = vunpack.c.l.b16 %v2343
    %v3093 = vunpack.c.h.b16 %v2343
    %v3094 = vunpack.c.l.b16 %v2344
    %v3095 = vunpack.c.h.b16 %v2344
    %v3096 = vunpack.c.l.b16 %v2345
    %v3097 = vunpack.c.h.b16 %v2345
    %v3098 = vunpack.c.l.b16 %v2346
    %v3099 = vunpack.c.h.b16 %v2346
    %v3100 = vunpack.c.l.b16 %v2347
    %v3101 = vunpack.c.h.b16 %v2347
    %v3102 = vunpack.c.l.b16 %v2348
    %v3103 = vunpack.c.h.b16 %v2348
    %v3104 = vunpack.c.l.b16 %v2349
    %v3105 = vunpack.c.h.b16 %v2349
    %v3106 = vunpack.c.l.b16 %v2350
    %v3107 = vunpack.c.h.b16 %v2350
    %v3108 = vunpack.c.l.b16 %v2351
    %v3109 = vunpack.c.h.b16 %v2351
    %v3110 = vunpack.c.l.b16 %v2352
    %v3111 = vunpack.c.h.b16 %v2352
    %v3112 = vunpack.c.l.b16 %v2353
    %v3113 = vunpack.c.h.b16 %v2353
    %v3114 = vunpack.c.l.b16 %v2354
    %v3115 = vunpack.c.h.b16 %v2354
    %v3116 = vunpack.c.l.b16 %v2355
    %v3117 = vunpack.c.h.b16 %v2355
    %v3118 = vunpack.c.l.b16 %v2356
    %v3119 = vunpack.c.h.b16 %v2356
    %v3120 = vunpack.c.l.b16 %v2357
    %v3121 = vunpack.c.h.b16 %v2357
    %v3122 = vunpack.c.l.b16 %v2358
    %v3123 = vunpack.c.h.b16 %v2358
    %v3124 = vunpack.c.l.b16 %v2359
    %v3125 = vunpack.c.h.b16 %v2359
    %v3126 = vunpack.c.l.b16 %v2360
    %v3127 = vunpack.c.h.b16 %v2360
    %v3128 = vunpack.c.l.b16 %v2361
    %v3129 = vunpack.c.h.b16 %v2361
    %v3130 = vunpack.c.l.b16 %v2362
    %v3131 = vunpack.c.h.b16 %v2362
    %v3132 = vunpack.c.l.b16 %v2363
    %v3133 = vunpack.c.h.b16 %v2363
    %v3134 = vunpack.c.l.b16 %v2364
    %v3135 = vunpack.c.h.b16 %v2364
    %v3136 = vunpack.c.l.b16 %v2365
    %v3137 = vunpack.c.h.b16 %v2365
    %v3138 = vunpack.c.l.b16 %v2366
    %v3139 = vunpack.c.h.b16 %v2366
    %v3140 = vunpack.c.l.b16 %v2367
    %v3141 = vunpack.c.h.b16 %v2367
    %v3142 = vunpack.c.l.b16 %v2368
    %v3143 = vunpack.c.h.b16 %v2368
    %v3144 = vunpack.c.l.b16 %v2369
    %v3145 = vunpack.c.h.b16 %v2369
    %v3146 = vunpack.c.l.b16 %v2370
    %v3147 = vunpack.c.h.b16 %v2370
    %v3148 = vunpack.c.l.b16 %v2371
    %v3149 = vunpack.c.h.b16 %v2371
    %v3150 = vpack.c.b16 %v2642, %v2638
    %v3151 = vpack.c.b16 %v2643, %v2639
    %v3152 = vpack.c.b16 %v2644, %v2640
    %v3153 = vpack.c.b16 %v2645, %v2641
    %v3154 = vpack.c.b16 %v2650, %v2646
    %v3155 = vpack.c.b16 %v2651, %v2647
    %v3156 = vpack.c.b16 %v2652, %v2648
    %v3157 = vpack.c.b16 %v2653, %v2649
    %v3158 = vpack.c.b16 %v2658, %v2654
    %v3159 = vpack.c.b16 %v2659, %v2655
    %v3160 = vpack.c.b16 %v2660, %v2656
    %v3161 = vpack.c.b16 %v2661, %v2657
    %v3162 = vpack.c.b16 %v2666, %v2662
    %v3163 = vpack.c.b16 %v2667, %v2663
    %v3164 = vpack.c.b16 %v2668, %v2664
    %v3165 = vpack.c.b16 %v2669, %v2665
    %v3166 = vpack.c.b16 %v2674, %v2670
    %v3167 = vpack.c.b16 %v2675, %v2671
    %v3168 = vpack.c.b16 %v2676, %v2672
    %v3169 = vpack.c.b16 %v2677, %v2673
    %v3170 = vpack.c.b16 %v2682, %v2678
    %v3171 = vpack.c.b16 %v2683, %v2679
    %v3172 = vpack.c.b16 %v2684, %v2680
    %v3173 = vpack.c.b16 %v2685, %v2681
    %v3174 = vpack.c.b16 %v2690, %v2686
    %v3175 = vpack.c.b16 %v2691, %v2687
    %v3176 = vpack.c.b16 %v2692, %v2688
    %v3177 = vpack.c.b16 %v2693, %v2689
    %v3178 = vpack.c.b16 %v2698, %v2694
    %v3179 = vpack.c.b16 %v2699, %v2695
    %v3180 = vpack.c.b16 %v2700, %v2696
    %v3181 = vpack.c.b16 %v2701, %v2697
    %v3182 = vpack.c.b16 %v2706, %v2702
    %v3183 = vpack.c.b16 %v2707, %v2703
    %v3184 = vpack.c.b16 %v2708, %v2704
    %v3185 = vpack.c.b16 %v2709, %v2705
    %v3186 = vpack.c.b16 %v2714, %v2710
    %v3187 = vpack.c.b16 %v2715, %v2711
    %v3188 = vpack.c.b16 %v2716, %v2712
    %v3189 = vpack.c.b16 %v2717, %v2713
    %v3190 = vpack.c.b16 %v2722, %v2718
    %v3191 = vpack.c.b16 %v2723, %v2719
    %v3192 = vpack.c.b16 %v2724, %v2720
    %v3193 = vpack.c.b16 %v2725, %v2721
    %v3194 = vpack.c.b16 %v2730, %v2726
    %v3195 = vpack.c.b16 %v2731, %v2727
    %v3196 = vpack.c.b16 %v2732, %v2728
    %v3197 = vpack.c.b16 %v2733, %v2729
    %v3198 = vpack.c.b16 %v2738, %v2734
    %v3199 = vpack.c.b16 %v2739, %v2735
    %v3200 = vpack.c.b16 %v2740, %v2736
    %v3201 = vpack.c.b16 %v2741, %v2737
    %v3202 = vpack.c.b16 %v2746, %v2742
    %v3203 = vpack.c.b16 %v2747, %v2743
    %v3204 = vpack.c.b16 %v2748, %v2744
    %v3205 = vpack.c.b16 %v2749, %v2745
    %v3206 = vpack.c.b16 %v2754, %v2750
    %v3207 = vpack.c.b16 %v2755, %v2751
    %v3208 = vpack.c.b16 %v2756, %v2752
    %v3209 = vpack.c.b16 %v2757, %v2753
    %v3210 = vpack.c.b16 %v2762, %v2758
    %v3211 = vpack.c.b16 %v2763, %v2759
    %v3212 = vpack.c.b16 %v2764, %v2760
    %v3213 = vpack.c.b16 %v2765, %v2761
    %v3214 = vpack.c.b16 %v2770, %v2766
    %v3215 = vpack.c.b16 %v2771, %v2767
    %v3216 = vpack.c.b16 %v2772, %v2768
    %v3217 = vpack.c.b16 %v2773, %v2769
    %v3218 = vpack.c.b16 %v2778, %v2774
    %v3219 = vpack.c.b16 %v2779, %v2775
    %v3220 = vpack.c.b16 %v2780, %v2776
    %v3221 = vpack.c.b16 %v2781, %v2777
    %v3222 = vpack.c.b16 %v2786, %v2782
    %v3223 = vpack.c.b16 %v2787, %v2783
    %v3224 = vpack.c.b16 %v2788, %v2784
    %v3225 = vpack.c.b16 %v2789, %v2785
    %v3226 = vpack.c.b16 %v2794, %v2790
    %v3227 = vpack.c.b16 %v2795, %v2791
    %v3228 = vpack.c.b16 %v2796, %v2792
    %v3229 = vpack.c.b16 %v2797, %v2793
    %v3230 = vpack.c.b16 %v2802, %v2798
    %v3231 = vpack.c.b16 %v2803, %v2799
    %v3232 = vpack.c.b16 %v2804, %v2800
    %v3233 = vpack.c.b16 %v2805, %v2801
    %v3234 = vpack.c.b16 %v2810, %v2806
    %v3235 = vpack.c.b16 %v2811, %v2807
    %v3236 = vpack.c.b16 %v2812, %v2808
    %v3237 = vpack.c.b16 %v2813, %v2809
    %v3238 = vpack.c.b16 %v2818, %v2814
    %v3239 = vpack.c.b16 %v2819, %v2815
    %v3240 = vpack.c.b16 %v2820, %v2816
    %v3241 = vpack.c.b16 %v2821, %v2817
    %v3242 = vpack.c.b16 %v2826, %v2822
    %v3243 = vpack.c.b16 %v2827, %v2823
    %v3244 = vpack.c.b16 %v2828, %v2824
    %v3245 = vpack.c.b16 %v2829, %v2825
    %v3246 = vpack.c.b16 %v2834, %v2830
    %v3247 = vpack.c.b16 %v2835, %v2831
    %v3248 = vpack.c.b16 %v2836, %v2832
    %v3249 = vpack.c.b16 %v2837, %v2833
    %v3250 = vpack.c.b16 %v2842, %v2838
    %v3251 = vpack.c.b16 %v2843, %v2839
    %v3252 = vpack.c.b16 %v2844, %v2840
    %v3253 = vpack.c.b16 %v2845, %v2841
    %v3254 = vpack.c.b16 %v2850, %v2846
    %v3255 = vpack.c.b16 %v2851, %v2847
    %v3256 = vpack.c.b16 %v2852, %v2848
    %v3257 = vpack.c.b16 %v2853, %v2849
    %v3258 = vpack.c.b16 %v2858, %v2854
    %v3259 = vpack.c.b16 %v2859, %v2855
    %v3260 = vpack.c.b16 %v2860, %v2856
    %v3261 = vpack.c.b16 %v2861, %v2857
    %v3262 = vpack.c.b16 %v2866, %v2862
    %v3263 = vpack.c.b16 %v2867, %v2863
    %v3264 = vpack.c.b16 %v2868, %v2864
    %v3265 = vpack.c.b16 %v2869, %v2865
    %v3266 = vpack.c.b16 %v2874, %v2870
    %v3267 = vpack.c.b16 %v2875, %v2871
    %v3268 = vpack.c.b16 %v2876, %v2872
    %v3269 = vpack.c.b16 %v2877, %v2873
    %v3270 = vpack.c.b16 %v2882, %v2878
    %v3271 = vpack.c.b16 %v2883, %v2879
    %v3272 = vpack.c.b16 %v2884, %v2880
    %v3273 = vpack.c.b16 %v2885, %v2881
    %v3274 = vpack.c.b16 %v2890, %v2886
    %v3275 = vpack.c.b16 %v2891, %v2887
    %v3276 = vpack.c.b16 %v2892, %v2888
    %v3277 = vpack.c.b16 %v2893, %v2889
    %v3278 = vpack.c.b16 %v2898, %v2894
    %v3279 = vpack.c.b16 %v2899, %v2895
    %v3280 = vpack.c.b16 %v2900, %v2896
    %v3281 = vpack.c.b16 %v2901, %v2897
    %v3282 = vpack.c.b16 %v2906, %v2902
    %v3283 = vpack.c.b16 %v2907, %v2903
    %v3284 = vpack.c.b16 %v2908, %v2904
    %v3285 = vpack.c.b16 %v2909, %v2905
    %v3286 = vpack.c.b16 %v2914, %v2910
    %v3287 = vpack.c.b16 %v2915, %v2911
    %v3288 = vpack.c.b16 %v2916, %v2912
    %v3289 = vpack.c.b16 %v2917, %v2913
    %v3290 = vpack.c.b16 %v2922, %v2918
    %v3291 = vpack.c.b16 %v2923, %v2919
    %v3292 = vpack.c.b16 %v2924, %v2920
    %v3293 = vpack.c.b16 %v2925, %v2921
    %v3294 = vpack.c.b16 %v2930, %v2926
    %v3295 = vpack.c.b16 %v2931, %v2927
    %v3296 = vpack.c.b16 %v2932, %v2928
    %v3297 = vpack.c.b16 %v2933, %v2929
    %v3298 = vpack.c.b16 %v2938, %v2934
    %v3299 = vpack.c.b16 %v2939, %v2935
    %v3300 = vpack.c.b16 %v2940, %v2936
    %v3301 = vpack.c.b16 %v2941, %v2937
    %v3302 = vpack.c.b16 %v2946, %v2942
    %v3303 = vpack.c.b16 %v2947, %v2943
    %v3304 = vpack.c.b16 %v2948, %v2944
    %v3305 = vpack.c.b16 %v2949, %v2945
    %v3306 = vpack.c.b16 %v2954, %v2950
    %v3307 = vpack.c.b16 %v2955, %v2951
    %v3308 = vpack.c.b16 %v2956, %v2952
    %v3309 = vpack.c.b16 %v2957, %v2953
    %v3310 = vpack.c.b16 %v2962, %v2958
    %v3311 = vpack.c.b16 %v2963, %v2959
    %v3312 = vpack.c.b16 %v2964, %v2960
    %v3313 = vpack.c.b16 %v2965, %v2961
    %v3314 = vpack.c.b16 %v2970, %v2966
    %v3315 = vpack.c.b16 %v2971, %v2967
    %v3316 = vpack.c.b16 %v2972, %v2968
    %v3317 = vpack.c.b16 %v2973, %v2969
    %v3318 = vpack.c.b16 %v2978, %v2974
    %v3319 = vpack.c.b16 %v2979, %v2975
    %v3320 = vpack.c.b16 %v2980, %v2976
    %v3321 = vpack.c.b16 %v2981, %v2977
    %v3322 = vpack.c.b16 %v2986, %v2982
    %v3323 = vpack.c.b16 %v2987, %v2983
    %v3324 = vpack.c.b16 %v2988, %v2984
    %v3325 = vpack.c.b16 %v2989, %v2985
    %v3326 = vpack.c.b16 %v2994, %v2990
    %v3327 = vpack.c.b16 %v2995, %v2991
    %v3328 = vpack.c.b16 %v2996, %v2992
    %v3329 = vpack.c.b16 %v2997, %v2993
    %v3330 = vpack.c.b16 %v3002, %v2998
    %v3331 = vpack.c.b16 %v3003, %v2999
    %v3332 = vpack.c.b16 %v3004, %v3000
    %v3333 = vpack.c.b16 %v3005, %v3001
    %v3334 = vpack.c.b16 %v3010, %v3006
    %v3335 = vpack.c.b16 %v3011, %v3007
    %v3336 = vpack.c.b16 %v3012, %v3008
    %v3337 = vpack.c.b16 %v3013, %v3009
    %v3338 = vpack.c.b16 %v3018, %v3014
    %v3339 = vpack.c.b16 %v3019, %v3015
    %v3340 = vpack.c.b16 %v3020, %v3016
    %v3341 = vpack.c.b16 %v3021, %v3017
    %v3342 = vpack.c.b16 %v3026, %v3022
    %v3343 = vpack.c.b16 %v3027, %v3023
    %v3344 = vpack.c.b16 %v3028, %v3024
    %v3345 = vpack.c.b16 %v3029, %v3025
    %v3346 = vpack.c.b16 %v3034, %v3030
    %v3347 = vpack.c.b16 %v3035, %v3031
    %v3348 = vpack.c.b16 %v3036, %v3032
    %v3349 = vpack.c.b16 %v3037, %v3033
    %v3350 = vpack.c.b16 %v3042, %v3038
    %v3351 = vpack.c.b16 %v3043, %v3039
    %v3352 = vpack.c.b16 %v3044, %v3040
    %v3353 = vpack.c.b16 %v3045, %v3041
    %v3354 = vpack.c.b16 %v3050, %v3046
    %v3355 = vpack.c.b16 %v3051, %v3047
    %v3356 = vpack.c.b16 %v3052, %v3048
    %v3357 = vpack.c.b16 %v3053, %v3049
    %v3358 = vpack.c.b16 %v3058, %v3054
    %v3359 = vpack.c.b16 %v3059, %v3055
    %v3360 = vpack.c.b16 %v3060, %v3056
    %v3361 = vpack.c.b16 %v3061, %v3057
    %v3362 = vpack.c.b16 %v3066, %v3062
    %v3363 = vpack.c.b16 %v3067, %v3063
    %v3364 = vpack.c.b16 %v3068, %v3064
    %v3365 = vpack.c.b16 %v3069, %v3065
    %v3366 = vpack.c.b16 %v3074, %v3070
    %v3367 = vpack.c.b16 %v3075, %v3071
    %v3368 = vpack.c.b16 %v3076, %v3072
    %v3369 = vpack.c.b16 %v3077, %v3073
    %v3370 = vpack.c.b16 %v3082, %v3078
    %v3371 = vpack.c.b16 %v3083, %v3079
    %v3372 = vpack.c.b16 %v3084, %v3080
    %v3373 = vpack.c.b16 %v3085, %v3081
    %v3374 = vpack.c.b16 %v3090, %v3086
    %v3375 = vpack.c.b16 %v3091, %v3087
    %v3376 = vpack.c.b16 %v3092, %v3088
    %v3377 = vpack.c.b16 %v3093, %v3089
    %v3378 = vpack.c.b16 %v3098, %v3094
    %v3379 = vpack.c.b16 %v3099, %v3095
    %v3380 = vpack.c.b16 %v3100, %v3096
    %v3381 = vpack.c.b16 %v3101, %v3097
    %v3382 = vpack.c.b16 %v3106, %v3102
    %v3383 = vpack.c.b16 %v3107, %v3103
    %v3384 = vpack.c.b16 %v3108, %v3104
    %v3385 = vpack.c.b16 %v3109, %v3105
    %v3386 = vpack.c.b16 %v3114, %v3110
    %v3387 = vpack.c.b16 %v3115, %v3111
    %v3388 = vpack.c.b16 %v3116, %v3112
    %v3389 = vpack.c.b16 %v3117, %v3113
    %v3390 = vpack.c.b16 %v3122, %v3118
    %v3391 = vpack.c.b16 %v3123, %v3119
    %v3392 = vpack.c.b16 %v3124, %v3120
    %v3393 = vpack.c.b16 %v3125, %v3121
    %v3394 = vpack.c.b16 %v3130, %v3126
    %v3395 = vpack.c.b16 %v3131, %v3127
    %v3396 = vpack.c.b16 %v3132, %v3128
    %v3397 = vpack.c.b16 %v3133, %v3129
    %v3398 = vpack.c.b16 %v3138, %v3134
    %v3399 = vpack.c.b16 %v3139, %v3135
    %v3400 = vpack.c.b16 %v3140, %v3136
    %v3401 = vpack.c.b16 %v3141, %v3137
    %v3402 = vpack.c.b16 %v3146, %v3142
    %v3403 = vpack.c.b16 %v3147, %v3143
    %v3404 = vpack.c.b16 %v3148, %v3144
    %v3405 = vpack.c.b16 %v3149, %v3145
    %3662 = vmatpush.bf16.msra.mxu0 %v3178
    %3663 = vmatpush.bf16.msra.mxu0 %v3174
    %3664 = vmatpush.bf16.msra.mxu0 %v3170
    %3665 = vmatpush.bf16.msra.mxu0 %v3166
    %3666 = vmatpush.bf16.msra.mxu0 %v3162
    %3667 = vmatpush.bf16.msra.mxu0 %v3158
    %3668 = vmatpush.bf16.msra.mxu0 %v3154
    %3669 = vmatpush.bf16.msra.mxu0 %v3150
    %3670 = vmatmul.bf16.gmra.mxu0 %v2108
    %v3671 = vpop.f32.mrf.mxu0
    %v3672 = vadd.f32 %v2374, %v3671
    %v3673 = vpop.f32.mrf.mxu0
    %3674 = vdwg.mxu0
    %3675 = vmatpush.bf16.msra.mxu0 %v3210
    %3676 = vmatpush.bf16.msra.mxu0 %v3206
    %3677 = vmatpush.bf16.msra.mxu0 %v3202
    %3678 = vmatpush.bf16.msra.mxu0 %v3198
    %3679 = vmatpush.bf16.msra.mxu0 %v3194
    %3680 = vmatpush.bf16.msra.mxu0 %v3190
    %3681 = vmatpush.bf16.msra.mxu0 %v3186
    %3682 = vmatpush.bf16.msra.mxu0 %v3182
    %3683 = vmatmul.bf16.gmra.mxu0 %v2109
    %v3684 = vpop.f32.mrf.mxu0
    %v3685 = vadd.f32 %v3672, %v3684
    %v3686 = vpop.f32.mrf.mxu0
    %3687 = vdwg.mxu0
    %3688 = vmatpush.bf16.msra.mxu0 %v3242
    %3689 = vmatpush.bf16.msra.mxu0 %v3238
    %3690 = vmatpush.bf16.msra.mxu0 %v3234
    %3691 = vmatpush.bf16.msra.mxu0 %v3230
    %3692 = vmatpush.bf16.msra.mxu0 %v3226
    %3693 = vmatpush.bf16.msra.mxu0 %v3222
    %3694 = vmatpush.bf16.msra.mxu0 %v3218
    %3695 = vmatpush.bf16.msra.mxu0 %v3214
    %3696 = vmatmul.bf16.gmra.mxu0 %v2110
    %v3697 = vpop.f32.mrf.mxu0
    %v3698 = vadd.f32 %v3685, %v3697
    %v3699 = vpop.f32.mrf.mxu0
    %3700 = vdwg.mxu0
    %3701 = vmatpush.bf16.msra.mxu0 %v3274
    %3702 = vmatpush.bf16.msra.mxu0 %v3270
    %3703 = vmatpush.bf16.msra.mxu0 %v3266
    %3704 = vmatpush.bf16.msra.mxu0 %v3262
    %3705 = vmatpush.bf16.msra.mxu0 %v3258
    %3706 = vmatpush.bf16.msra.mxu0 %v3254
    %3707 = vmatpush.bf16.msra.mxu0 %v3250
    %3708 = vmatpush.bf16.msra.mxu0 %v3246
    %3709 = vmatmul.bf16.gmra.mxu0 %v2111
    %v3710 = vpop.f32.mrf.mxu0
    %v3711 = vadd.f32 %v3698, %v3710
    %v3712 = vpop.f32.mrf.mxu0
    %3713 = vdwg.mxu0
    %3714 = vmatpush.bf16.msra.mxu0 %v3306
    %3715 = vmatpush.bf16.msra.mxu0 %v3302
    %3716 = vmatpush.bf16.msra.mxu0 %v3298
    %3717 = vmatpush.bf16.msra.mxu0 %v3294
    %3718 = vmatpush.bf16.msra.mxu0 %v3290
    %3719 = vmatpush.bf16.msra.mxu0 %v3286
    %3720 = vmatpush.bf16.msra.mxu0 %v3282
    %3721 = vmatpush.bf16.msra.mxu0 %v3278
    %3722 = vmatmul.bf16.gmra.mxu0 %v2112
    %v3723 = vpop.f32.mrf.mxu0
    %v3724 = vadd.f32 %v3711, %v3723
    %v3725 = vpop.f32.mrf.mxu0
    %3726 = vdwg.mxu0
    %3727 = vmatpush.bf16.msra.mxu0 %v3338
    %3728 = vmatpush.bf16.msra.mxu0 %v3334
    %3729 = vmatpush.bf16.msra.mxu0 %v3330
    %3730 = vmatpush.bf16.msra.mxu0 %v3326
    %3731 = vmatpush.bf16.msra.mxu0 %v3322
    %3732 = vmatpush.bf16.msra.mxu0 %v3318
    %3733 = vmatpush.bf16.msra.mxu0 %v3314
    %3734 = vmatpush.bf16.msra.mxu0 %v3310
    %3735 = vmatmul.bf16.gmra.mxu0 %v2113
    %v3736 = vpop.f32.mrf.mxu0
    %v3737 = vadd.f32 %v3724, %v3736
    %v3738 = vpop.f32.mrf.mxu0
    %3739 = vdwg.mxu0
    %3740 = vmatpush.bf16.msra.mxu0 %v3370
    %3741 = vmatpush.bf16.msra.mxu0 %v3366
    %3742 = vmatpush.bf16.msra.mxu0 %v3362
    %3743 = vmatpush.bf16.msra.mxu0 %v3358
    %3744 = vmatpush.bf16.msra.mxu0 %v3354
    %3745 = vmatpush.bf16.msra.mxu0 %v3350
    %3746 = vmatpush.bf16.msra.mxu0 %v3346
    %3747 = vmatpush.bf16.msra.mxu0 %v3342
    %3748 = vmatmul.bf16.gmra.mxu0 %v2114
    %v3749 = vpop.f32.mrf.mxu0
    %v3750 = vadd.f32 %v3737, %v3749
    %v3751 = vpop.f32.mrf.mxu0
    %3752 = vdwg.mxu0
    %3753 = vmatpush.bf16.msra.mxu0 %v3402
    %3754 = vmatpush.bf16.msra.mxu0 %v3398
    %3755 = vmatpush.bf16.msra.mxu0 %v3394
    %3756 = vmatpush.bf16.msra.mxu0 %v3390
    %3757 = vmatpush.bf16.msra.mxu0 %v3386
    %3758 = vmatpush.bf16.msra.mxu0 %v3382
    %3759 = vmatpush.bf16.msra.mxu0 %v3378
    %3760 = vmatpush.bf16.msra.mxu0 %v3374
    %3761 = vmatmul.bf16.gmra.mxu0 %v2115
    %v3762 = vpop.f32.mrf.mxu0
    %v3763 = vadd.f32 %v3750, %v3762
    %v3764 = vpop.f32.mrf.mxu0
    %3765 = vdwg.mxu0
    %3766 = vmatpush.bf16.msra.mxu0 %v3179
    %3767 = vmatpush.bf16.msra.mxu0 %v3175
    %3768 = vmatpush.bf16.msra.mxu0 %v3171
    %3769 = vmatpush.bf16.msra.mxu0 %v3167
    %3770 = vmatpush.bf16.msra.mxu0 %v3163
    %3771 = vmatpush.bf16.msra.mxu0 %v3159
    %3772 = vmatpush.bf16.msra.mxu0 %v3155
    %3773 = vmatpush.bf16.msra.mxu0 %v3151
    %3774 = vmatmul.bf16.gmra.mxu0 %v2108
    %v3775 = vpop.f32.mrf.mxu0
    %v3776 = vadd.f32 %v2375, %v3775
    %v3777 = vpop.f32.mrf.mxu0
    %3778 = vdwg.mxu0
    %3779 = vmatpush.bf16.msra.mxu0 %v3211
    %3780 = vmatpush.bf16.msra.mxu0 %v3207
    %3781 = vmatpush.bf16.msra.mxu0 %v3203
    %3782 = vmatpush.bf16.msra.mxu0 %v3199
    %3783 = vmatpush.bf16.msra.mxu0 %v3195
    %3784 = vmatpush.bf16.msra.mxu0 %v3191
    %3785 = vmatpush.bf16.msra.mxu0 %v3187
    %3786 = vmatpush.bf16.msra.mxu0 %v3183
    %3787 = vmatmul.bf16.gmra.mxu0 %v2109
    %v3788 = vpop.f32.mrf.mxu0
    %v3789 = vadd.f32 %v3776, %v3788
    %v3790 = vpop.f32.mrf.mxu0
    %3791 = vdwg.mxu0
    %3792 = vmatpush.bf16.msra.mxu0 %v3243
    %3793 = vmatpush.bf16.msra.mxu0 %v3239
    %3794 = vmatpush.bf16.msra.mxu0 %v3235
    %3795 = vmatpush.bf16.msra.mxu0 %v3231
    %3796 = vmatpush.bf16.msra.mxu0 %v3227
    %3797 = vmatpush.bf16.msra.mxu0 %v3223
    %3798 = vmatpush.bf16.msra.mxu0 %v3219
    %3799 = vmatpush.bf16.msra.mxu0 %v3215
    %3800 = vmatmul.bf16.gmra.mxu0 %v2110
    %v3801 = vpop.f32.mrf.mxu0
    %v3802 = vadd.f32 %v3789, %v3801
    %v3803 = vpop.f32.mrf.mxu0
    %3804 = vdwg.mxu0
    %3805 = vmatpush.bf16.msra.mxu0 %v3275
    %3806 = vmatpush.bf16.msra.mxu0 %v3271
    %3807 = vmatpush.bf16.msra.mxu0 %v3267
    %3808 = vmatpush.bf16.msra.mxu0 %v3263
    %3809 = vmatpush.bf16.msra.mxu0 %v3259
    %3810 = vmatpush.bf16.msra.mxu0 %v3255
    %3811 = vmatpush.bf16.msra.mxu0 %v3251
    %3812 = vmatpush.bf16.msra.mxu0 %v3247
    %3813 = vmatmul.bf16.gmra.mxu0 %v2111
    %v3814 = vpop.f32.mrf.mxu0
    %v3815 = vadd.f32 %v3802, %v3814
    %v3816 = vpop.f32.mrf.mxu0
    %3817 = vdwg.mxu0
    %3818 = vmatpush.bf16.msra.mxu0 %v3307
    %3819 = vmatpush.bf16.msra.mxu0 %v3303
    %3820 = vmatpush.bf16.msra.mxu0 %v3299
    %3821 = vmatpush.bf16.msra.mxu0 %v3295
    %3822 = vmatpush.bf16.msra.mxu0 %v3291
    %3823 = vmatpush.bf16.msra.mxu0 %v3287
    %3824 = vmatpush.bf16.msra.mxu0 %v3283
    %3825 = vmatpush.bf16.msra.mxu0 %v3279
    %3826 = vmatmul.bf16.gmra.mxu0 %v2112
    %v3827 = vpop.f32.mrf.mxu0
    %v3828 = vadd.f32 %v3815, %v3827
    %v3829 = vpop.f32.mrf.mxu0
    %3830 = vdwg.mxu0
    %3831 = vmatpush.bf16.msra.mxu0 %v3339
    %3832 = vmatpush.bf16.msra.mxu0 %v3335
    %3833 = vmatpush.bf16.msra.mxu0 %v3331
    %3834 = vmatpush.bf16.msra.mxu0 %v3327
    %3835 = vmatpush.bf16.msra.mxu0 %v3323
    %3836 = vmatpush.bf16.msra.mxu0 %v3319
    %3837 = vmatpush.bf16.msra.mxu0 %v3315
    %3838 = vmatpush.bf16.msra.mxu0 %v3311
    %3839 = vmatmul.bf16.gmra.mxu0 %v2113
    %v3840 = vpop.f32.mrf.mxu0
    %v3841 = vadd.f32 %v3828, %v3840
    %v3842 = vpop.f32.mrf.mxu0
    %3843 = vdwg.mxu0
    %3844 = vmatpush.bf16.msra.mxu0 %v3371
    %3845 = vmatpush.bf16.msra.mxu0 %v3367
    %3846 = vmatpush.bf16.msra.mxu0 %v3363
    %3847 = vmatpush.bf16.msra.mxu0 %v3359
    %3848 = vmatpush.bf16.msra.mxu0 %v3355
    %3849 = vmatpush.bf16.msra.mxu0 %v3351
    %3850 = vmatpush.bf16.msra.mxu0 %v3347
    %3851 = vmatpush.bf16.msra.mxu0 %v3343
    %3852 = vmatmul.bf16.gmra.mxu0 %v2114
    %v3853 = vpop.f32.mrf.mxu0
    %v3854 = vadd.f32 %v3841, %v3853
    %v3855 = vpop.f32.mrf.mxu0
    %3856 = vdwg.mxu0
    %3857 = vmatpush.bf16.msra.mxu0 %v3403
    %3858 = vmatpush.bf16.msra.mxu0 %v3399
    %3859 = vmatpush.bf16.msra.mxu0 %v3395
    %3860 = vmatpush.bf16.msra.mxu0 %v3391
    %3861 = vmatpush.bf16.msra.mxu0 %v3387
    %3862 = vmatpush.bf16.msra.mxu0 %v3383
    %3863 = vmatpush.bf16.msra.mxu0 %v3379
    %3864 = vmatpush.bf16.msra.mxu0 %v3375
    %3865 = vmatmul.bf16.gmra.mxu0 %v2115
    %v3866 = vpop.f32.mrf.mxu0
    %v3867 = vadd.f32 %v3854, %v3866
    %v3868 = vpop.f32.mrf.mxu0
    %3869 = vdwg.mxu0
    %3870 = vmatpush.bf16.msra.mxu0 %v3180
    %3871 = vmatpush.bf16.msra.mxu0 %v3176
    %3872 = vmatpush.bf16.msra.mxu0 %v3172
    %3873 = vmatpush.bf16.msra.mxu0 %v3168
    %3874 = vmatpush.bf16.msra.mxu0 %v3164
    %3875 = vmatpush.bf16.msra.mxu0 %v3160
    %3876 = vmatpush.bf16.msra.mxu0 %v3156
    %3877 = vmatpush.bf16.msra.mxu0 %v3152
    %3878 = vmatmul.bf16.gmra.mxu0 %v2108
    %v3879 = vpop.f32.mrf.mxu0
    %v3880 = vadd.f32 %v2376, %v3879
    %v3881 = vpop.f32.mrf.mxu0
    %3882 = vdwg.mxu0
    %3883 = vmatpush.bf16.msra.mxu0 %v3212
    %3884 = vmatpush.bf16.msra.mxu0 %v3208
    %3885 = vmatpush.bf16.msra.mxu0 %v3204
    %3886 = vmatpush.bf16.msra.mxu0 %v3200
    %3887 = vmatpush.bf16.msra.mxu0 %v3196
    %3888 = vmatpush.bf16.msra.mxu0 %v3192
    %3889 = vmatpush.bf16.msra.mxu0 %v3188
    %3890 = vmatpush.bf16.msra.mxu0 %v3184
    %3891 = vmatmul.bf16.gmra.mxu0 %v2109
    %v3892 = vpop.f32.mrf.mxu0
    %v3893 = vadd.f32 %v3880, %v3892
    %v3894 = vpop.f32.mrf.mxu0
    %3895 = vdwg.mxu0
    %3896 = vmatpush.bf16.msra.mxu0 %v3244
    %3897 = vmatpush.bf16.msra.mxu0 %v3240
    %3898 = vmatpush.bf16.msra.mxu0 %v3236
    %3899 = vmatpush.bf16.msra.mxu0 %v3232
    %3900 = vmatpush.bf16.msra.mxu0 %v3228
    %3901 = vmatpush.bf16.msra.mxu0 %v3224
    %3902 = vmatpush.bf16.msra.mxu0 %v3220
    %3903 = vmatpush.bf16.msra.mxu0 %v3216
    %3904 = vmatmul.bf16.gmra.mxu0 %v2110
    %v3905 = vpop.f32.mrf.mxu0
    %v3906 = vadd.f32 %v3893, %v3905
    %v3907 = vpop.f32.mrf.mxu0
    %3908 = vdwg.mxu0
    %3909 = vmatpush.bf16.msra.mxu0 %v3276
    %3910 = vmatpush.bf16.msra.mxu0 %v3272
    %3911 = vmatpush.bf16.msra.mxu0 %v3268
    %3912 = vmatpush.bf16.msra.mxu0 %v3264
    %3913 = vmatpush.bf16.msra.mxu0 %v3260
    %3914 = vmatpush.bf16.msra.mxu0 %v3256
    %3915 = vmatpush.bf16.msra.mxu0 %v3252
    %3916 = vmatpush.bf16.msra.mxu0 %v3248
    %3917 = vmatmul.bf16.gmra.mxu0 %v2111
    %v3918 = vpop.f32.mrf.mxu0
    %v3919 = vadd.f32 %v3906, %v3918
    %v3920 = vpop.f32.mrf.mxu0
    %3921 = vdwg.mxu0
    %3922 = vmatpush.bf16.msra.mxu0 %v3308
    %3923 = vmatpush.bf16.msra.mxu0 %v3304
    %3924 = vmatpush.bf16.msra.mxu0 %v3300
    %3925 = vmatpush.bf16.msra.mxu0 %v3296
    %3926 = vmatpush.bf16.msra.mxu0 %v3292
    %3927 = vmatpush.bf16.msra.mxu0 %v3288
    %3928 = vmatpush.bf16.msra.mxu0 %v3284
    %3929 = vmatpush.bf16.msra.mxu0 %v3280
    %3930 = vmatmul.bf16.gmra.mxu0 %v2112
    %v3931 = vpop.f32.mrf.mxu0
    %v3932 = vadd.f32 %v3919, %v3931
    %v3933 = vpop.f32.mrf.mxu0
    %3934 = vdwg.mxu0
    %3935 = vmatpush.bf16.msra.mxu0 %v3340
    %3936 = vmatpush.bf16.msra.mxu0 %v3336
    %3937 = vmatpush.bf16.msra.mxu0 %v3332
    %3938 = vmatpush.bf16.msra.mxu0 %v3328
    %3939 = vmatpush.bf16.msra.mxu0 %v3324
    %3940 = vmatpush.bf16.msra.mxu0 %v3320
    %3941 = vmatpush.bf16.msra.mxu0 %v3316
    %3942 = vmatpush.bf16.msra.mxu0 %v3312
    %3943 = vmatmul.bf16.gmra.mxu0 %v2113
    %v3944 = vpop.f32.mrf.mxu0
    %v3945 = vadd.f32 %v3932, %v3944
    %v3946 = vpop.f32.mrf.mxu0
    %3947 = vdwg.mxu0
    %3948 = vmatpush.bf16.msra.mxu0 %v3372
    %3949 = vmatpush.bf16.msra.mxu0 %v3368
    %3950 = vmatpush.bf16.msra.mxu0 %v3364
    %3951 = vmatpush.bf16.msra.mxu0 %v3360
    %3952 = vmatpush.bf16.msra.mxu0 %v3356
    %3953 = vmatpush.bf16.msra.mxu0 %v3352
    %3954 = vmatpush.bf16.msra.mxu0 %v3348
    %3955 = vmatpush.bf16.msra.mxu0 %v3344
    %3956 = vmatmul.bf16.gmra.mxu0 %v2114
    %v3957 = vpop.f32.mrf.mxu0
    %v3958 = vadd.f32 %v3945, %v3957
    %v3959 = vpop.f32.mrf.mxu0
    %3960 = vdwg.mxu0
    %3961 = vmatpush.bf16.msra.mxu0 %v3404
    %3962 = vmatpush.bf16.msra.mxu0 %v3400
    %3963 = vmatpush.bf16.msra.mxu0 %v3396
    %3964 = vmatpush.bf16.msra.mxu0 %v3392
    %3965 = vmatpush.bf16.msra.mxu0 %v3388
    %3966 = vmatpush.bf16.msra.mxu0 %v3384
    %3967 = vmatpush.bf16.msra.mxu0 %v3380
    %3968 = vmatpush.bf16.msra.mxu0 %v3376
    %3969 = vmatmul.bf16.gmra.mxu0 %v2115
    %v3970 = vpop.f32.mrf.mxu0
    %v3971 = vadd.f32 %v3958, %v3970
    %v3972 = vpop.f32.mrf.mxu0
    %3973 = vdwg.mxu0
    %3974 = vmatpush.bf16.msra.mxu0 %v3181
    %3975 = vmatpush.bf16.msra.mxu0 %v3177
    %3976 = vmatpush.bf16.msra.mxu0 %v3173
    %3977 = vmatpush.bf16.msra.mxu0 %v3169
    %3978 = vmatpush.bf16.msra.mxu0 %v3165
    %3979 = vmatpush.bf16.msra.mxu0 %v3161
    %3980 = vmatpush.bf16.msra.mxu0 %v3157
    %3981 = vmatpush.bf16.msra.mxu0 %v3153
    %3982 = vmatmul.bf16.gmra.mxu0 %v2108
    %v3983 = vpop.f32.mrf.mxu0
    %v3984 = vadd.f32 %v2377, %v3983
    %v3985 = vpop.f32.mrf.mxu0
    %3986 = vdwg.mxu0
    %3987 = vmatpush.bf16.msra.mxu0 %v3213
    %3988 = vmatpush.bf16.msra.mxu0 %v3209
    %3989 = vmatpush.bf16.msra.mxu0 %v3205
    %3990 = vmatpush.bf16.msra.mxu0 %v3201
    %3991 = vmatpush.bf16.msra.mxu0 %v3197
    %3992 = vmatpush.bf16.msra.mxu0 %v3193
    %3993 = vmatpush.bf16.msra.mxu0 %v3189
    %3994 = vmatpush.bf16.msra.mxu0 %v3185
    %3995 = vmatmul.bf16.gmra.mxu0 %v2109
    %v3996 = vpop.f32.mrf.mxu0
    %v3997 = vadd.f32 %v3984, %v3996
    %v3998 = vpop.f32.mrf.mxu0
    %3999 = vdwg.mxu0
    %4000 = vmatpush.bf16.msra.mxu0 %v3245
    %4001 = vmatpush.bf16.msra.mxu0 %v3241
    %4002 = vmatpush.bf16.msra.mxu0 %v3237
    %4003 = vmatpush.bf16.msra.mxu0 %v3233
    %4004 = vmatpush.bf16.msra.mxu0 %v3229
    %4005 = vmatpush.bf16.msra.mxu0 %v3225
    %4006 = vmatpush.bf16.msra.mxu0 %v3221
    %4007 = vmatpush.bf16.msra.mxu0 %v3217
    %4008 = vmatmul.bf16.gmra.mxu0 %v2110
    %v4009 = vpop.f32.mrf.mxu0
    %v4010 = vadd.f32 %v3997, %v4009
    %v4011 = vpop.f32.mrf.mxu0
    %4012 = vdwg.mxu0
    %4013 = vmatpush.bf16.msra.mxu0 %v3277
    %4014 = vmatpush.bf16.msra.mxu0 %v3273
    %4015 = vmatpush.bf16.msra.mxu0 %v3269
    %4016 = vmatpush.bf16.msra.mxu0 %v3265
    %4017 = vmatpush.bf16.msra.mxu0 %v3261
    %4018 = vmatpush.bf16.msra.mxu0 %v3257
    %4019 = vmatpush.bf16.msra.mxu0 %v3253
    %4020 = vmatpush.bf16.msra.mxu0 %v3249
    %4021 = vmatmul.bf16.gmra.mxu0 %v2111
    %v4022 = vpop.f32.mrf.mxu0
    %v4023 = vadd.f32 %v4010, %v4022
    %v4024 = vpop.f32.mrf.mxu0
    %4025 = vdwg.mxu0
    %4026 = vmatpush.bf16.msra.mxu0 %v3309
    %4027 = vmatpush.bf16.msra.mxu0 %v3305
    %4028 = vmatpush.bf16.msra.mxu0 %v3301
    %4029 = vmatpush.bf16.msra.mxu0 %v3297
    %4030 = vmatpush.bf16.msra.mxu0 %v3293
    %4031 = vmatpush.bf16.msra.mxu0 %v3289
    %4032 = vmatpush.bf16.msra.mxu0 %v3285
    %4033 = vmatpush.bf16.msra.mxu0 %v3281
    %4034 = vmatmul.bf16.gmra.mxu0 %v2112
    %v4035 = vpop.f32.mrf.mxu0
    %v4036 = vadd.f32 %v4023, %v4035
    %v4037 = vpop.f32.mrf.mxu0
    %4038 = vdwg.mxu0
    %4039 = vmatpush.bf16.msra.mxu0 %v3341
    %4040 = vmatpush.bf16.msra.mxu0 %v3337
    %4041 = vmatpush.bf16.msra.mxu0 %v3333
    %4042 = vmatpush.bf16.msra.mxu0 %v3329
    %4043 = vmatpush.bf16.msra.mxu0 %v3325
    %4044 = vmatpush.bf16.msra.mxu0 %v3321
    %4045 = vmatpush.bf16.msra.mxu0 %v3317
    %4046 = vmatpush.bf16.msra.mxu0 %v3313
    %4047 = vmatmul.bf16.gmra.mxu0 %v2113
    %v4048 = vpop.f32.mrf.mxu0
    %v4049 = vadd.f32 %v4036, %v4048
    %v4050 = vpop.f32.mrf.mxu0
    %4051 = vdwg.mxu0
    %4052 = vmatpush.bf16.msra.mxu0 %v3373
    %4053 = vmatpush.bf16.msra.mxu0 %v3369
    %4054 = vmatpush.bf16.msra.mxu0 %v3365
    %4055 = vmatpush.bf16.msra.mxu0 %v3361
    %4056 = vmatpush.bf16.msra.mxu0 %v3357
    %4057 = vmatpush.bf16.msra.mxu0 %v3353
    %4058 = vmatpush.bf16.msra.mxu0 %v3349
    %4059 = vmatpush.bf16.msra.mxu0 %v3345
    %4060 = vmatmul.bf16.gmra.mxu0 %v2114
    %v4061 = vpop.f32.mrf.mxu0
    %v4062 = vadd.f32 %v4049, %v4061
    %v4063 = vpop.f32.mrf.mxu0
    %4064 = vdwg.mxu0
    %4065 = vmatpush.bf16.msra.mxu0 %v3405
    %4066 = vmatpush.bf16.msra.mxu0 %v3401
    %4067 = vmatpush.bf16.msra.mxu0 %v3397
    %4068 = vmatpush.bf16.msra.mxu0 %v3393
    %4069 = vmatpush.bf16.msra.mxu0 %v3389
    %4070 = vmatpush.bf16.msra.mxu0 %v3385
    %4071 = vmatpush.bf16.msra.mxu0 %v3381
    %4072 = vmatpush.bf16.msra.mxu0 %v3377
    %4073 = vmatmul.bf16.gmra.mxu0 %v2115
    %v4074 = vpop.f32.mrf.mxu0
    %v4075 = vadd.f32 %v4062, %v4074
    %v4076 = vpop.f32.mrf.mxu0
    %4077 = vdwg.mxu0
    %v4078 = vmax.f32 %v3763, 0.0
    %v4079 = vmax.f32 %v3867, 0.0
    %v4080 = vmax.f32 %v3971, 0.0
    %v4081 = vmax.f32 %v4075, 0.0
    %v4082 = vpack.c.bf16 %v4078, %v4078
    %v4083 = vpack.c.bf16 %v4079, %v4079
    %v4084 = vpack.c.bf16 %v4080, %v4080
    %v4085 = vpack.c.bf16 %v4081, %v4081
    %v4086 = vld [vmem:[#allocation11] sm:$0xf]
    %v4087 = vld [vmem:[#allocation11 + $0x4] sm:$0xf]
    %v4088 = vld [vmem:[#allocation11 + $0x8] sm:$0xf]
    %v4089 = vld [vmem:[#allocation11 + $0xc] sm:$0xf]
    %v4090 = vld [vmem:[#allocation11 + $0x10] sm:$0xf]
    %v4091 = vld [vmem:[#allocation11 + $0x14] sm:$0xf]
    %v4092 = vld [vmem:[#allocation11 + $0x18] sm:$0xf]
    %v4093 = vld [vmem:[#allocation11 + $0x1c] sm:$0xf]
    %v4094 = vld [vmem:[#allocation11 + $0x20] sm:$0xf]
    %v4095 = vld [vmem:[#allocation11 + $0x24] sm:$0xf]
    %v4096 = vld [vmem:[#allocation11 + $0x28] sm:$0xf]
    %v4097 = vld [vmem:[#allocation11 + $0x2c] sm:$0xf]
    %v4098 = vld [vmem:[#allocation11 + $0x30] sm:$0xf]
    %v4099 = vld [vmem:[#allocation11 + $0x34] sm:$0xf]
    %v4100 = vld [vmem:[#allocation11 + $0x38] sm:$0xf]
    %v4101 = vld [vmem:[#allocation11 + $0x3c] sm:$0xf]
    %v4102 = vld [vmem:[#allocation11 + $0x40] sm:$0xf]
    %v4103 = vld [vmem:[#allocation11 + $0x44] sm:$0xf]
    %v4104 = vld [vmem:[#allocation11 + $0x48] sm:$0xf]
    %v4105 = vld [vmem:[#allocation11 + $0x4c] sm:$0xf]
    %v4106 = vld [vmem:[#allocation11 + $0x50] sm:$0xf]
    %v4107 = vld [vmem:[#allocation11 + $0x54] sm:$0xf]
    %v4108 = vld [vmem:[#allocation11 + $0x58] sm:$0xf]
    %v4109 = vld [vmem:[#allocation11 + $0x5c] sm:$0xf]
    %v4110 = vld [vmem:[#allocation11 + $0x60] sm:$0xf]
    %v4111 = vld [vmem:[#allocation11 + $0x64] sm:$0xf]
    %v4112 = vld [vmem:[#allocation11 + $0x68] sm:$0xf]
    %v4113 = vld [vmem:[#allocation11 + $0x6c] sm:$0xf]
    %v4114 = vld [vmem:[#allocation11 + $0x70] sm:$0xf]
    %v4115 = vld [vmem:[#allocation11 + $0x74] sm:$0xf]
    %v4116 = vld [vmem:[#allocation11 + $0x78] sm:$0xf]
    %v4117 = vld [vmem:[#allocation11 + $0x7c] sm:$0xf]
    %v4118 = vld [vmem:[#allocation11 + $0x80] sm:$0xf]
    %v4119 = vld [vmem:[#allocation11 + $0x84] sm:$0xf]
    %v4120 = vld [vmem:[#allocation11 + $0x88] sm:$0xf]
    %v4121 = vld [vmem:[#allocation11 + $0x8c] sm:$0xf]
    %v4122 = vld [vmem:[#allocation11 + $0x90] sm:$0xf]
    %v4123 = vld [vmem:[#allocation11 + $0x94] sm:$0xf]
    %v4124 = vld [vmem:[#allocation11 + $0x98] sm:$0xf]
    %v4125 = vld [vmem:[#allocation11 + $0x9c] sm:$0xf]
    %v4126 = vld [vmem:[#allocation11 + $0xa0] sm:$0xf]
    %v4127 = vld [vmem:[#allocation11 + $0xa4] sm:$0xf]
    %v4128 = vld [vmem:[#allocation11 + $0xa8] sm:$0xf]
    %v4129 = vld [vmem:[#allocation11 + $0xac] sm:$0xf]
    %v4130 = vld [vmem:[#allocation11 + $0xb0] sm:$0xf]
    %v4131 = vld [vmem:[#allocation11 + $0xb4] sm:$0xf]
    %v4132 = vld [vmem:[#allocation11 + $0xb8] sm:$0xf]
    %v4133 = vld [vmem:[#allocation11 + $0xbc] sm:$0xf]
    %v4134 = vld [vmem:[#allocation11 + $0xc0] sm:$0xf]
    %v4135 = vld [vmem:[#allocation11 + $0xc4] sm:$0xf]
    %v4136 = vld [vmem:[#allocation11 + $0xc8] sm:$0xf]
    %v4137 = vld [vmem:[#allocation11 + $0xcc] sm:$0xf]
    %v4138 = vld [vmem:[#allocation11 + $0xd0] sm:$0xf]
    %v4139 = vld [vmem:[#allocation11 + $0xd4] sm:$0xf]
    %v4140 = vld [vmem:[#allocation11 + $0xd8] sm:$0xf]
    %v4141 = vld [vmem:[#allocation11 + $0xdc] sm:$0xf]
    %v4142 = vld [vmem:[#allocation11 + $0xe0] sm:$0xf]
    %v4143 = vld [vmem:[#allocation11 + $0xe4] sm:$0xf]
    %v4144 = vld [vmem:[#allocation11 + $0xe8] sm:$0xf]
    %v4145 = vld [vmem:[#allocation11 + $0xec] sm:$0xf]
    %v4146 = vld [vmem:[#allocation11 + $0xf0] sm:$0xf]
    %v4147 = vld [vmem:[#allocation11 + $0xf4] sm:$0xf]
    %v4148 = vld [vmem:[#allocation11 + $0xf8] sm:$0xf]
    %v4149 = vld [vmem:[#allocation11 + $0xfc] sm:$0xf]
    %v4150 = vld [vmem:[%s6] sm:$0x1]
    %v4152 = vperm.slane %v4150, 0
    %v4218 = vunpack.c.l.b16 %v4086
    %v4219 = vunpack.c.l.b16 %v4087
    %v4220 = vunpack.c.l.b16 %v4088
    %v4221 = vunpack.c.l.b16 %v4089
    %v4222 = vunpack.c.l.b16 %v4090
    %v4223 = vunpack.c.l.b16 %v4091
    %v4224 = vunpack.c.l.b16 %v4092
    %v4225 = vunpack.c.l.b16 %v4093
    %v4226 = vunpack.c.l.b16 %v4094
    %v4227 = vunpack.c.l.b16 %v4095
    %v4228 = vunpack.c.l.b16 %v4096
    %v4229 = vunpack.c.l.b16 %v4097
    %v4230 = vunpack.c.l.b16 %v4098
    %v4231 = vunpack.c.l.b16 %v4099
    %v4232 = vunpack.c.l.b16 %v4100
    %v4233 = vunpack.c.l.b16 %v4101
    %v4234 = vunpack.c.l.b16 %v4102
    %v4235 = vunpack.c.l.b16 %v4103
    %v4236 = vunpack.c.l.b16 %v4104
    %v4237 = vunpack.c.l.b16 %v4105
    %v4238 = vunpack.c.l.b16 %v4106
    %v4239 = vunpack.c.l.b16 %v4107
    %v4240 = vunpack.c.l.b16 %v4108
    %v4241 = vunpack.c.l.b16 %v4109
    %v4242 = vunpack.c.l.b16 %v4110
    %v4243 = vunpack.c.l.b16 %v4111
    %v4244 = vunpack.c.l.b16 %v4112
    %v4245 = vunpack.c.l.b16 %v4113
    %v4246 = vunpack.c.l.b16 %v4114
    %v4247 = vunpack.c.l.b16 %v4115
    %v4248 = vunpack.c.l.b16 %v4116
    %v4249 = vunpack.c.l.b16 %v4117
    %v4250 = vunpack.c.l.b16 %v4118
    %v4251 = vunpack.c.l.b16 %v4119
    %v4252 = vunpack.c.l.b16 %v4120
    %v4253 = vunpack.c.l.b16 %v4121
    %v4254 = vunpack.c.l.b16 %v4122
    %v4255 = vunpack.c.l.b16 %v4123
    %v4256 = vunpack.c.l.b16 %v4124
    %v4257 = vunpack.c.l.b16 %v4125
    %v4258 = vunpack.c.l.b16 %v4126
    %v4259 = vunpack.c.l.b16 %v4127
    %v4260 = vunpack.c.l.b16 %v4128
    %v4261 = vunpack.c.l.b16 %v4129
    %v4262 = vunpack.c.l.b16 %v4130
    %v4263 = vunpack.c.l.b16 %v4131
    %v4264 = vunpack.c.l.b16 %v4132
    %v4265 = vunpack.c.l.b16 %v4133
    %v4266 = vunpack.c.l.b16 %v4134
    %v4267 = vunpack.c.l.b16 %v4135
    %v4268 = vunpack.c.l.b16 %v4136
    %v4269 = vunpack.c.l.b16 %v4137
    %v4270 = vunpack.c.l.b16 %v4138
    %v4271 = vunpack.c.l.b16 %v4139
    %v4272 = vunpack.c.l.b16 %v4140
    %v4273 = vunpack.c.l.b16 %v4141
    %v4274 = vunpack.c.l.b16 %v4142
    %v4275 = vunpack.c.l.b16 %v4143
    %v4276 = vunpack.c.l.b16 %v4144
    %v4277 = vunpack.c.l.b16 %v4145
    %v4278 = vunpack.c.l.b16 %v4146
    %v4279 = vunpack.c.l.b16 %v4147
    %v4280 = vunpack.c.l.b16 %v4148
    %v4281 = vunpack.c.l.b16 %v4149
    %v4282 = vpack.c.b16 %v4219, %v4218
    %v4283 = vpack.c.b16 %v4221, %v4220
    %v4284 = vpack.c.b16 %v4223, %v4222
    %v4285 = vpack.c.b16 %v4225, %v4224
    %v4286 = vpack.c.b16 %v4227, %v4226
    %v4287 = vpack.c.b16 %v4229, %v4228
    %v4288 = vpack.c.b16 %v4231, %v4230
    %v4289 = vpack.c.b16 %v4233, %v4232
    %v4290 = vpack.c.b16 %v4235, %v4234
    %v4291 = vpack.c.b16 %v4237, %v4236
    %v4292 = vpack.c.b16 %v4239, %v4238
    %v4293 = vpack.c.b16 %v4241, %v4240
    %v4294 = vpack.c.b16 %v4243, %v4242
    %v4295 = vpack.c.b16 %v4245, %v4244
    %v4296 = vpack.c.b16 %v4247, %v4246
    %v4297 = vpack.c.b16 %v4249, %v4248
    %v4298 = vpack.c.b16 %v4251, %v4250
    %v4299 = vpack.c.b16 %v4253, %v4252
    %v4300 = vpack.c.b16 %v4255, %v4254
    %v4301 = vpack.c.b16 %v4257, %v4256
    %v4302 = vpack.c.b16 %v4259, %v4258
    %v4303 = vpack.c.b16 %v4261, %v4260
    %v4304 = vpack.c.b16 %v4263, %v4262
    %v4305 = vpack.c.b16 %v4265, %v4264
    %v4306 = vpack.c.b16 %v4267, %v4266
    %v4307 = vpack.c.b16 %v4269, %v4268
    %v4308 = vpack.c.b16 %v4271, %v4270
    %v4309 = vpack.c.b16 %v4273, %v4272
    %v4310 = vpack.c.b16 %v4275, %v4274
    %v4311 = vpack.c.b16 %v4277, %v4276
    %v4312 = vpack.c.b16 %v4279, %v4278
    %v4313 = vpack.c.b16 %v4281, %v4280
    %4346 = vmatpush.bf16.msra.mxu0 %v4289
    %4347 = vmatpush.bf16.msra.mxu0 %v4288
    %4348 = vmatpush.bf16.msra.mxu0 %v4287
    %4349 = vmatpush.bf16.msra.mxu0 %v4286
    %4350 = vmatpush.bf16.msra.mxu0 %v4285
    %4351 = vmatpush.bf16.msra.mxu0 %v4284
    %4352 = vmatpush.bf16.msra.mxu0 %v4283
    %4353 = vmatpush.bf16.msra.mxu0 %v4282
    %4354 = vmatmul.bf16.gmra.mxu0 %v4082
    %v4355 = vpop.f32.mrf.mxu0
    %v4356 = vadd.f32 %v4152, %v4355
    %v4357 = vpop.f32.mrf.mxu0
    %4358 = vdwg.mxu0
    %4359 = vmatpush.bf16.msra.mxu0 %v4297
    %4360 = vmatpush.bf16.msra.mxu0 %v4296
    %4361 = vmatpush.bf16.msra.mxu0 %v4295
    %4362 = vmatpush.bf16.msra.mxu0 %v4294
    %4363 = vmatpush.bf16.msra.mxu0 %v4293
    %4364 = vmatpush.bf16.msra.mxu0 %v4292
    %4365 = vmatpush.bf16.msra.mxu0 %v4291
    %4366 = vmatpush.bf16.msra.mxu0 %v4290
    %4367 = vmatmul.bf16.gmra.mxu0 %v4083
    %v4368 = vpop.f32.mrf.mxu0
    %v4369 = vadd.f32 %v4356, %v4368
    %v4370 = vpop.f32.mrf.mxu0
    %4371 = vdwg.mxu0
    %4372 = vmatpush.bf16.msra.mxu0 %v4305
    %4373 = vmatpush.bf16.msra.mxu0 %v4304
    %4374 = vmatpush.bf16.msra.mxu0 %v4303
    %4375 = vmatpush.bf16.msra.mxu0 %v4302
    %4376 = vmatpush.bf16.msra.mxu0 %v4301
    %4377 = vmatpush.bf16.msra.mxu0 %v4300
    %4378 = vmatpush.bf16.msra.mxu0 %v4299
    %4379 = vmatpush.bf16.msra.mxu0 %v4298
    %4380 = vmatmul.bf16.gmra.mxu0 %v4084
    %v4381 = vpop.f32.mrf.mxu0
    %v4382 = vadd.f32 %v4369, %v4381
    %v4383 = vpop.f32.mrf.mxu0
    %4384 = vdwg.mxu0
    %4385 = vmatpush.bf16.msra.mxu0 %v4313
    %4386 = vmatpush.bf16.msra.mxu0 %v4312
    %4387 = vmatpush.bf16.msra.mxu0 %v4311
    %4388 = vmatpush.bf16.msra.mxu0 %v4310
    %4389 = vmatpush.bf16.msra.mxu0 %v4309
    %4390 = vmatpush.bf16.msra.mxu0 %v4308
    %4391 = vmatpush.bf16.msra.mxu0 %v4307
    %4392 = vmatpush.bf16.msra.mxu0 %v4306
    %4393 = vmatmul.bf16.gmra.mxu0 %v4085
    %v4394 = vpop.f32.mrf.mxu0
    %v4395 = vadd.f32 %v4382, %v4394
    %v4396 = vpop.f32.mrf.mxu0
    %4397 = vdwg.mxu0
    %4398 = vst [vmem:[#allocation13] sm:$0x3] %v4395
    // Predicated region
    $region54: #{tpu_custom_call.1} parent=1 // pred_check
      _
    $region55: #{tpu_custom_call.1} parent=1 // pred_check_branch
      %4400 = sbr.rel (0) target = $region57
    $region56: #{tpu_custom_call.1} parent=1 // pred_region
      %4402 = vsyncadd [#allocation4], 0
      %s4404 = sshll.u32 [#allocation13], 4
      %s4405 = int_to_ptr.vmem [resolvable:$true] %s4404
      %s4406 = sshll.u32 %s7, 4
      %s4407 = int_to_ptr.hbm [resolvable:$true] %s4406
      %4409 = dma.vmem_to_hbm [thread:$0]  %s4405, 32, %s4407, [#allocation4]
    $region57: #{tpu_custom_call.1} parent=1 // pred_fallthru
      _
    // Predicated region
    $region58: #{tpu_custom_call.1} parent=1 // pred_check
      _
    $region59: #{tpu_custom_call.1} parent=1 // pred_check_branch
      %4411 = sbr.rel (0) target = $region61
    $region60: #{tpu_custom_call.1} parent=1 // pred_region
      %4413 = dma.done [#allocation4], 32
    $region61: #{tpu_custom_call.1} parent=1 // pred_fallthru
      _
    %4414 = vsyncpa [#allocation3], 1
    %4415 = vsyncpa [#allocation6], 1
    %4416 = vsyncpa [#allocation9], 1
    %4417 = vsyncpa [#allocation12], 1
    %4418 = vsyncpa [#allocation4], 1

</llo_original>
